<compile_context>
chip_gen: v5e
topology: v5e:2x2
jax: 0.10.0
libtpu: 0.0.40
codegen_flags: <defaults>
</compile_context>

<pallas_src>
import functools

import jax
import jax.numpy as jnp
from jax.experimental import pallas as pl
from jax.experimental.pallas import tpu as pltpu


# ------------------------------ Pallas kernels ------------------------------
def _matmul_bias_relu_kernel(x_ref, w_ref, b_ref, o_ref):
    """o = relu(x @ w + b).  x: f32 (cast to bf16 for MXU), w: bf16, b/o: f32."""
    x = x_ref[...].astype(jnp.bfloat16)
    acc = jnp.dot(x, w_ref[...], preferred_element_type=jnp.float32)
    o_ref[...] = jnp.maximum(acc + b_ref[...], 0.0)


def _dueling_head_kernel(x_ref, w1_ref, b1_ref, w2_ref, b2_ref, o_ref, *, num_actions):
    """Fused dueling head.

    w1 = [fc1_adv | fc1_val]          -> one [2304, 1024] matmul
    w2 = block-diag(fc2_adv, fc2_val) -> one [1024, A+1] matmul
    out = val + adv - adv.mean(axis=1, keepdims=True)
    """
    x = x_ref[...].astype(jnp.bfloat16)
    h = jnp.dot(x, w1_ref[...], preferred_element_type=jnp.float32) + b1_ref[...]
    h = jnp.maximum(h, 0.0)                                            # [B, 1024] f32
    y = jnp.dot(h.astype(jnp.bfloat16), w2_ref[...],
                preferred_element_type=jnp.float32) + b2_ref[...]      # [B, A+1]
    adv = y[:, :num_actions]                                           # [B, A]
    val = y[:, num_actions:num_actions + 1]                            # [B, 1]
    o_ref[...] = val + adv - jnp.mean(adv, axis=1, keepdims=True)


_VMEM = pl.BlockSpec(memory_space=pltpu.MemorySpace.VMEM)


def _matmul_bias_relu(x, w_bf16, b):
    m = x.shape[0]
    n = w_bf16.shape[1]
    return pl.pallas_call(
        _matmul_bias_relu_kernel,
        out_shape=jax.ShapeDtypeStruct((m, n), jnp.float32),
        in_specs=[_VMEM] * 3,
        out_specs=_VMEM,
    )(x, w_bf16, b)


def _dueling_head(x, w1, b1, w2, b2, num_actions):
    batch = x.shape[0]
    return pl.pallas_call(
        functools.partial(_dueling_head_kernel, num_actions=num_actions),
        out_shape=jax.ShapeDtypeStruct((batch, num_actions), jnp.float32),
        in_specs=[_VMEM] * 5,
        out_specs=_VMEM,
    )(x, w1, b1, w2, b2)


# --------------------------- wrapper (forward pass) --------------------------
def _im2col(x_nhwc, kh, kw, stride):
    """[B,H,W,C] -> patches [B*OH*OW, kh*kw*C] (rows (b,oy,ox), cols (dy,dx,c))."""
    b, h, w, c = x_nhwc.shape
    oh = (h - kh) // stride + 1
    ow = (w - kw) // stride + 1
    cols = []
    for dy in range(kh):
        for dx in range(kw):
            cols.append(x_nhwc[:, dy:dy + (oh - 1) * stride + 1:stride,
                               dx:dx + (ow - 1) * stride + 1:stride, :])
    patches = jnp.concatenate(cols, axis=-1)            # [B, OH, OW, kh*kw*C]
    return patches.reshape(b * oh * ow, kh * kw * c), oh, ow


def dueling_dqn_forward(x_nchw, params, num_actions):
    (w1c, b1c, w2c, b2c, w3c, b3c, wf1, bf1, wf2, bf2) = params
    batch = x_nchw.shape[0]
    x = jnp.transpose(x_nchw, (0, 2, 3, 1))             # NHWC

    # conv1: 7x7 stride 3
    p, oh, ow = _im2col(x, 7, 7, 3)
    x = _matmul_bias_relu(p, w1c, b1c).reshape(batch, oh, ow, 32)
    # conv2: 5x5 stride 2
    p, oh, ow = _im2col(x, 5, 5, 2)
    x = _matmul_bias_relu(p, w2c, b2c).reshape(batch, oh, ow, 64)
    # conv3: 3x3 stride 1
    p, oh, ow = _im2col(x, 3, 3, 1)
    x = _matmul_bias_relu(p, w3c, b3c).reshape(batch, oh, ow, 64)

    # flatten in PyTorch NCHW order (c, h, w)
    flat = jnp.transpose(x, (0, 3, 1, 2)).reshape(batch, -1)   # [B, 2304]

    return _dueling_head(flat, wf1, bf1, wf2, bf2, num_actions)


# --------------------------- parameter construction --------------------------
def make_torch_params(key, in_channels, num_actions):
    """PyTorch-layout params (W:[out,in,...], b:[out]) with nn-default uniform init."""
    keys = jax.random.split(key, 14)

    def uni(k, shape, fan_in):
        bound = 1.0 / float(fan_in) ** 0.5
        return jax.random.uniform(k, shape, minval=-bound, maxval=bound,
                                  dtype=jnp.float32)

    w_c1 = uni(keys[0], (32, in_channels, 7, 7), in_channels * 49)
    b_c1 = uni(keys[1], (32,), in_channels * 49)
    w_c2 = uni(keys[2], (64, 32, 5, 5), 32 * 25)
    b_c2 = uni(keys[3], (64,), 32 * 25)
    w_c3 = uni(keys[4], (64, 64, 3, 3), 64 * 9)
    b_c3 = uni(keys[5], (64,), 64 * 9)
    w_fa1 = uni(keys[6], (512, 2304), 2304)
    b_fa1 = uni(keys[7], (512,), 2304)
    w_fv1 = uni(keys[8], (512, 2304), 2304)
    b_fv1 = uni(keys[9], (512,), 2304)
    w_fa2 = uni(keys[10], (num_actions, 512), 512)
    b_fa2 = uni(keys[11], (num_actions,), 512)
    w_fv2 = uni(keys[12], (1, 512), 512)
    b_fv2 = uni(keys[13], (1,), 512)
    return (w_c1, b_c1, w_c2, b_c2, w_c3, b_c3,
            w_fa1, b_fa1, w_fv1, b_fv1, w_fa2, b_fa2, w_fv2, b_fv2)


def prep_kernel_params(tp, num_actions):
    """Kernel-format params: bf16 [in,out] matmul weights, f32 [1,out] biases, fused FC."""
    (w_c1, b_c1, w_c2, b_c2, w_c3, b_c3,
     w_fa1, b_fa1, w_fv1, b_fv1, w_fa2, b_fa2, w_fv2, b_fv2) = tp

    def conv_mat(w):  # [O,I,KH,KW] -> [(KH*KW*I), O], rows ordered (dy, dx, cin)
        return jnp.transpose(w, (2, 3, 1, 0)).reshape(-1, w.shape[0]).astype(jnp.bfloat16)

    w1c, b1c = conv_mat(w_c1), b_c1.reshape(1, -1)
    w2c, b2c = conv_mat(w_c2), b_c2.reshape(1, -1)
    w3c, b3c = conv_mat(w_c3), b_c3.reshape(1, -1)

    # fused fc1: [2304, 1024] = [adv | val]
    wf1 = jnp.concatenate([w_fa1.T, w_fv1.T], axis=1).astype(jnp.bfloat16)
    bf1 = jnp.concatenate([b_fa1, b_fv1]).reshape(1, -1)

    # fused fc2 (block-diagonal): [1024, A+1]; cols 0:A <- fc2_adv, col A <- fc2_val
    a = num_actions
    wf2 = jnp.zeros((1024, a + 1), jnp.float32)
    wf2 = wf2.at[:512, :a].set(w_fa2.T)
    wf2 = wf2.at[512:, a].set(w_fv2[0, :])
    wf2 = wf2.astype(jnp.bfloat16)
    bf2 = jnp.concatenate([b_fa2, b_fv2]).reshape(1, -1)

    return (w1c, b1c, w2c, b2c, w3c, b3c, wf1, bf1, wf2, bf2)


# --------------------------------- reference ---------------------------------
def reference_forward(x_nchw, tp, num_actions):
    """Plain-JAX reference with matched bf16-weight / f32-accumulation numerics."""
    (w_c1, b_c1, w_c2, b_c2, w_c3, b_c3,
     w_fa1, b_fa1, w_fv1, b_fv1, w_fa2, b_fa2, w_fv2, b_fv2) = tp

    def conv(x, w, b, stride):
        y = jax.lax.conv_general_dilated(
            x.astype(jnp.bfloat16), w.astype(jnp.bfloat16),
            window_strides=(stride, stride), padding="VALID",
            dimension_numbers=("NCHW", "OIHW", "NCHW"),
            preferred_element_type=jnp.float32)
        return jnp.maximum(y + b.reshape(1, -1, 1, 1), 0.0)

    x = conv(x_nchw, w_c1, b_c1, 3)
    x = conv(x, w_c2, b_c2, 2)
    x = conv(x, w_c3, b_c3, 1)
    flat = x.reshape(x.shape[0], -1)

    def linear(aa, w, b):
        return jnp.dot(aa.astype(jnp.bfloat16), w.astype(jnp.bfloat16).T,
                       preferred_element_type=jnp.float32) + b

    adv = jnp.maximum(linear(flat, w_fa1, b_fa1), 0.0)
    val = jnp.maximum(linear(flat, w_fv1, b_fv1), 0.0)
    adv = linear(adv, w_fa2, b_fa2)
    val = linear(val, w_fv2, b_fv2)
    return val + adv - jnp.mean(adv, axis=1, keepdims=True)


# ----------------------------------- main ------------------------------------
if __name__ == "__main__":
    key = jax.random.PRNGKey(0)
    k_params, k_x = jax.random.split(key)

    batch = 2
    in_channels = 4
    num_actions = 6
    spatial = 64  # 64 -> conv1 20 -> conv2 8 -> conv3 6  => 6*6*64 = 2304 (fc1 in_features)

    torch_params = make_torch_params(k_params, in_channels, num_actions)
    kernel_params = prep_kernel_params(torch_params, num_actions)

    x = jax.random.normal(k_x, (batch, in_channels, spatial, spatial), dtype=jnp.float32)

    fwd = jax.jit(dueling_dqn_forward, static_argnums=2)
    out = fwd(x, kernel_params, num_actions)
    out = jax.block_until_ready(out)

    ref = reference_forward(x, torch_params, num_actions)
    assert out.shape == (batch, num_actions), out.shape
    assert jnp.allclose(out, ref, atol=2e-3, rtol=2e-3), (out, ref)

    print("KERNEL_OK")
</pallas_src>

<mosaic_0001>
module attributes {stable_mosaic.version = 11 : i64} {
  func.func @_matmul_bias_relu_kernel(%arg0: memref<800x196xf32, #tpu.memory_space<vmem>>, %arg1: memref<196x32xbf16, #tpu.memory_space<vmem>>, %arg2: memref<1x32xf32, #tpu.memory_space<vmem>>, %arg3: memref<800x32xf32, #tpu.memory_space<vmem>>) attributes {dimension_semantics = [], scalar_prefetch = 0 : i64, scratch_operands = 0 : i64, tpu.core_type = #tpu.core_type<tc>} {
    %c0 = arith.constant 0 : index
    %c0_0 = arith.constant 0 : index
    %0 = vector.load %arg0[%c0, %c0_0] : memref<800x196xf32, #tpu.memory_space<vmem>>, vector<800x196xf32>
    %1 = arith.truncf %0 : vector<800x196xf32> to vector<800x196xbf16>
    %c0_1 = arith.constant 0 : index
    %c0_2 = arith.constant 0 : index
    %2 = vector.load %arg1[%c0_1, %c0_2] : memref<196x32xbf16, #tpu.memory_space<vmem>>, vector<196x32xbf16>
    %cst = arith.constant dense<0.000000e+00> : vector<800x32xf32>
    %3 = tpu.matmul %1, %2, %cst {dimension_numbers = #tpu.dot_dimension_numbers<[1], [0], [0], [1], [0, 0, 1, 1], [], []>} : vector<800x196xbf16>, vector<196x32xbf16>, vector<800x32xf32> -> vector<800x32xf32>
    %c0_3 = arith.constant 0 : index
    %c0_4 = arith.constant 0 : index
    %4 = vector.load %arg2[%c0_3, %c0_4] : memref<1x32xf32, #tpu.memory_space<vmem>>, vector<1x32xf32>
    %5 = vector.broadcast %4 : vector<1x32xf32> to vector<800x32xf32>
    %6 = arith.addf %3, %5 : vector<800x32xf32>
    %cst_5 = arith.constant 0.000000e+00 : f32
    %7 = vector.broadcast %cst_5 : f32 to vector<800x32xf32>
    %8 = arith.maximumf %6, %7 : vector<800x32xf32>
    %c0_6 = arith.constant 0 : index
    %c0_7 = arith.constant 0 : index
    %9 = vector.load %arg3[%c0_6, %c0_7] : memref<800x32xf32, #tpu.memory_space<vmem>>, vector<800x32xf32>
    tpu.vector_store %arg3[%c0_6, %c0_7], %8 {strides = array<i32>} : memref<800x32xf32, #tpu.memory_space<vmem>>, vector<800x32xf32>,
    return
  }
}

module attributes {stable_mosaic.version = 11 : i64} {
  func.func @_matmul_bias_relu_kernel(%arg0: memref<128x800xf32, #tpu.memory_space<vmem>>, %arg1: memref<800x64xbf16, #tpu.memory_space<vmem>>, %arg2: memref<1x64xf32, #tpu.memory_space<vmem>>, %arg3: memref<128x64xf32, #tpu.memory_space<vmem>>) attributes {dimension_semantics = [], scalar_prefetch = 0 : i64, scratch_operands = 0 : i64, tpu.core_type = #tpu.core_type<tc>} {
    %c0 = arith.constant 0 : index
    %c0_0 = arith.constant 0 : index
    %0 = vector.load %arg0[%c0, %c0_0] : memref<128x800xf32, #tpu.memory_space<vmem>>, vector<128x800xf32>
    %1 = arith.truncf %0 : vector<128x800xf32> to vector<128x800xbf16>
    %c0_1 = arith.constant 0 : index
    %c0_2 = arith.constant 0 : index
    %2 = vector.load %arg1[%c0_1, %c0_2] : memref<800x64xbf16, #tpu.memory_space<vmem>>, vector<800x64xbf16>
    %cst = arith.constant dense<0.000000e+00> : vector<128x64xf32>
    %3 = tpu.matmul %1, %2, %cst {dimension_numbers = #tpu.dot_dimension_numbers<[1], [0], [0], [1], [0, 0, 1, 1], [], []>} : vector<128x800xbf16>, vector<800x64xbf16>, vector<128x64xf32> -> vector<128x64xf32>
    %c0_3 = arith.constant 0 : index
    %c0_4 = arith.constant 0 : index
    %4 = vector.load %arg2[%c0_3, %c0_4] : memref<1x64xf32, #tpu.memory_space<vmem>>, vector<1x64xf32>
    %5 = vector.broadcast %4 : vector<1x64xf32> to vector<128x64xf32>
    %6 = arith.addf %3, %5 : vector<128x64xf32>
    %cst_5 = arith.constant 0.000000e+00 : f32
    %7 = vector.broadcast %cst_5 : f32 to vector<128x64xf32>
    %8 = arith.maximumf %6, %7 : vector<128x64xf32>
    %c0_6 = arith.constant 0 : index
    %c0_7 = arith.constant 0 : index
    %9 = vector.load %arg3[%c0_6, %c0_7] : memref<128x64xf32, #tpu.memory_space<vmem>>, vector<128x64xf32>
    tpu.vector_store %arg3[%c0_6, %c0_7], %8 {strides = array<i32>} : memref<128x64xf32, #tpu.memory_space<vmem>>, vector<128x64xf32>,
    return
  }
}

module attributes {stable_mosaic.version = 11 : i64} {
  func.func @_matmul_bias_relu_kernel(%arg0: memref<72x576xf32, #tpu.memory_space<vmem>>, %arg1: memref<576x64xbf16, #tpu.memory_space<vmem>>, %arg2: memref<1x64xf32, #tpu.memory_space<vmem>>, %arg3: memref<72x64xf32, #tpu.memory_space<vmem>>) attributes {dimension_semantics = [], scalar_prefetch = 0 : i64, scratch_operands = 0 : i64, tpu.core_type = #tpu.core_type<tc>} {
    %c0 = arith.constant 0 : index
    %c0_0 = arith.constant 0 : index
    %0 = vector.load %arg0[%c0, %c0_0] : memref<72x576xf32, #tpu.memory_space<vmem>>, vector<72x576xf32>
    %1 = arith.truncf %0 : vector<72x576xf32> to vector<72x576xbf16>
    %c0_1 = arith.constant 0 : index
    %c0_2 = arith.constant 0 : index
    %2 = vector.load %arg1[%c0_1, %c0_2] : memref<576x64xbf16, #tpu.memory_space<vmem>>, vector<576x64xbf16>
    %cst = arith.constant dense<0.000000e+00> : vector<72x64xf32>
    %3 = tpu.matmul %1, %2, %cst {dimension_numbers = #tpu.dot_dimension_numbers<[1], [0], [0], [1], [0, 0, 1, 1], [], []>} : vector<72x576xbf16>, vector<576x64xbf16>, vector<72x64xf32> -> vector<72x64xf32>
    %c0_3 = arith.constant 0 : index
    %c0_4 = arith.constant 0 : index
    %4 = vector.load %arg2[%c0_3, %c0_4] : memref<1x64xf32, #tpu.memory_space<vmem>>, vector<1x64xf32>
    %5 = vector.broadcast %4 : vector<1x64xf32> to vector<72x64xf32>
    %6 = arith.addf %3, %5 : vector<72x64xf32>
    %cst_5 = arith.constant 0.000000e+00 : f32
    %7 = vector.broadcast %cst_5 : f32 to vector<72x64xf32>
    %8 = arith.maximumf %6, %7 : vector<72x64xf32>
    %c0_6 = arith.constant 0 : index
    %c0_7 = arith.constant 0 : index
    %9 = vector.load %arg3[%c0_6, %c0_7] : memref<72x64xf32, #tpu.memory_space<vmem>>, vector<72x64xf32>
    tpu.vector_store %arg3[%c0_6, %c0_7], %8 {strides = array<i32>} : memref<72x64xf32, #tpu.memory_space<vmem>>, vector<72x64xf32>,
    return
  }
}

module attributes {stable_mosaic.version = 11 : i64} {
  func.func @_dueling_head_kernel(%arg0: memref<2x2304xf32, #tpu.memory_space<vmem>>, %arg1: memref<2304x1024xbf16, #tpu.memory_space<vmem>>, %arg2: memref<1x1024xf32, #tpu.memory_space<vmem>>, %arg3: memref<1024x7xbf16, #tpu.memory_space<vmem>>, %arg4: memref<1x7xf32, #tpu.memory_space<vmem>>, %arg5: memref<2x6xf32, #tpu.memory_space<vmem>>) attributes {dimension_semantics = [], scalar_prefetch = 0 : i64, scratch_operands = 0 : i64, tpu.core_type = #tpu.core_type<tc>} {
    %c0 = arith.constant 0 : index
    %c0_0 = arith.constant 0 : index
    %0 = vector.load %arg0[%c0, %c0_0] : memref<2x2304xf32, #tpu.memory_space<vmem>>, vector<2x2304xf32>
    %1 = arith.truncf %0 : vector<2x2304xf32> to vector<2x2304xbf16>
    %c0_1 = arith.constant 0 : index
    %c0_2 = arith.constant 0 : index
    %2 = vector.load %arg1[%c0_1, %c0_2] : memref<2304x1024xbf16, #tpu.memory_space<vmem>>, vector<2304x1024xbf16>
    %cst = arith.constant dense<0.000000e+00> : vector<2x1024xf32>
    %3 = tpu.matmul %1, %2, %cst {dimension_numbers = #tpu.dot_dimension_numbers<[1], [0], [0], [1], [0, 0, 1, 1], [], []>} : vector<2x2304xbf16>, vector<2304x1024xbf16>, vector<2x1024xf32> -> vector<2x1024xf32>
    %c0_3 = arith.constant 0 : index
    %c0_4 = arith.constant 0 : index
    %4 = vector.load %arg2[%c0_3, %c0_4] : memref<1x1024xf32, #tpu.memory_space<vmem>>, vector<1x1024xf32>
    %5 = vector.broadcast %4 : vector<1x1024xf32> to vector<2x1024xf32>
    %6 = arith.addf %3, %5 : vector<2x1024xf32>
    %cst_5 = arith.constant 0.000000e+00 : f32
    %7 = vector.broadcast %cst_5 : f32 to vector<2x1024xf32>
    %8 = arith.maximumf %6, %7 : vector<2x1024xf32>
    %9 = arith.truncf %8 : vector<2x1024xf32> to vector<2x1024xbf16>
    %c0_6 = arith.constant 0 : index
    %c0_7 = arith.constant 0 : index
    %10 = vector.load %arg3[%c0_6, %c0_7] : memref<1024x7xbf16, #tpu.memory_space<vmem>>, vector<1024x7xbf16>
    %cst_8 = arith.constant dense<0.000000e+00> : vector<2x7xf32>
    %11 = tpu.matmul %9, %10, %cst_8 {dimension_numbers = #tpu.dot_dimension_numbers<[1], [0], [0], [1], [0, 0, 1, 1], [], []>} : vector<2x1024xbf16>, vector<1024x7xbf16>, vector<2x7xf32> -> vector<2x7xf32>
    %c0_9 = arith.constant 0 : index
    %c0_10 = arith.constant 0 : index
    %12 = vector.load %arg4[%c0_9, %c0_10] : memref<1x7xf32, #tpu.memory_space<vmem>>, vector<1x7xf32>
    %13 = vector.broadcast %12 : vector<1x7xf32> to vector<2x7xf32>
    %14 = arith.addf %11, %13 : vector<2x7xf32>
    %15 = vector.extract_strided_slice %14 {offsets = [0, 0], sizes = [2, 6], strides = [1, 1]} : vector<2x7xf32> to vector<2x6xf32>
    %16 = vector.extract_strided_slice %14 {offsets = [0, 6], sizes = [2, 1], strides = [1, 1]} : vector<2x7xf32> to vector<2x1xf32>
    %17 = vector.broadcast %16 : vector<2x1xf32> to vector<2x6xf32>
    %18 = arith.addf %17, %15 : vector<2x6xf32>
    %cst_11 = arith.constant dense<0.000000e+00> : vector<2xf32>
    %19 = vector.multi_reduction <add>, %15, %cst_11 [1] : vector<2x6xf32> to vector<2xf32>
    %20 = vector.shape_cast %19 : vector<2xf32> to vector<2x1xf32>
    %cst_12 = arith.constant 6.000000e+00 : f32
    %21 = vector.broadcast %cst_12 : f32 to vector<2x1xf32>
    %22 = arith.divf %20, %21 : vector<2x1xf32>
    %23 = vector.broadcast %22 : vector<2x1xf32> to vector<2x6xf32>
    %24 = arith.subf %18, %23 : vector<2x6xf32>
    %c0_13 = arith.constant 0 : index
    %c0_14 = arith.constant 0 : index
    %25 = vector.load %arg5[%c0_13, %c0_14] : memref<2x6xf32, #tpu.memory_space<vmem>>, vector<2x6xf32>
    tpu.vector_store %arg5[%c0_13, %c0_14], %24 {strides = array<i32>} : memref<2x6xf32, #tpu.memory_space<vmem>>, vector<2x6xf32>,
    return
  }
}

</mosaic_0001>

<llo_original>
// kernel: dueling_dqn_forward.4
$region0: #{dueling_dqn_forward.4}
  #allocation0 [shape = 'u32[]', space=smem, size = 0x4, offset = 0x4, fixed_abs, tag = 'smem constant byte address 0x4 - core index']
  #allocation1 [shape = 'u32[72,128]{1,0:T(1,128)}', space=vmem, size = 0x9000, scoped, tag = 'internal scratch']
  %s0 = inlined_call_operand.vmem [shape: f32[800,196], index: 0, kind: input, shape index: {}]
  %s1 = inlined_call_operand.vmem [shape: bf16[196,32], index: 1, kind: input, shape index: {}]
  %s2 = inlined_call_operand.vmem [shape: f32[1,32], index: 2, kind: input, shape index: {}]
  %s3 = inlined_call_operand.vmem [shape: f32[800,32], index: 3, kind: output, shape index: {}]
  %s4 = sld [smem:[#allocation0]]
  $region22: #{dueling_dqn_forward.4} parent=0
    _
  %s6 = ssub.s32 1, %s4
  %s7 = scalar_select 0, %s6, %s4
  // Predicated region
  $region2: #{dueling_dqn_forward.4} parent=0 // pred_check
    _
  $region3: #{dueling_dqn_forward.4} parent=0 // pred_check_branch
    %9 = sbr.rel (0) target = $region5
  $region4: #{dueling_dqn_forward.4} parent=0 // pred_region
    _
  $region5: #{dueling_dqn_forward.4} parent=0 // pred_fallthru
    _
  // Predicated region
  $region6: #{dueling_dqn_forward.4} parent=0 // pred_check
    _
  $region7: #{dueling_dqn_forward.4} parent=0 // pred_check_branch
    %11 = sbr.rel (0) target = $region9
  $region8: #{dueling_dqn_forward.4} parent=0 // pred_region
    _
  $region9: #{dueling_dqn_forward.4} parent=0 // pred_fallthru
    _
  // Predicated region
  $region10: #{dueling_dqn_forward.4} parent=0 // pred_check
    _
  $region11: #{dueling_dqn_forward.4} parent=0 // pred_check_branch
    %13 = sbr.rel (0) target = $region13
  $region12: #{dueling_dqn_forward.4} parent=0 // pred_region
    _
  $region13: #{dueling_dqn_forward.4} parent=0 // pred_fallthru
    _
  %v15 = vld [vmem:[%s0] sm:$0xff]
  %v16 = vld [vmem:[%s0 + $0x8] sm:$0xff]
  %v17 = vld [vmem:[%s0 + $0x10] sm:$0xff]
  %v18 = vld [vmem:[%s0 + $0x18] sm:$0xff]
  %v19 = vld [vmem:[%s0 + $0x20] sm:$0xff]
  %v20 = vld [vmem:[%s0 + $0x28] sm:$0xff]
  %v21 = vld [vmem:[%s0 + $0x30] sm:$0xff]
  %v22 = vld [vmem:[%s0 + $0x38] sm:$0xff]
  %v23 = vld [vmem:[%s0 + $0x40] sm:$0xff]
  %v24 = vld [vmem:[%s0 + $0x48] sm:$0xff]
  %v25 = vld [vmem:[%s0 + $0x50] sm:$0xff]
  %v26 = vld [vmem:[%s0 + $0x58] sm:$0xff]
  %v27 = vld [vmem:[%s0 + $0x60] sm:$0xff]
  %v28 = vld [vmem:[%s0 + $0x68] sm:$0xff]
  %v29 = vld [vmem:[%s0 + $0x70] sm:$0xff]
  %v30 = vld [vmem:[%s0 + $0x78] sm:$0xff]
  %v31 = vld [vmem:[%s0 + $0x80] sm:$0xff]
  %v32 = vld [vmem:[%s0 + $0x88] sm:$0xff]
  %v33 = vld [vmem:[%s0 + $0x90] sm:$0xff]
  %v34 = vld [vmem:[%s0 + $0x98] sm:$0xff]
  %v35 = vld [vmem:[%s0 + $0xa0] sm:$0xff]
  %v36 = vld [vmem:[%s0 + $0xa8] sm:$0xff]
  %v37 = vld [vmem:[%s0 + $0xb0] sm:$0xff]
  %v38 = vld [vmem:[%s0 + $0xb8] sm:$0xff]
  %v39 = vld [vmem:[%s0 + $0xc0] sm:$0xff]
  %v40 = vld [vmem:[%s0 + $0xc8] sm:$0xff]
  %v41 = vld [vmem:[%s0 + $0xd0] sm:$0xff]
  %v42 = vld [vmem:[%s0 + $0xd8] sm:$0xff]
  %v43 = vld [vmem:[%s0 + $0xe0] sm:$0xff]
  %v44 = vld [vmem:[%s0 + $0xe8] sm:$0xff]
  %v45 = vld [vmem:[%s0 + $0xf0] sm:$0xff]
  %v46 = vld [vmem:[%s0 + $0xf8] sm:$0xff]
  %v47 = vld [vmem:[%s0 + $0x100] sm:$0xff]
  %v48 = vld [vmem:[%s0 + $0x108] sm:$0xff]
  %v49 = vld [vmem:[%s0 + $0x110] sm:$0xff]
  %v50 = vld [vmem:[%s0 + $0x118] sm:$0xff]
  %v51 = vld [vmem:[%s0 + $0x120] sm:$0xff]
  %v52 = vld [vmem:[%s0 + $0x128] sm:$0xff]
  %v53 = vld [vmem:[%s0 + $0x130] sm:$0xff]
  %v54 = vld [vmem:[%s0 + $0x138] sm:$0xff]
  %v55 = vld [vmem:[%s0 + $0x140] sm:$0xff]
  %v56 = vld [vmem:[%s0 + $0x148] sm:$0xff]
  %v57 = vld [vmem:[%s0 + $0x150] sm:$0xff]
  %v58 = vld [vmem:[%s0 + $0x158] sm:$0xff]
  %v59 = vld [vmem:[%s0 + $0x160] sm:$0xff]
  %v60 = vld [vmem:[%s0 + $0x168] sm:$0xff]
  %v61 = vld [vmem:[%s0 + $0x170] sm:$0xff]
  %v62 = vld [vmem:[%s0 + $0x178] sm:$0xff]
  %v63 = vld [vmem:[%s0 + $0x180] sm:$0xff]
  %v64 = vld [vmem:[%s0 + $0x188] sm:$0xff]
  %v65 = vld [vmem:[%s0 + $0x190] sm:$0xff]
  %v66 = vld [vmem:[%s0 + $0x198] sm:$0xff]
  %v67 = vld [vmem:[%s0 + $0x1a0] sm:$0xff]
  %v68 = vld [vmem:[%s0 + $0x1a8] sm:$0xff]
  %v69 = vld [vmem:[%s0 + $0x1b0] sm:$0xff]
  %v70 = vld [vmem:[%s0 + $0x1b8] sm:$0xff]
  %v71 = vld [vmem:[%s0 + $0x1c0] sm:$0xff]
  %v72 = vld [vmem:[%s0 + $0x1c8] sm:$0xff]
  %v73 = vld [vmem:[%s0 + $0x1d0] sm:$0xff]
  %v74 = vld [vmem:[%s0 + $0x1d8] sm:$0xff]
  %v75 = vld [vmem:[%s0 + $0x1e0] sm:$0xff]
  %v76 = vld [vmem:[%s0 + $0x1e8] sm:$0xff]
  %v77 = vld [vmem:[%s0 + $0x1f0] sm:$0xff]
  %v78 = vld [vmem:[%s0 + $0x1f8] sm:$0xff]
  %v79 = vld [vmem:[%s0 + $0x200] sm:$0xff]
  %v80 = vld [vmem:[%s0 + $0x208] sm:$0xff]
  %v81 = vld [vmem:[%s0 + $0x210] sm:$0xff]
  %v82 = vld [vmem:[%s0 + $0x218] sm:$0xff]
  %v83 = vld [vmem:[%s0 + $0x220] sm:$0xff]
  %v84 = vld [vmem:[%s0 + $0x228] sm:$0xff]
  %v85 = vld [vmem:[%s0 + $0x230] sm:$0xff]
  %v86 = vld [vmem:[%s0 + $0x238] sm:$0xff]
  %v87 = vld [vmem:[%s0 + $0x240] sm:$0xff]
  %v88 = vld [vmem:[%s0 + $0x248] sm:$0xff]
  %v89 = vld [vmem:[%s0 + $0x250] sm:$0xff]
  %v90 = vld [vmem:[%s0 + $0x258] sm:$0xff]
  %v91 = vld [vmem:[%s0 + $0x260] sm:$0xff]
  %v92 = vld [vmem:[%s0 + $0x268] sm:$0xff]
  %v93 = vld [vmem:[%s0 + $0x270] sm:$0xff]
  %v94 = vld [vmem:[%s0 + $0x278] sm:$0xff]
  %v95 = vld [vmem:[%s0 + $0x280] sm:$0xff]
  %v96 = vld [vmem:[%s0 + $0x288] sm:$0xff]
  %v97 = vld [vmem:[%s0 + $0x290] sm:$0xff]
  %v98 = vld [vmem:[%s0 + $0x298] sm:$0xff]
  %v99 = vld [vmem:[%s0 + $0x2a0] sm:$0xff]
  %v100 = vld [vmem:[%s0 + $0x2a8] sm:$0xff]
  %v101 = vld [vmem:[%s0 + $0x2b0] sm:$0xff]
  %v102 = vld [vmem:[%s0 + $0x2b8] sm:$0xff]
  %v103 = vld [vmem:[%s0 + $0x2c0] sm:$0xff]
  %v104 = vld [vmem:[%s0 + $0x2c8] sm:$0xff]
  %v105 = vld [vmem:[%s0 + $0x2d0] sm:$0xff]
  %v106 = vld [vmem:[%s0 + $0x2d8] sm:$0xff]
  %v107 = vld [vmem:[%s0 + $0x2e0] sm:$0xff]
  %v108 = vld [vmem:[%s0 + $0x2e8] sm:$0xff]
  %v109 = vld [vmem:[%s0 + $0x2f0] sm:$0xff]
  %v110 = vld [vmem:[%s0 + $0x2f8] sm:$0xff]
  %v111 = vld [vmem:[%s0 + $0x300] sm:$0xff]
  %v112 = vld [vmem:[%s0 + $0x308] sm:$0xff]
  %v113 = vld [vmem:[%s0 + $0x310] sm:$0xff]
  %v114 = vld [vmem:[%s0 + $0x318] sm:$0xff]
  %v115 = vld [vmem:[%s0 + $0x320] sm:$0xff]
  %v116 = vld [vmem:[%s0 + $0x328] sm:$0xff]
  %v117 = vld [vmem:[%s0 + $0x330] sm:$0xff]
  %v118 = vld [vmem:[%s0 + $0x338] sm:$0xff]
  %v119 = vld [vmem:[%s0 + $0x340] sm:$0xff]
  %v120 = vld [vmem:[%s0 + $0x348] sm:$0xff]
  %v121 = vld [vmem:[%s0 + $0x350] sm:$0xff]
  %v122 = vld [vmem:[%s0 + $0x358] sm:$0xff]
  %v123 = vld [vmem:[%s0 + $0x360] sm:$0xff]
  %v124 = vld [vmem:[%s0 + $0x368] sm:$0xff]
  %v125 = vld [vmem:[%s0 + $0x370] sm:$0xff]
  %v126 = vld [vmem:[%s0 + $0x378] sm:$0xff]
  %v127 = vld [vmem:[%s0 + $0x380] sm:$0xff]
  %v128 = vld [vmem:[%s0 + $0x388] sm:$0xff]
  %v129 = vld [vmem:[%s0 + $0x390] sm:$0xff]
  %v130 = vld [vmem:[%s0 + $0x398] sm:$0xff]
  %v131 = vld [vmem:[%s0 + $0x3a0] sm:$0xff]
  %v132 = vld [vmem:[%s0 + $0x3a8] sm:$0xff]
  %v133 = vld [vmem:[%s0 + $0x3b0] sm:$0xff]
  %v134 = vld [vmem:[%s0 + $0x3b8] sm:$0xff]
  %v135 = vld [vmem:[%s0 + $0x3c0] sm:$0xff]
  %v136 = vld [vmem:[%s0 + $0x3c8] sm:$0xff]
  %v137 = vld [vmem:[%s0 + $0x3d0] sm:$0xff]
  %v138 = vld [vmem:[%s0 + $0x3d8] sm:$0xff]
  %v139 = vld [vmem:[%s0 + $0x3e0] sm:$0xff]
  %v140 = vld [vmem:[%s0 + $0x3e8] sm:$0xff]
  %v141 = vld [vmem:[%s0 + $0x3f0] sm:$0xff]
  %v142 = vld [vmem:[%s0 + $0x3f8] sm:$0xff]
  %v143 = vld [vmem:[%s0 + $0x400] sm:$0xff]
  %v144 = vld [vmem:[%s0 + $0x408] sm:$0xff]
  %v145 = vld [vmem:[%s0 + $0x410] sm:$0xff]
  %v146 = vld [vmem:[%s0 + $0x418] sm:$0xff]
  %v147 = vld [vmem:[%s0 + $0x420] sm:$0xff]
  %v148 = vld [vmem:[%s0 + $0x428] sm:$0xff]
  %v149 = vld [vmem:[%s0 + $0x430] sm:$0xff]
  %v150 = vld [vmem:[%s0 + $0x438] sm:$0xff]
  %v151 = vld [vmem:[%s0 + $0x440] sm:$0xff]
  %v152 = vld [vmem:[%s0 + $0x448] sm:$0xff]
  %v153 = vld [vmem:[%s0 + $0x450] sm:$0xff]
  %v154 = vld [vmem:[%s0 + $0x458] sm:$0xff]
  %v155 = vld [vmem:[%s0 + $0x460] sm:$0xff]
  %v156 = vld [vmem:[%s0 + $0x468] sm:$0xff]
  %v157 = vld [vmem:[%s0 + $0x470] sm:$0xff]
  %v158 = vld [vmem:[%s0 + $0x478] sm:$0xff]
  %v159 = vld [vmem:[%s0 + $0x480] sm:$0xff]
  %v160 = vld [vmem:[%s0 + $0x488] sm:$0xff]
  %v161 = vld [vmem:[%s0 + $0x490] sm:$0xff]
  %v162 = vld [vmem:[%s0 + $0x498] sm:$0xff]
  %v163 = vld [vmem:[%s0 + $0x4a0] sm:$0xff]
  %v164 = vld [vmem:[%s0 + $0x4a8] sm:$0xff]
  %v165 = vld [vmem:[%s0 + $0x4b0] sm:$0xff]
  %v166 = vld [vmem:[%s0 + $0x4b8] sm:$0xff]
  %v167 = vld [vmem:[%s0 + $0x4c0] sm:$0xff]
  %v168 = vld [vmem:[%s0 + $0x4c8] sm:$0xff]
  %v169 = vld [vmem:[%s0 + $0x4d0] sm:$0xff]
  %v170 = vld [vmem:[%s0 + $0x4d8] sm:$0xff]
  %v171 = vld [vmem:[%s0 + $0x4e0] sm:$0xff]
  %v172 = vld [vmem:[%s0 + $0x4e8] sm:$0xff]
  %v173 = vld [vmem:[%s0 + $0x4f0] sm:$0xff]
  %v174 = vld [vmem:[%s0 + $0x4f8] sm:$0xff]
  %v175 = vld [vmem:[%s0 + $0x500] sm:$0xff]
  %v176 = vld [vmem:[%s0 + $0x508] sm:$0xff]
  %v177 = vld [vmem:[%s0 + $0x510] sm:$0xff]
  %v178 = vld [vmem:[%s0 + $0x518] sm:$0xff]
  %v179 = vld [vmem:[%s0 + $0x520] sm:$0xff]
  %v180 = vld [vmem:[%s0 + $0x528] sm:$0xff]
  %v181 = vld [vmem:[%s0 + $0x530] sm:$0xff]
  %v182 = vld [vmem:[%s0 + $0x538] sm:$0xff]
  %v183 = vld [vmem:[%s0 + $0x540] sm:$0xff]
  %v184 = vld [vmem:[%s0 + $0x548] sm:$0xff]
  %v185 = vld [vmem:[%s0 + $0x550] sm:$0xff]
  %v186 = vld [vmem:[%s0 + $0x558] sm:$0xff]
  %v187 = vld [vmem:[%s0 + $0x560] sm:$0xff]
  %v188 = vld [vmem:[%s0 + $0x568] sm:$0xff]
  %v189 = vld [vmem:[%s0 + $0x570] sm:$0xff]
  %v190 = vld [vmem:[%s0 + $0x578] sm:$0xff]
  %v191 = vld [vmem:[%s0 + $0x580] sm:$0xff]
  %v192 = vld [vmem:[%s0 + $0x588] sm:$0xff]
  %v193 = vld [vmem:[%s0 + $0x590] sm:$0xff]
  %v194 = vld [vmem:[%s0 + $0x598] sm:$0xff]
  %v195 = vld [vmem:[%s0 + $0x5a0] sm:$0xff]
  %v196 = vld [vmem:[%s0 + $0x5a8] sm:$0xff]
  %v197 = vld [vmem:[%s0 + $0x5b0] sm:$0xff]
  %v198 = vld [vmem:[%s0 + $0x5b8] sm:$0xff]
  %v199 = vld [vmem:[%s0 + $0x5c0] sm:$0xff]
  %v200 = vld [vmem:[%s0 + $0x5c8] sm:$0xff]
  %v201 = vld [vmem:[%s0 + $0x5d0] sm:$0xff]
  %v202 = vld [vmem:[%s0 + $0x5d8] sm:$0xff]
  %v203 = vld [vmem:[%s0 + $0x5e0] sm:$0xff]
  %v204 = vld [vmem:[%s0 + $0x5e8] sm:$0xff]
  %v205 = vld [vmem:[%s0 + $0x5f0] sm:$0xff]
  %v206 = vld [vmem:[%s0 + $0x5f8] sm:$0xff]
  %v207 = vld [vmem:[%s0 + $0x600] sm:$0xff]
  %v208 = vld [vmem:[%s0 + $0x608] sm:$0xff]
  %v209 = vld [vmem:[%s0 + $0x610] sm:$0xff]
  %v210 = vld [vmem:[%s0 + $0x618] sm:$0xff]
  %v211 = vld [vmem:[%s0 + $0x620] sm:$0xff]
  %v212 = vld [vmem:[%s0 + $0x628] sm:$0xff]
  %v213 = vld [vmem:[%s0 + $0x630] sm:$0xff]
  %v214 = vld [vmem:[%s0 + $0x638] sm:$0xff]
  %v215 = vpack.c.bf16 %v17, %v15
  %v216 = vpack.c.bf16 %v18, %v16
  %v217 = vpack.c.bf16 %v21, %v19
  %v218 = vpack.c.bf16 %v22, %v20
  %v219 = vpack.c.bf16 %v25, %v23
  %v220 = vpack.c.bf16 %v26, %v24
  %v221 = vpack.c.bf16 %v29, %v27
  %v222 = vpack.c.bf16 %v30, %v28
  %v223 = vpack.c.bf16 %v33, %v31
  %v224 = vpack.c.bf16 %v34, %v32
  %v225 = vpack.c.bf16 %v37, %v35
  %v226 = vpack.c.bf16 %v38, %v36
  %v227 = vpack.c.bf16 %v41, %v39
  %v228 = vpack.c.bf16 %v42, %v40
  %v229 = vpack.c.bf16 %v45, %v43
  %v230 = vpack.c.bf16 %v46, %v44
  %v231 = vpack.c.bf16 %v49, %v47
  %v232 = vpack.c.bf16 %v50, %v48
  %v233 = vpack.c.bf16 %v53, %v51
  %v234 = vpack.c.bf16 %v54, %v52
  %v235 = vpack.c.bf16 %v57, %v55
  %v236 = vpack.c.bf16 %v58, %v56
  %v237 = vpack.c.bf16 %v61, %v59
  %v238 = vpack.c.bf16 %v62, %v60
  %v239 = vpack.c.bf16 %v65, %v63
  %v240 = vpack.c.bf16 %v66, %v64
  %v241 = vpack.c.bf16 %v69, %v67
  %v242 = vpack.c.bf16 %v70, %v68
  %v243 = vpack.c.bf16 %v73, %v71
  %v244 = vpack.c.bf16 %v74, %v72
  %v245 = vpack.c.bf16 %v77, %v75
  %v246 = vpack.c.bf16 %v78, %v76
  %v247 = vpack.c.bf16 %v81, %v79
  %v248 = vpack.c.bf16 %v82, %v80
  %v249 = vpack.c.bf16 %v85, %v83
  %v250 = vpack.c.bf16 %v86, %v84
  %v251 = vpack.c.bf16 %v89, %v87
  %v252 = vpack.c.bf16 %v90, %v88
  %v253 = vpack.c.bf16 %v93, %v91
  %v254 = vpack.c.bf16 %v94, %v92
  %v255 = vpack.c.bf16 %v97, %v95
  %v256 = vpack.c.bf16 %v98, %v96
  %v257 = vpack.c.bf16 %v101, %v99
  %v258 = vpack.c.bf16 %v102, %v100
  %v259 = vpack.c.bf16 %v105, %v103
  %v260 = vpack.c.bf16 %v106, %v104
  %v261 = vpack.c.bf16 %v109, %v107
  %v262 = vpack.c.bf16 %v110, %v108
  %v263 = vpack.c.bf16 %v113, %v111
  %v264 = vpack.c.bf16 %v114, %v112
  %v265 = vpack.c.bf16 %v117, %v115
  %v266 = vpack.c.bf16 %v118, %v116
  %v267 = vpack.c.bf16 %v121, %v119
  %v268 = vpack.c.bf16 %v122, %v120
  %v269 = vpack.c.bf16 %v125, %v123
  %v270 = vpack.c.bf16 %v126, %v124
  %v271 = vpack.c.bf16 %v129, %v127
  %v272 = vpack.c.bf16 %v130, %v128
  %v273 = vpack.c.bf16 %v133, %v131
  %v274 = vpack.c.bf16 %v134, %v132
  %v275 = vpack.c.bf16 %v137, %v135
  %v276 = vpack.c.bf16 %v138, %v136
  %v277 = vpack.c.bf16 %v141, %v139
  %v278 = vpack.c.bf16 %v142, %v140
  %v279 = vpack.c.bf16 %v145, %v143
  %v280 = vpack.c.bf16 %v146, %v144
  %v281 = vpack.c.bf16 %v149, %v147
  %v282 = vpack.c.bf16 %v150, %v148
  %v283 = vpack.c.bf16 %v153, %v151
  %v284 = vpack.c.bf16 %v154, %v152
  %v285 = vpack.c.bf16 %v157, %v155
  %v286 = vpack.c.bf16 %v158, %v156
  %v287 = vpack.c.bf16 %v161, %v159
  %v288 = vpack.c.bf16 %v162, %v160
  %v289 = vpack.c.bf16 %v165, %v163
  %v290 = vpack.c.bf16 %v166, %v164
  %v291 = vpack.c.bf16 %v169, %v167
  %v292 = vpack.c.bf16 %v170, %v168
  %v293 = vpack.c.bf16 %v173, %v171
  %v294 = vpack.c.bf16 %v174, %v172
  %v295 = vpack.c.bf16 %v177, %v175
  %v296 = vpack.c.bf16 %v178, %v176
  %v297 = vpack.c.bf16 %v181, %v179
  %v298 = vpack.c.bf16 %v182, %v180
  %v299 = vpack.c.bf16 %v185, %v183
  %v300 = vpack.c.bf16 %v186, %v184
  %v301 = vpack.c.bf16 %v189, %v187
  %v302 = vpack.c.bf16 %v190, %v188
  %v303 = vpack.c.bf16 %v193, %v191
  %v304 = vpack.c.bf16 %v194, %v192
  %v305 = vpack.c.bf16 %v197, %v195
  %v306 = vpack.c.bf16 %v198, %v196
  %v307 = vpack.c.bf16 %v201, %v199
  %v308 = vpack.c.bf16 %v202, %v200
  %v309 = vpack.c.bf16 %v205, %v203
  %v310 = vpack.c.bf16 %v206, %v204
  %v311 = vpack.c.bf16 %v209, %v207
  %v312 = vpack.c.bf16 %v210, %v208
  %v313 = vpack.c.bf16 %v213, %v211
  %v314 = vpack.c.bf16 %v214, %v212
  %v315 = vld [vmem:[%s1] sm:$0xf]
  %v316 = vld [vmem:[%s1 + $0x4] sm:$0xf]
  %v317 = vld [vmem:[%s1 + $0x8] sm:$0xf]
  %v318 = vld [vmem:[%s1 + $0xc] sm:$0xf]
  %v319 = vld [vmem:[%s1 + $0x10] sm:$0xf]
  %v320 = vld [vmem:[%s1 + $0x14] sm:$0xf]
  %v321 = vld [vmem:[%s1 + $0x18] sm:$0xf]
  %v322 = vld [vmem:[%s1 + $0x1c] sm:$0xf]
  %v323 = vld [vmem:[%s1 + $0x20] sm:$0xf]
  %v324 = vld [vmem:[%s1 + $0x24] sm:$0xf]
  %v325 = vld [vmem:[%s1 + $0x28] sm:$0xf]
  %v326 = vld [vmem:[%s1 + $0x2c] sm:$0xf]
  %v327 = vld [vmem:[%s1 + $0x30] sm:$0xf]
  %v328 = vld [vmem:[%s1 + $0x34] sm:$0xf]
  %v329 = vld [vmem:[%s1 + $0x38] sm:$0xf]
  %v330 = vld [vmem:[%s1 + $0x3c] sm:$0xf]
  %v331 = vld [vmem:[%s1 + $0x40] sm:$0xf]
  %v332 = vld [vmem:[%s1 + $0x44] sm:$0xf]
  %v333 = vld [vmem:[%s1 + $0x48] sm:$0xf]
  %v334 = vld [vmem:[%s1 + $0x4c] sm:$0xf]
  %v335 = vld [vmem:[%s1 + $0x50] sm:$0xf]
  %v336 = vld [vmem:[%s1 + $0x54] sm:$0xf]
  %v337 = vld [vmem:[%s1 + $0x58] sm:$0xf]
  %v338 = vld [vmem:[%s1 + $0x5c] sm:$0xf]
  %v339 = vld [vmem:[%s1 + $0x60] sm:$0x3]
  %v340 = vld [vmem:[%s2] sm:$0x1]
  %v342 = vperm.slane %v340, 0
  %v369 = vunpack.c.l.b16 %v315
  %v370 = vunpack.c.l.b16 %v316
  %v371 = vunpack.c.l.b16 %v317
  %v372 = vunpack.c.l.b16 %v318
  %v373 = vunpack.c.l.b16 %v319
  %v374 = vunpack.c.l.b16 %v320
  %v375 = vunpack.c.l.b16 %v321
  %v376 = vunpack.c.l.b16 %v322
  %v377 = vunpack.c.l.b16 %v323
  %v378 = vunpack.c.l.b16 %v324
  %v379 = vunpack.c.l.b16 %v325
  %v380 = vunpack.c.l.b16 %v326
  %v381 = vunpack.c.l.b16 %v327
  %v382 = vunpack.c.l.b16 %v328
  %v383 = vunpack.c.l.b16 %v329
  %v384 = vunpack.c.l.b16 %v330
  %v385 = vunpack.c.l.b16 %v331
  %v386 = vunpack.c.l.b16 %v332
  %v387 = vunpack.c.l.b16 %v333
  %v388 = vunpack.c.l.b16 %v334
  %v389 = vunpack.c.l.b16 %v335
  %v390 = vunpack.c.l.b16 %v336
  %v391 = vunpack.c.l.b16 %v337
  %v392 = vunpack.c.l.b16 %v338
  %v393 = vunpack.c.l.b16 %v339
  %v394 = vpack.c.b16 %v370, %v369
  %v395 = vpack.c.b16 %v372, %v371
  %v396 = vpack.c.b16 %v374, %v373
  %v397 = vpack.c.b16 %v376, %v375
  %v398 = vpack.c.b16 %v378, %v377
  %v399 = vpack.c.b16 %v380, %v379
  %v400 = vpack.c.b16 %v382, %v381
  %v401 = vpack.c.b16 %v384, %v383
  %v402 = vpack.c.b16 %v386, %v385
  %v403 = vpack.c.b16 %v388, %v387
  %v404 = vpack.c.b16 %v390, %v389
  %v405 = vpack.c.b16 %v392, %v391
  %v406 = vpack.c.b16 %v393, %v393
  %vm419 = vcmask 556032
  %v421 = vsel %vm419, %v216, 0
  %v424 = vsel %vm419, %v218, 0
  %v427 = vsel %vm419, %v220, 0
  %v430 = vsel %vm419, %v222, 0
  %v433 = vsel %vm419, %v224, 0
  %v436 = vsel %vm419, %v226, 0
  %v439 = vsel %vm419, %v228, 0
  %v442 = vsel %vm419, %v230, 0
  %v445 = vsel %vm419, %v232, 0
  %v448 = vsel %vm419, %v234, 0
  %v451 = vsel %vm419, %v236, 0
  %v454 = vsel %vm419, %v238, 0
  %v457 = vsel %vm419, %v240, 0
  %v460 = vsel %vm419, %v242, 0
  %v463 = vsel %vm419, %v244, 0
  %v466 = vsel %vm419, %v246, 0
  %v469 = vsel %vm419, %v248, 0
  %v472 = vsel %vm419, %v250, 0
  %v475 = vsel %vm419, %v252, 0
  %v478 = vsel %vm419, %v254, 0
  %v481 = vsel %vm419, %v256, 0
  %v484 = vsel %vm419, %v258, 0
  %v487 = vsel %vm419, %v260, 0
  %v490 = vsel %vm419, %v262, 0
  %v493 = vsel %vm419, %v264, 0
  %v496 = vsel %vm419, %v266, 0
  %v499 = vsel %vm419, %v268, 0
  %v502 = vsel %vm419, %v270, 0
  %v505 = vsel %vm419, %v272, 0
  %v508 = vsel %vm419, %v274, 0
  %v511 = vsel %vm419, %v276, 0
  %v514 = vsel %vm419, %v278, 0
  %v517 = vsel %vm419, %v280, 0
  %v520 = vsel %vm419, %v282, 0
  %v523 = vsel %vm419, %v284, 0
  %v526 = vsel %vm419, %v286, 0
  %v529 = vsel %vm419, %v288, 0
  %v532 = vsel %vm419, %v290, 0
  %v535 = vsel %vm419, %v292, 0
  %v538 = vsel %vm419, %v294, 0
  %v541 = vsel %vm419, %v296, 0
  %v544 = vsel %vm419, %v298, 0
  %v547 = vsel %vm419, %v300, 0
  %v550 = vsel %vm419, %v302, 0
  %v553 = vsel %vm419, %v304, 0
  %v556 = vsel %vm419, %v306, 0
  %v559 = vsel %vm419, %v308, 0
  %v562 = vsel %vm419, %v310, 0
  %v565 = vsel %vm419, %v312, 0
  %v568 = vsel %vm419, %v314, 0
  %vm570 = vcmask 1041408
  %v572 = vsel %vm570, %v406, 0
  %574 = vmatpush.bf16.msra.mxu0 %v401
  %575 = vmatpush.bf16.msra.mxu0 %v400
  %576 = vmatpush.bf16.msra.mxu0 %v399
  %577 = vmatpush.bf16.msra.mxu0 %v398
  %578 = vmatpush.bf16.msra.mxu0 %v397
  %579 = vmatpush.bf16.msra.mxu0 %v396
  %580 = vmatpush.bf16.msra.mxu0 %v395
  %581 = vmatpush.bf16.msra.mxu0 %v394
  %582 = vmatmul.bf16.gmra.mxu0 %v215
  %v583 = vpop.f32.mrf.mxu0
  %v584 = vadd.f32 %v342, %v583
  %v585 = vpop.f32.mrf.mxu0
  %v586 = vadd.f32 %v342, %v585
  %587 = vmatmul.bf16.gmra.mxu0 %v217
  %v588 = vpop.f32.mrf.mxu0
  %v589 = vadd.f32 %v342, %v588
  %v590 = vpop.f32.mrf.mxu0
  %v591 = vadd.f32 %v342, %v590
  %592 = vmatmul.bf16.gmra.mxu0 %v219
  %v593 = vpop.f32.mrf.mxu0
  %v594 = vadd.f32 %v342, %v593
  %v595 = vpop.f32.mrf.mxu0
  %v596 = vadd.f32 %v342, %v595
  %597 = vmatmul.bf16.gmra.mxu0 %v221
  %v598 = vpop.f32.mrf.mxu0
  %v599 = vadd.f32 %v342, %v598
  %v600 = vpop.f32.mrf.mxu0
  %v601 = vadd.f32 %v342, %v600
  %602 = vmatmul.bf16.gmra.mxu0 %v223
  %v603 = vpop.f32.mrf.mxu0
  %v604 = vadd.f32 %v342, %v603
  %v605 = vpop.f32.mrf.mxu0
  %v606 = vadd.f32 %v342, %v605
  %607 = vmatmul.bf16.gmra.mxu0 %v225
  %v608 = vpop.f32.mrf.mxu0
  %v609 = vadd.f32 %v342, %v608
  %v610 = vpop.f32.mrf.mxu0
  %v611 = vadd.f32 %v342, %v610
  %612 = vmatmul.bf16.gmra.mxu0 %v227
  %v613 = vpop.f32.mrf.mxu0
  %v614 = vadd.f32 %v342, %v613
  %v615 = vpop.f32.mrf.mxu0
  %v616 = vadd.f32 %v342, %v615
  %617 = vmatmul.bf16.gmra.mxu0 %v229
  %v618 = vpop.f32.mrf.mxu0
  %v619 = vadd.f32 %v342, %v618
  %v620 = vpop.f32.mrf.mxu0
  %v621 = vadd.f32 %v342, %v620
  %622 = vmatmul.bf16.gmra.mxu0 %v231
  %v623 = vpop.f32.mrf.mxu0
  %v624 = vadd.f32 %v342, %v623
  %v625 = vpop.f32.mrf.mxu0
  %v626 = vadd.f32 %v342, %v625
  %627 = vmatmul.bf16.gmra.mxu0 %v233
  %v628 = vpop.f32.mrf.mxu0
  %v629 = vadd.f32 %v342, %v628
  %v630 = vpop.f32.mrf.mxu0
  %v631 = vadd.f32 %v342, %v630
  %632 = vmatmul.bf16.gmra.mxu0 %v235
  %v633 = vpop.f32.mrf.mxu0
  %v634 = vadd.f32 %v342, %v633
  %v635 = vpop.f32.mrf.mxu0
  %v636 = vadd.f32 %v342, %v635
  %637 = vmatmul.bf16.gmra.mxu0 %v237
  %v638 = vpop.f32.mrf.mxu0
  %v639 = vadd.f32 %v342, %v638
  %v640 = vpop.f32.mrf.mxu0
  %v641 = vadd.f32 %v342, %v640
  %642 = vmatmul.bf16.gmra.mxu0 %v239
  %v643 = vpop.f32.mrf.mxu0
  %v644 = vadd.f32 %v342, %v643
  %v645 = vpop.f32.mrf.mxu0
  %v646 = vadd.f32 %v342, %v645
  %647 = vmatmul.bf16.gmra.mxu0 %v241
  %v648 = vpop.f32.mrf.mxu0
  %v649 = vadd.f32 %v342, %v648
  %v650 = vpop.f32.mrf.mxu0
  %v651 = vadd.f32 %v342, %v650
  %652 = vmatmul.bf16.gmra.mxu0 %v243
  %v653 = vpop.f32.mrf.mxu0
  %v654 = vadd.f32 %v342, %v653
  %v655 = vpop.f32.mrf.mxu0
  %v656 = vadd.f32 %v342, %v655
  %657 = vmatmul.bf16.gmra.mxu0 %v245
  %v658 = vpop.f32.mrf.mxu0
  %v659 = vadd.f32 %v342, %v658
  %v660 = vpop.f32.mrf.mxu0
  %v661 = vadd.f32 %v342, %v660
  %662 = vmatmul.bf16.gmra.mxu0 %v247
  %v663 = vpop.f32.mrf.mxu0
  %v664 = vadd.f32 %v342, %v663
  %v665 = vpop.f32.mrf.mxu0
  %v666 = vadd.f32 %v342, %v665
  %667 = vmatmul.bf16.gmra.mxu0 %v249
  %v668 = vpop.f32.mrf.mxu0
  %v669 = vadd.f32 %v342, %v668
  %v670 = vpop.f32.mrf.mxu0
  %v671 = vadd.f32 %v342, %v670
  %672 = vmatmul.bf16.gmra.mxu0 %v251
  %v673 = vpop.f32.mrf.mxu0
  %v674 = vadd.f32 %v342, %v673
  %v675 = vpop.f32.mrf.mxu0
  %v676 = vadd.f32 %v342, %v675
  %677 = vmatmul.bf16.gmra.mxu0 %v253
  %v678 = vpop.f32.mrf.mxu0
  %v679 = vadd.f32 %v342, %v678
  %v680 = vpop.f32.mrf.mxu0
  %v681 = vadd.f32 %v342, %v680
  %682 = vmatmul.bf16.gmra.mxu0 %v255
  %v683 = vpop.f32.mrf.mxu0
  %v684 = vadd.f32 %v342, %v683
  %v685 = vpop.f32.mrf.mxu0
  %v686 = vadd.f32 %v342, %v685
  %687 = vmatmul.bf16.gmra.mxu0 %v257
  %v688 = vpop.f32.mrf.mxu0
  %v689 = vadd.f32 %v342, %v688
  %v690 = vpop.f32.mrf.mxu0
  %v691 = vadd.f32 %v342, %v690
  %692 = vmatmul.bf16.gmra.mxu0 %v259
  %v693 = vpop.f32.mrf.mxu0
  %v694 = vadd.f32 %v342, %v693
  %v695 = vpop.f32.mrf.mxu0
  %v696 = vadd.f32 %v342, %v695
  %697 = vmatmul.bf16.gmra.mxu0 %v261
  %v698 = vpop.f32.mrf.mxu0
  %v699 = vadd.f32 %v342, %v698
  %v700 = vpop.f32.mrf.mxu0
  %v701 = vadd.f32 %v342, %v700
  %702 = vmatmul.bf16.gmra.mxu0 %v263
  %v703 = vpop.f32.mrf.mxu0
  %v704 = vadd.f32 %v342, %v703
  %v705 = vpop.f32.mrf.mxu0
  %v706 = vadd.f32 %v342, %v705
  %707 = vmatmul.bf16.gmra.mxu0 %v265
  %v708 = vpop.f32.mrf.mxu0
  %v709 = vadd.f32 %v342, %v708
  %v710 = vpop.f32.mrf.mxu0
  %v711 = vadd.f32 %v342, %v710
  %712 = vmatmul.bf16.gmra.mxu0 %v267
  %v713 = vpop.f32.mrf.mxu0
  %v714 = vadd.f32 %v342, %v713
  %v715 = vpop.f32.mrf.mxu0
  %v716 = vadd.f32 %v342, %v715
  %717 = vmatmul.bf16.gmra.mxu0 %v269
  %v718 = vpop.f32.mrf.mxu0
  %v719 = vadd.f32 %v342, %v718
  %v720 = vpop.f32.mrf.mxu0
  %v721 = vadd.f32 %v342, %v720
  %722 = vmatmul.bf16.gmra.mxu0 %v271
  %v723 = vpop.f32.mrf.mxu0
  %v724 = vadd.f32 %v342, %v723
  %v725 = vpop.f32.mrf.mxu0
  %v726 = vadd.f32 %v342, %v725
  %727 = vmatmul.bf16.gmra.mxu0 %v273
  %v728 = vpop.f32.mrf.mxu0
  %v729 = vadd.f32 %v342, %v728
  %v730 = vpop.f32.mrf.mxu0
  %v731 = vadd.f32 %v342, %v730
  %732 = vmatmul.bf16.gmra.mxu0 %v275
  %v733 = vpop.f32.mrf.mxu0
  %v734 = vadd.f32 %v342, %v733
  %v735 = vpop.f32.mrf.mxu0
  %v736 = vadd.f32 %v342, %v735
  %737 = vmatmul.bf16.gmra.mxu0 %v277
  %v738 = vpop.f32.mrf.mxu0
  %v739 = vadd.f32 %v342, %v738
  %v740 = vpop.f32.mrf.mxu0
  %v741 = vadd.f32 %v342, %v740
  %742 = vmatmul.bf16.gmra.mxu0 %v279
  %v743 = vpop.f32.mrf.mxu0
  %v744 = vadd.f32 %v342, %v743
  %v745 = vpop.f32.mrf.mxu0
  %v746 = vadd.f32 %v342, %v745
  %747 = vmatmul.bf16.gmra.mxu0 %v281
  %v748 = vpop.f32.mrf.mxu0
  %v749 = vadd.f32 %v342, %v748
  %v750 = vpop.f32.mrf.mxu0
  %v751 = vadd.f32 %v342, %v750
  %752 = vmatmul.bf16.gmra.mxu0 %v283
  %v753 = vpop.f32.mrf.mxu0
  %v754 = vadd.f32 %v342, %v753
  %v755 = vpop.f32.mrf.mxu0
  %v756 = vadd.f32 %v342, %v755
  %757 = vmatmul.bf16.gmra.mxu0 %v285
  %v758 = vpop.f32.mrf.mxu0
  %v759 = vadd.f32 %v342, %v758
  %v760 = vpop.f32.mrf.mxu0
  %v761 = vadd.f32 %v342, %v760
  %762 = vmatmul.bf16.gmra.mxu0 %v287
  %v763 = vpop.f32.mrf.mxu0
  %v764 = vadd.f32 %v342, %v763
  %v765 = vpop.f32.mrf.mxu0
  %v766 = vadd.f32 %v342, %v765
  %767 = vmatmul.bf16.gmra.mxu0 %v289
  %v768 = vpop.f32.mrf.mxu0
  %v769 = vadd.f32 %v342, %v768
  %v770 = vpop.f32.mrf.mxu0
  %v771 = vadd.f32 %v342, %v770
  %772 = vmatmul.bf16.gmra.mxu0 %v291
  %v773 = vpop.f32.mrf.mxu0
  %v774 = vadd.f32 %v342, %v773
  %v775 = vpop.f32.mrf.mxu0
  %v776 = vadd.f32 %v342, %v775
  %777 = vmatmul.bf16.gmra.mxu0 %v293
  %v778 = vpop.f32.mrf.mxu0
  %v779 = vadd.f32 %v342, %v778
  %v780 = vpop.f32.mrf.mxu0
  %v781 = vadd.f32 %v342, %v780
  %782 = vmatmul.bf16.gmra.mxu0 %v295
  %v783 = vpop.f32.mrf.mxu0
  %v784 = vadd.f32 %v342, %v783
  %v785 = vpop.f32.mrf.mxu0
  %v786 = vadd.f32 %v342, %v785
  %787 = vmatmul.bf16.gmra.mxu0 %v297
  %v788 = vpop.f32.mrf.mxu0
  %v789 = vadd.f32 %v342, %v788
  %v790 = vpop.f32.mrf.mxu0
  %v791 = vadd.f32 %v342, %v790
  %792 = vmatmul.bf16.gmra.mxu0 %v299
  %v793 = vpop.f32.mrf.mxu0
  %v794 = vadd.f32 %v342, %v793
  %v795 = vpop.f32.mrf.mxu0
  %v796 = vadd.f32 %v342, %v795
  %797 = vmatmul.bf16.gmra.mxu0 %v301
  %v798 = vpop.f32.mrf.mxu0
  %v799 = vadd.f32 %v342, %v798
  %v800 = vpop.f32.mrf.mxu0
  %v801 = vadd.f32 %v342, %v800
  %802 = vmatmul.bf16.gmra.mxu0 %v303
  %v803 = vpop.f32.mrf.mxu0
  %v804 = vadd.f32 %v342, %v803
  %v805 = vpop.f32.mrf.mxu0
  %v806 = vadd.f32 %v342, %v805
  %807 = vmatmul.bf16.gmra.mxu0 %v305
  %v808 = vpop.f32.mrf.mxu0
  %v809 = vadd.f32 %v342, %v808
  %v810 = vpop.f32.mrf.mxu0
  %v811 = vadd.f32 %v342, %v810
  %812 = vmatmul.bf16.gmra.mxu0 %v307
  %v813 = vpop.f32.mrf.mxu0
  %v814 = vadd.f32 %v342, %v813
  %v815 = vpop.f32.mrf.mxu0
  %v816 = vadd.f32 %v342, %v815
  %817 = vmatmul.bf16.gmra.mxu0 %v309
  %v818 = vpop.f32.mrf.mxu0
  %v819 = vadd.f32 %v342, %v818
  %v820 = vpop.f32.mrf.mxu0
  %v821 = vadd.f32 %v342, %v820
  %822 = vmatmul.bf16.gmra.mxu0 %v311
  %v823 = vpop.f32.mrf.mxu0
  %v824 = vadd.f32 %v342, %v823
  %v825 = vpop.f32.mrf.mxu0
  %v826 = vadd.f32 %v342, %v825
  %827 = vmatmul.bf16.gmra.mxu0 %v313
  %v828 = vpop.f32.mrf.mxu0
  %v829 = vadd.f32 %v342, %v828
  %v830 = vpop.f32.mrf.mxu0
  %v831 = vadd.f32 %v342, %v830
  %832 = vdwg.mxu0
  %833 = vmatpush.bf16.msra.mxu0 0
  %834 = vmatpush.bf16.msra.mxu0 0
  %835 = vmatpush.bf16.msra.mxu0 0
  %836 = vmatpush.bf16.msra.mxu0 %v572
  %837 = vmatpush.bf16.msra.mxu0 %v405
  %838 = vmatpush.bf16.msra.mxu0 %v404
  %839 = vmatpush.bf16.msra.mxu0 %v403
  %840 = vmatpush.bf16.msra.mxu0 %v402
  %841 = vmatmul.bf16.gmra.mxu0 %v421
  %v842 = vpop.f32.mrf.mxu0
  %v843 = vadd.f32 %v584, %v842
  %v844 = vpop.f32.mrf.mxu0
  %v845 = vadd.f32 %v586, %v844
  %846 = vmatmul.bf16.gmra.mxu0 %v424
  %v847 = vpop.f32.mrf.mxu0
  %v848 = vadd.f32 %v589, %v847
  %v849 = vpop.f32.mrf.mxu0
  %v850 = vadd.f32 %v591, %v849
  %851 = vmatmul.bf16.gmra.mxu0 %v427
  %v852 = vpop.f32.mrf.mxu0
  %v853 = vadd.f32 %v594, %v852
  %v854 = vpop.f32.mrf.mxu0
  %v855 = vadd.f32 %v596, %v854
  %856 = vmatmul.bf16.gmra.mxu0 %v430
  %v857 = vpop.f32.mrf.mxu0
  %v858 = vadd.f32 %v599, %v857
  %v859 = vpop.f32.mrf.mxu0
  %v860 = vadd.f32 %v601, %v859
  %861 = vmatmul.bf16.gmra.mxu0 %v433
  %v862 = vpop.f32.mrf.mxu0
  %v863 = vadd.f32 %v604, %v862
  %v864 = vpop.f32.mrf.mxu0
  %v865 = vadd.f32 %v606, %v864
  %866 = vmatmul.bf16.gmra.mxu0 %v436
  %v867 = vpop.f32.mrf.mxu0
  %v868 = vadd.f32 %v609, %v867
  %v869 = vpop.f32.mrf.mxu0
  %v870 = vadd.f32 %v611, %v869
  %871 = vmatmul.bf16.gmra.mxu0 %v439
  %v872 = vpop.f32.mrf.mxu0
  %v873 = vadd.f32 %v614, %v872
  %v874 = vpop.f32.mrf.mxu0
  %v875 = vadd.f32 %v616, %v874
  %876 = vmatmul.bf16.gmra.mxu0 %v442
  %v877 = vpop.f32.mrf.mxu0
  %v878 = vadd.f32 %v619, %v877
  %v879 = vpop.f32.mrf.mxu0
  %v880 = vadd.f32 %v621, %v879
  %881 = vmatmul.bf16.gmra.mxu0 %v445
  %v882 = vpop.f32.mrf.mxu0
  %v883 = vadd.f32 %v624, %v882
  %v884 = vpop.f32.mrf.mxu0
  %v885 = vadd.f32 %v626, %v884
  %886 = vmatmul.bf16.gmra.mxu0 %v448
  %v887 = vpop.f32.mrf.mxu0
  %v888 = vadd.f32 %v629, %v887
  %v889 = vpop.f32.mrf.mxu0
  %v890 = vadd.f32 %v631, %v889
  %891 = vmatmul.bf16.gmra.mxu0 %v451
  %v892 = vpop.f32.mrf.mxu0
  %v893 = vadd.f32 %v634, %v892
  %v894 = vpop.f32.mrf.mxu0
  %v895 = vadd.f32 %v636, %v894
  %896 = vmatmul.bf16.gmra.mxu0 %v454
  %v897 = vpop.f32.mrf.mxu0
  %v898 = vadd.f32 %v639, %v897
  %v899 = vpop.f32.mrf.mxu0
  %v900 = vadd.f32 %v641, %v899
  %901 = vmatmul.bf16.gmra.mxu0 %v457
  %v902 = vpop.f32.mrf.mxu0
  %v903 = vadd.f32 %v644, %v902
  %v904 = vpop.f32.mrf.mxu0
  %v905 = vadd.f32 %v646, %v904
  %906 = vmatmul.bf16.gmra.mxu0 %v460
  %v907 = vpop.f32.mrf.mxu0
  %v908 = vadd.f32 %v649, %v907
  %v909 = vpop.f32.mrf.mxu0
  %v910 = vadd.f32 %v651, %v909
  %911 = vmatmul.bf16.gmra.mxu0 %v463
  %v912 = vpop.f32.mrf.mxu0
  %v913 = vadd.f32 %v654, %v912
  %v914 = vpop.f32.mrf.mxu0
  %v915 = vadd.f32 %v656, %v914
  %916 = vmatmul.bf16.gmra.mxu0 %v466
  %v917 = vpop.f32.mrf.mxu0
  %v918 = vadd.f32 %v659, %v917
  %v919 = vpop.f32.mrf.mxu0
  %v920 = vadd.f32 %v661, %v919
  %921 = vmatmul.bf16.gmra.mxu0 %v469
  %v922 = vpop.f32.mrf.mxu0
  %v923 = vadd.f32 %v664, %v922
  %v924 = vpop.f32.mrf.mxu0
  %v925 = vadd.f32 %v666, %v924
  %926 = vmatmul.bf16.gmra.mxu0 %v472
  %v927 = vpop.f32.mrf.mxu0
  %v928 = vadd.f32 %v669, %v927
  %v929 = vpop.f32.mrf.mxu0
  %v930 = vadd.f32 %v671, %v929
  %931 = vmatmul.bf16.gmra.mxu0 %v475
  %v932 = vpop.f32.mrf.mxu0
  %v933 = vadd.f32 %v674, %v932
  %v934 = vpop.f32.mrf.mxu0
  %v935 = vadd.f32 %v676, %v934
  %936 = vmatmul.bf16.gmra.mxu0 %v478
  %v937 = vpop.f32.mrf.mxu0
  %v938 = vadd.f32 %v679, %v937
  %v939 = vpop.f32.mrf.mxu0
  %v940 = vadd.f32 %v681, %v939
  %941 = vmatmul.bf16.gmra.mxu0 %v481
  %v942 = vpop.f32.mrf.mxu0
  %v943 = vadd.f32 %v684, %v942
  %v944 = vpop.f32.mrf.mxu0
  %v945 = vadd.f32 %v686, %v944
  %946 = vmatmul.bf16.gmra.mxu0 %v484
  %v947 = vpop.f32.mrf.mxu0
  %v948 = vadd.f32 %v689, %v947
  %v949 = vpop.f32.mrf.mxu0
  %v950 = vadd.f32 %v691, %v949
  %951 = vmatmul.bf16.gmra.mxu0 %v487
  %v952 = vpop.f32.mrf.mxu0
  %v953 = vadd.f32 %v694, %v952
  %v954 = vpop.f32.mrf.mxu0
  %v955 = vadd.f32 %v696, %v954
  %956 = vmatmul.bf16.gmra.mxu0 %v490
  %v957 = vpop.f32.mrf.mxu0
  %v958 = vadd.f32 %v699, %v957
  %v959 = vpop.f32.mrf.mxu0
  %v960 = vadd.f32 %v701, %v959
  %961 = vmatmul.bf16.gmra.mxu0 %v493
  %v962 = vpop.f32.mrf.mxu0
  %v963 = vadd.f32 %v704, %v962
  %v964 = vpop.f32.mrf.mxu0
  %v965 = vadd.f32 %v706, %v964
  %966 = vmatmul.bf16.gmra.mxu0 %v496
  %v967 = vpop.f32.mrf.mxu0
  %v968 = vadd.f32 %v709, %v967
  %v969 = vpop.f32.mrf.mxu0
  %v970 = vadd.f32 %v711, %v969
  %971 = vmatmul.bf16.gmra.mxu0 %v499
  %v972 = vpop.f32.mrf.mxu0
  %v973 = vadd.f32 %v714, %v972
  %v974 = vpop.f32.mrf.mxu0
  %v975 = vadd.f32 %v716, %v974
  %976 = vmatmul.bf16.gmra.mxu0 %v502
  %v977 = vpop.f32.mrf.mxu0
  %v978 = vadd.f32 %v719, %v977
  %v979 = vpop.f32.mrf.mxu0
  %v980 = vadd.f32 %v721, %v979
  %981 = vmatmul.bf16.gmra.mxu0 %v505
  %v982 = vpop.f32.mrf.mxu0
  %v983 = vadd.f32 %v724, %v982
  %v984 = vpop.f32.mrf.mxu0
  %v985 = vadd.f32 %v726, %v984
  %986 = vmatmul.bf16.gmra.mxu0 %v508
  %v987 = vpop.f32.mrf.mxu0
  %v988 = vadd.f32 %v729, %v987
  %v989 = vpop.f32.mrf.mxu0
  %v990 = vadd.f32 %v731, %v989
  %991 = vmatmul.bf16.gmra.mxu0 %v511
  %v992 = vpop.f32.mrf.mxu0
  %v993 = vadd.f32 %v734, %v992
  %v994 = vpop.f32.mrf.mxu0
  %v995 = vadd.f32 %v736, %v994
  %996 = vmatmul.bf16.gmra.mxu0 %v514
  %v997 = vpop.f32.mrf.mxu0
  %v998 = vadd.f32 %v739, %v997
  %v999 = vpop.f32.mrf.mxu0
  %v1000 = vadd.f32 %v741, %v999
  %1001 = vmatmul.bf16.gmra.mxu0 %v517
  %v1002 = vpop.f32.mrf.mxu0
  %v1003 = vadd.f32 %v744, %v1002
  %v1004 = vpop.f32.mrf.mxu0
  %v1005 = vadd.f32 %v746, %v1004
  %1006 = vmatmul.bf16.gmra.mxu0 %v520
  %v1007 = vpop.f32.mrf.mxu0
  %v1008 = vadd.f32 %v749, %v1007
  %v1009 = vpop.f32.mrf.mxu0
  %v1010 = vadd.f32 %v751, %v1009
  %1011 = vmatmul.bf16.gmra.mxu0 %v523
  %v1012 = vpop.f32.mrf.mxu0
  %v1013 = vadd.f32 %v754, %v1012
  %v1014 = vpop.f32.mrf.mxu0
  %v1015 = vadd.f32 %v756, %v1014
  %1016 = vmatmul.bf16.gmra.mxu0 %v526
  %v1017 = vpop.f32.mrf.mxu0
  %v1018 = vadd.f32 %v759, %v1017
  %v1019 = vpop.f32.mrf.mxu0
  %v1020 = vadd.f32 %v761, %v1019
  %1021 = vmatmul.bf16.gmra.mxu0 %v529
  %v1022 = vpop.f32.mrf.mxu0
  %v1023 = vadd.f32 %v764, %v1022
  %v1024 = vpop.f32.mrf.mxu0
  %v1025 = vadd.f32 %v766, %v1024
  %1026 = vmatmul.bf16.gmra.mxu0 %v532
  %v1027 = vpop.f32.mrf.mxu0
  %v1028 = vadd.f32 %v769, %v1027
  %v1029 = vpop.f32.mrf.mxu0
  %v1030 = vadd.f32 %v771, %v1029
  %1031 = vmatmul.bf16.gmra.mxu0 %v535
  %v1032 = vpop.f32.mrf.mxu0
  %v1033 = vadd.f32 %v774, %v1032
  %v1034 = vpop.f32.mrf.mxu0
  %v1035 = vadd.f32 %v776, %v1034
  %1036 = vmatmul.bf16.gmra.mxu0 %v538
  %v1037 = vpop.f32.mrf.mxu0
  %v1038 = vadd.f32 %v779, %v1037
  %v1039 = vpop.f32.mrf.mxu0
  %v1040 = vadd.f32 %v781, %v1039
  %1041 = vmatmul.bf16.gmra.mxu0 %v541
  %v1042 = vpop.f32.mrf.mxu0
  %v1043 = vadd.f32 %v784, %v1042
  %v1044 = vpop.f32.mrf.mxu0
  %v1045 = vadd.f32 %v786, %v1044
  %1046 = vmatmul.bf16.gmra.mxu0 %v544
  %v1047 = vpop.f32.mrf.mxu0
  %v1048 = vadd.f32 %v789, %v1047
  %v1049 = vpop.f32.mrf.mxu0
  %v1050 = vadd.f32 %v791, %v1049
  %1051 = vmatmul.bf16.gmra.mxu0 %v547
  %v1052 = vpop.f32.mrf.mxu0
  %v1053 = vadd.f32 %v794, %v1052
  %v1054 = vpop.f32.mrf.mxu0
  %v1055 = vadd.f32 %v796, %v1054
  %1056 = vmatmul.bf16.gmra.mxu0 %v550
  %v1057 = vpop.f32.mrf.mxu0
  %v1058 = vadd.f32 %v799, %v1057
  %v1059 = vpop.f32.mrf.mxu0
  %v1060 = vadd.f32 %v801, %v1059
  %1061 = vmatmul.bf16.gmra.mxu0 %v553
  %v1062 = vpop.f32.mrf.mxu0
  %v1063 = vadd.f32 %v804, %v1062
  %v1064 = vpop.f32.mrf.mxu0
  %v1065 = vadd.f32 %v806, %v1064
  %1066 = vmatmul.bf16.gmra.mxu0 %v556
  %v1067 = vpop.f32.mrf.mxu0
  %v1068 = vadd.f32 %v809, %v1067
  %v1069 = vpop.f32.mrf.mxu0
  %v1070 = vadd.f32 %v811, %v1069
  %1071 = vmatmul.bf16.gmra.mxu0 %v559
  %v1072 = vpop.f32.mrf.mxu0
  %v1073 = vadd.f32 %v814, %v1072
  %v1074 = vpop.f32.mrf.mxu0
  %v1075 = vadd.f32 %v816, %v1074
  %1076 = vmatmul.bf16.gmra.mxu0 %v562
  %v1077 = vpop.f32.mrf.mxu0
  %v1078 = vadd.f32 %v819, %v1077
  %v1079 = vpop.f32.mrf.mxu0
  %v1080 = vadd.f32 %v821, %v1079
  %1081 = vmatmul.bf16.gmra.mxu0 %v565
  %v1082 = vpop.f32.mrf.mxu0
  %v1083 = vadd.f32 %v824, %v1082
  %v1084 = vpop.f32.mrf.mxu0
  %v1085 = vadd.f32 %v826, %v1084
  %1086 = vmatmul.bf16.gmra.mxu0 %v568
  %v1087 = vpop.f32.mrf.mxu0
  %v1088 = vadd.f32 %v829, %v1087
  %v1089 = vpop.f32.mrf.mxu0
  %v1090 = vadd.f32 %v831, %v1089
  %1091 = vdwg.mxu0
  %v1092 = vmax.f32 %v843, 0.0
  %v1093 = vmax.f32 %v845, 0.0
  %v1094 = vmax.f32 %v848, 0.0
  %v1095 = vmax.f32 %v850, 0.0
  %v1096 = vmax.f32 %v853, 0.0
  %v1097 = vmax.f32 %v855, 0.0
  %v1098 = vmax.f32 %v858, 0.0
  %v1099 = vmax.f32 %v860, 0.0
  %v1100 = vmax.f32 %v863, 0.0
  %v1101 = vmax.f32 %v865, 0.0
  %v1102 = vmax.f32 %v868, 0.0
  %v1103 = vmax.f32 %v870, 0.0
  %v1104 = vmax.f32 %v873, 0.0
  %v1105 = vmax.f32 %v875, 0.0
  %v1106 = vmax.f32 %v878, 0.0
  %v1107 = vmax.f32 %v880, 0.0
  %v1108 = vmax.f32 %v883, 0.0
  %v1109 = vmax.f32 %v885, 0.0
  %v1110 = vmax.f32 %v888, 0.0
  %v1111 = vmax.f32 %v890, 0.0
  %v1112 = vmax.f32 %v893, 0.0
  %v1113 = vmax.f32 %v895, 0.0
  %v1114 = vmax.f32 %v898, 0.0
  %v1115 = vmax.f32 %v900, 0.0
  %v1116 = vmax.f32 %v903, 0.0
  %v1117 = vmax.f32 %v905, 0.0
  %v1118 = vmax.f32 %v908, 0.0
  %v1119 = vmax.f32 %v910, 0.0
  %v1120 = vmax.f32 %v913, 0.0
  %v1121 = vmax.f32 %v915, 0.0
  %v1122 = vmax.f32 %v918, 0.0
  %v1123 = vmax.f32 %v920, 0.0
  %v1124 = vmax.f32 %v923, 0.0
  %v1125 = vmax.f32 %v925, 0.0
  %v1126 = vmax.f32 %v928, 0.0
  %v1127 = vmax.f32 %v930, 0.0
  %v1128 = vmax.f32 %v933, 0.0
  %v1129 = vmax.f32 %v935, 0.0
  %v1130 = vmax.f32 %v938, 0.0
  %v1131 = vmax.f32 %v940, 0.0
  %v1132 = vmax.f32 %v943, 0.0
  %v1133 = vmax.f32 %v945, 0.0
  %v1134 = vmax.f32 %v948, 0.0
  %v1135 = vmax.f32 %v950, 0.0
  %v1136 = vmax.f32 %v953, 0.0
  %v1137 = vmax.f32 %v955, 0.0
  %v1138 = vmax.f32 %v958, 0.0
  %v1139 = vmax.f32 %v960, 0.0
  %v1140 = vmax.f32 %v963, 0.0
  %v1141 = vmax.f32 %v965, 0.0
  %v1142 = vmax.f32 %v968, 0.0
  %v1143 = vmax.f32 %v970, 0.0
  %v1144 = vmax.f32 %v973, 0.0
  %v1145 = vmax.f32 %v975, 0.0
  %v1146 = vmax.f32 %v978, 0.0
  %v1147 = vmax.f32 %v980, 0.0
  %v1148 = vmax.f32 %v983, 0.0
  %v1149 = vmax.f32 %v985, 0.0
  %v1150 = vmax.f32 %v988, 0.0
  %v1151 = vmax.f32 %v990, 0.0
  %v1152 = vmax.f32 %v993, 0.0
  %v1153 = vmax.f32 %v995, 0.0
  %v1154 = vmax.f32 %v998, 0.0
  %v1155 = vmax.f32 %v1000, 0.0
  %v1156 = vmax.f32 %v1003, 0.0
  %v1157 = vmax.f32 %v1005, 0.0
  %v1158 = vmax.f32 %v1008, 0.0
  %v1159 = vmax.f32 %v1010, 0.0
  %v1160 = vmax.f32 %v1013, 0.0
  %v1161 = vmax.f32 %v1015, 0.0
  %v1162 = vmax.f32 %v1018, 0.0
  %v1163 = vmax.f32 %v1020, 0.0
  %v1164 = vmax.f32 %v1023, 0.0
  %v1165 = vmax.f32 %v1025, 0.0
  %v1166 = vmax.f32 %v1028, 0.0
  %v1167 = vmax.f32 %v1030, 0.0
  %v1168 = vmax.f32 %v1033, 0.0
  %v1169 = vmax.f32 %v1035, 0.0
  %v1170 = vmax.f32 %v1038, 0.0
  %v1171 = vmax.f32 %v1040, 0.0
  %v1172 = vmax.f32 %v1043, 0.0
  %v1173 = vmax.f32 %v1045, 0.0
  %v1174 = vmax.f32 %v1048, 0.0
  %v1175 = vmax.f32 %v1050, 0.0
  %v1176 = vmax.f32 %v1053, 0.0
  %v1177 = vmax.f32 %v1055, 0.0
  %v1178 = vmax.f32 %v1058, 0.0
  %v1179 = vmax.f32 %v1060, 0.0
  %v1180 = vmax.f32 %v1063, 0.0
  %v1181 = vmax.f32 %v1065, 0.0
  %v1182 = vmax.f32 %v1068, 0.0
  %v1183 = vmax.f32 %v1070, 0.0
  %v1184 = vmax.f32 %v1073, 0.0
  %v1185 = vmax.f32 %v1075, 0.0
  %v1186 = vmax.f32 %v1078, 0.0
  %v1187 = vmax.f32 %v1080, 0.0
  %v1188 = vmax.f32 %v1083, 0.0
  %v1189 = vmax.f32 %v1085, 0.0
  %v1190 = vmax.f32 %v1088, 0.0
  %v1191 = vmax.f32 %v1090, 0.0
  %vm1192 = vcmask 261120
  %1193 = vst.msk [vmem:[%s3] sm:$0xff] %vm1192, %v1092
  %1194 = vst.msk [vmem:[%s3 + $0x8] sm:$0xff] %vm1192, %v1093
  %1195 = vst.msk [vmem:[%s3 + $0x10] sm:$0xff] %vm1192, %v1094
  %1196 = vst.msk [vmem:[%s3 + $0x18] sm:$0xff] %vm1192, %v1095
  %1197 = vst.msk [vmem:[%s3 + $0x20] sm:$0xff] %vm1192, %v1096
  %1198 = vst.msk [vmem:[%s3 + $0x28] sm:$0xff] %vm1192, %v1097
  %1199 = vst.msk [vmem:[%s3 + $0x30] sm:$0xff] %vm1192, %v1098
  %1200 = vst.msk [vmem:[%s3 + $0x38] sm:$0xff] %vm1192, %v1099
  %1201 = vst.msk [vmem:[%s3 + $0x40] sm:$0xff] %vm1192, %v1100
  %1202 = vst.msk [vmem:[%s3 + $0x48] sm:$0xff] %vm1192, %v1101
  %1203 = vst.msk [vmem:[%s3 + $0x50] sm:$0xff] %vm1192, %v1102
  %1204 = vst.msk [vmem:[%s3 + $0x58] sm:$0xff] %vm1192, %v1103
  %1205 = vst.msk [vmem:[%s3 + $0x60] sm:$0xff] %vm1192, %v1104
  %1206 = vst.msk [vmem:[%s3 + $0x68] sm:$0xff] %vm1192, %v1105
  %1207 = vst.msk [vmem:[%s3 + $0x70] sm:$0xff] %vm1192, %v1106
  %1208 = vst.msk [vmem:[%s3 + $0x78] sm:$0xff] %vm1192, %v1107
  %1209 = vst.msk [vmem:[%s3 + $0x80] sm:$0xff] %vm1192, %v1108
  %1210 = vst.msk [vmem:[%s3 + $0x88] sm:$0xff] %vm1192, %v1109
  %1211 = vst.msk [vmem:[%s3 + $0x90] sm:$0xff] %vm1192, %v1110
  %1212 = vst.msk [vmem:[%s3 + $0x98] sm:$0xff] %vm1192, %v1111
  %1213 = vst.msk [vmem:[%s3 + $0xa0] sm:$0xff] %vm1192, %v1112
  %1214 = vst.msk [vmem:[%s3 + $0xa8] sm:$0xff] %vm1192, %v1113
  %1215 = vst.msk [vmem:[%s3 + $0xb0] sm:$0xff] %vm1192, %v1114
  %1216 = vst.msk [vmem:[%s3 + $0xb8] sm:$0xff] %vm1192, %v1115
  %1217 = vst.msk [vmem:[%s3 + $0xc0] sm:$0xff] %vm1192, %v1116
  %1218 = vst.msk [vmem:[%s3 + $0xc8] sm:$0xff] %vm1192, %v1117
  %1219 = vst.msk [vmem:[%s3 + $0xd0] sm:$0xff] %vm1192, %v1118
  %1220 = vst.msk [vmem:[%s3 + $0xd8] sm:$0xff] %vm1192, %v1119
  %1221 = vst.msk [vmem:[%s3 + $0xe0] sm:$0xff] %vm1192, %v1120
  %1222 = vst.msk [vmem:[%s3 + $0xe8] sm:$0xff] %vm1192, %v1121
  %1223 = vst.msk [vmem:[%s3 + $0xf0] sm:$0xff] %vm1192, %v1122
  %1224 = vst.msk [vmem:[%s3 + $0xf8] sm:$0xff] %vm1192, %v1123
  %1225 = vst.msk [vmem:[%s3 + $0x100] sm:$0xff] %vm1192, %v1124
  %1226 = vst.msk [vmem:[%s3 + $0x108] sm:$0xff] %vm1192, %v1125
  %1227 = vst.msk [vmem:[%s3 + $0x110] sm:$0xff] %vm1192, %v1126
  %1228 = vst.msk [vmem:[%s3 + $0x118] sm:$0xff] %vm1192, %v1127
  %1229 = vst.msk [vmem:[%s3 + $0x120] sm:$0xff] %vm1192, %v1128
  %1230 = vst.msk [vmem:[%s3 + $0x128] sm:$0xff] %vm1192, %v1129
  %1231 = vst.msk [vmem:[%s3 + $0x130] sm:$0xff] %vm1192, %v1130
  %1232 = vst.msk [vmem:[%s3 + $0x138] sm:$0xff] %vm1192, %v1131
  %1233 = vst.msk [vmem:[%s3 + $0x140] sm:$0xff] %vm1192, %v1132
  %1234 = vst.msk [vmem:[%s3 + $0x148] sm:$0xff] %vm1192, %v1133
  %1235 = vst.msk [vmem:[%s3 + $0x150] sm:$0xff] %vm1192, %v1134
  %1236 = vst.msk [vmem:[%s3 + $0x158] sm:$0xff] %vm1192, %v1135
  %1237 = vst.msk [vmem:[%s3 + $0x160] sm:$0xff] %vm1192, %v1136
  %1238 = vst.msk [vmem:[%s3 + $0x168] sm:$0xff] %vm1192, %v1137
  %1239 = vst.msk [vmem:[%s3 + $0x170] sm:$0xff] %vm1192, %v1138
  %1240 = vst.msk [vmem:[%s3 + $0x178] sm:$0xff] %vm1192, %v1139
  %1241 = vst.msk [vmem:[%s3 + $0x180] sm:$0xff] %vm1192, %v1140
  %1242 = vst.msk [vmem:[%s3 + $0x188] sm:$0xff] %vm1192, %v1141
  %1243 = vst.msk [vmem:[%s3 + $0x190] sm:$0xff] %vm1192, %v1142
  %1244 = vst.msk [vmem:[%s3 + $0x198] sm:$0xff] %vm1192, %v1143
  %1245 = vst.msk [vmem:[%s3 + $0x1a0] sm:$0xff] %vm1192, %v1144
  %1246 = vst.msk [vmem:[%s3 + $0x1a8] sm:$0xff] %vm1192, %v1145
  %1247 = vst.msk [vmem:[%s3 + $0x1b0] sm:$0xff] %vm1192, %v1146
  %1248 = vst.msk [vmem:[%s3 + $0x1b8] sm:$0xff] %vm1192, %v1147
  %1249 = vst.msk [vmem:[%s3 + $0x1c0] sm:$0xff] %vm1192, %v1148
  %1250 = vst.msk [vmem:[%s3 + $0x1c8] sm:$0xff] %vm1192, %v1149
  %1251 = vst.msk [vmem:[%s3 + $0x1d0] sm:$0xff] %vm1192, %v1150
  %1252 = vst.msk [vmem:[%s3 + $0x1d8] sm:$0xff] %vm1192, %v1151
  %1253 = vst.msk [vmem:[%s3 + $0x1e0] sm:$0xff] %vm1192, %v1152
  %1254 = vst.msk [vmem:[%s3 + $0x1e8] sm:$0xff] %vm1192, %v1153
  %1255 = vst.msk [vmem:[%s3 + $0x1f0] sm:$0xff] %vm1192, %v1154
  %1256 = vst.msk [vmem:[%s3 + $0x1f8] sm:$0xff] %vm1192, %v1155
  %1257 = vst.msk [vmem:[%s3 + $0x200] sm:$0xff] %vm1192, %v1156
  %1258 = vst.msk [vmem:[%s3 + $0x208] sm:$0xff] %vm1192, %v1157
  %1259 = vst.msk [vmem:[%s3 + $0x210] sm:$0xff] %vm1192, %v1158
  %1260 = vst.msk [vmem:[%s3 + $0x218] sm:$0xff] %vm1192, %v1159
  %1261 = vst.msk [vmem:[%s3 + $0x220] sm:$0xff] %vm1192, %v1160
  %1262 = vst.msk [vmem:[%s3 + $0x228] sm:$0xff] %vm1192, %v1161
  %1263 = vst.msk [vmem:[%s3 + $0x230] sm:$0xff] %vm1192, %v1162
  %1264 = vst.msk [vmem:[%s3 + $0x238] sm:$0xff] %vm1192, %v1163
  %1265 = vst.msk [vmem:[%s3 + $0x240] sm:$0xff] %vm1192, %v1164
  %1266 = vst.msk [vmem:[%s3 + $0x248] sm:$0xff] %vm1192, %v1165
  %1267 = vst.msk [vmem:[%s3 + $0x250] sm:$0xff] %vm1192, %v1166
  %1268 = vst.msk [vmem:[%s3 + $0x258] sm:$0xff] %vm1192, %v1167
  %1269 = vst.msk [vmem:[%s3 + $0x260] sm:$0xff] %vm1192, %v1168
  %1270 = vst.msk [vmem:[%s3 + $0x268] sm:$0xff] %vm1192, %v1169
  %1271 = vst.msk [vmem:[%s3 + $0x270] sm:$0xff] %vm1192, %v1170
  %1272 = vst.msk [vmem:[%s3 + $0x278] sm:$0xff] %vm1192, %v1171
  %1273 = vst.msk [vmem:[%s3 + $0x280] sm:$0xff] %vm1192, %v1172
  %1274 = vst.msk [vmem:[%s3 + $0x288] sm:$0xff] %vm1192, %v1173
  %1275 = vst.msk [vmem:[%s3 + $0x290] sm:$0xff] %vm1192, %v1174
  %1276 = vst.msk [vmem:[%s3 + $0x298] sm:$0xff] %vm1192, %v1175
  %1277 = vst.msk [vmem:[%s3 + $0x2a0] sm:$0xff] %vm1192, %v1176
  %1278 = vst.msk [vmem:[%s3 + $0x2a8] sm:$0xff] %vm1192, %v1177
  %1279 = vst.msk [vmem:[%s3 + $0x2b0] sm:$0xff] %vm1192, %v1178
  %1280 = vst.msk [vmem:[%s3 + $0x2b8] sm:$0xff] %vm1192, %v1179
  %1281 = vst.msk [vmem:[%s3 + $0x2c0] sm:$0xff] %vm1192, %v1180
  %1282 = vst.msk [vmem:[%s3 + $0x2c8] sm:$0xff] %vm1192, %v1181
  %1283 = vst.msk [vmem:[%s3 + $0x2d0] sm:$0xff] %vm1192, %v1182
  %1284 = vst.msk [vmem:[%s3 + $0x2d8] sm:$0xff] %vm1192, %v1183
  %1285 = vst.msk [vmem:[%s3 + $0x2e0] sm:$0xff] %vm1192, %v1184
  %1286 = vst.msk [vmem:[%s3 + $0x2e8] sm:$0xff] %vm1192, %v1185
  %1287 = vst.msk [vmem:[%s3 + $0x2f0] sm:$0xff] %vm1192, %v1186
  %1288 = vst.msk [vmem:[%s3 + $0x2f8] sm:$0xff] %vm1192, %v1187
  %1289 = vst.msk [vmem:[%s3 + $0x300] sm:$0xff] %vm1192, %v1188
  %1290 = vst.msk [vmem:[%s3 + $0x308] sm:$0xff] %vm1192, %v1189
  %1291 = vst.msk [vmem:[%s3 + $0x310] sm:$0xff] %vm1192, %v1190
  %1292 = vst.msk [vmem:[%s3 + $0x318] sm:$0xff] %vm1192, %v1191
  // Predicated region
  $region14: #{dueling_dqn_forward.4} parent=0 // pred_check
    _
  $region15: #{dueling_dqn_forward.4} parent=0 // pred_check_branch
    %1294 = sbr.rel (0) target = $region17
  $region16: #{dueling_dqn_forward.4} parent=0 // pred_region
    _
  $region17: #{dueling_dqn_forward.4} parent=0 // pred_fallthru
    _
  // Predicated region
  $region18: #{dueling_dqn_forward.4} parent=0 // pred_check
    _
  $region19: #{dueling_dqn_forward.4} parent=0 // pred_check_branch
    %1296 = sbr.rel (0) target = $region21
  $region20: #{dueling_dqn_forward.4} parent=0 // pred_region
    _
  $region21: #{dueling_dqn_forward.4} parent=0 // pred_fallthru
    _

// kernel: dueling_dqn_forward.5
$region0: #{dueling_dqn_forward.5}
  #allocation0 [shape = 'u32[]', space=smem, size = 0x4, offset = 0x4, fixed_abs, tag = 'smem constant byte address 0x4 - core index']
  #allocation1 [shape = 'u32[72,128]{1,0:T(1,128)}', space=vmem, size = 0x9000, scoped, tag = 'internal scratch']
  %s0 = inlined_call_operand.vmem [shape: f32[128,800], index: 0, kind: input, shape index: {}]
  %s1 = inlined_call_operand.vmem [shape: bf16[800,64], index: 1, kind: input, shape index: {}]
  %s2 = inlined_call_operand.vmem [shape: f32[1,64], index: 2, kind: input, shape index: {}]
  %s3 = inlined_call_operand.vmem [shape: f32[128,64], index: 3, kind: output, shape index: {}]
  %s4 = sld [smem:[#allocation0]]
  $region22: #{dueling_dqn_forward.5} parent=0
    _
  %s6 = ssub.s32 1, %s4
  %s7 = scalar_select 0, %s6, %s4
  // Predicated region
  $region2: #{dueling_dqn_forward.5} parent=0 // pred_check
    _
  $region3: #{dueling_dqn_forward.5} parent=0 // pred_check_branch
    %9 = sbr.rel (0) target = $region5
  $region4: #{dueling_dqn_forward.5} parent=0 // pred_region
    _
  $region5: #{dueling_dqn_forward.5} parent=0 // pred_fallthru
    _
  // Predicated region
  $region6: #{dueling_dqn_forward.5} parent=0 // pred_check
    _
  $region7: #{dueling_dqn_forward.5} parent=0 // pred_check_branch
    %11 = sbr.rel (0) target = $region9
  $region8: #{dueling_dqn_forward.5} parent=0 // pred_region
    _
  $region9: #{dueling_dqn_forward.5} parent=0 // pred_fallthru
    _
  // Predicated region
  $region10: #{dueling_dqn_forward.5} parent=0 // pred_check
    _
  $region11: #{dueling_dqn_forward.5} parent=0 // pred_check_branch
    %13 = sbr.rel (0) target = $region13
  $region12: #{dueling_dqn_forward.5} parent=0 // pred_region
    _
  $region13: #{dueling_dqn_forward.5} parent=0 // pred_fallthru
    _
  %v15 = vld [vmem:[%s0] sm:$0xff]
  %v16 = vld [vmem:[%s0 + $0x8] sm:$0xff]
  %v17 = vld [vmem:[%s0 + $0x10] sm:$0xff]
  %v18 = vld [vmem:[%s0 + $0x18] sm:$0xff]
  %v19 = vld [vmem:[%s0 + $0x20] sm:$0xff]
  %v20 = vld [vmem:[%s0 + $0x28] sm:$0xff]
  %v21 = vld [vmem:[%s0 + $0x30] sm:$0xff]
  %v22 = vld [vmem:[%s0 + $0x38] sm:$0xff]
  %v23 = vld [vmem:[%s0 + $0x40] sm:$0xff]
  %v24 = vld [vmem:[%s0 + $0x48] sm:$0xff]
  %v25 = vld [vmem:[%s0 + $0x50] sm:$0xff]
  %v26 = vld [vmem:[%s0 + $0x58] sm:$0xff]
  %v27 = vld [vmem:[%s0 + $0x60] sm:$0xff]
  %v28 = vld [vmem:[%s0 + $0x68] sm:$0xff]
  %v29 = vld [vmem:[%s0 + $0x70] sm:$0xff]
  %v30 = vld [vmem:[%s0 + $0x78] sm:$0xff]
  %v31 = vld [vmem:[%s0 + $0x80] sm:$0xff]
  %v32 = vld [vmem:[%s0 + $0x88] sm:$0xff]
  %v33 = vld [vmem:[%s0 + $0x90] sm:$0xff]
  %v34 = vld [vmem:[%s0 + $0x98] sm:$0xff]
  %v35 = vld [vmem:[%s0 + $0xa0] sm:$0xff]
  %v36 = vld [vmem:[%s0 + $0xa8] sm:$0xff]
  %v37 = vld [vmem:[%s0 + $0xb0] sm:$0xff]
  %v38 = vld [vmem:[%s0 + $0xb8] sm:$0xff]
  %v39 = vld [vmem:[%s0 + $0xc0] sm:$0xff]
  %v40 = vld [vmem:[%s0 + $0xc8] sm:$0xff]
  %v41 = vld [vmem:[%s0 + $0xd0] sm:$0xff]
  %v42 = vld [vmem:[%s0 + $0xd8] sm:$0xff]
  %v43 = vld [vmem:[%s0 + $0xe0] sm:$0xff]
  %v44 = vld [vmem:[%s0 + $0xe8] sm:$0xff]
  %v45 = vld [vmem:[%s0 + $0xf0] sm:$0xff]
  %v46 = vld [vmem:[%s0 + $0xf8] sm:$0xff]
  %v47 = vld [vmem:[%s0 + $0x100] sm:$0xff]
  %v48 = vld [vmem:[%s0 + $0x108] sm:$0xff]
  %v49 = vld [vmem:[%s0 + $0x110] sm:$0xff]
  %v50 = vld [vmem:[%s0 + $0x118] sm:$0xff]
  %v51 = vld [vmem:[%s0 + $0x120] sm:$0xff]
  %v52 = vld [vmem:[%s0 + $0x128] sm:$0xff]
  %v53 = vld [vmem:[%s0 + $0x130] sm:$0xff]
  %v54 = vld [vmem:[%s0 + $0x138] sm:$0xff]
  %v55 = vld [vmem:[%s0 + $0x140] sm:$0xff]
  %v56 = vld [vmem:[%s0 + $0x148] sm:$0xff]
  %v57 = vld [vmem:[%s0 + $0x150] sm:$0xff]
  %v58 = vld [vmem:[%s0 + $0x158] sm:$0xff]
  %v59 = vld [vmem:[%s0 + $0x160] sm:$0xff]
  %v60 = vld [vmem:[%s0 + $0x168] sm:$0xff]
  %v61 = vld [vmem:[%s0 + $0x170] sm:$0xff]
  %v62 = vld [vmem:[%s0 + $0x178] sm:$0xff]
  %v63 = vld [vmem:[%s0 + $0x180] sm:$0xff]
  %v64 = vld [vmem:[%s0 + $0x188] sm:$0xff]
  %v65 = vld [vmem:[%s0 + $0x190] sm:$0xff]
  %v66 = vld [vmem:[%s0 + $0x198] sm:$0xff]
  %v67 = vld [vmem:[%s0 + $0x1a0] sm:$0xff]
  %v68 = vld [vmem:[%s0 + $0x1a8] sm:$0xff]
  %v69 = vld [vmem:[%s0 + $0x1b0] sm:$0xff]
  %v70 = vld [vmem:[%s0 + $0x1b8] sm:$0xff]
  %v71 = vld [vmem:[%s0 + $0x1c0] sm:$0xff]
  %v72 = vld [vmem:[%s0 + $0x1c8] sm:$0xff]
  %v73 = vld [vmem:[%s0 + $0x1d0] sm:$0xff]
  %v74 = vld [vmem:[%s0 + $0x1d8] sm:$0xff]
  %v75 = vld [vmem:[%s0 + $0x1e0] sm:$0xff]
  %v76 = vld [vmem:[%s0 + $0x1e8] sm:$0xff]
  %v77 = vld [vmem:[%s0 + $0x1f0] sm:$0xff]
  %v78 = vld [vmem:[%s0 + $0x1f8] sm:$0xff]
  %v79 = vld [vmem:[%s0 + $0x200] sm:$0xff]
  %v80 = vld [vmem:[%s0 + $0x208] sm:$0xff]
  %v81 = vld [vmem:[%s0 + $0x210] sm:$0xff]
  %v82 = vld [vmem:[%s0 + $0x218] sm:$0xff]
  %v83 = vld [vmem:[%s0 + $0x220] sm:$0xff]
  %v84 = vld [vmem:[%s0 + $0x228] sm:$0xff]
  %v85 = vld [vmem:[%s0 + $0x230] sm:$0xff]
  %v86 = vld [vmem:[%s0 + $0x238] sm:$0xff]
  %v87 = vld [vmem:[%s0 + $0x240] sm:$0xff]
  %v88 = vld [vmem:[%s0 + $0x248] sm:$0xff]
  %v89 = vld [vmem:[%s0 + $0x250] sm:$0xff]
  %v90 = vld [vmem:[%s0 + $0x258] sm:$0xff]
  %v91 = vld [vmem:[%s0 + $0x260] sm:$0xff]
  %v92 = vld [vmem:[%s0 + $0x268] sm:$0xff]
  %v93 = vld [vmem:[%s0 + $0x270] sm:$0xff]
  %v94 = vld [vmem:[%s0 + $0x278] sm:$0xff]
  %v95 = vld [vmem:[%s0 + $0x280] sm:$0xff]
  %v96 = vld [vmem:[%s0 + $0x288] sm:$0xff]
  %v97 = vld [vmem:[%s0 + $0x290] sm:$0xff]
  %v98 = vld [vmem:[%s0 + $0x298] sm:$0xff]
  %v99 = vld [vmem:[%s0 + $0x2a0] sm:$0xff]
  %v100 = vld [vmem:[%s0 + $0x2a8] sm:$0xff]
  %v101 = vld [vmem:[%s0 + $0x2b0] sm:$0xff]
  %v102 = vld [vmem:[%s0 + $0x2b8] sm:$0xff]
  %v103 = vld [vmem:[%s0 + $0x2c0] sm:$0xff]
  %v104 = vld [vmem:[%s0 + $0x2c8] sm:$0xff]
  %v105 = vld [vmem:[%s0 + $0x2d0] sm:$0xff]
  %v106 = vld [vmem:[%s0 + $0x2d8] sm:$0xff]
  %v107 = vld [vmem:[%s0 + $0x2e0] sm:$0xff]
  %v108 = vld [vmem:[%s0 + $0x2e8] sm:$0xff]
  %v109 = vld [vmem:[%s0 + $0x2f0] sm:$0xff]
  %v110 = vld [vmem:[%s0 + $0x2f8] sm:$0xff]
  %v111 = vld [vmem:[%s0 + $0x300] sm:$0xff]
  %v112 = vld [vmem:[%s0 + $0x308] sm:$0xff]
  %v113 = vld [vmem:[%s0 + $0x310] sm:$0xff]
  %v114 = vld [vmem:[%s0 + $0x318] sm:$0xff]
  %v115 = vld [vmem:[%s0 + $0x320] sm:$0xff]
  %v116 = vld [vmem:[%s0 + $0x328] sm:$0xff]
  %v117 = vld [vmem:[%s0 + $0x330] sm:$0xff]
  %v118 = vld [vmem:[%s0 + $0x338] sm:$0xff]
  %v119 = vld [vmem:[%s0 + $0x340] sm:$0xff]
  %v120 = vld [vmem:[%s0 + $0x348] sm:$0xff]
  %v121 = vld [vmem:[%s0 + $0x350] sm:$0xff]
  %v122 = vld [vmem:[%s0 + $0x358] sm:$0xff]
  %v123 = vld [vmem:[%s0 + $0x360] sm:$0xff]
  %v124 = vld [vmem:[%s0 + $0x368] sm:$0xff]
  %v125 = vld [vmem:[%s0 + $0x370] sm:$0xff]
  %v126 = vld [vmem:[%s0 + $0x378] sm:$0xff]
  %v127 = vpack.c.bf16 %v22, %v15
  %v128 = vpack.c.bf16 %v23, %v16
  %v129 = vpack.c.bf16 %v24, %v17
  %v130 = vpack.c.bf16 %v25, %v18
  %v131 = vpack.c.bf16 %v26, %v19
  %v132 = vpack.c.bf16 %v27, %v20
  %v133 = vpack.c.bf16 %v28, %v21
  %v134 = vpack.c.bf16 %v36, %v29
  %v135 = vpack.c.bf16 %v37, %v30
  %v136 = vpack.c.bf16 %v38, %v31
  %v137 = vpack.c.bf16 %v39, %v32
  %v138 = vpack.c.bf16 %v40, %v33
  %v139 = vpack.c.bf16 %v41, %v34
  %v140 = vpack.c.bf16 %v42, %v35
  %v141 = vpack.c.bf16 %v50, %v43
  %v142 = vpack.c.bf16 %v51, %v44
  %v143 = vpack.c.bf16 %v52, %v45
  %v144 = vpack.c.bf16 %v53, %v46
  %v145 = vpack.c.bf16 %v54, %v47
  %v146 = vpack.c.bf16 %v55, %v48
  %v147 = vpack.c.bf16 %v56, %v49
  %v148 = vpack.c.bf16 %v64, %v57
  %v149 = vpack.c.bf16 %v65, %v58
  %v150 = vpack.c.bf16 %v66, %v59
  %v151 = vpack.c.bf16 %v67, %v60
  %v152 = vpack.c.bf16 %v68, %v61
  %v153 = vpack.c.bf16 %v69, %v62
  %v154 = vpack.c.bf16 %v70, %v63
  %v155 = vpack.c.bf16 %v78, %v71
  %v156 = vpack.c.bf16 %v79, %v72
  %v157 = vpack.c.bf16 %v80, %v73
  %v158 = vpack.c.bf16 %v81, %v74
  %v159 = vpack.c.bf16 %v82, %v75
  %v160 = vpack.c.bf16 %v83, %v76
  %v161 = vpack.c.bf16 %v84, %v77
  %v162 = vpack.c.bf16 %v92, %v85
  %v163 = vpack.c.bf16 %v93, %v86
  %v164 = vpack.c.bf16 %v94, %v87
  %v165 = vpack.c.bf16 %v95, %v88
  %v166 = vpack.c.bf16 %v96, %v89
  %v167 = vpack.c.bf16 %v97, %v90
  %v168 = vpack.c.bf16 %v98, %v91
  %v169 = vpack.c.bf16 %v106, %v99
  %v170 = vpack.c.bf16 %v107, %v100
  %v171 = vpack.c.bf16 %v108, %v101
  %v172 = vpack.c.bf16 %v109, %v102
  %v173 = vpack.c.bf16 %v110, %v103
  %v174 = vpack.c.bf16 %v111, %v104
  %v175 = vpack.c.bf16 %v112, %v105
  %v176 = vpack.c.bf16 %v120, %v113
  %v177 = vpack.c.bf16 %v121, %v114
  %v178 = vpack.c.bf16 %v122, %v115
  %v179 = vpack.c.bf16 %v123, %v116
  %v180 = vpack.c.bf16 %v124, %v117
  %v181 = vpack.c.bf16 %v125, %v118
  %v182 = vpack.c.bf16 %v126, %v119
  %v183 = vld [vmem:[%s1] sm:$0xf]
  %v184 = vld [vmem:[%s1 + $0x4] sm:$0xf]
  %v185 = vld [vmem:[%s1 + $0x8] sm:$0xf]
  %v186 = vld [vmem:[%s1 + $0xc] sm:$0xf]
  %v187 = vld [vmem:[%s1 + $0x10] sm:$0xf]
  %v188 = vld [vmem:[%s1 + $0x14] sm:$0xf]
  %v189 = vld [vmem:[%s1 + $0x18] sm:$0xf]
  %v190 = vld [vmem:[%s1 + $0x1c] sm:$0xf]
  %v191 = vld [vmem:[%s1 + $0x20] sm:$0xf]
  %v192 = vld [vmem:[%s1 + $0x24] sm:$0xf]
  %v193 = vld [vmem:[%s1 + $0x28] sm:$0xf]
  %v194 = vld [vmem:[%s1 + $0x2c] sm:$0xf]
  %v195 = vld [vmem:[%s1 + $0x30] sm:$0xf]
  %v196 = vld [vmem:[%s1 + $0x34] sm:$0xf]
  %v197 = vld [vmem:[%s1 + $0x38] sm:$0xf]
  %v198 = vld [vmem:[%s1 + $0x3c] sm:$0xf]
  %v199 = vld [vmem:[%s1 + $0x40] sm:$0xf]
  %v200 = vld [vmem:[%s1 + $0x44] sm:$0xf]
  %v201 = vld [vmem:[%s1 + $0x48] sm:$0xf]
  %v202 = vld [vmem:[%s1 + $0x4c] sm:$0xf]
  %v203 = vld [vmem:[%s1 + $0x50] sm:$0xf]
  %v204 = vld [vmem:[%s1 + $0x54] sm:$0xf]
  %v205 = vld [vmem:[%s1 + $0x58] sm:$0xf]
  %v206 = vld [vmem:[%s1 + $0x5c] sm:$0xf]
  %v207 = vld [vmem:[%s1 + $0x60] sm:$0xf]
  %v208 = vld [vmem:[%s1 + $0x64] sm:$0xf]
  %v209 = vld [vmem:[%s1 + $0x68] sm:$0xf]
  %v210 = vld [vmem:[%s1 + $0x6c] sm:$0xf]
  %v211 = vld [vmem:[%s1 + $0x70] sm:$0xf]
  %v212 = vld [vmem:[%s1 + $0x74] sm:$0xf]
  %v213 = vld [vmem:[%s1 + $0x78] sm:$0xf]
  %v214 = vld [vmem:[%s1 + $0x7c] sm:$0xf]
  %v215 = vld [vmem:[%s1 + $0x80] sm:$0xf]
  %v216 = vld [vmem:[%s1 + $0x84] sm:$0xf]
  %v217 = vld [vmem:[%s1 + $0x88] sm:$0xf]
  %v218 = vld [vmem:[%s1 + $0x8c] sm:$0xf]
  %v219 = vld [vmem:[%s1 + $0x90] sm:$0xf]
  %v220 = vld [vmem:[%s1 + $0x94] sm:$0xf]
  %v221 = vld [vmem:[%s1 + $0x98] sm:$0xf]
  %v222 = vld [vmem:[%s1 + $0x9c] sm:$0xf]
  %v223 = vld [vmem:[%s1 + $0xa0] sm:$0xf]
  %v224 = vld [vmem:[%s1 + $0xa4] sm:$0xf]
  %v225 = vld [vmem:[%s1 + $0xa8] sm:$0xf]
  %v226 = vld [vmem:[%s1 + $0xac] sm:$0xf]
  %v227 = vld [vmem:[%s1 + $0xb0] sm:$0xf]
  %v228 = vld [vmem:[%s1 + $0xb4] sm:$0xf]
  %v229 = vld [vmem:[%s1 + $0xb8] sm:$0xf]
  %v230 = vld [vmem:[%s1 + $0xbc] sm:$0xf]
  %v231 = vld [vmem:[%s1 + $0xc0] sm:$0xf]
  %v232 = vld [vmem:[%s1 + $0xc4] sm:$0xf]
  %v233 = vld [vmem:[%s1 + $0xc8] sm:$0xf]
  %v234 = vld [vmem:[%s1 + $0xcc] sm:$0xf]
  %v235 = vld [vmem:[%s1 + $0xd0] sm:$0xf]
  %v236 = vld [vmem:[%s1 + $0xd4] sm:$0xf]
  %v237 = vld [vmem:[%s1 + $0xd8] sm:$0xf]
  %v238 = vld [vmem:[%s1 + $0xdc] sm:$0xf]
  %v239 = vld [vmem:[%s1 + $0xe0] sm:$0xf]
  %v240 = vld [vmem:[%s1 + $0xe4] sm:$0xf]
  %v241 = vld [vmem:[%s1 + $0xe8] sm:$0xf]
  %v242 = vld [vmem:[%s1 + $0xec] sm:$0xf]
  %v243 = vld [vmem:[%s1 + $0xf0] sm:$0xf]
  %v244 = vld [vmem:[%s1 + $0xf4] sm:$0xf]
  %v245 = vld [vmem:[%s1 + $0xf8] sm:$0xf]
  %v246 = vld [vmem:[%s1 + $0xfc] sm:$0xf]
  %v247 = vld [vmem:[%s1 + $0x100] sm:$0xf]
  %v248 = vld [vmem:[%s1 + $0x104] sm:$0xf]
  %v249 = vld [vmem:[%s1 + $0x108] sm:$0xf]
  %v250 = vld [vmem:[%s1 + $0x10c] sm:$0xf]
  %v251 = vld [vmem:[%s1 + $0x110] sm:$0xf]
  %v252 = vld [vmem:[%s1 + $0x114] sm:$0xf]
  %v253 = vld [vmem:[%s1 + $0x118] sm:$0xf]
  %v254 = vld [vmem:[%s1 + $0x11c] sm:$0xf]
  %v255 = vld [vmem:[%s1 + $0x120] sm:$0xf]
  %v256 = vld [vmem:[%s1 + $0x124] sm:$0xf]
  %v257 = vld [vmem:[%s1 + $0x128] sm:$0xf]
  %v258 = vld [vmem:[%s1 + $0x12c] sm:$0xf]
  %v259 = vld [vmem:[%s1 + $0x130] sm:$0xf]
  %v260 = vld [vmem:[%s1 + $0x134] sm:$0xf]
  %v261 = vld [vmem:[%s1 + $0x138] sm:$0xf]
  %v262 = vld [vmem:[%s1 + $0x13c] sm:$0xf]
  %v263 = vld [vmem:[%s1 + $0x140] sm:$0xf]
  %v264 = vld [vmem:[%s1 + $0x144] sm:$0xf]
  %v265 = vld [vmem:[%s1 + $0x148] sm:$0xf]
  %v266 = vld [vmem:[%s1 + $0x14c] sm:$0xf]
  %v267 = vld [vmem:[%s1 + $0x150] sm:$0xf]
  %v268 = vld [vmem:[%s1 + $0x154] sm:$0xf]
  %v269 = vld [vmem:[%s1 + $0x158] sm:$0xf]
  %v270 = vld [vmem:[%s1 + $0x15c] sm:$0xf]
  %v271 = vld [vmem:[%s1 + $0x160] sm:$0xf]
  %v272 = vld [vmem:[%s1 + $0x164] sm:$0xf]
  %v273 = vld [vmem:[%s1 + $0x168] sm:$0xf]
  %v274 = vld [vmem:[%s1 + $0x16c] sm:$0xf]
  %v275 = vld [vmem:[%s1 + $0x170] sm:$0xf]
  %v276 = vld [vmem:[%s1 + $0x174] sm:$0xf]
  %v277 = vld [vmem:[%s1 + $0x178] sm:$0xf]
  %v278 = vld [vmem:[%s1 + $0x17c] sm:$0xf]
  %v279 = vld [vmem:[%s1 + $0x180] sm:$0xf]
  %v280 = vld [vmem:[%s1 + $0x184] sm:$0xf]
  %v281 = vld [vmem:[%s1 + $0x188] sm:$0xf]
  %v282 = vld [vmem:[%s1 + $0x18c] sm:$0xf]
  %v283 = vld [vmem:[%s2] sm:$0x1]
  %v285 = vperm.slane %v283, 0
  %v387 = vunpack.c.l.b16 %v183
  %v388 = vunpack.c.l.b16 %v184
  %v389 = vunpack.c.l.b16 %v185
  %v390 = vunpack.c.l.b16 %v186
  %v391 = vunpack.c.l.b16 %v187
  %v392 = vunpack.c.l.b16 %v188
  %v393 = vunpack.c.l.b16 %v189
  %v394 = vunpack.c.l.b16 %v190
  %v395 = vunpack.c.l.b16 %v191
  %v396 = vunpack.c.l.b16 %v192
  %v397 = vunpack.c.l.b16 %v193
  %v398 = vunpack.c.l.b16 %v194
  %v399 = vunpack.c.l.b16 %v195
  %v400 = vunpack.c.l.b16 %v196
  %v401 = vunpack.c.l.b16 %v197
  %v402 = vunpack.c.l.b16 %v198
  %v403 = vunpack.c.l.b16 %v199
  %v404 = vunpack.c.l.b16 %v200
  %v405 = vunpack.c.l.b16 %v201
  %v406 = vunpack.c.l.b16 %v202
  %v407 = vunpack.c.l.b16 %v203
  %v408 = vunpack.c.l.b16 %v204
  %v409 = vunpack.c.l.b16 %v205
  %v410 = vunpack.c.l.b16 %v206
  %v411 = vunpack.c.l.b16 %v207
  %v412 = vunpack.c.l.b16 %v208
  %v413 = vunpack.c.l.b16 %v209
  %v414 = vunpack.c.l.b16 %v210
  %v415 = vunpack.c.l.b16 %v211
  %v416 = vunpack.c.l.b16 %v212
  %v417 = vunpack.c.l.b16 %v213
  %v418 = vunpack.c.l.b16 %v214
  %v419 = vunpack.c.l.b16 %v215
  %v420 = vunpack.c.l.b16 %v216
  %v421 = vunpack.c.l.b16 %v217
  %v422 = vunpack.c.l.b16 %v218
  %v423 = vunpack.c.l.b16 %v219
  %v424 = vunpack.c.l.b16 %v220
  %v425 = vunpack.c.l.b16 %v221
  %v426 = vunpack.c.l.b16 %v222
  %v427 = vunpack.c.l.b16 %v223
  %v428 = vunpack.c.l.b16 %v224
  %v429 = vunpack.c.l.b16 %v225
  %v430 = vunpack.c.l.b16 %v226
  %v431 = vunpack.c.l.b16 %v227
  %v432 = vunpack.c.l.b16 %v228
  %v433 = vunpack.c.l.b16 %v229
  %v434 = vunpack.c.l.b16 %v230
  %v435 = vunpack.c.l.b16 %v231
  %v436 = vunpack.c.l.b16 %v232
  %v437 = vunpack.c.l.b16 %v233
  %v438 = vunpack.c.l.b16 %v234
  %v439 = vunpack.c.l.b16 %v235
  %v440 = vunpack.c.l.b16 %v236
  %v441 = vunpack.c.l.b16 %v237
  %v442 = vunpack.c.l.b16 %v238
  %v443 = vunpack.c.l.b16 %v239
  %v444 = vunpack.c.l.b16 %v240
  %v445 = vunpack.c.l.b16 %v241
  %v446 = vunpack.c.l.b16 %v242
  %v447 = vunpack.c.l.b16 %v243
  %v448 = vunpack.c.l.b16 %v244
  %v449 = vunpack.c.l.b16 %v245
  %v450 = vunpack.c.l.b16 %v246
  %v451 = vunpack.c.l.b16 %v247
  %v452 = vunpack.c.l.b16 %v248
  %v453 = vunpack.c.l.b16 %v249
  %v454 = vunpack.c.l.b16 %v250
  %v455 = vunpack.c.l.b16 %v251
  %v456 = vunpack.c.l.b16 %v252
  %v457 = vunpack.c.l.b16 %v253
  %v458 = vunpack.c.l.b16 %v254
  %v459 = vunpack.c.l.b16 %v255
  %v460 = vunpack.c.l.b16 %v256
  %v461 = vunpack.c.l.b16 %v257
  %v462 = vunpack.c.l.b16 %v258
  %v463 = vunpack.c.l.b16 %v259
  %v464 = vunpack.c.l.b16 %v260
  %v465 = vunpack.c.l.b16 %v261
  %v466 = vunpack.c.l.b16 %v262
  %v467 = vunpack.c.l.b16 %v263
  %v468 = vunpack.c.l.b16 %v264
  %v469 = vunpack.c.l.b16 %v265
  %v470 = vunpack.c.l.b16 %v266
  %v471 = vunpack.c.l.b16 %v267
  %v472 = vunpack.c.l.b16 %v268
  %v473 = vunpack.c.l.b16 %v269
  %v474 = vunpack.c.l.b16 %v270
  %v475 = vunpack.c.l.b16 %v271
  %v476 = vunpack.c.l.b16 %v272
  %v477 = vunpack.c.l.b16 %v273
  %v478 = vunpack.c.l.b16 %v274
  %v479 = vunpack.c.l.b16 %v275
  %v480 = vunpack.c.l.b16 %v276
  %v481 = vunpack.c.l.b16 %v277
  %v482 = vunpack.c.l.b16 %v278
  %v483 = vunpack.c.l.b16 %v279
  %v484 = vunpack.c.l.b16 %v280
  %v485 = vunpack.c.l.b16 %v281
  %v486 = vunpack.c.l.b16 %v282
  %v487 = vpack.c.b16 %v388, %v387
  %v488 = vpack.c.b16 %v390, %v389
  %v489 = vpack.c.b16 %v392, %v391
  %v490 = vpack.c.b16 %v394, %v393
  %v491 = vpack.c.b16 %v396, %v395
  %v492 = vpack.c.b16 %v398, %v397
  %v493 = vpack.c.b16 %v400, %v399
  %v494 = vpack.c.b16 %v402, %v401
  %v495 = vpack.c.b16 %v404, %v403
  %v496 = vpack.c.b16 %v406, %v405
  %v497 = vpack.c.b16 %v408, %v407
  %v498 = vpack.c.b16 %v410, %v409
  %v499 = vpack.c.b16 %v412, %v411
  %v500 = vpack.c.b16 %v414, %v413
  %v501 = vpack.c.b16 %v416, %v415
  %v502 = vpack.c.b16 %v418, %v417
  %v503 = vpack.c.b16 %v420, %v419
  %v504 = vpack.c.b16 %v422, %v421
  %v505 = vpack.c.b16 %v424, %v423
  %v506 = vpack.c.b16 %v426, %v425
  %v507 = vpack.c.b16 %v428, %v427
  %v508 = vpack.c.b16 %v430, %v429
  %v509 = vpack.c.b16 %v432, %v431
  %v510 = vpack.c.b16 %v434, %v433
  %v511 = vpack.c.b16 %v436, %v435
  %v512 = vpack.c.b16 %v438, %v437
  %v513 = vpack.c.b16 %v440, %v439
  %v514 = vpack.c.b16 %v442, %v441
  %v515 = vpack.c.b16 %v444, %v443
  %v516 = vpack.c.b16 %v446, %v445
  %v517 = vpack.c.b16 %v448, %v447
  %v518 = vpack.c.b16 %v450, %v449
  %v519 = vpack.c.b16 %v452, %v451
  %v520 = vpack.c.b16 %v454, %v453
  %v521 = vpack.c.b16 %v456, %v455
  %v522 = vpack.c.b16 %v458, %v457
  %v523 = vpack.c.b16 %v460, %v459
  %v524 = vpack.c.b16 %v462, %v461
  %v525 = vpack.c.b16 %v464, %v463
  %v526 = vpack.c.b16 %v466, %v465
  %v527 = vpack.c.b16 %v468, %v467
  %v528 = vpack.c.b16 %v470, %v469
  %v529 = vpack.c.b16 %v472, %v471
  %v530 = vpack.c.b16 %v474, %v473
  %v531 = vpack.c.b16 %v476, %v475
  %v532 = vpack.c.b16 %v478, %v477
  %v533 = vpack.c.b16 %v480, %v479
  %v534 = vpack.c.b16 %v482, %v481
  %v535 = vpack.c.b16 %v484, %v483
  %v536 = vpack.c.b16 %v486, %v485
  %vm587 = vcmask 261120
  %v589 = vsel %vm587, %v133, 0
  %v592 = vsel %vm587, %v140, 0
  %v595 = vsel %vm587, %v147, 0
  %v598 = vsel %vm587, %v154, 0
  %v601 = vsel %vm587, %v161, 0
  %v604 = vsel %vm587, %v168, 0
  %v607 = vsel %vm587, %v175, 0
  %v610 = vsel %vm587, %v182, 0
  %612 = vmatpush.bf16.msra.mxu0 %v494
  %613 = vmatpush.bf16.msra.mxu0 %v493
  %614 = vmatpush.bf16.msra.mxu0 %v492
  %615 = vmatpush.bf16.msra.mxu0 %v491
  %616 = vmatpush.bf16.msra.mxu0 %v490
  %617 = vmatpush.bf16.msra.mxu0 %v489
  %618 = vmatpush.bf16.msra.mxu0 %v488
  %619 = vmatpush.bf16.msra.mxu0 %v487
  %620 = vmatmul.bf16.gmra.mxu0 %v127
  %v621 = vpop.f32.mrf.mxu0
  %v622 = vadd.f32 %v285, %v621
  %v623 = vpop.f32.mrf.mxu0
  %v624 = vadd.f32 %v285, %v623
  %625 = vmatmul.bf16.gmra.mxu0 %v134
  %v626 = vpop.f32.mrf.mxu0
  %v627 = vadd.f32 %v285, %v626
  %v628 = vpop.f32.mrf.mxu0
  %v629 = vadd.f32 %v285, %v628
  %630 = vmatmul.bf16.gmra.mxu0 %v141
  %v631 = vpop.f32.mrf.mxu0
  %v632 = vadd.f32 %v285, %v631
  %v633 = vpop.f32.mrf.mxu0
  %v634 = vadd.f32 %v285, %v633
  %635 = vmatmul.bf16.gmra.mxu0 %v148
  %v636 = vpop.f32.mrf.mxu0
  %v637 = vadd.f32 %v285, %v636
  %v638 = vpop.f32.mrf.mxu0
  %v639 = vadd.f32 %v285, %v638
  %640 = vmatmul.bf16.gmra.mxu0 %v155
  %v641 = vpop.f32.mrf.mxu0
  %v642 = vadd.f32 %v285, %v641
  %v643 = vpop.f32.mrf.mxu0
  %v644 = vadd.f32 %v285, %v643
  %645 = vmatmul.bf16.gmra.mxu0 %v162
  %v646 = vpop.f32.mrf.mxu0
  %v647 = vadd.f32 %v285, %v646
  %v648 = vpop.f32.mrf.mxu0
  %v649 = vadd.f32 %v285, %v648
  %650 = vmatmul.bf16.gmra.mxu0 %v169
  %v651 = vpop.f32.mrf.mxu0
  %v652 = vadd.f32 %v285, %v651
  %v653 = vpop.f32.mrf.mxu0
  %v654 = vadd.f32 %v285, %v653
  %655 = vmatmul.bf16.gmra.mxu0 %v176
  %v656 = vpop.f32.mrf.mxu0
  %v657 = vadd.f32 %v285, %v656
  %v658 = vpop.f32.mrf.mxu0
  %v659 = vadd.f32 %v285, %v658
  %660 = vdwg.mxu0
  %661 = vmatpush.bf16.msra.mxu0 %v502
  %662 = vmatpush.bf16.msra.mxu0 %v501
  %663 = vmatpush.bf16.msra.mxu0 %v500
  %664 = vmatpush.bf16.msra.mxu0 %v499
  %665 = vmatpush.bf16.msra.mxu0 %v498
  %666 = vmatpush.bf16.msra.mxu0 %v497
  %667 = vmatpush.bf16.msra.mxu0 %v496
  %668 = vmatpush.bf16.msra.mxu0 %v495
  %669 = vmatmul.bf16.gmra.mxu0 %v128
  %v670 = vpop.f32.mrf.mxu0
  %v671 = vadd.f32 %v622, %v670
  %v672 = vpop.f32.mrf.mxu0
  %v673 = vadd.f32 %v624, %v672
  %674 = vmatmul.bf16.gmra.mxu0 %v135
  %v675 = vpop.f32.mrf.mxu0
  %v676 = vadd.f32 %v627, %v675
  %v677 = vpop.f32.mrf.mxu0
  %v678 = vadd.f32 %v629, %v677
  %679 = vmatmul.bf16.gmra.mxu0 %v142
  %v680 = vpop.f32.mrf.mxu0
  %v681 = vadd.f32 %v632, %v680
  %v682 = vpop.f32.mrf.mxu0
  %v683 = vadd.f32 %v634, %v682
  %684 = vmatmul.bf16.gmra.mxu0 %v149
  %v685 = vpop.f32.mrf.mxu0
  %v686 = vadd.f32 %v637, %v685
  %v687 = vpop.f32.mrf.mxu0
  %v688 = vadd.f32 %v639, %v687
  %689 = vmatmul.bf16.gmra.mxu0 %v156
  %v690 = vpop.f32.mrf.mxu0
  %v691 = vadd.f32 %v642, %v690
  %v692 = vpop.f32.mrf.mxu0
  %v693 = vadd.f32 %v644, %v692
  %694 = vmatmul.bf16.gmra.mxu0 %v163
  %v695 = vpop.f32.mrf.mxu0
  %v696 = vadd.f32 %v647, %v695
  %v697 = vpop.f32.mrf.mxu0
  %v698 = vadd.f32 %v649, %v697
  %699 = vmatmul.bf16.gmra.mxu0 %v170
  %v700 = vpop.f32.mrf.mxu0
  %v701 = vadd.f32 %v652, %v700
  %v702 = vpop.f32.mrf.mxu0
  %v703 = vadd.f32 %v654, %v702
  %704 = vmatmul.bf16.gmra.mxu0 %v177
  %v705 = vpop.f32.mrf.mxu0
  %v706 = vadd.f32 %v657, %v705
  %v707 = vpop.f32.mrf.mxu0
  %v708 = vadd.f32 %v659, %v707
  %709 = vdwg.mxu0
  %710 = vmatpush.bf16.msra.mxu0 %v510
  %711 = vmatpush.bf16.msra.mxu0 %v509
  %712 = vmatpush.bf16.msra.mxu0 %v508
  %713 = vmatpush.bf16.msra.mxu0 %v507
  %714 = vmatpush.bf16.msra.mxu0 %v506
  %715 = vmatpush.bf16.msra.mxu0 %v505
  %716 = vmatpush.bf16.msra.mxu0 %v504
  %717 = vmatpush.bf16.msra.mxu0 %v503
  %718 = vmatmul.bf16.gmra.mxu0 %v129
  %v719 = vpop.f32.mrf.mxu0
  %v720 = vadd.f32 %v671, %v719
  %v721 = vpop.f32.mrf.mxu0
  %v722 = vadd.f32 %v673, %v721
  %723 = vmatmul.bf16.gmra.mxu0 %v136
  %v724 = vpop.f32.mrf.mxu0
  %v725 = vadd.f32 %v676, %v724
  %v726 = vpop.f32.mrf.mxu0
  %v727 = vadd.f32 %v678, %v726
  %728 = vmatmul.bf16.gmra.mxu0 %v143
  %v729 = vpop.f32.mrf.mxu0
  %v730 = vadd.f32 %v681, %v729
  %v731 = vpop.f32.mrf.mxu0
  %v732 = vadd.f32 %v683, %v731
  %733 = vmatmul.bf16.gmra.mxu0 %v150
  %v734 = vpop.f32.mrf.mxu0
  %v735 = vadd.f32 %v686, %v734
  %v736 = vpop.f32.mrf.mxu0
  %v737 = vadd.f32 %v688, %v736
  %738 = vmatmul.bf16.gmra.mxu0 %v157
  %v739 = vpop.f32.mrf.mxu0
  %v740 = vadd.f32 %v691, %v739
  %v741 = vpop.f32.mrf.mxu0
  %v742 = vadd.f32 %v693, %v741
  %743 = vmatmul.bf16.gmra.mxu0 %v164
  %v744 = vpop.f32.mrf.mxu0
  %v745 = vadd.f32 %v696, %v744
  %v746 = vpop.f32.mrf.mxu0
  %v747 = vadd.f32 %v698, %v746
  %748 = vmatmul.bf16.gmra.mxu0 %v171
  %v749 = vpop.f32.mrf.mxu0
  %v750 = vadd.f32 %v701, %v749
  %v751 = vpop.f32.mrf.mxu0
  %v752 = vadd.f32 %v703, %v751
  %753 = vmatmul.bf16.gmra.mxu0 %v178
  %v754 = vpop.f32.mrf.mxu0
  %v755 = vadd.f32 %v706, %v754
  %v756 = vpop.f32.mrf.mxu0
  %v757 = vadd.f32 %v708, %v756
  %758 = vdwg.mxu0
  %759 = vmatpush.bf16.msra.mxu0 %v518
  %760 = vmatpush.bf16.msra.mxu0 %v517
  %761 = vmatpush.bf16.msra.mxu0 %v516
  %762 = vmatpush.bf16.msra.mxu0 %v515
  %763 = vmatpush.bf16.msra.mxu0 %v514
  %764 = vmatpush.bf16.msra.mxu0 %v513
  %765 = vmatpush.bf16.msra.mxu0 %v512
  %766 = vmatpush.bf16.msra.mxu0 %v511
  %767 = vmatmul.bf16.gmra.mxu0 %v130
  %v768 = vpop.f32.mrf.mxu0
  %v769 = vadd.f32 %v720, %v768
  %v770 = vpop.f32.mrf.mxu0
  %v771 = vadd.f32 %v722, %v770
  %772 = vmatmul.bf16.gmra.mxu0 %v137
  %v773 = vpop.f32.mrf.mxu0
  %v774 = vadd.f32 %v725, %v773
  %v775 = vpop.f32.mrf.mxu0
  %v776 = vadd.f32 %v727, %v775
  %777 = vmatmul.bf16.gmra.mxu0 %v144
  %v778 = vpop.f32.mrf.mxu0
  %v779 = vadd.f32 %v730, %v778
  %v780 = vpop.f32.mrf.mxu0
  %v781 = vadd.f32 %v732, %v780
  %782 = vmatmul.bf16.gmra.mxu0 %v151
  %v783 = vpop.f32.mrf.mxu0
  %v784 = vadd.f32 %v735, %v783
  %v785 = vpop.f32.mrf.mxu0
  %v786 = vadd.f32 %v737, %v785
  %787 = vmatmul.bf16.gmra.mxu0 %v158
  %v788 = vpop.f32.mrf.mxu0
  %v789 = vadd.f32 %v740, %v788
  %v790 = vpop.f32.mrf.mxu0
  %v791 = vadd.f32 %v742, %v790
  %792 = vmatmul.bf16.gmra.mxu0 %v165
  %v793 = vpop.f32.mrf.mxu0
  %v794 = vadd.f32 %v745, %v793
  %v795 = vpop.f32.mrf.mxu0
  %v796 = vadd.f32 %v747, %v795
  %797 = vmatmul.bf16.gmra.mxu0 %v172
  %v798 = vpop.f32.mrf.mxu0
  %v799 = vadd.f32 %v750, %v798
  %v800 = vpop.f32.mrf.mxu0
  %v801 = vadd.f32 %v752, %v800
  %802 = vmatmul.bf16.gmra.mxu0 %v179
  %v803 = vpop.f32.mrf.mxu0
  %v804 = vadd.f32 %v755, %v803
  %v805 = vpop.f32.mrf.mxu0
  %v806 = vadd.f32 %v757, %v805
  %807 = vdwg.mxu0
  %808 = vmatpush.bf16.msra.mxu0 %v526
  %809 = vmatpush.bf16.msra.mxu0 %v525
  %810 = vmatpush.bf16.msra.mxu0 %v524
  %811 = vmatpush.bf16.msra.mxu0 %v523
  %812 = vmatpush.bf16.msra.mxu0 %v522
  %813 = vmatpush.bf16.msra.mxu0 %v521
  %814 = vmatpush.bf16.msra.mxu0 %v520
  %815 = vmatpush.bf16.msra.mxu0 %v519
  %816 = vmatmul.bf16.gmra.mxu0 %v131
  %v817 = vpop.f32.mrf.mxu0
  %v818 = vadd.f32 %v769, %v817
  %v819 = vpop.f32.mrf.mxu0
  %v820 = vadd.f32 %v771, %v819
  %821 = vmatmul.bf16.gmra.mxu0 %v138
  %v822 = vpop.f32.mrf.mxu0
  %v823 = vadd.f32 %v774, %v822
  %v824 = vpop.f32.mrf.mxu0
  %v825 = vadd.f32 %v776, %v824
  %826 = vmatmul.bf16.gmra.mxu0 %v145
  %v827 = vpop.f32.mrf.mxu0
  %v828 = vadd.f32 %v779, %v827
  %v829 = vpop.f32.mrf.mxu0
  %v830 = vadd.f32 %v781, %v829
  %831 = vmatmul.bf16.gmra.mxu0 %v152
  %v832 = vpop.f32.mrf.mxu0
  %v833 = vadd.f32 %v784, %v832
  %v834 = vpop.f32.mrf.mxu0
  %v835 = vadd.f32 %v786, %v834
  %836 = vmatmul.bf16.gmra.mxu0 %v159
  %v837 = vpop.f32.mrf.mxu0
  %v838 = vadd.f32 %v789, %v837
  %v839 = vpop.f32.mrf.mxu0
  %v840 = vadd.f32 %v791, %v839
  %841 = vmatmul.bf16.gmra.mxu0 %v166
  %v842 = vpop.f32.mrf.mxu0
  %v843 = vadd.f32 %v794, %v842
  %v844 = vpop.f32.mrf.mxu0
  %v845 = vadd.f32 %v796, %v844
  %846 = vmatmul.bf16.gmra.mxu0 %v173
  %v847 = vpop.f32.mrf.mxu0
  %v848 = vadd.f32 %v799, %v847
  %v849 = vpop.f32.mrf.mxu0
  %v850 = vadd.f32 %v801, %v849
  %851 = vmatmul.bf16.gmra.mxu0 %v180
  %v852 = vpop.f32.mrf.mxu0
  %v853 = vadd.f32 %v804, %v852
  %v854 = vpop.f32.mrf.mxu0
  %v855 = vadd.f32 %v806, %v854
  %856 = vdwg.mxu0
  %857 = vmatpush.bf16.msra.mxu0 %v534
  %858 = vmatpush.bf16.msra.mxu0 %v533
  %859 = vmatpush.bf16.msra.mxu0 %v532
  %860 = vmatpush.bf16.msra.mxu0 %v531
  %861 = vmatpush.bf16.msra.mxu0 %v530
  %862 = vmatpush.bf16.msra.mxu0 %v529
  %863 = vmatpush.bf16.msra.mxu0 %v528
  %864 = vmatpush.bf16.msra.mxu0 %v527
  %865 = vmatmul.bf16.gmra.mxu0 %v132
  %v866 = vpop.f32.mrf.mxu0
  %v867 = vadd.f32 %v818, %v866
  %v868 = vpop.f32.mrf.mxu0
  %v869 = vadd.f32 %v820, %v868
  %870 = vmatmul.bf16.gmra.mxu0 %v139
  %v871 = vpop.f32.mrf.mxu0
  %v872 = vadd.f32 %v823, %v871
  %v873 = vpop.f32.mrf.mxu0
  %v874 = vadd.f32 %v825, %v873
  %875 = vmatmul.bf16.gmra.mxu0 %v146
  %v876 = vpop.f32.mrf.mxu0
  %v877 = vadd.f32 %v828, %v876
  %v878 = vpop.f32.mrf.mxu0
  %v879 = vadd.f32 %v830, %v878
  %880 = vmatmul.bf16.gmra.mxu0 %v153
  %v881 = vpop.f32.mrf.mxu0
  %v882 = vadd.f32 %v833, %v881
  %v883 = vpop.f32.mrf.mxu0
  %v884 = vadd.f32 %v835, %v883
  %885 = vmatmul.bf16.gmra.mxu0 %v160
  %v886 = vpop.f32.mrf.mxu0
  %v887 = vadd.f32 %v838, %v886
  %v888 = vpop.f32.mrf.mxu0
  %v889 = vadd.f32 %v840, %v888
  %890 = vmatmul.bf16.gmra.mxu0 %v167
  %v891 = vpop.f32.mrf.mxu0
  %v892 = vadd.f32 %v843, %v891
  %v893 = vpop.f32.mrf.mxu0
  %v894 = vadd.f32 %v845, %v893
  %895 = vmatmul.bf16.gmra.mxu0 %v174
  %v896 = vpop.f32.mrf.mxu0
  %v897 = vadd.f32 %v848, %v896
  %v898 = vpop.f32.mrf.mxu0
  %v899 = vadd.f32 %v850, %v898
  %900 = vmatmul.bf16.gmra.mxu0 %v181
  %v901 = vpop.f32.mrf.mxu0
  %v902 = vadd.f32 %v853, %v901
  %v903 = vpop.f32.mrf.mxu0
  %v904 = vadd.f32 %v855, %v903
  %905 = vdwg.mxu0
  %906 = vmatpush.bf16.msra.mxu0 0
  %907 = vmatpush.bf16.msra.mxu0 0
  %908 = vmatpush.bf16.msra.mxu0 0
  %909 = vmatpush.bf16.msra.mxu0 0
  %910 = vmatpush.bf16.msra.mxu0 0
  %911 = vmatpush.bf16.msra.mxu0 0
  %912 = vmatpush.bf16.msra.mxu0 %v536
  %913 = vmatpush.bf16.msra.mxu0 %v535
  %914 = vmatmul.bf16.gmra.mxu0 %v589
  %v915 = vpop.f32.mrf.mxu0
  %v916 = vadd.f32 %v867, %v915
  %v917 = vpop.f32.mrf.mxu0
  %v918 = vadd.f32 %v869, %v917
  %919 = vmatmul.bf16.gmra.mxu0 %v592
  %v920 = vpop.f32.mrf.mxu0
  %v921 = vadd.f32 %v872, %v920
  %v922 = vpop.f32.mrf.mxu0
  %v923 = vadd.f32 %v874, %v922
  %924 = vmatmul.bf16.gmra.mxu0 %v595
  %v925 = vpop.f32.mrf.mxu0
  %v926 = vadd.f32 %v877, %v925
  %v927 = vpop.f32.mrf.mxu0
  %v928 = vadd.f32 %v879, %v927
  %929 = vmatmul.bf16.gmra.mxu0 %v598
  %v930 = vpop.f32.mrf.mxu0
  %v931 = vadd.f32 %v882, %v930
  %v932 = vpop.f32.mrf.mxu0
  %v933 = vadd.f32 %v884, %v932
  %934 = vmatmul.bf16.gmra.mxu0 %v601
  %v935 = vpop.f32.mrf.mxu0
  %v936 = vadd.f32 %v887, %v935
  %v937 = vpop.f32.mrf.mxu0
  %v938 = vadd.f32 %v889, %v937
  %939 = vmatmul.bf16.gmra.mxu0 %v604
  %v940 = vpop.f32.mrf.mxu0
  %v941 = vadd.f32 %v892, %v940
  %v942 = vpop.f32.mrf.mxu0
  %v943 = vadd.f32 %v894, %v942
  %944 = vmatmul.bf16.gmra.mxu0 %v607
  %v945 = vpop.f32.mrf.mxu0
  %v946 = vadd.f32 %v897, %v945
  %v947 = vpop.f32.mrf.mxu0
  %v948 = vadd.f32 %v899, %v947
  %949 = vmatmul.bf16.gmra.mxu0 %v610
  %v950 = vpop.f32.mrf.mxu0
  %v951 = vadd.f32 %v902, %v950
  %v952 = vpop.f32.mrf.mxu0
  %v953 = vadd.f32 %v904, %v952
  %954 = vdwg.mxu0
  %v955 = vmax.f32 %v916, 0.0
  %v956 = vmax.f32 %v918, 0.0
  %v957 = vmax.f32 %v921, 0.0
  %v958 = vmax.f32 %v923, 0.0
  %v959 = vmax.f32 %v926, 0.0
  %v960 = vmax.f32 %v928, 0.0
  %v961 = vmax.f32 %v931, 0.0
  %v962 = vmax.f32 %v933, 0.0
  %v963 = vmax.f32 %v936, 0.0
  %v964 = vmax.f32 %v938, 0.0
  %v965 = vmax.f32 %v941, 0.0
  %v966 = vmax.f32 %v943, 0.0
  %v967 = vmax.f32 %v946, 0.0
  %v968 = vmax.f32 %v948, 0.0
  %v969 = vmax.f32 %v951, 0.0
  %v970 = vmax.f32 %v953, 0.0
  %vm971 = vcmask 523264
  %972 = vst.msk [vmem:[%s3] sm:$0xff] %vm971, %v955
  %973 = vst.msk [vmem:[%s3 + $0x8] sm:$0xff] %vm971, %v956
  %974 = vst.msk [vmem:[%s3 + $0x10] sm:$0xff] %vm971, %v957
  %975 = vst.msk [vmem:[%s3 + $0x18] sm:$0xff] %vm971, %v958
  %976 = vst.msk [vmem:[%s3 + $0x20] sm:$0xff] %vm971, %v959
  %977 = vst.msk [vmem:[%s3 + $0x28] sm:$0xff] %vm971, %v960
  %978 = vst.msk [vmem:[%s3 + $0x30] sm:$0xff] %vm971, %v961
  %979 = vst.msk [vmem:[%s3 + $0x38] sm:$0xff] %vm971, %v962
  %980 = vst.msk [vmem:[%s3 + $0x40] sm:$0xff] %vm971, %v963
  %981 = vst.msk [vmem:[%s3 + $0x48] sm:$0xff] %vm971, %v964
  %982 = vst.msk [vmem:[%s3 + $0x50] sm:$0xff] %vm971, %v965
  %983 = vst.msk [vmem:[%s3 + $0x58] sm:$0xff] %vm971, %v966
  %984 = vst.msk [vmem:[%s3 + $0x60] sm:$0xff] %vm971, %v967
  %985 = vst.msk [vmem:[%s3 + $0x68] sm:$0xff] %vm971, %v968
  %986 = vst.msk [vmem:[%s3 + $0x70] sm:$0xff] %vm971, %v969
  %987 = vst.msk [vmem:[%s3 + $0x78] sm:$0xff] %vm971, %v970
  // Predicated region
  $region14: #{dueling_dqn_forward.5} parent=0 // pred_check
    _
  $region15: #{dueling_dqn_forward.5} parent=0 // pred_check_branch
    %989 = sbr.rel (0) target = $region17
  $region16: #{dueling_dqn_forward.5} parent=0 // pred_region
    _
  $region17: #{dueling_dqn_forward.5} parent=0 // pred_fallthru
    _
  // Predicated region
  $region18: #{dueling_dqn_forward.5} parent=0 // pred_check
    _
  $region19: #{dueling_dqn_forward.5} parent=0 // pred_check_branch
    %991 = sbr.rel (0) target = $region21
  $region20: #{dueling_dqn_forward.5} parent=0 // pred_region
    _
  $region21: #{dueling_dqn_forward.5} parent=0 // pred_fallthru
    _

// kernel: dueling_dqn_forward.6
$region0: #{dueling_dqn_forward.6}
  #allocation0 [shape = 'u32[]', space=smem, size = 0x4, offset = 0x4, fixed_abs, tag = 'smem constant byte address 0x4 - core index']
  #allocation1 [shape = 'u32[72,128]{1,0:T(1,128)}', space=vmem, size = 0x9000, scoped, tag = 'internal scratch']
  %s0 = inlined_call_operand.vmem [shape: f32[72,576], index: 0, kind: input, shape index: {}]
  %s1 = inlined_call_operand.vmem [shape: bf16[576,64], index: 1, kind: input, shape index: {}]
  %s2 = inlined_call_operand.vmem [shape: f32[1,64], index: 2, kind: input, shape index: {}]
  %s3 = inlined_call_operand.vmem [shape: f32[72,64], index: 3, kind: output, shape index: {}]
  %s4 = sld [smem:[#allocation0]]
  $region22: #{dueling_dqn_forward.6} parent=0
    _
  %s6 = ssub.s32 1, %s4
  %s7 = scalar_select 0, %s6, %s4
  // Predicated region
  $region2: #{dueling_dqn_forward.6} parent=0 // pred_check
    _
  $region3: #{dueling_dqn_forward.6} parent=0 // pred_check_branch
    %9 = sbr.rel (0) target = $region5
  $region4: #{dueling_dqn_forward.6} parent=0 // pred_region
    _
  $region5: #{dueling_dqn_forward.6} parent=0 // pred_fallthru
    _
  // Predicated region
  $region6: #{dueling_dqn_forward.6} parent=0 // pred_check
    _
  $region7: #{dueling_dqn_forward.6} parent=0 // pred_check_branch
    %11 = sbr.rel (0) target = $region9
  $region8: #{dueling_dqn_forward.6} parent=0 // pred_region
    _
  $region9: #{dueling_dqn_forward.6} parent=0 // pred_fallthru
    _
  // Predicated region
  $region10: #{dueling_dqn_forward.6} parent=0 // pred_check
    _
  $region11: #{dueling_dqn_forward.6} parent=0 // pred_check_branch
    %13 = sbr.rel (0) target = $region13
  $region12: #{dueling_dqn_forward.6} parent=0 // pred_region
    _
  $region13: #{dueling_dqn_forward.6} parent=0 // pred_fallthru
    _
  %v15 = vld [vmem:[%s0] sm:$0xff]
  %v16 = vld [vmem:[%s0 + $0x8] sm:$0xff]
  %v17 = vld [vmem:[%s0 + $0x10] sm:$0xff]
  %v18 = vld [vmem:[%s0 + $0x18] sm:$0xff]
  %v19 = vld [vmem:[%s0 + $0x20] sm:$0xff]
  %v20 = vld [vmem:[%s0 + $0x28] sm:$0xff]
  %v21 = vld [vmem:[%s0 + $0x30] sm:$0xff]
  %v22 = vld [vmem:[%s0 + $0x38] sm:$0xff]
  %v23 = vld [vmem:[%s0 + $0x40] sm:$0xff]
  %v24 = vld [vmem:[%s0 + $0x48] sm:$0xff]
  %v25 = vld [vmem:[%s0 + $0x50] sm:$0xff]
  %v26 = vld [vmem:[%s0 + $0x58] sm:$0xff]
  %v27 = vld [vmem:[%s0 + $0x60] sm:$0xff]
  %v28 = vld [vmem:[%s0 + $0x68] sm:$0xff]
  %v29 = vld [vmem:[%s0 + $0x70] sm:$0xff]
  %v30 = vld [vmem:[%s0 + $0x78] sm:$0xff]
  %v31 = vld [vmem:[%s0 + $0x80] sm:$0xff]
  %v32 = vld [vmem:[%s0 + $0x88] sm:$0xff]
  %v33 = vld [vmem:[%s0 + $0x90] sm:$0xff]
  %v34 = vld [vmem:[%s0 + $0x98] sm:$0xff]
  %v35 = vld [vmem:[%s0 + $0xa0] sm:$0xff]
  %v36 = vld [vmem:[%s0 + $0xa8] sm:$0xff]
  %v37 = vld [vmem:[%s0 + $0xb0] sm:$0xff]
  %v38 = vld [vmem:[%s0 + $0xb8] sm:$0xff]
  %v39 = vld [vmem:[%s0 + $0xc0] sm:$0xff]
  %v40 = vld [vmem:[%s0 + $0xc8] sm:$0xff]
  %v41 = vld [vmem:[%s0 + $0xd0] sm:$0xff]
  %v42 = vld [vmem:[%s0 + $0xd8] sm:$0xff]
  %v43 = vld [vmem:[%s0 + $0xe0] sm:$0xff]
  %v44 = vld [vmem:[%s0 + $0xe8] sm:$0xff]
  %v45 = vld [vmem:[%s0 + $0xf0] sm:$0xff]
  %v46 = vld [vmem:[%s0 + $0xf8] sm:$0xff]
  %v47 = vld [vmem:[%s0 + $0x100] sm:$0xff]
  %v48 = vld [vmem:[%s0 + $0x108] sm:$0xff]
  %v49 = vld [vmem:[%s0 + $0x110] sm:$0xff]
  %v50 = vld [vmem:[%s0 + $0x118] sm:$0xff]
  %v51 = vld [vmem:[%s0 + $0x120] sm:$0xff]
  %v52 = vld [vmem:[%s0 + $0x128] sm:$0xff]
  %v53 = vld [vmem:[%s0 + $0x130] sm:$0xff]
  %v54 = vld [vmem:[%s0 + $0x138] sm:$0xff]
  %v55 = vld [vmem:[%s0 + $0x140] sm:$0xff]
  %v56 = vld [vmem:[%s0 + $0x148] sm:$0xff]
  %v57 = vld [vmem:[%s0 + $0x150] sm:$0xff]
  %v58 = vld [vmem:[%s0 + $0x158] sm:$0xff]
  %v59 = vld [vmem:[%s0 + $0x160] sm:$0xff]
  %v60 = vpack.c.bf16 %v20, %v15
  %v61 = vpack.c.bf16 %v21, %v16
  %v62 = vpack.c.bf16 %v22, %v17
  %v63 = vpack.c.bf16 %v23, %v18
  %v64 = vpack.c.bf16 %v24, %v19
  %v65 = vpack.c.bf16 %v30, %v25
  %v66 = vpack.c.bf16 %v31, %v26
  %v67 = vpack.c.bf16 %v32, %v27
  %v68 = vpack.c.bf16 %v33, %v28
  %v69 = vpack.c.bf16 %v34, %v29
  %v70 = vpack.c.bf16 %v40, %v35
  %v71 = vpack.c.bf16 %v41, %v36
  %v72 = vpack.c.bf16 %v42, %v37
  %v73 = vpack.c.bf16 %v43, %v38
  %v74 = vpack.c.bf16 %v44, %v39
  %v75 = vpack.c.bf16 %v50, %v45
  %v76 = vpack.c.bf16 %v51, %v46
  %v77 = vpack.c.bf16 %v52, %v47
  %v78 = vpack.c.bf16 %v53, %v48
  %v79 = vpack.c.bf16 %v54, %v49
  %v80 = vpack.c.bf16 %v55, %v55
  %v81 = vpack.c.bf16 %v56, %v56
  %v82 = vpack.c.bf16 %v57, %v57
  %v83 = vpack.c.bf16 %v58, %v58
  %v84 = vpack.c.bf16 %v59, %v59
  %v85 = vld [vmem:[%s1] sm:$0xf]
  %v86 = vld [vmem:[%s1 + $0x4] sm:$0xf]
  %v87 = vld [vmem:[%s1 + $0x8] sm:$0xf]
  %v88 = vld [vmem:[%s1 + $0xc] sm:$0xf]
  %v89 = vld [vmem:[%s1 + $0x10] sm:$0xf]
  %v90 = vld [vmem:[%s1 + $0x14] sm:$0xf]
  %v91 = vld [vmem:[%s1 + $0x18] sm:$0xf]
  %v92 = vld [vmem:[%s1 + $0x1c] sm:$0xf]
  %v93 = vld [vmem:[%s1 + $0x20] sm:$0xf]
  %v94 = vld [vmem:[%s1 + $0x24] sm:$0xf]
  %v95 = vld [vmem:[%s1 + $0x28] sm:$0xf]
  %v96 = vld [vmem:[%s1 + $0x2c] sm:$0xf]
  %v97 = vld [vmem:[%s1 + $0x30] sm:$0xf]
  %v98 = vld [vmem:[%s1 + $0x34] sm:$0xf]
  %v99 = vld [vmem:[%s1 + $0x38] sm:$0xf]
  %v100 = vld [vmem:[%s1 + $0x3c] sm:$0xf]
  %v101 = vld [vmem:[%s1 + $0x40] sm:$0xf]
  %v102 = vld [vmem:[%s1 + $0x44] sm:$0xf]
  %v103 = vld [vmem:[%s1 + $0x48] sm:$0xf]
  %v104 = vld [vmem:[%s1 + $0x4c] sm:$0xf]
  %v105 = vld [vmem:[%s1 + $0x50] sm:$0xf]
  %v106 = vld [vmem:[%s1 + $0x54] sm:$0xf]
  %v107 = vld [vmem:[%s1 + $0x58] sm:$0xf]
  %v108 = vld [vmem:[%s1 + $0x5c] sm:$0xf]
  %v109 = vld [vmem:[%s1 + $0x60] sm:$0xf]
  %v110 = vld [vmem:[%s1 + $0x64] sm:$0xf]
  %v111 = vld [vmem:[%s1 + $0x68] sm:$0xf]
  %v112 = vld [vmem:[%s1 + $0x6c] sm:$0xf]
  %v113 = vld [vmem:[%s1 + $0x70] sm:$0xf]
  %v114 = vld [vmem:[%s1 + $0x74] sm:$0xf]
  %v115 = vld [vmem:[%s1 + $0x78] sm:$0xf]
  %v116 = vld [vmem:[%s1 + $0x7c] sm:$0xf]
  %v117 = vld [vmem:[%s1 + $0x80] sm:$0xf]
  %v118 = vld [vmem:[%s1 + $0x84] sm:$0xf]
  %v119 = vld [vmem:[%s1 + $0x88] sm:$0xf]
  %v120 = vld [vmem:[%s1 + $0x8c] sm:$0xf]
  %v121 = vld [vmem:[%s1 + $0x90] sm:$0xf]
  %v122 = vld [vmem:[%s1 + $0x94] sm:$0xf]
  %v123 = vld [vmem:[%s1 + $0x98] sm:$0xf]
  %v124 = vld [vmem:[%s1 + $0x9c] sm:$0xf]
  %v125 = vld [vmem:[%s1 + $0xa0] sm:$0xf]
  %v126 = vld [vmem:[%s1 + $0xa4] sm:$0xf]
  %v127 = vld [vmem:[%s1 + $0xa8] sm:$0xf]
  %v128 = vld [vmem:[%s1 + $0xac] sm:$0xf]
  %v129 = vld [vmem:[%s1 + $0xb0] sm:$0xf]
  %v130 = vld [vmem:[%s1 + $0xb4] sm:$0xf]
  %v131 = vld [vmem:[%s1 + $0xb8] sm:$0xf]
  %v132 = vld [vmem:[%s1 + $0xbc] sm:$0xf]
  %v133 = vld [vmem:[%s1 + $0xc0] sm:$0xf]
  %v134 = vld [vmem:[%s1 + $0xc4] sm:$0xf]
  %v135 = vld [vmem:[%s1 + $0xc8] sm:$0xf]
  %v136 = vld [vmem:[%s1 + $0xcc] sm:$0xf]
  %v137 = vld [vmem:[%s1 + $0xd0] sm:$0xf]
  %v138 = vld [vmem:[%s1 + $0xd4] sm:$0xf]
  %v139 = vld [vmem:[%s1 + $0xd8] sm:$0xf]
  %v140 = vld [vmem:[%s1 + $0xdc] sm:$0xf]
  %v141 = vld [vmem:[%s1 + $0xe0] sm:$0xf]
  %v142 = vld [vmem:[%s1 + $0xe4] sm:$0xf]
  %v143 = vld [vmem:[%s1 + $0xe8] sm:$0xf]
  %v144 = vld [vmem:[%s1 + $0xec] sm:$0xf]
  %v145 = vld [vmem:[%s1 + $0xf0] sm:$0xf]
  %v146 = vld [vmem:[%s1 + $0xf4] sm:$0xf]
  %v147 = vld [vmem:[%s1 + $0xf8] sm:$0xf]
  %v148 = vld [vmem:[%s1 + $0xfc] sm:$0xf]
  %v149 = vld [vmem:[%s1 + $0x100] sm:$0xf]
  %v150 = vld [vmem:[%s1 + $0x104] sm:$0xf]
  %v151 = vld [vmem:[%s1 + $0x108] sm:$0xf]
  %v152 = vld [vmem:[%s1 + $0x10c] sm:$0xf]
  %v153 = vld [vmem:[%s1 + $0x110] sm:$0xf]
  %v154 = vld [vmem:[%s1 + $0x114] sm:$0xf]
  %v155 = vld [vmem:[%s1 + $0x118] sm:$0xf]
  %v156 = vld [vmem:[%s1 + $0x11c] sm:$0xf]
  %v157 = vld [vmem:[%s2] sm:$0x1]
  %v159 = vperm.slane %v157, 0
  %v233 = vunpack.c.l.b16 %v85
  %v234 = vunpack.c.l.b16 %v86
  %v235 = vunpack.c.l.b16 %v87
  %v236 = vunpack.c.l.b16 %v88
  %v237 = vunpack.c.l.b16 %v89
  %v238 = vunpack.c.l.b16 %v90
  %v239 = vunpack.c.l.b16 %v91
  %v240 = vunpack.c.l.b16 %v92
  %v241 = vunpack.c.l.b16 %v93
  %v242 = vunpack.c.l.b16 %v94
  %v243 = vunpack.c.l.b16 %v95
  %v244 = vunpack.c.l.b16 %v96
  %v245 = vunpack.c.l.b16 %v97
  %v246 = vunpack.c.l.b16 %v98
  %v247 = vunpack.c.l.b16 %v99
  %v248 = vunpack.c.l.b16 %v100
  %v249 = vunpack.c.l.b16 %v101
  %v250 = vunpack.c.l.b16 %v102
  %v251 = vunpack.c.l.b16 %v103
  %v252 = vunpack.c.l.b16 %v104
  %v253 = vunpack.c.l.b16 %v105
  %v254 = vunpack.c.l.b16 %v106
  %v255 = vunpack.c.l.b16 %v107
  %v256 = vunpack.c.l.b16 %v108
  %v257 = vunpack.c.l.b16 %v109
  %v258 = vunpack.c.l.b16 %v110
  %v259 = vunpack.c.l.b16 %v111
  %v260 = vunpack.c.l.b16 %v112
  %v261 = vunpack.c.l.b16 %v113
  %v262 = vunpack.c.l.b16 %v114
  %v263 = vunpack.c.l.b16 %v115
  %v264 = vunpack.c.l.b16 %v116
  %v265 = vunpack.c.l.b16 %v117
  %v266 = vunpack.c.l.b16 %v118
  %v267 = vunpack.c.l.b16 %v119
  %v268 = vunpack.c.l.b16 %v120
  %v269 = vunpack.c.l.b16 %v121
  %v270 = vunpack.c.l.b16 %v122
  %v271 = vunpack.c.l.b16 %v123
  %v272 = vunpack.c.l.b16 %v124
  %v273 = vunpack.c.l.b16 %v125
  %v274 = vunpack.c.l.b16 %v126
  %v275 = vunpack.c.l.b16 %v127
  %v276 = vunpack.c.l.b16 %v128
  %v277 = vunpack.c.l.b16 %v129
  %v278 = vunpack.c.l.b16 %v130
  %v279 = vunpack.c.l.b16 %v131
  %v280 = vunpack.c.l.b16 %v132
  %v281 = vunpack.c.l.b16 %v133
  %v282 = vunpack.c.l.b16 %v134
  %v283 = vunpack.c.l.b16 %v135
  %v284 = vunpack.c.l.b16 %v136
  %v285 = vunpack.c.l.b16 %v137
  %v286 = vunpack.c.l.b16 %v138
  %v287 = vunpack.c.l.b16 %v139
  %v288 = vunpack.c.l.b16 %v140
  %v289 = vunpack.c.l.b16 %v141
  %v290 = vunpack.c.l.b16 %v142
  %v291 = vunpack.c.l.b16 %v143
  %v292 = vunpack.c.l.b16 %v144
  %v293 = vunpack.c.l.b16 %v145
  %v294 = vunpack.c.l.b16 %v146
  %v295 = vunpack.c.l.b16 %v147
  %v296 = vunpack.c.l.b16 %v148
  %v297 = vunpack.c.l.b16 %v149
  %v298 = vunpack.c.l.b16 %v150
  %v299 = vunpack.c.l.b16 %v151
  %v300 = vunpack.c.l.b16 %v152
  %v301 = vunpack.c.l.b16 %v153
  %v302 = vunpack.c.l.b16 %v154
  %v303 = vunpack.c.l.b16 %v155
  %v304 = vunpack.c.l.b16 %v156
  %v305 = vpack.c.b16 %v234, %v233
  %v306 = vpack.c.b16 %v236, %v235
  %v307 = vpack.c.b16 %v238, %v237
  %v308 = vpack.c.b16 %v240, %v239
  %v309 = vpack.c.b16 %v242, %v241
  %v310 = vpack.c.b16 %v244, %v243
  %v311 = vpack.c.b16 %v246, %v245
  %v312 = vpack.c.b16 %v248, %v247
  %v313 = vpack.c.b16 %v250, %v249
  %v314 = vpack.c.b16 %v252, %v251
  %v315 = vpack.c.b16 %v254, %v253
  %v316 = vpack.c.b16 %v256, %v255
  %v317 = vpack.c.b16 %v258, %v257
  %v318 = vpack.c.b16 %v260, %v259
  %v319 = vpack.c.b16 %v262, %v261
  %v320 = vpack.c.b16 %v264, %v263
  %v321 = vpack.c.b16 %v266, %v265
  %v322 = vpack.c.b16 %v268, %v267
  %v323 = vpack.c.b16 %v270, %v269
  %v324 = vpack.c.b16 %v272, %v271
  %v325 = vpack.c.b16 %v274, %v273
  %v326 = vpack.c.b16 %v276, %v275
  %v327 = vpack.c.b16 %v278, %v277
  %v328 = vpack.c.b16 %v280, %v279
  %v329 = vpack.c.b16 %v282, %v281
  %v330 = vpack.c.b16 %v284, %v283
  %v331 = vpack.c.b16 %v286, %v285
  %v332 = vpack.c.b16 %v288, %v287
  %v333 = vpack.c.b16 %v290, %v289
  %v334 = vpack.c.b16 %v292, %v291
  %v335 = vpack.c.b16 %v294, %v293
  %v336 = vpack.c.b16 %v296, %v295
  %v337 = vpack.c.b16 %v298, %v297
  %v338 = vpack.c.b16 %v300, %v299
  %v339 = vpack.c.b16 %v302, %v301
  %v340 = vpack.c.b16 %v304, %v303
  %vm377 = vcmask 523264
  %v379 = vsel %vm377, %v64, 0
  %v382 = vsel %vm377, %v69, 0
  %v385 = vsel %vm377, %v74, 0
  %v388 = vsel %vm377, %v79, 0
  %v391 = vsel %vm377, %v84, 0
  %393 = vmatpush.bf16.msra.mxu0 %v312
  %394 = vmatpush.bf16.msra.mxu0 %v311
  %395 = vmatpush.bf16.msra.mxu0 %v310
  %396 = vmatpush.bf16.msra.mxu0 %v309
  %397 = vmatpush.bf16.msra.mxu0 %v308
  %398 = vmatpush.bf16.msra.mxu0 %v307
  %399 = vmatpush.bf16.msra.mxu0 %v306
  %400 = vmatpush.bf16.msra.mxu0 %v305
  %401 = vmatmul.bf16.gmra.mxu0 %v60
  %v402 = vpop.f32.mrf.mxu0
  %v403 = vadd.f32 %v159, %v402
  %v404 = vpop.f32.mrf.mxu0
  %v405 = vadd.f32 %v159, %v404
  %406 = vmatmul.bf16.gmra.mxu0 %v65
  %v407 = vpop.f32.mrf.mxu0
  %v408 = vadd.f32 %v159, %v407
  %v409 = vpop.f32.mrf.mxu0
  %v410 = vadd.f32 %v159, %v409
  %411 = vmatmul.bf16.gmra.mxu0 %v70
  %v412 = vpop.f32.mrf.mxu0
  %v413 = vadd.f32 %v159, %v412
  %v414 = vpop.f32.mrf.mxu0
  %v415 = vadd.f32 %v159, %v414
  %416 = vmatmul.bf16.gmra.mxu0 %v75
  %v417 = vpop.f32.mrf.mxu0
  %v418 = vadd.f32 %v159, %v417
  %v419 = vpop.f32.mrf.mxu0
  %v420 = vadd.f32 %v159, %v419
  %421 = vmatmul.bf16.gmra.mxu0 %v80
  %v422 = vpop.f32.mrf.mxu0
  %v423 = vadd.f32 %v159, %v422
  %v424 = vpop.f32.mrf.mxu0
  %425 = vdwg.mxu0
  %426 = vmatpush.bf16.msra.mxu0 %v320
  %427 = vmatpush.bf16.msra.mxu0 %v319
  %428 = vmatpush.bf16.msra.mxu0 %v318
  %429 = vmatpush.bf16.msra.mxu0 %v317
  %430 = vmatpush.bf16.msra.mxu0 %v316
  %431 = vmatpush.bf16.msra.mxu0 %v315
  %432 = vmatpush.bf16.msra.mxu0 %v314
  %433 = vmatpush.bf16.msra.mxu0 %v313
  %434 = vmatmul.bf16.gmra.mxu0 %v61
  %v435 = vpop.f32.mrf.mxu0
  %v436 = vadd.f32 %v403, %v435
  %v437 = vpop.f32.mrf.mxu0
  %v438 = vadd.f32 %v405, %v437
  %439 = vmatmul.bf16.gmra.mxu0 %v66
  %v440 = vpop.f32.mrf.mxu0
  %v441 = vadd.f32 %v408, %v440
  %v442 = vpop.f32.mrf.mxu0
  %v443 = vadd.f32 %v410, %v442
  %444 = vmatmul.bf16.gmra.mxu0 %v71
  %v445 = vpop.f32.mrf.mxu0
  %v446 = vadd.f32 %v413, %v445
  %v447 = vpop.f32.mrf.mxu0
  %v448 = vadd.f32 %v415, %v447
  %449 = vmatmul.bf16.gmra.mxu0 %v76
  %v450 = vpop.f32.mrf.mxu0
  %v451 = vadd.f32 %v418, %v450
  %v452 = vpop.f32.mrf.mxu0
  %v453 = vadd.f32 %v420, %v452
  %454 = vmatmul.bf16.gmra.mxu0 %v81
  %v455 = vpop.f32.mrf.mxu0
  %v456 = vadd.f32 %v423, %v455
  %v457 = vpop.f32.mrf.mxu0
  %458 = vdwg.mxu0
  %459 = vmatpush.bf16.msra.mxu0 %v328
  %460 = vmatpush.bf16.msra.mxu0 %v327
  %461 = vmatpush.bf16.msra.mxu0 %v326
  %462 = vmatpush.bf16.msra.mxu0 %v325
  %463 = vmatpush.bf16.msra.mxu0 %v324
  %464 = vmatpush.bf16.msra.mxu0 %v323
  %465 = vmatpush.bf16.msra.mxu0 %v322
  %466 = vmatpush.bf16.msra.mxu0 %v321
  %467 = vmatmul.bf16.gmra.mxu0 %v62
  %v468 = vpop.f32.mrf.mxu0
  %v469 = vadd.f32 %v436, %v468
  %v470 = vpop.f32.mrf.mxu0
  %v471 = vadd.f32 %v438, %v470
  %472 = vmatmul.bf16.gmra.mxu0 %v67
  %v473 = vpop.f32.mrf.mxu0
  %v474 = vadd.f32 %v441, %v473
  %v475 = vpop.f32.mrf.mxu0
  %v476 = vadd.f32 %v443, %v475
  %477 = vmatmul.bf16.gmra.mxu0 %v72
  %v478 = vpop.f32.mrf.mxu0
  %v479 = vadd.f32 %v446, %v478
  %v480 = vpop.f32.mrf.mxu0
  %v481 = vadd.f32 %v448, %v480
  %482 = vmatmul.bf16.gmra.mxu0 %v77
  %v483 = vpop.f32.mrf.mxu0
  %v484 = vadd.f32 %v451, %v483
  %v485 = vpop.f32.mrf.mxu0
  %v486 = vadd.f32 %v453, %v485
  %487 = vmatmul.bf16.gmra.mxu0 %v82
  %v488 = vpop.f32.mrf.mxu0
  %v489 = vadd.f32 %v456, %v488
  %v490 = vpop.f32.mrf.mxu0
  %491 = vdwg.mxu0
  %492 = vmatpush.bf16.msra.mxu0 %v336
  %493 = vmatpush.bf16.msra.mxu0 %v335
  %494 = vmatpush.bf16.msra.mxu0 %v334
  %495 = vmatpush.bf16.msra.mxu0 %v333
  %496 = vmatpush.bf16.msra.mxu0 %v332
  %497 = vmatpush.bf16.msra.mxu0 %v331
  %498 = vmatpush.bf16.msra.mxu0 %v330
  %499 = vmatpush.bf16.msra.mxu0 %v329
  %500 = vmatmul.bf16.gmra.mxu0 %v63
  %v501 = vpop.f32.mrf.mxu0
  %v502 = vadd.f32 %v469, %v501
  %v503 = vpop.f32.mrf.mxu0
  %v504 = vadd.f32 %v471, %v503
  %505 = vmatmul.bf16.gmra.mxu0 %v68
  %v506 = vpop.f32.mrf.mxu0
  %v507 = vadd.f32 %v474, %v506
  %v508 = vpop.f32.mrf.mxu0
  %v509 = vadd.f32 %v476, %v508
  %510 = vmatmul.bf16.gmra.mxu0 %v73
  %v511 = vpop.f32.mrf.mxu0
  %v512 = vadd.f32 %v479, %v511
  %v513 = vpop.f32.mrf.mxu0
  %v514 = vadd.f32 %v481, %v513
  %515 = vmatmul.bf16.gmra.mxu0 %v78
  %v516 = vpop.f32.mrf.mxu0
  %v517 = vadd.f32 %v484, %v516
  %v518 = vpop.f32.mrf.mxu0
  %v519 = vadd.f32 %v486, %v518
  %520 = vmatmul.bf16.gmra.mxu0 %v83
  %v521 = vpop.f32.mrf.mxu0
  %v522 = vadd.f32 %v489, %v521
  %v523 = vpop.f32.mrf.mxu0
  %524 = vdwg.mxu0
  %525 = vmatpush.bf16.msra.mxu0 0
  %526 = vmatpush.bf16.msra.mxu0 0
  %527 = vmatpush.bf16.msra.mxu0 0
  %528 = vmatpush.bf16.msra.mxu0 0
  %529 = vmatpush.bf16.msra.mxu0 %v340
  %530 = vmatpush.bf16.msra.mxu0 %v339
  %531 = vmatpush.bf16.msra.mxu0 %v338
  %532 = vmatpush.bf16.msra.mxu0 %v337
  %533 = vmatmul.bf16.gmra.mxu0 %v379
  %v534 = vpop.f32.mrf.mxu0
  %v535 = vadd.f32 %v502, %v534
  %v536 = vpop.f32.mrf.mxu0
  %v537 = vadd.f32 %v504, %v536
  %538 = vmatmul.bf16.gmra.mxu0 %v382
  %v539 = vpop.f32.mrf.mxu0
  %v540 = vadd.f32 %v507, %v539
  %v541 = vpop.f32.mrf.mxu0
  %v542 = vadd.f32 %v509, %v541
  %543 = vmatmul.bf16.gmra.mxu0 %v385
  %v544 = vpop.f32.mrf.mxu0
  %v545 = vadd.f32 %v512, %v544
  %v546 = vpop.f32.mrf.mxu0
  %v547 = vadd.f32 %v514, %v546
  %548 = vmatmul.bf16.gmra.mxu0 %v388
  %v549 = vpop.f32.mrf.mxu0
  %v550 = vadd.f32 %v517, %v549
  %v551 = vpop.f32.mrf.mxu0
  %v552 = vadd.f32 %v519, %v551
  %553 = vmatmul.bf16.gmra.mxu0 %v391
  %v554 = vpop.f32.mrf.mxu0
  %v555 = vadd.f32 %v522, %v554
  %v556 = vpop.f32.mrf.mxu0
  %557 = vdwg.mxu0
  %v558 = vmax.f32 %v535, 0.0
  %v559 = vmax.f32 %v537, 0.0
  %v560 = vmax.f32 %v540, 0.0
  %v561 = vmax.f32 %v542, 0.0
  %v562 = vmax.f32 %v545, 0.0
  %v563 = vmax.f32 %v547, 0.0
  %v564 = vmax.f32 %v550, 0.0
  %v565 = vmax.f32 %v552, 0.0
  %v566 = vmax.f32 %v555, 0.0
  %567 = vst.msk [vmem:[%s3] sm:$0xff] %vm377, %v558
  %568 = vst.msk [vmem:[%s3 + $0x8] sm:$0xff] %vm377, %v559
  %569 = vst.msk [vmem:[%s3 + $0x10] sm:$0xff] %vm377, %v560
  %570 = vst.msk [vmem:[%s3 + $0x18] sm:$0xff] %vm377, %v561
  %571 = vst.msk [vmem:[%s3 + $0x20] sm:$0xff] %vm377, %v562
  %572 = vst.msk [vmem:[%s3 + $0x28] sm:$0xff] %vm377, %v563
  %573 = vst.msk [vmem:[%s3 + $0x30] sm:$0xff] %vm377, %v564
  %574 = vst.msk [vmem:[%s3 + $0x38] sm:$0xff] %vm377, %v565
  %575 = vst.msk [vmem:[%s3 + $0x40] sm:$0xff] %vm377, %v566
  // Predicated region
  $region14: #{dueling_dqn_forward.6} parent=0 // pred_check
    _
  $region15: #{dueling_dqn_forward.6} parent=0 // pred_check_branch
    %577 = sbr.rel (0) target = $region17
  $region16: #{dueling_dqn_forward.6} parent=0 // pred_region
    _
  $region17: #{dueling_dqn_forward.6} parent=0 // pred_fallthru
    _
  // Predicated region
  $region18: #{dueling_dqn_forward.6} parent=0 // pred_check
    _
  $region19: #{dueling_dqn_forward.6} parent=0 // pred_check_branch
    %579 = sbr.rel (0) target = $region21
  $region20: #{dueling_dqn_forward.6} parent=0 // pred_region
    _
  $region21: #{dueling_dqn_forward.6} parent=0 // pred_fallthru
    _

// kernel: dueling_dqn_forward.7
$region0: #{dueling_dqn_forward.7}
  #allocation0 [shape = 'u32[]', space=smem, size = 0x4, offset = 0x4, fixed_abs, tag = 'smem constant byte address 0x4 - core index']
  #allocation1 [shape = 'u32[72,128]{1,0:T(1,128)}', space=vmem, size = 0x9000, scoped, tag = 'internal scratch']
  %s0 = inlined_call_operand.vmem [shape: f32[2,2304], index: 0, kind: input, shape index: {}]
  %s1 = inlined_call_operand.vmem [shape: bf16[2304,1024], index: 1, kind: input, shape index: {}]
  %s2 = inlined_call_operand.vmem [shape: f32[1,1024], index: 2, kind: input, shape index: {}]
  %s3 = inlined_call_operand.vmem [shape: bf16[1024,7], index: 3, kind: input, shape index: {}]
  %s4 = inlined_call_operand.vmem [shape: f32[1,7], index: 4, kind: input, shape index: {}]
  %s5 = inlined_call_operand.hbm [shape: f32[2,6], index: 5, kind: output, shape index: {}]
  %s6 = sld [smem:[#allocation0]]
  $region30: #{dueling_dqn_forward.7} parent=0
    _
  %s8 = ssub.s32 1, %s6
  %s9 = scalar_select 0, %s8, %s6
  $region1: #{dueling_dqn_forward.7} parent=0
    #allocation2 [shape = 'u8[1024]{0}', space=vmem, size = 0x400, scoped, tag = 'output window, operand 0, single buffered']
    #allocation3 [shape = 's32[1]{0}', space=sflag, size = 0x4, scoped, tag = 'scoped memory for dueling_dqn_forward.7']
    %10 = vsyncpa [#allocation3], 0
    // Predicated region
    $region2: #{dueling_dqn_forward.7} parent=1 // pred_check
      _
    $region3: #{dueling_dqn_forward.7} parent=1 // pred_check_branch
      %12 = sbr.rel (0) target = $region5
    $region4: #{dueling_dqn_forward.7} parent=1 // pred_region
      _
    $region5: #{dueling_dqn_forward.7} parent=1 // pred_fallthru
      _
    // Predicated region
    $region6: #{dueling_dqn_forward.7} parent=1 // pred_check
      _
    $region7: #{dueling_dqn_forward.7} parent=1 // pred_check_branch
      %14 = sbr.rel (0) target = $region9
    $region8: #{dueling_dqn_forward.7} parent=1 // pred_region
      _
    $region9: #{dueling_dqn_forward.7} parent=1 // pred_fallthru
      _
    // Predicated region
    $region10: #{dueling_dqn_forward.7} parent=1 // pred_check
      _
    $region11: #{dueling_dqn_forward.7} parent=1 // pred_check_branch
      %16 = sbr.rel (0) target = $region13
    $region12: #{dueling_dqn_forward.7} parent=1 // pred_region
      _
    $region13: #{dueling_dqn_forward.7} parent=1 // pred_fallthru
      _
    // Predicated region
    $region14: #{dueling_dqn_forward.7} parent=1 // pred_check
      _
    $region15: #{dueling_dqn_forward.7} parent=1 // pred_check_branch
      %18 = sbr.rel (0) target = $region17
    $region16: #{dueling_dqn_forward.7} parent=1 // pred_region
      _
    $region17: #{dueling_dqn_forward.7} parent=1 // pred_fallthru
      _
    // Predicated region
    $region18: #{dueling_dqn_forward.7} parent=1 // pred_check
      _
    $region19: #{dueling_dqn_forward.7} parent=1 // pred_check_branch
      %20 = sbr.rel (0) target = $region21
    $region20: #{dueling_dqn_forward.7} parent=1 // pred_region
      _
    $region21: #{dueling_dqn_forward.7} parent=1 // pred_fallthru
      _
    %v21 = vld [vmem:[%s0] sm:$0xff]
    %v22 = vld [vmem:[%s0 + $0x8] sm:$0xff]
    %v23 = vld [vmem:[%s0 + $0x10] sm:$0xff]
    %v24 = vld [vmem:[%s0 + $0x18] sm:$0xff]
    %v25 = vld [vmem:[%s0 + $0x20] sm:$0xf]
    %31 = vst [vmem:[#allocation1] ss:$4 sm:$0xff] %v21
    %s32 = scalar_lea.vmem [#allocation1], 32
    %33 = vst [vmem:[%s32] ss:$4 sm:$0xff] %v22
    %v34 = vld.sshfl [vmem:[#allocation1] sm:$0xff pattern:$0x73625140]
    %v35 = vld.sshfl [vmem:[#allocation1 + $0x8] sm:$0xff pattern:$0x73625140]
    %v36 = vld.sshfl [vmem:[#allocation1 + $0x10] sm:$0xff pattern:$0x73625140]
    %v37 = vld.sshfl [vmem:[#allocation1 + $0x18] sm:$0xff pattern:$0x73625140]
    %v38 = vld.sshfl [vmem:[#allocation1 + $0x20] sm:$0xff pattern:$0x73625140]
    %v39 = vld.sshfl [vmem:[#allocation1 + $0x28] sm:$0xff pattern:$0x73625140]
    %v40 = vld.sshfl [vmem:[#allocation1 + $0x30] sm:$0xff pattern:$0x73625140]
    %v41 = vld.sshfl [vmem:[#allocation1 + $0x38] sm:$0xff pattern:$0x73625140]
    %42 = vst [vmem:[#allocation1] ss:$4 sm:$0xff] %v23
    %43 = vst [vmem:[%s32] ss:$4 sm:$0xff] %v24
    %v44 = vld.sshfl [vmem:[#allocation1] sm:$0xff pattern:$0x73625140]
    %v45 = vld.sshfl [vmem:[#allocation1 + $0x8] sm:$0xff pattern:$0x73625140]
    %v46 = vld.sshfl [vmem:[#allocation1 + $0x10] sm:$0xff pattern:$0x73625140]
    %v47 = vld.sshfl [vmem:[#allocation1 + $0x18] sm:$0xff pattern:$0x73625140]
    %v48 = vld.sshfl [vmem:[#allocation1 + $0x20] sm:$0xff pattern:$0x73625140]
    %v49 = vld.sshfl [vmem:[#allocation1 + $0x28] sm:$0xff pattern:$0x73625140]
    %v50 = vld.sshfl [vmem:[#allocation1 + $0x30] sm:$0xff pattern:$0x73625140]
    %v51 = vld.sshfl [vmem:[#allocation1 + $0x38] sm:$0xff pattern:$0x73625140]
    %52 = vst [vmem:[#allocation1] ss:$4 sm:$0xff] %v25
    %v53 = vld.sshfl [vmem:[#allocation1] sm:$0xff pattern:$0x73625140]
    %v54 = vld.sshfl [vmem:[#allocation1 + $0x8] sm:$0xff pattern:$0x73625140]
    %v73 = vpack.c.bf16 %v34, %v34
    %v74 = vpack.c.bf16 %v35, %v35
    %v75 = vpack.c.bf16 %v36, %v36
    %v76 = vpack.c.bf16 %v37, %v37
    %v77 = vpack.c.bf16 %v38, %v38
    %v78 = vpack.c.bf16 %v39, %v39
    %v79 = vpack.c.bf16 %v40, %v40
    %v80 = vpack.c.bf16 %v41, %v41
    %v81 = vpack.c.bf16 %v44, %v44
    %v82 = vpack.c.bf16 %v45, %v45
    %v83 = vpack.c.bf16 %v46, %v46
    %v84 = vpack.c.bf16 %v47, %v47
    %v85 = vpack.c.bf16 %v48, %v48
    %v86 = vpack.c.bf16 %v49, %v49
    %v87 = vpack.c.bf16 %v50, %v50
    %v88 = vpack.c.bf16 %v51, %v51
    %v89 = vpack.c.bf16 %v53, %v53
    %v90 = vpack.c.bf16 %v54, %v54
    %v91 = vld [vmem:[%s1] sm:$0xff]
    %v92 = vld [vmem:[%s1 + $0x8] sm:$0xff]
    %v93 = vld [vmem:[%s1 + $0x10] sm:$0xff]
    %v94 = vld [vmem:[%s1 + $0x18] sm:$0xff]
    %v95 = vld [vmem:[%s1 + $0x20] sm:$0xff]
    %v96 = vld [vmem:[%s1 + $0x28] sm:$0xff]
    %v97 = vld [vmem:[%s1 + $0x30] sm:$0xff]
    %v98 = vld [vmem:[%s1 + $0x38] sm:$0xff]
    %v99 = vld [vmem:[%s1 + $0x40] sm:$0xff]
    %v100 = vld [vmem:[%s1 + $0x48] sm:$0xff]
    %v101 = vld [vmem:[%s1 + $0x50] sm:$0xff]
    %v102 = vld [vmem:[%s1 + $0x58] sm:$0xff]
    %v103 = vld [vmem:[%s1 + $0x60] sm:$0xff]
    %v104 = vld [vmem:[%s1 + $0x68] sm:$0xff]
    %v105 = vld [vmem:[%s1 + $0x70] sm:$0xff]
    %v106 = vld [vmem:[%s1 + $0x78] sm:$0xff]
    %v107 = vld [vmem:[%s1 + $0x80] sm:$0xff]
    %v108 = vld [vmem:[%s1 + $0x88] sm:$0xff]
    %v109 = vld [vmem:[%s1 + $0x90] sm:$0xff]
    %v110 = vld [vmem:[%s1 + $0x98] sm:$0xff]
    %v111 = vld [vmem:[%s1 + $0xa0] sm:$0xff]
    %v112 = vld [vmem:[%s1 + $0xa8] sm:$0xff]
    %v113 = vld [vmem:[%s1 + $0xb0] sm:$0xff]
    %v114 = vld [vmem:[%s1 + $0xb8] sm:$0xff]
    %v115 = vld [vmem:[%s1 + $0xc0] sm:$0xff]
    %v116 = vld [vmem:[%s1 + $0xc8] sm:$0xff]
    %v117 = vld [vmem:[%s1 + $0xd0] sm:$0xff]
    %v118 = vld [vmem:[%s1 + $0xd8] sm:$0xff]
    %v119 = vld [vmem:[%s1 + $0xe0] sm:$0xff]
    %v120 = vld [vmem:[%s1 + $0xe8] sm:$0xff]
    %v121 = vld [vmem:[%s1 + $0xf0] sm:$0xff]
    %v122 = vld [vmem:[%s1 + $0xf8] sm:$0xff]
    %v123 = vld [vmem:[%s1 + $0x100] sm:$0xff]
    %v124 = vld [vmem:[%s1 + $0x108] sm:$0xff]
    %v125 = vld [vmem:[%s1 + $0x110] sm:$0xff]
    %v126 = vld [vmem:[%s1 + $0x118] sm:$0xff]
    %v127 = vld [vmem:[%s1 + $0x120] sm:$0xff]
    %v128 = vld [vmem:[%s1 + $0x128] sm:$0xff]
    %v129 = vld [vmem:[%s1 + $0x130] sm:$0xff]
    %v130 = vld [vmem:[%s1 + $0x138] sm:$0xff]
    %v131 = vld [vmem:[%s1 + $0x140] sm:$0xff]
    %v132 = vld [vmem:[%s1 + $0x148] sm:$0xff]
    %v133 = vld [vmem:[%s1 + $0x150] sm:$0xff]
    %v134 = vld [vmem:[%s1 + $0x158] sm:$0xff]
    %v135 = vld [vmem:[%s1 + $0x160] sm:$0xff]
    %v136 = vld [vmem:[%s1 + $0x168] sm:$0xff]
    %v137 = vld [vmem:[%s1 + $0x170] sm:$0xff]
    %v138 = vld [vmem:[%s1 + $0x178] sm:$0xff]
    %v139 = vld [vmem:[%s1 + $0x180] sm:$0xff]
    %v140 = vld [vmem:[%s1 + $0x188] sm:$0xff]
    %v141 = vld [vmem:[%s1 + $0x190] sm:$0xff]
    %v142 = vld [vmem:[%s1 + $0x198] sm:$0xff]
    %v143 = vld [vmem:[%s1 + $0x1a0] sm:$0xff]
    %v144 = vld [vmem:[%s1 + $0x1a8] sm:$0xff]
    %v145 = vld [vmem:[%s1 + $0x1b0] sm:$0xff]
    %v146 = vld [vmem:[%s1 + $0x1b8] sm:$0xff]
    %v147 = vld [vmem:[%s1 + $0x1c0] sm:$0xff]
    %v148 = vld [vmem:[%s1 + $0x1c8] sm:$0xff]
    %v149 = vld [vmem:[%s1 + $0x1d0] sm:$0xff]
    %v150 = vld [vmem:[%s1 + $0x1d8] sm:$0xff]
    %v151 = vld [vmem:[%s1 + $0x1e0] sm:$0xff]
    %v152 = vld [vmem:[%s1 + $0x1e8] sm:$0xff]
    %v153 = vld [vmem:[%s1 + $0x1f0] sm:$0xff]
    %v154 = vld [vmem:[%s1 + $0x1f8] sm:$0xff]
    %v155 = vld [vmem:[%s1 + $0x200] sm:$0xff]
    %v156 = vld [vmem:[%s1 + $0x208] sm:$0xff]
    %v157 = vld [vmem:[%s1 + $0x210] sm:$0xff]
    %v158 = vld [vmem:[%s1 + $0x218] sm:$0xff]
    %v159 = vld [vmem:[%s1 + $0x220] sm:$0xff]
    %v160 = vld [vmem:[%s1 + $0x228] sm:$0xff]
    %v161 = vld [vmem:[%s1 + $0x230] sm:$0xff]
    %v162 = vld [vmem:[%s1 + $0x238] sm:$0xff]
    %v163 = vld [vmem:[%s1 + $0x240] sm:$0xff]
    %v164 = vld [vmem:[%s1 + $0x248] sm:$0xff]
    %v165 = vld [vmem:[%s1 + $0x250] sm:$0xff]
    %v166 = vld [vmem:[%s1 + $0x258] sm:$0xff]
    %v167 = vld [vmem:[%s1 + $0x260] sm:$0xff]
    %v168 = vld [vmem:[%s1 + $0x268] sm:$0xff]
    %v169 = vld [vmem:[%s1 + $0x270] sm:$0xff]
    %v170 = vld [vmem:[%s1 + $0x278] sm:$0xff]
    %v171 = vld [vmem:[%s1 + $0x280] sm:$0xff]
    %v172 = vld [vmem:[%s1 + $0x288] sm:$0xff]
    %v173 = vld [vmem:[%s1 + $0x290] sm:$0xff]
    %v174 = vld [vmem:[%s1 + $0x298] sm:$0xff]
    %v175 = vld [vmem:[%s1 + $0x2a0] sm:$0xff]
    %v176 = vld [vmem:[%s1 + $0x2a8] sm:$0xff]
    %v177 = vld [vmem:[%s1 + $0x2b0] sm:$0xff]
    %v178 = vld [vmem:[%s1 + $0x2b8] sm:$0xff]
    %v179 = vld [vmem:[%s1 + $0x2c0] sm:$0xff]
    %v180 = vld [vmem:[%s1 + $0x2c8] sm:$0xff]
    %v181 = vld [vmem:[%s1 + $0x2d0] sm:$0xff]
    %v182 = vld [vmem:[%s1 + $0x2d8] sm:$0xff]
    %v183 = vld [vmem:[%s1 + $0x2e0] sm:$0xff]
    %v184 = vld [vmem:[%s1 + $0x2e8] sm:$0xff]
    %v185 = vld [vmem:[%s1 + $0x2f0] sm:$0xff]
    %v186 = vld [vmem:[%s1 + $0x2f8] sm:$0xff]
    %v187 = vld [vmem:[%s1 + $0x300] sm:$0xff]
    %v188 = vld [vmem:[%s1 + $0x308] sm:$0xff]
    %v189 = vld [vmem:[%s1 + $0x310] sm:$0xff]
    %v190 = vld [vmem:[%s1 + $0x318] sm:$0xff]
    %v191 = vld [vmem:[%s1 + $0x320] sm:$0xff]
    %v192 = vld [vmem:[%s1 + $0x328] sm:$0xff]
    %v193 = vld [vmem:[%s1 + $0x330] sm:$0xff]
    %v194 = vld [vmem:[%s1 + $0x338] sm:$0xff]
    %v195 = vld [vmem:[%s1 + $0x340] sm:$0xff]
    %v196 = vld [vmem:[%s1 + $0x348] sm:$0xff]
    %v197 = vld [vmem:[%s1 + $0x350] sm:$0xff]
    %v198 = vld [vmem:[%s1 + $0x358] sm:$0xff]
    %v199 = vld [vmem:[%s1 + $0x360] sm:$0xff]
    %v200 = vld [vmem:[%s1 + $0x368] sm:$0xff]
    %v201 = vld [vmem:[%s1 + $0x370] sm:$0xff]
    %v202 = vld [vmem:[%s1 + $0x378] sm:$0xff]
    %v203 = vld [vmem:[%s1 + $0x380] sm:$0xff]
    %v204 = vld [vmem:[%s1 + $0x388] sm:$0xff]
    %v205 = vld [vmem:[%s1 + $0x390] sm:$0xff]
    %v206 = vld [vmem:[%s1 + $0x398] sm:$0xff]
    %v207 = vld [vmem:[%s1 + $0x3a0] sm:$0xff]
    %v208 = vld [vmem:[%s1 + $0x3a8] sm:$0xff]
    %v209 = vld [vmem:[%s1 + $0x3b0] sm:$0xff]
    %v210 = vld [vmem:[%s1 + $0x3b8] sm:$0xff]
    %v211 = vld [vmem:[%s1 + $0x3c0] sm:$0xff]
    %v212 = vld [vmem:[%s1 + $0x3c8] sm:$0xff]
    %v213 = vld [vmem:[%s1 + $0x3d0] sm:$0xff]
    %v214 = vld [vmem:[%s1 + $0x3d8] sm:$0xff]
    %v215 = vld [vmem:[%s1 + $0x3e0] sm:$0xff]
    %v216 = vld [vmem:[%s1 + $0x3e8] sm:$0xff]
    %v217 = vld [vmem:[%s1 + $0x3f0] sm:$0xff]
    %v218 = vld [vmem:[%s1 + $0x3f8] sm:$0xff]
    %v219 = vld [vmem:[%s1 + $0x400] sm:$0xff]
    %v220 = vld [vmem:[%s1 + $0x408] sm:$0xff]
    %v221 = vld [vmem:[%s1 + $0x410] sm:$0xff]
    %v222 = vld [vmem:[%s1 + $0x418] sm:$0xff]
    %v223 = vld [vmem:[%s1 + $0x420] sm:$0xff]
    %v224 = vld [vmem:[%s1 + $0x428] sm:$0xff]
    %v225 = vld [vmem:[%s1 + $0x430] sm:$0xff]
    %v226 = vld [vmem:[%s1 + $0x438] sm:$0xff]
    %v227 = vld [vmem:[%s1 + $0x440] sm:$0xff]
    %v228 = vld [vmem:[%s1 + $0x448] sm:$0xff]
    %v229 = vld [vmem:[%s1 + $0x450] sm:$0xff]
    %v230 = vld [vmem:[%s1 + $0x458] sm:$0xff]
    %v231 = vld [vmem:[%s1 + $0x460] sm:$0xff]
    %v232 = vld [vmem:[%s1 + $0x468] sm:$0xff]
    %v233 = vld [vmem:[%s1 + $0x470] sm:$0xff]
    %v234 = vld [vmem:[%s1 + $0x478] sm:$0xff]
    %v235 = vld [vmem:[%s1 + $0x480] sm:$0xff]
    %v236 = vld [vmem:[%s1 + $0x488] sm:$0xff]
    %v237 = vld [vmem:[%s1 + $0x490] sm:$0xff]
    %v238 = vld [vmem:[%s1 + $0x498] sm:$0xff]
    %v239 = vld [vmem:[%s1 + $0x4a0] sm:$0xff]
    %v240 = vld [vmem:[%s1 + $0x4a8] sm:$0xff]
    %v241 = vld [vmem:[%s1 + $0x4b0] sm:$0xff]
    %v242 = vld [vmem:[%s1 + $0x4b8] sm:$0xff]
    %v243 = vld [vmem:[%s1 + $0x4c0] sm:$0xff]
    %v244 = vld [vmem:[%s1 + $0x4c8] sm:$0xff]
    %v245 = vld [vmem:[%s1 + $0x4d0] sm:$0xff]
    %v246 = vld [vmem:[%s1 + $0x4d8] sm:$0xff]
    %v247 = vld [vmem:[%s1 + $0x4e0] sm:$0xff]
    %v248 = vld [vmem:[%s1 + $0x4e8] sm:$0xff]
    %v249 = vld [vmem:[%s1 + $0x4f0] sm:$0xff]
    %v250 = vld [vmem:[%s1 + $0x4f8] sm:$0xff]
    %v251 = vld [vmem:[%s1 + $0x500] sm:$0xff]
    %v252 = vld [vmem:[%s1 + $0x508] sm:$0xff]
    %v253 = vld [vmem:[%s1 + $0x510] sm:$0xff]
    %v254 = vld [vmem:[%s1 + $0x518] sm:$0xff]
    %v255 = vld [vmem:[%s1 + $0x520] sm:$0xff]
    %v256 = vld [vmem:[%s1 + $0x528] sm:$0xff]
    %v257 = vld [vmem:[%s1 + $0x530] sm:$0xff]
    %v258 = vld [vmem:[%s1 + $0x538] sm:$0xff]
    %v259 = vld [vmem:[%s1 + $0x540] sm:$0xff]
    %v260 = vld [vmem:[%s1 + $0x548] sm:$0xff]
    %v261 = vld [vmem:[%s1 + $0x550] sm:$0xff]
    %v262 = vld [vmem:[%s1 + $0x558] sm:$0xff]
    %v263 = vld [vmem:[%s1 + $0x560] sm:$0xff]
    %v264 = vld [vmem:[%s1 + $0x568] sm:$0xff]
    %v265 = vld [vmem:[%s1 + $0x570] sm:$0xff]
    %v266 = vld [vmem:[%s1 + $0x578] sm:$0xff]
    %v267 = vld [vmem:[%s1 + $0x580] sm:$0xff]
    %v268 = vld [vmem:[%s1 + $0x588] sm:$0xff]
    %v269 = vld [vmem:[%s1 + $0x590] sm:$0xff]
    %v270 = vld [vmem:[%s1 + $0x598] sm:$0xff]
    %v271 = vld [vmem:[%s1 + $0x5a0] sm:$0xff]
    %v272 = vld [vmem:[%s1 + $0x5a8] sm:$0xff]
    %v273 = vld [vmem:[%s1 + $0x5b0] sm:$0xff]
    %v274 = vld [vmem:[%s1 + $0x5b8] sm:$0xff]
    %v275 = vld [vmem:[%s1 + $0x5c0] sm:$0xff]
    %v276 = vld [vmem:[%s1 + $0x5c8] sm:$0xff]
    %v277 = vld [vmem:[%s1 + $0x5d0] sm:$0xff]
    %v278 = vld [vmem:[%s1 + $0x5d8] sm:$0xff]
    %v279 = vld [vmem:[%s1 + $0x5e0] sm:$0xff]
    %v280 = vld [vmem:[%s1 + $0x5e8] sm:$0xff]
    %v281 = vld [vmem:[%s1 + $0x5f0] sm:$0xff]
    %v282 = vld [vmem:[%s1 + $0x5f8] sm:$0xff]
    %v283 = vld [vmem:[%s1 + $0x600] sm:$0xff]
    %v284 = vld [vmem:[%s1 + $0x608] sm:$0xff]
    %v285 = vld [vmem:[%s1 + $0x610] sm:$0xff]
    %v286 = vld [vmem:[%s1 + $0x618] sm:$0xff]
    %v287 = vld [vmem:[%s1 + $0x620] sm:$0xff]
    %v288 = vld [vmem:[%s1 + $0x628] sm:$0xff]
    %v289 = vld [vmem:[%s1 + $0x630] sm:$0xff]
    %v290 = vld [vmem:[%s1 + $0x638] sm:$0xff]
    %v291 = vld [vmem:[%s1 + $0x640] sm:$0xff]
    %v292 = vld [vmem:[%s1 + $0x648] sm:$0xff]
    %v293 = vld [vmem:[%s1 + $0x650] sm:$0xff]
    %v294 = vld [vmem:[%s1 + $0x658] sm:$0xff]
    %v295 = vld [vmem:[%s1 + $0x660] sm:$0xff]
    %v296 = vld [vmem:[%s1 + $0x668] sm:$0xff]
    %v297 = vld [vmem:[%s1 + $0x670] sm:$0xff]
    %v298 = vld [vmem:[%s1 + $0x678] sm:$0xff]
    %v299 = vld [vmem:[%s1 + $0x680] sm:$0xff]
    %v300 = vld [vmem:[%s1 + $0x688] sm:$0xff]
    %v301 = vld [vmem:[%s1 + $0x690] sm:$0xff]
    %v302 = vld [vmem:[%s1 + $0x698] sm:$0xff]
    %v303 = vld [vmem:[%s1 + $0x6a0] sm:$0xff]
    %v304 = vld [vmem:[%s1 + $0x6a8] sm:$0xff]
    %v305 = vld [vmem:[%s1 + $0x6b0] sm:$0xff]
    %v306 = vld [vmem:[%s1 + $0x6b8] sm:$0xff]
    %v307 = vld [vmem:[%s1 + $0x6c0] sm:$0xff]
    %v308 = vld [vmem:[%s1 + $0x6c8] sm:$0xff]
    %v309 = vld [vmem:[%s1 + $0x6d0] sm:$0xff]
    %v310 = vld [vmem:[%s1 + $0x6d8] sm:$0xff]
    %v311 = vld [vmem:[%s1 + $0x6e0] sm:$0xff]
    %v312 = vld [vmem:[%s1 + $0x6e8] sm:$0xff]
    %v313 = vld [vmem:[%s1 + $0x6f0] sm:$0xff]
    %v314 = vld [vmem:[%s1 + $0x6f8] sm:$0xff]
    %v315 = vld [vmem:[%s1 + $0x700] sm:$0xff]
    %v316 = vld [vmem:[%s1 + $0x708] sm:$0xff]
    %v317 = vld [vmem:[%s1 + $0x710] sm:$0xff]
    %v318 = vld [vmem:[%s1 + $0x718] sm:$0xff]
    %v319 = vld [vmem:[%s1 + $0x720] sm:$0xff]
    %v320 = vld [vmem:[%s1 + $0x728] sm:$0xff]
    %v321 = vld [vmem:[%s1 + $0x730] sm:$0xff]
    %v322 = vld [vmem:[%s1 + $0x738] sm:$0xff]
    %v323 = vld [vmem:[%s1 + $0x740] sm:$0xff]
    %v324 = vld [vmem:[%s1 + $0x748] sm:$0xff]
    %v325 = vld [vmem:[%s1 + $0x750] sm:$0xff]
    %v326 = vld [vmem:[%s1 + $0x758] sm:$0xff]
    %v327 = vld [vmem:[%s1 + $0x760] sm:$0xff]
    %v328 = vld [vmem:[%s1 + $0x768] sm:$0xff]
    %v329 = vld [vmem:[%s1 + $0x770] sm:$0xff]
    %v330 = vld [vmem:[%s1 + $0x778] sm:$0xff]
    %v331 = vld [vmem:[%s1 + $0x780] sm:$0xff]
    %v332 = vld [vmem:[%s1 + $0x788] sm:$0xff]
    %v333 = vld [vmem:[%s1 + $0x790] sm:$0xff]
    %v334 = vld [vmem:[%s1 + $0x798] sm:$0xff]
    %v335 = vld [vmem:[%s1 + $0x7a0] sm:$0xff]
    %v336 = vld [vmem:[%s1 + $0x7a8] sm:$0xff]
    %v337 = vld [vmem:[%s1 + $0x7b0] sm:$0xff]
    %v338 = vld [vmem:[%s1 + $0x7b8] sm:$0xff]
    %v339 = vld [vmem:[%s1 + $0x7c0] sm:$0xff]
    %v340 = vld [vmem:[%s1 + $0x7c8] sm:$0xff]
    %v341 = vld [vmem:[%s1 + $0x7d0] sm:$0xff]
    %v342 = vld [vmem:[%s1 + $0x7d8] sm:$0xff]
    %v343 = vld [vmem:[%s1 + $0x7e0] sm:$0xff]
    %v344 = vld [vmem:[%s1 + $0x7e8] sm:$0xff]
    %v345 = vld [vmem:[%s1 + $0x7f0] sm:$0xff]
    %v346 = vld [vmem:[%s1 + $0x7f8] sm:$0xff]
    %v347 = vld [vmem:[%s1 + $0x800] sm:$0xff]
    %v348 = vld [vmem:[%s1 + $0x808] sm:$0xff]
    %v349 = vld [vmem:[%s1 + $0x810] sm:$0xff]
    %v350 = vld [vmem:[%s1 + $0x818] sm:$0xff]
    %v351 = vld [vmem:[%s1 + $0x820] sm:$0xff]
    %v352 = vld [vmem:[%s1 + $0x828] sm:$0xff]
    %v353 = vld [vmem:[%s1 + $0x830] sm:$0xff]
    %v354 = vld [vmem:[%s1 + $0x838] sm:$0xff]
    %v355 = vld [vmem:[%s1 + $0x840] sm:$0xff]
    %v356 = vld [vmem:[%s1 + $0x848] sm:$0xff]
    %v357 = vld [vmem:[%s1 + $0x850] sm:$0xff]
    %v358 = vld [vmem:[%s1 + $0x858] sm:$0xff]
    %v359 = vld [vmem:[%s1 + $0x860] sm:$0xff]
    %v360 = vld [vmem:[%s1 + $0x868] sm:$0xff]
    %v361 = vld [vmem:[%s1 + $0x870] sm:$0xff]
    %v362 = vld [vmem:[%s1 + $0x878] sm:$0xff]
    %v363 = vld [vmem:[%s1 + $0x880] sm:$0xff]
    %v364 = vld [vmem:[%s1 + $0x888] sm:$0xff]
    %v365 = vld [vmem:[%s1 + $0x890] sm:$0xff]
    %v366 = vld [vmem:[%s1 + $0x898] sm:$0xff]
    %v367 = vld [vmem:[%s1 + $0x8a0] sm:$0xff]
    %v368 = vld [vmem:[%s1 + $0x8a8] sm:$0xff]
    %v369 = vld [vmem:[%s1 + $0x8b0] sm:$0xff]
    %v370 = vld [vmem:[%s1 + $0x8b8] sm:$0xff]
    %v371 = vld [vmem:[%s1 + $0x8c0] sm:$0xff]
    %v372 = vld [vmem:[%s1 + $0x8c8] sm:$0xff]
    %v373 = vld [vmem:[%s1 + $0x8d0] sm:$0xff]
    %v374 = vld [vmem:[%s1 + $0x8d8] sm:$0xff]
    %v375 = vld [vmem:[%s1 + $0x8e0] sm:$0xff]
    %v376 = vld [vmem:[%s1 + $0x8e8] sm:$0xff]
    %v377 = vld [vmem:[%s1 + $0x8f0] sm:$0xff]
    %v378 = vld [vmem:[%s1 + $0x8f8] sm:$0xff]
    %v379 = vld [vmem:[%s1 + $0x900] sm:$0xff]
    %v380 = vld [vmem:[%s1 + $0x908] sm:$0xff]
    %v381 = vld [vmem:[%s1 + $0x910] sm:$0xff]
    %v382 = vld [vmem:[%s1 + $0x918] sm:$0xff]
    %v383 = vld [vmem:[%s1 + $0x920] sm:$0xff]
    %v384 = vld [vmem:[%s1 + $0x928] sm:$0xff]
    %v385 = vld [vmem:[%s1 + $0x930] sm:$0xff]
    %v386 = vld [vmem:[%s1 + $0x938] sm:$0xff]
    %v387 = vld [vmem:[%s1 + $0x940] sm:$0xff]
    %v388 = vld [vmem:[%s1 + $0x948] sm:$0xff]
    %v389 = vld [vmem:[%s1 + $0x950] sm:$0xff]
    %v390 = vld [vmem:[%s1 + $0x958] sm:$0xff]
    %v391 = vld [vmem:[%s1 + $0x960] sm:$0xff]
    %v392 = vld [vmem:[%s1 + $0x968] sm:$0xff]
    %v393 = vld [vmem:[%s1 + $0x970] sm:$0xff]
    %v394 = vld [vmem:[%s1 + $0x978] sm:$0xff]
    %v395 = vld [vmem:[%s1 + $0x980] sm:$0xff]
    %v396 = vld [vmem:[%s1 + $0x988] sm:$0xff]
    %v397 = vld [vmem:[%s1 + $0x990] sm:$0xff]
    %v398 = vld [vmem:[%s1 + $0x998] sm:$0xff]
    %v399 = vld [vmem:[%s1 + $0x9a0] sm:$0xff]
    %v400 = vld [vmem:[%s1 + $0x9a8] sm:$0xff]
    %v401 = vld [vmem:[%s1 + $0x9b0] sm:$0xff]
    %v402 = vld [vmem:[%s1 + $0x9b8] sm:$0xff]
    %v403 = vld [vmem:[%s1 + $0x9c0] sm:$0xff]
    %v404 = vld [vmem:[%s1 + $0x9c8] sm:$0xff]
    %v405 = vld [vmem:[%s1 + $0x9d0] sm:$0xff]
    %v406 = vld [vmem:[%s1 + $0x9d8] sm:$0xff]
    %v407 = vld [vmem:[%s1 + $0x9e0] sm:$0xff]
    %v408 = vld [vmem:[%s1 + $0x9e8] sm:$0xff]
    %v409 = vld [vmem:[%s1 + $0x9f0] sm:$0xff]
    %v410 = vld [vmem:[%s1 + $0x9f8] sm:$0xff]
    %v411 = vld [vmem:[%s1 + $0xa00] sm:$0xff]
    %v412 = vld [vmem:[%s1 + $0xa08] sm:$0xff]
    %v413 = vld [vmem:[%s1 + $0xa10] sm:$0xff]
    %v414 = vld [vmem:[%s1 + $0xa18] sm:$0xff]
    %v415 = vld [vmem:[%s1 + $0xa20] sm:$0xff]
    %v416 = vld [vmem:[%s1 + $0xa28] sm:$0xff]
    %v417 = vld [vmem:[%s1 + $0xa30] sm:$0xff]
    %v418 = vld [vmem:[%s1 + $0xa38] sm:$0xff]
    %v419 = vld [vmem:[%s1 + $0xa40] sm:$0xff]
    %v420 = vld [vmem:[%s1 + $0xa48] sm:$0xff]
    %v421 = vld [vmem:[%s1 + $0xa50] sm:$0xff]
    %v422 = vld [vmem:[%s1 + $0xa58] sm:$0xff]
    %v423 = vld [vmem:[%s1 + $0xa60] sm:$0xff]
    %v424 = vld [vmem:[%s1 + $0xa68] sm:$0xff]
    %v425 = vld [vmem:[%s1 + $0xa70] sm:$0xff]
    %v426 = vld [vmem:[%s1 + $0xa78] sm:$0xff]
    %v427 = vld [vmem:[%s1 + $0xa80] sm:$0xff]
    %v428 = vld [vmem:[%s1 + $0xa88] sm:$0xff]
    %v429 = vld [vmem:[%s1 + $0xa90] sm:$0xff]
    %v430 = vld [vmem:[%s1 + $0xa98] sm:$0xff]
    %v431 = vld [vmem:[%s1 + $0xaa0] sm:$0xff]
    %v432 = vld [vmem:[%s1 + $0xaa8] sm:$0xff]
    %v433 = vld [vmem:[%s1 + $0xab0] sm:$0xff]
    %v434 = vld [vmem:[%s1 + $0xab8] sm:$0xff]
    %v435 = vld [vmem:[%s1 + $0xac0] sm:$0xff]
    %v436 = vld [vmem:[%s1 + $0xac8] sm:$0xff]
    %v437 = vld [vmem:[%s1 + $0xad0] sm:$0xff]
    %v438 = vld [vmem:[%s1 + $0xad8] sm:$0xff]
    %v439 = vld [vmem:[%s1 + $0xae0] sm:$0xff]
    %v440 = vld [vmem:[%s1 + $0xae8] sm:$0xff]
    %v441 = vld [vmem:[%s1 + $0xaf0] sm:$0xff]
    %v442 = vld [vmem:[%s1 + $0xaf8] sm:$0xff]
    %v443 = vld [vmem:[%s1 + $0xb00] sm:$0xff]
    %v444 = vld [vmem:[%s1 + $0xb08] sm:$0xff]
    %v445 = vld [vmem:[%s1 + $0xb10] sm:$0xff]
    %v446 = vld [vmem:[%s1 + $0xb18] sm:$0xff]
    %v447 = vld [vmem:[%s1 + $0xb20] sm:$0xff]
    %v448 = vld [vmem:[%s1 + $0xb28] sm:$0xff]
    %v449 = vld [vmem:[%s1 + $0xb30] sm:$0xff]
    %v450 = vld [vmem:[%s1 + $0xb38] sm:$0xff]
    %v451 = vld [vmem:[%s1 + $0xb40] sm:$0xff]
    %v452 = vld [vmem:[%s1 + $0xb48] sm:$0xff]
    %v453 = vld [vmem:[%s1 + $0xb50] sm:$0xff]
    %v454 = vld [vmem:[%s1 + $0xb58] sm:$0xff]
    %v455 = vld [vmem:[%s1 + $0xb60] sm:$0xff]
    %v456 = vld [vmem:[%s1 + $0xb68] sm:$0xff]
    %v457 = vld [vmem:[%s1 + $0xb70] sm:$0xff]
    %v458 = vld [vmem:[%s1 + $0xb78] sm:$0xff]
    %v459 = vld [vmem:[%s1 + $0xb80] sm:$0xff]
    %v460 = vld [vmem:[%s1 + $0xb88] sm:$0xff]
    %v461 = vld [vmem:[%s1 + $0xb90] sm:$0xff]
    %v462 = vld [vmem:[%s1 + $0xb98] sm:$0xff]
    %v463 = vld [vmem:[%s1 + $0xba0] sm:$0xff]
    %v464 = vld [vmem:[%s1 + $0xba8] sm:$0xff]
    %v465 = vld [vmem:[%s1 + $0xbb0] sm:$0xff]
    %v466 = vld [vmem:[%s1 + $0xbb8] sm:$0xff]
    %v467 = vld [vmem:[%s1 + $0xbc0] sm:$0xff]
    %v468 = vld [vmem:[%s1 + $0xbc8] sm:$0xff]
    %v469 = vld [vmem:[%s1 + $0xbd0] sm:$0xff]
    %v470 = vld [vmem:[%s1 + $0xbd8] sm:$0xff]
    %v471 = vld [vmem:[%s1 + $0xbe0] sm:$0xff]
    %v472 = vld [vmem:[%s1 + $0xbe8] sm:$0xff]
    %v473 = vld [vmem:[%s1 + $0xbf0] sm:$0xff]
    %v474 = vld [vmem:[%s1 + $0xbf8] sm:$0xff]
    %v475 = vld [vmem:[%s1 + $0xc00] sm:$0xff]
    %v476 = vld [vmem:[%s1 + $0xc08] sm:$0xff]
    %v477 = vld [vmem:[%s1 + $0xc10] sm:$0xff]
    %v478 = vld [vmem:[%s1 + $0xc18] sm:$0xff]
    %v479 = vld [vmem:[%s1 + $0xc20] sm:$0xff]
    %v480 = vld [vmem:[%s1 + $0xc28] sm:$0xff]
    %v481 = vld [vmem:[%s1 + $0xc30] sm:$0xff]
    %v482 = vld [vmem:[%s1 + $0xc38] sm:$0xff]
    %v483 = vld [vmem:[%s1 + $0xc40] sm:$0xff]
    %v484 = vld [vmem:[%s1 + $0xc48] sm:$0xff]
    %v485 = vld [vmem:[%s1 + $0xc50] sm:$0xff]
    %v486 = vld [vmem:[%s1 + $0xc58] sm:$0xff]
    %v487 = vld [vmem:[%s1 + $0xc60] sm:$0xff]
    %v488 = vld [vmem:[%s1 + $0xc68] sm:$0xff]
    %v489 = vld [vmem:[%s1 + $0xc70] sm:$0xff]
    %v490 = vld [vmem:[%s1 + $0xc78] sm:$0xff]
    %v491 = vld [vmem:[%s1 + $0xc80] sm:$0xff]
    %v492 = vld [vmem:[%s1 + $0xc88] sm:$0xff]
    %v493 = vld [vmem:[%s1 + $0xc90] sm:$0xff]
    %v494 = vld [vmem:[%s1 + $0xc98] sm:$0xff]
    %v495 = vld [vmem:[%s1 + $0xca0] sm:$0xff]
    %v496 = vld [vmem:[%s1 + $0xca8] sm:$0xff]
    %v497 = vld [vmem:[%s1 + $0xcb0] sm:$0xff]
    %v498 = vld [vmem:[%s1 + $0xcb8] sm:$0xff]
    %v499 = vld [vmem:[%s1 + $0xcc0] sm:$0xff]
    %v500 = vld [vmem:[%s1 + $0xcc8] sm:$0xff]
    %v501 = vld [vmem:[%s1 + $0xcd0] sm:$0xff]
    %v502 = vld [vmem:[%s1 + $0xcd8] sm:$0xff]
    %v503 = vld [vmem:[%s1 + $0xce0] sm:$0xff]
    %v504 = vld [vmem:[%s1 + $0xce8] sm:$0xff]
    %v505 = vld [vmem:[%s1 + $0xcf0] sm:$0xff]
    %v506 = vld [vmem:[%s1 + $0xcf8] sm:$0xff]
    %v507 = vld [vmem:[%s1 + $0xd00] sm:$0xff]
    %v508 = vld [vmem:[%s1 + $0xd08] sm:$0xff]
    %v509 = vld [vmem:[%s1 + $0xd10] sm:$0xff]
    %v510 = vld [vmem:[%s1 + $0xd18] sm:$0xff]
    %v511 = vld [vmem:[%s1 + $0xd20] sm:$0xff]
    %v512 = vld [vmem:[%s1 + $0xd28] sm:$0xff]
    %v513 = vld [vmem:[%s1 + $0xd30] sm:$0xff]
    %v514 = vld [vmem:[%s1 + $0xd38] sm:$0xff]
    %v515 = vld [vmem:[%s1 + $0xd40] sm:$0xff]
    %v516 = vld [vmem:[%s1 + $0xd48] sm:$0xff]
    %v517 = vld [vmem:[%s1 + $0xd50] sm:$0xff]
    %v518 = vld [vmem:[%s1 + $0xd58] sm:$0xff]
    %v519 = vld [vmem:[%s1 + $0xd60] sm:$0xff]
    %v520 = vld [vmem:[%s1 + $0xd68] sm:$0xff]
    %v521 = vld [vmem:[%s1 + $0xd70] sm:$0xff]
    %v522 = vld [vmem:[%s1 + $0xd78] sm:$0xff]
    %v523 = vld [vmem:[%s1 + $0xd80] sm:$0xff]
    %v524 = vld [vmem:[%s1 + $0xd88] sm:$0xff]
    %v525 = vld [vmem:[%s1 + $0xd90] sm:$0xff]
    %v526 = vld [vmem:[%s1 + $0xd98] sm:$0xff]
    %v527 = vld [vmem:[%s1 + $0xda0] sm:$0xff]
    %v528 = vld [vmem:[%s1 + $0xda8] sm:$0xff]
    %v529 = vld [vmem:[%s1 + $0xdb0] sm:$0xff]
    %v530 = vld [vmem:[%s1 + $0xdb8] sm:$0xff]
    %v531 = vld [vmem:[%s1 + $0xdc0] sm:$0xff]
    %v532 = vld [vmem:[%s1 + $0xdc8] sm:$0xff]
    %v533 = vld [vmem:[%s1 + $0xdd0] sm:$0xff]
    %v534 = vld [vmem:[%s1 + $0xdd8] sm:$0xff]
    %v535 = vld [vmem:[%s1 + $0xde0] sm:$0xff]
    %v536 = vld [vmem:[%s1 + $0xde8] sm:$0xff]
    %v537 = vld [vmem:[%s1 + $0xdf0] sm:$0xff]
    %v538 = vld [vmem:[%s1 + $0xdf8] sm:$0xff]
    %v539 = vld [vmem:[%s1 + $0xe00] sm:$0xff]
    %v540 = vld [vmem:[%s1 + $0xe08] sm:$0xff]
    %v541 = vld [vmem:[%s1 + $0xe10] sm:$0xff]
    %v542 = vld [vmem:[%s1 + $0xe18] sm:$0xff]
    %v543 = vld [vmem:[%s1 + $0xe20] sm:$0xff]
    %v544 = vld [vmem:[%s1 + $0xe28] sm:$0xff]
    %v545 = vld [vmem:[%s1 + $0xe30] sm:$0xff]
    %v546 = vld [vmem:[%s1 + $0xe38] sm:$0xff]
    %v547 = vld [vmem:[%s1 + $0xe40] sm:$0xff]
    %v548 = vld [vmem:[%s1 + $0xe48] sm:$0xff]
    %v549 = vld [vmem:[%s1 + $0xe50] sm:$0xff]
    %v550 = vld [vmem:[%s1 + $0xe58] sm:$0xff]
    %v551 = vld [vmem:[%s1 + $0xe60] sm:$0xff]
    %v552 = vld [vmem:[%s1 + $0xe68] sm:$0xff]
    %v553 = vld [vmem:[%s1 + $0xe70] sm:$0xff]
    %v554 = vld [vmem:[%s1 + $0xe78] sm:$0xff]
    %v555 = vld [vmem:[%s1 + $0xe80] sm:$0xff]
    %v556 = vld [vmem:[%s1 + $0xe88] sm:$0xff]
    %v557 = vld [vmem:[%s1 + $0xe90] sm:$0xff]
    %v558 = vld [vmem:[%s1 + $0xe98] sm:$0xff]
    %v559 = vld [vmem:[%s1 + $0xea0] sm:$0xff]
    %v560 = vld [vmem:[%s1 + $0xea8] sm:$0xff]
    %v561 = vld [vmem:[%s1 + $0xeb0] sm:$0xff]
    %v562 = vld [vmem:[%s1 + $0xeb8] sm:$0xff]
    %v563 = vld [vmem:[%s1 + $0xec0] sm:$0xff]
    %v564 = vld [vmem:[%s1 + $0xec8] sm:$0xff]
    %v565 = vld [vmem:[%s1 + $0xed0] sm:$0xff]
    %v566 = vld [vmem:[%s1 + $0xed8] sm:$0xff]
    %v567 = vld [vmem:[%s1 + $0xee0] sm:$0xff]
    %v568 = vld [vmem:[%s1 + $0xee8] sm:$0xff]
    %v569 = vld [vmem:[%s1 + $0xef0] sm:$0xff]
    %v570 = vld [vmem:[%s1 + $0xef8] sm:$0xff]
    %v571 = vld [vmem:[%s1 + $0xf00] sm:$0xff]
    %v572 = vld [vmem:[%s1 + $0xf08] sm:$0xff]
    %v573 = vld [vmem:[%s1 + $0xf10] sm:$0xff]
    %v574 = vld [vmem:[%s1 + $0xf18] sm:$0xff]
    %v575 = vld [vmem:[%s1 + $0xf20] sm:$0xff]
    %v576 = vld [vmem:[%s1 + $0xf28] sm:$0xff]
    %v577 = vld [vmem:[%s1 + $0xf30] sm:$0xff]
    %v578 = vld [vmem:[%s1 + $0xf38] sm:$0xff]
    %v579 = vld [vmem:[%s1 + $0xf40] sm:$0xff]
    %v580 = vld [vmem:[%s1 + $0xf48] sm:$0xff]
    %v581 = vld [vmem:[%s1 + $0xf50] sm:$0xff]
    %v582 = vld [vmem:[%s1 + $0xf58] sm:$0xff]
    %v583 = vld [vmem:[%s1 + $0xf60] sm:$0xff]
    %v584 = vld [vmem:[%s1 + $0xf68] sm:$0xff]
    %v585 = vld [vmem:[%s1 + $0xf70] sm:$0xff]
    %v586 = vld [vmem:[%s1 + $0xf78] sm:$0xff]
    %v587 = vld [vmem:[%s1 + $0xf80] sm:$0xff]
    %v588 = vld [vmem:[%s1 + $0xf88] sm:$0xff]
    %v589 = vld [vmem:[%s1 + $0xf90] sm:$0xff]
    %v590 = vld [vmem:[%s1 + $0xf98] sm:$0xff]
    %v591 = vld [vmem:[%s1 + $0xfa0] sm:$0xff]
    %v592 = vld [vmem:[%s1 + $0xfa8] sm:$0xff]
    %v593 = vld [vmem:[%s1 + $0xfb0] sm:$0xff]
    %v594 = vld [vmem:[%s1 + $0xfb8] sm:$0xff]
    %v595 = vld [vmem:[%s1 + $0xfc0] sm:$0xff]
    %v596 = vld [vmem:[%s1 + $0xfc8] sm:$0xff]
    %v597 = vld [vmem:[%s1 + $0xfd0] sm:$0xff]
    %v598 = vld [vmem:[%s1 + $0xfd8] sm:$0xff]
    %v599 = vld [vmem:[%s1 + $0xfe0] sm:$0xff]
    %v600 = vld [vmem:[%s1 + $0xfe8] sm:$0xff]
    %v601 = vld [vmem:[%s1 + $0xff0] sm:$0xff]
    %v602 = vld [vmem:[%s1 + $0xff8] sm:$0xff]
    %v603 = vld [vmem:[%s1 + $0x1000] sm:$0xff]
    %v604 = vld [vmem:[%s1 + $0x1008] sm:$0xff]
    %v605 = vld [vmem:[%s1 + $0x1010] sm:$0xff]
    %v606 = vld [vmem:[%s1 + $0x1018] sm:$0xff]
    %v607 = vld [vmem:[%s1 + $0x1020] sm:$0xff]
    %v608 = vld [vmem:[%s1 + $0x1028] sm:$0xff]
    %v609 = vld [vmem:[%s1 + $0x1030] sm:$0xff]
    %v610 = vld [vmem:[%s1 + $0x1038] sm:$0xff]
    %v611 = vld [vmem:[%s1 + $0x1040] sm:$0xff]
    %v612 = vld [vmem:[%s1 + $0x1048] sm:$0xff]
    %v613 = vld [vmem:[%s1 + $0x1050] sm:$0xff]
    %v614 = vld [vmem:[%s1 + $0x1058] sm:$0xff]
    %v615 = vld [vmem:[%s1 + $0x1060] sm:$0xff]
    %v616 = vld [vmem:[%s1 + $0x1068] sm:$0xff]
    %v617 = vld [vmem:[%s1 + $0x1070] sm:$0xff]
    %v618 = vld [vmem:[%s1 + $0x1078] sm:$0xff]
    %v619 = vld [vmem:[%s1 + $0x1080] sm:$0xff]
    %v620 = vld [vmem:[%s1 + $0x1088] sm:$0xff]
    %v621 = vld [vmem:[%s1 + $0x1090] sm:$0xff]
    %v622 = vld [vmem:[%s1 + $0x1098] sm:$0xff]
    %v623 = vld [vmem:[%s1 + $0x10a0] sm:$0xff]
    %v624 = vld [vmem:[%s1 + $0x10a8] sm:$0xff]
    %v625 = vld [vmem:[%s1 + $0x10b0] sm:$0xff]
    %v626 = vld [vmem:[%s1 + $0x10b8] sm:$0xff]
    %v627 = vld [vmem:[%s1 + $0x10c0] sm:$0xff]
    %v628 = vld [vmem:[%s1 + $0x10c8] sm:$0xff]
    %v629 = vld [vmem:[%s1 + $0x10d0] sm:$0xff]
    %v630 = vld [vmem:[%s1 + $0x10d8] sm:$0xff]
    %v631 = vld [vmem:[%s1 + $0x10e0] sm:$0xff]
    %v632 = vld [vmem:[%s1 + $0x10e8] sm:$0xff]
    %v633 = vld [vmem:[%s1 + $0x10f0] sm:$0xff]
    %v634 = vld [vmem:[%s1 + $0x10f8] sm:$0xff]
    %v635 = vld [vmem:[%s1 + $0x1100] sm:$0xff]
    %v636 = vld [vmem:[%s1 + $0x1108] sm:$0xff]
    %v637 = vld [vmem:[%s1 + $0x1110] sm:$0xff]
    %v638 = vld [vmem:[%s1 + $0x1118] sm:$0xff]
    %v639 = vld [vmem:[%s1 + $0x1120] sm:$0xff]
    %v640 = vld [vmem:[%s1 + $0x1128] sm:$0xff]
    %v641 = vld [vmem:[%s1 + $0x1130] sm:$0xff]
    %v642 = vld [vmem:[%s1 + $0x1138] sm:$0xff]
    %v643 = vld [vmem:[%s1 + $0x1140] sm:$0xff]
    %v644 = vld [vmem:[%s1 + $0x1148] sm:$0xff]
    %v645 = vld [vmem:[%s1 + $0x1150] sm:$0xff]
    %v646 = vld [vmem:[%s1 + $0x1158] sm:$0xff]
    %v647 = vld [vmem:[%s1 + $0x1160] sm:$0xff]
    %v648 = vld [vmem:[%s1 + $0x1168] sm:$0xff]
    %v649 = vld [vmem:[%s1 + $0x1170] sm:$0xff]
    %v650 = vld [vmem:[%s1 + $0x1178] sm:$0xff]
    %v651 = vld [vmem:[%s1 + $0x1180] sm:$0xff]
    %v652 = vld [vmem:[%s1 + $0x1188] sm:$0xff]
    %v653 = vld [vmem:[%s1 + $0x1190] sm:$0xff]
    %v654 = vld [vmem:[%s1 + $0x1198] sm:$0xff]
    %v655 = vld [vmem:[%s1 + $0x11a0] sm:$0xff]
    %v656 = vld [vmem:[%s1 + $0x11a8] sm:$0xff]
    %v657 = vld [vmem:[%s1 + $0x11b0] sm:$0xff]
    %v658 = vld [vmem:[%s1 + $0x11b8] sm:$0xff]
    %v659 = vld [vmem:[%s1 + $0x11c0] sm:$0xff]
    %v660 = vld [vmem:[%s1 + $0x11c8] sm:$0xff]
    %v661 = vld [vmem:[%s1 + $0x11d0] sm:$0xff]
    %v662 = vld [vmem:[%s1 + $0x11d8] sm:$0xff]
    %v663 = vld [vmem:[%s1 + $0x11e0] sm:$0xff]
    %v664 = vld [vmem:[%s1 + $0x11e8] sm:$0xff]
    %v665 = vld [vmem:[%s1 + $0x11f0] sm:$0xff]
    %v666 = vld [vmem:[%s1 + $0x11f8] sm:$0xff]
    %v667 = vld [vmem:[%s1 + $0x1200] sm:$0xff]
    %v668 = vld [vmem:[%s1 + $0x1208] sm:$0xff]
    %v669 = vld [vmem:[%s1 + $0x1210] sm:$0xff]
    %v670 = vld [vmem:[%s1 + $0x1218] sm:$0xff]
    %v671 = vld [vmem:[%s1 + $0x1220] sm:$0xff]
    %v672 = vld [vmem:[%s1 + $0x1228] sm:$0xff]
    %v673 = vld [vmem:[%s1 + $0x1230] sm:$0xff]
    %v674 = vld [vmem:[%s1 + $0x1238] sm:$0xff]
    %v675 = vld [vmem:[%s1 + $0x1240] sm:$0xff]
    %v676 = vld [vmem:[%s1 + $0x1248] sm:$0xff]
    %v677 = vld [vmem:[%s1 + $0x1250] sm:$0xff]
    %v678 = vld [vmem:[%s1 + $0x1258] sm:$0xff]
    %v679 = vld [vmem:[%s1 + $0x1260] sm:$0xff]
    %v680 = vld [vmem:[%s1 + $0x1268] sm:$0xff]
    %v681 = vld [vmem:[%s1 + $0x1270] sm:$0xff]
    %v682 = vld [vmem:[%s1 + $0x1278] sm:$0xff]
    %v683 = vld [vmem:[%s1 + $0x1280] sm:$0xff]
    %v684 = vld [vmem:[%s1 + $0x1288] sm:$0xff]
    %v685 = vld [vmem:[%s1 + $0x1290] sm:$0xff]
    %v686 = vld [vmem:[%s1 + $0x1298] sm:$0xff]
    %v687 = vld [vmem:[%s1 + $0x12a0] sm:$0xff]
    %v688 = vld [vmem:[%s1 + $0x12a8] sm:$0xff]
    %v689 = vld [vmem:[%s1 + $0x12b0] sm:$0xff]
    %v690 = vld [vmem:[%s1 + $0x12b8] sm:$0xff]
    %v691 = vld [vmem:[%s1 + $0x12c0] sm:$0xff]
    %v692 = vld [vmem:[%s1 + $0x12c8] sm:$0xff]
    %v693 = vld [vmem:[%s1 + $0x12d0] sm:$0xff]
    %v694 = vld [vmem:[%s1 + $0x12d8] sm:$0xff]
    %v695 = vld [vmem:[%s1 + $0x12e0] sm:$0xff]
    %v696 = vld [vmem:[%s1 + $0x12e8] sm:$0xff]
    %v697 = vld [vmem:[%s1 + $0x12f0] sm:$0xff]
    %v698 = vld [vmem:[%s1 + $0x12f8] sm:$0xff]
    %v699 = vld [vmem:[%s1 + $0x1300] sm:$0xff]
    %v700 = vld [vmem:[%s1 + $0x1308] sm:$0xff]
    %v701 = vld [vmem:[%s1 + $0x1310] sm:$0xff]
    %v702 = vld [vmem:[%s1 + $0x1318] sm:$0xff]
    %v703 = vld [vmem:[%s1 + $0x1320] sm:$0xff]
    %v704 = vld [vmem:[%s1 + $0x1328] sm:$0xff]
    %v705 = vld [vmem:[%s1 + $0x1330] sm:$0xff]
    %v706 = vld [vmem:[%s1 + $0x1338] sm:$0xff]
    %v707 = vld [vmem:[%s1 + $0x1340] sm:$0xff]
    %v708 = vld [vmem:[%s1 + $0x1348] sm:$0xff]
    %v709 = vld [vmem:[%s1 + $0x1350] sm:$0xff]
    %v710 = vld [vmem:[%s1 + $0x1358] sm:$0xff]
    %v711 = vld [vmem:[%s1 + $0x1360] sm:$0xff]
    %v712 = vld [vmem:[%s1 + $0x1368] sm:$0xff]
    %v713 = vld [vmem:[%s1 + $0x1370] sm:$0xff]
    %v714 = vld [vmem:[%s1 + $0x1378] sm:$0xff]
    %v715 = vld [vmem:[%s1 + $0x1380] sm:$0xff]
    %v716 = vld [vmem:[%s1 + $0x1388] sm:$0xff]
    %v717 = vld [vmem:[%s1 + $0x1390] sm:$0xff]
    %v718 = vld [vmem:[%s1 + $0x1398] sm:$0xff]
    %v719 = vld [vmem:[%s1 + $0x13a0] sm:$0xff]
    %v720 = vld [vmem:[%s1 + $0x13a8] sm:$0xff]
    %v721 = vld [vmem:[%s1 + $0x13b0] sm:$0xff]
    %v722 = vld [vmem:[%s1 + $0x13b8] sm:$0xff]
    %v723 = vld [vmem:[%s1 + $0x13c0] sm:$0xff]
    %v724 = vld [vmem:[%s1 + $0x13c8] sm:$0xff]
    %v725 = vld [vmem:[%s1 + $0x13d0] sm:$0xff]
    %v726 = vld [vmem:[%s1 + $0x13d8] sm:$0xff]
    %v727 = vld [vmem:[%s1 + $0x13e0] sm:$0xff]
    %v728 = vld [vmem:[%s1 + $0x13e8] sm:$0xff]
    %v729 = vld [vmem:[%s1 + $0x13f0] sm:$0xff]
    %v730 = vld [vmem:[%s1 + $0x13f8] sm:$0xff]
    %v731 = vld [vmem:[%s1 + $0x1400] sm:$0xff]
    %v732 = vld [vmem:[%s1 + $0x1408] sm:$0xff]
    %v733 = vld [vmem:[%s1 + $0x1410] sm:$0xff]
    %v734 = vld [vmem:[%s1 + $0x1418] sm:$0xff]
    %v735 = vld [vmem:[%s1 + $0x1420] sm:$0xff]
    %v736 = vld [vmem:[%s1 + $0x1428] sm:$0xff]
    %v737 = vld [vmem:[%s1 + $0x1430] sm:$0xff]
    %v738 = vld [vmem:[%s1 + $0x1438] sm:$0xff]
    %v739 = vld [vmem:[%s1 + $0x1440] sm:$0xff]
    %v740 = vld [vmem:[%s1 + $0x1448] sm:$0xff]
    %v741 = vld [vmem:[%s1 + $0x1450] sm:$0xff]
    %v742 = vld [vmem:[%s1 + $0x1458] sm:$0xff]
    %v743 = vld [vmem:[%s1 + $0x1460] sm:$0xff]
    %v744 = vld [vmem:[%s1 + $0x1468] sm:$0xff]
    %v745 = vld [vmem:[%s1 + $0x1470] sm:$0xff]
    %v746 = vld [vmem:[%s1 + $0x1478] sm:$0xff]
    %v747 = vld [vmem:[%s1 + $0x1480] sm:$0xff]
    %v748 = vld [vmem:[%s1 + $0x1488] sm:$0xff]
    %v749 = vld [vmem:[%s1 + $0x1490] sm:$0xff]
    %v750 = vld [vmem:[%s1 + $0x1498] sm:$0xff]
    %v751 = vld [vmem:[%s1 + $0x14a0] sm:$0xff]
    %v752 = vld [vmem:[%s1 + $0x14a8] sm:$0xff]
    %v753 = vld [vmem:[%s1 + $0x14b0] sm:$0xff]
    %v754 = vld [vmem:[%s1 + $0x14b8] sm:$0xff]
    %v755 = vld [vmem:[%s1 + $0x14c0] sm:$0xff]
    %v756 = vld [vmem:[%s1 + $0x14c8] sm:$0xff]
    %v757 = vld [vmem:[%s1 + $0x14d0] sm:$0xff]
    %v758 = vld [vmem:[%s1 + $0x14d8] sm:$0xff]
    %v759 = vld [vmem:[%s1 + $0x14e0] sm:$0xff]
    %v760 = vld [vmem:[%s1 + $0x14e8] sm:$0xff]
    %v761 = vld [vmem:[%s1 + $0x14f0] sm:$0xff]
    %v762 = vld [vmem:[%s1 + $0x14f8] sm:$0xff]
    %v763 = vld [vmem:[%s1 + $0x1500] sm:$0xff]
    %v764 = vld [vmem:[%s1 + $0x1508] sm:$0xff]
    %v765 = vld [vmem:[%s1 + $0x1510] sm:$0xff]
    %v766 = vld [vmem:[%s1 + $0x1518] sm:$0xff]
    %v767 = vld [vmem:[%s1 + $0x1520] sm:$0xff]
    %v768 = vld [vmem:[%s1 + $0x1528] sm:$0xff]
    %v769 = vld [vmem:[%s1 + $0x1530] sm:$0xff]
    %v770 = vld [vmem:[%s1 + $0x1538] sm:$0xff]
    %v771 = vld [vmem:[%s1 + $0x1540] sm:$0xff]
    %v772 = vld [vmem:[%s1 + $0x1548] sm:$0xff]
    %v773 = vld [vmem:[%s1 + $0x1550] sm:$0xff]
    %v774 = vld [vmem:[%s1 + $0x1558] sm:$0xff]
    %v775 = vld [vmem:[%s1 + $0x1560] sm:$0xff]
    %v776 = vld [vmem:[%s1 + $0x1568] sm:$0xff]
    %v777 = vld [vmem:[%s1 + $0x1570] sm:$0xff]
    %v778 = vld [vmem:[%s1 + $0x1578] sm:$0xff]
    %v779 = vld [vmem:[%s1 + $0x1580] sm:$0xff]
    %v780 = vld [vmem:[%s1 + $0x1588] sm:$0xff]
    %v781 = vld [vmem:[%s1 + $0x1590] sm:$0xff]
    %v782 = vld [vmem:[%s1 + $0x1598] sm:$0xff]
    %v783 = vld [vmem:[%s1 + $0x15a0] sm:$0xff]
    %v784 = vld [vmem:[%s1 + $0x15a8] sm:$0xff]
    %v785 = vld [vmem:[%s1 + $0x15b0] sm:$0xff]
    %v786 = vld [vmem:[%s1 + $0x15b8] sm:$0xff]
    %v787 = vld [vmem:[%s1 + $0x15c0] sm:$0xff]
    %v788 = vld [vmem:[%s1 + $0x15c8] sm:$0xff]
    %v789 = vld [vmem:[%s1 + $0x15d0] sm:$0xff]
    %v790 = vld [vmem:[%s1 + $0x15d8] sm:$0xff]
    %v791 = vld [vmem:[%s1 + $0x15e0] sm:$0xff]
    %v792 = vld [vmem:[%s1 + $0x15e8] sm:$0xff]
    %v793 = vld [vmem:[%s1 + $0x15f0] sm:$0xff]
    %v794 = vld [vmem:[%s1 + $0x15f8] sm:$0xff]
    %v795 = vld [vmem:[%s1 + $0x1600] sm:$0xff]
    %v796 = vld [vmem:[%s1 + $0x1608] sm:$0xff]
    %v797 = vld [vmem:[%s1 + $0x1610] sm:$0xff]
    %v798 = vld [vmem:[%s1 + $0x1618] sm:$0xff]
    %v799 = vld [vmem:[%s1 + $0x1620] sm:$0xff]
    %v800 = vld [vmem:[%s1 + $0x1628] sm:$0xff]
    %v801 = vld [vmem:[%s1 + $0x1630] sm:$0xff]
    %v802 = vld [vmem:[%s1 + $0x1638] sm:$0xff]
    %v803 = vld [vmem:[%s1 + $0x1640] sm:$0xff]
    %v804 = vld [vmem:[%s1 + $0x1648] sm:$0xff]
    %v805 = vld [vmem:[%s1 + $0x1650] sm:$0xff]
    %v806 = vld [vmem:[%s1 + $0x1658] sm:$0xff]
    %v807 = vld [vmem:[%s1 + $0x1660] sm:$0xff]
    %v808 = vld [vmem:[%s1 + $0x1668] sm:$0xff]
    %v809 = vld [vmem:[%s1 + $0x1670] sm:$0xff]
    %v810 = vld [vmem:[%s1 + $0x1678] sm:$0xff]
    %v811 = vld [vmem:[%s1 + $0x1680] sm:$0xff]
    %v812 = vld [vmem:[%s1 + $0x1688] sm:$0xff]
    %v813 = vld [vmem:[%s1 + $0x1690] sm:$0xff]
    %v814 = vld [vmem:[%s1 + $0x1698] sm:$0xff]
    %v815 = vld [vmem:[%s1 + $0x16a0] sm:$0xff]
    %v816 = vld [vmem:[%s1 + $0x16a8] sm:$0xff]
    %v817 = vld [vmem:[%s1 + $0x16b0] sm:$0xff]
    %v818 = vld [vmem:[%s1 + $0x16b8] sm:$0xff]
    %v819 = vld [vmem:[%s1 + $0x16c0] sm:$0xff]
    %v820 = vld [vmem:[%s1 + $0x16c8] sm:$0xff]
    %v821 = vld [vmem:[%s1 + $0x16d0] sm:$0xff]
    %v822 = vld [vmem:[%s1 + $0x16d8] sm:$0xff]
    %v823 = vld [vmem:[%s1 + $0x16e0] sm:$0xff]
    %v824 = vld [vmem:[%s1 + $0x16e8] sm:$0xff]
    %v825 = vld [vmem:[%s1 + $0x16f0] sm:$0xff]
    %v826 = vld [vmem:[%s1 + $0x16f8] sm:$0xff]
    %v827 = vld [vmem:[%s1 + $0x1700] sm:$0xff]
    %v828 = vld [vmem:[%s1 + $0x1708] sm:$0xff]
    %v829 = vld [vmem:[%s1 + $0x1710] sm:$0xff]
    %v830 = vld [vmem:[%s1 + $0x1718] sm:$0xff]
    %v831 = vld [vmem:[%s1 + $0x1720] sm:$0xff]
    %v832 = vld [vmem:[%s1 + $0x1728] sm:$0xff]
    %v833 = vld [vmem:[%s1 + $0x1730] sm:$0xff]
    %v834 = vld [vmem:[%s1 + $0x1738] sm:$0xff]
    %v835 = vld [vmem:[%s1 + $0x1740] sm:$0xff]
    %v836 = vld [vmem:[%s1 + $0x1748] sm:$0xff]
    %v837 = vld [vmem:[%s1 + $0x1750] sm:$0xff]
    %v838 = vld [vmem:[%s1 + $0x1758] sm:$0xff]
    %v839 = vld [vmem:[%s1 + $0x1760] sm:$0xff]
    %v840 = vld [vmem:[%s1 + $0x1768] sm:$0xff]
    %v841 = vld [vmem:[%s1 + $0x1770] sm:$0xff]
    %v842 = vld [vmem:[%s1 + $0x1778] sm:$0xff]
    %v843 = vld [vmem:[%s1 + $0x1780] sm:$0xff]
    %v844 = vld [vmem:[%s1 + $0x1788] sm:$0xff]
    %v845 = vld [vmem:[%s1 + $0x1790] sm:$0xff]
    %v846 = vld [vmem:[%s1 + $0x1798] sm:$0xff]
    %v847 = vld [vmem:[%s1 + $0x17a0] sm:$0xff]
    %v848 = vld [vmem:[%s1 + $0x17a8] sm:$0xff]
    %v849 = vld [vmem:[%s1 + $0x17b0] sm:$0xff]
    %v850 = vld [vmem:[%s1 + $0x17b8] sm:$0xff]
    %v851 = vld [vmem:[%s1 + $0x17c0] sm:$0xff]
    %v852 = vld [vmem:[%s1 + $0x17c8] sm:$0xff]
    %v853 = vld [vmem:[%s1 + $0x17d0] sm:$0xff]
    %v854 = vld [vmem:[%s1 + $0x17d8] sm:$0xff]
    %v855 = vld [vmem:[%s1 + $0x17e0] sm:$0xff]
    %v856 = vld [vmem:[%s1 + $0x17e8] sm:$0xff]
    %v857 = vld [vmem:[%s1 + $0x17f0] sm:$0xff]
    %v858 = vld [vmem:[%s1 + $0x17f8] sm:$0xff]
    %v859 = vld [vmem:[%s1 + $0x1800] sm:$0xff]
    %v860 = vld [vmem:[%s1 + $0x1808] sm:$0xff]
    %v861 = vld [vmem:[%s1 + $0x1810] sm:$0xff]
    %v862 = vld [vmem:[%s1 + $0x1818] sm:$0xff]
    %v863 = vld [vmem:[%s1 + $0x1820] sm:$0xff]
    %v864 = vld [vmem:[%s1 + $0x1828] sm:$0xff]
    %v865 = vld [vmem:[%s1 + $0x1830] sm:$0xff]
    %v866 = vld [vmem:[%s1 + $0x1838] sm:$0xff]
    %v867 = vld [vmem:[%s1 + $0x1840] sm:$0xff]
    %v868 = vld [vmem:[%s1 + $0x1848] sm:$0xff]
    %v869 = vld [vmem:[%s1 + $0x1850] sm:$0xff]
    %v870 = vld [vmem:[%s1 + $0x1858] sm:$0xff]
    %v871 = vld [vmem:[%s1 + $0x1860] sm:$0xff]
    %v872 = vld [vmem:[%s1 + $0x1868] sm:$0xff]
    %v873 = vld [vmem:[%s1 + $0x1870] sm:$0xff]
    %v874 = vld [vmem:[%s1 + $0x1878] sm:$0xff]
    %v875 = vld [vmem:[%s1 + $0x1880] sm:$0xff]
    %v876 = vld [vmem:[%s1 + $0x1888] sm:$0xff]
    %v877 = vld [vmem:[%s1 + $0x1890] sm:$0xff]
    %v878 = vld [vmem:[%s1 + $0x1898] sm:$0xff]
    %v879 = vld [vmem:[%s1 + $0x18a0] sm:$0xff]
    %v880 = vld [vmem:[%s1 + $0x18a8] sm:$0xff]
    %v881 = vld [vmem:[%s1 + $0x18b0] sm:$0xff]
    %v882 = vld [vmem:[%s1 + $0x18b8] sm:$0xff]
    %v883 = vld [vmem:[%s1 + $0x18c0] sm:$0xff]
    %v884 = vld [vmem:[%s1 + $0x18c8] sm:$0xff]
    %v885 = vld [vmem:[%s1 + $0x18d0] sm:$0xff]
    %v886 = vld [vmem:[%s1 + $0x18d8] sm:$0xff]
    %v887 = vld [vmem:[%s1 + $0x18e0] sm:$0xff]
    %v888 = vld [vmem:[%s1 + $0x18e8] sm:$0xff]
    %v889 = vld [vmem:[%s1 + $0x18f0] sm:$0xff]
    %v890 = vld [vmem:[%s1 + $0x18f8] sm:$0xff]
    %v891 = vld [vmem:[%s1 + $0x1900] sm:$0xff]
    %v892 = vld [vmem:[%s1 + $0x1908] sm:$0xff]
    %v893 = vld [vmem:[%s1 + $0x1910] sm:$0xff]
    %v894 = vld [vmem:[%s1 + $0x1918] sm:$0xff]
    %v895 = vld [vmem:[%s1 + $0x1920] sm:$0xff]
    %v896 = vld [vmem:[%s1 + $0x1928] sm:$0xff]
    %v897 = vld [vmem:[%s1 + $0x1930] sm:$0xff]
    %v898 = vld [vmem:[%s1 + $0x1938] sm:$0xff]
    %v899 = vld [vmem:[%s1 + $0x1940] sm:$0xff]
    %v900 = vld [vmem:[%s1 + $0x1948] sm:$0xff]
    %v901 = vld [vmem:[%s1 + $0x1950] sm:$0xff]
    %v902 = vld [vmem:[%s1 + $0x1958] sm:$0xff]
    %v903 = vld [vmem:[%s1 + $0x1960] sm:$0xff]
    %v904 = vld [vmem:[%s1 + $0x1968] sm:$0xff]
    %v905 = vld [vmem:[%s1 + $0x1970] sm:$0xff]
    %v906 = vld [vmem:[%s1 + $0x1978] sm:$0xff]
    %v907 = vld [vmem:[%s1 + $0x1980] sm:$0xff]
    %v908 = vld [vmem:[%s1 + $0x1988] sm:$0xff]
    %v909 = vld [vmem:[%s1 + $0x1990] sm:$0xff]
    %v910 = vld [vmem:[%s1 + $0x1998] sm:$0xff]
    %v911 = vld [vmem:[%s1 + $0x19a0] sm:$0xff]
    %v912 = vld [vmem:[%s1 + $0x19a8] sm:$0xff]
    %v913 = vld [vmem:[%s1 + $0x19b0] sm:$0xff]
    %v914 = vld [vmem:[%s1 + $0x19b8] sm:$0xff]
    %v915 = vld [vmem:[%s1 + $0x19c0] sm:$0xff]
    %v916 = vld [vmem:[%s1 + $0x19c8] sm:$0xff]
    %v917 = vld [vmem:[%s1 + $0x19d0] sm:$0xff]
    %v918 = vld [vmem:[%s1 + $0x19d8] sm:$0xff]
    %v919 = vld [vmem:[%s1 + $0x19e0] sm:$0xff]
    %v920 = vld [vmem:[%s1 + $0x19e8] sm:$0xff]
    %v921 = vld [vmem:[%s1 + $0x19f0] sm:$0xff]
    %v922 = vld [vmem:[%s1 + $0x19f8] sm:$0xff]
    %v923 = vld [vmem:[%s1 + $0x1a00] sm:$0xff]
    %v924 = vld [vmem:[%s1 + $0x1a08] sm:$0xff]
    %v925 = vld [vmem:[%s1 + $0x1a10] sm:$0xff]
    %v926 = vld [vmem:[%s1 + $0x1a18] sm:$0xff]
    %v927 = vld [vmem:[%s1 + $0x1a20] sm:$0xff]
    %v928 = vld [vmem:[%s1 + $0x1a28] sm:$0xff]
    %v929 = vld [vmem:[%s1 + $0x1a30] sm:$0xff]
    %v930 = vld [vmem:[%s1 + $0x1a38] sm:$0xff]
    %v931 = vld [vmem:[%s1 + $0x1a40] sm:$0xff]
    %v932 = vld [vmem:[%s1 + $0x1a48] sm:$0xff]
    %v933 = vld [vmem:[%s1 + $0x1a50] sm:$0xff]
    %v934 = vld [vmem:[%s1 + $0x1a58] sm:$0xff]
    %v935 = vld [vmem:[%s1 + $0x1a60] sm:$0xff]
    %v936 = vld [vmem:[%s1 + $0x1a68] sm:$0xff]
    %v937 = vld [vmem:[%s1 + $0x1a70] sm:$0xff]
    %v938 = vld [vmem:[%s1 + $0x1a78] sm:$0xff]
    %v939 = vld [vmem:[%s1 + $0x1a80] sm:$0xff]
    %v940 = vld [vmem:[%s1 + $0x1a88] sm:$0xff]
    %v941 = vld [vmem:[%s1 + $0x1a90] sm:$0xff]
    %v942 = vld [vmem:[%s1 + $0x1a98] sm:$0xff]
    %v943 = vld [vmem:[%s1 + $0x1aa0] sm:$0xff]
    %v944 = vld [vmem:[%s1 + $0x1aa8] sm:$0xff]
    %v945 = vld [vmem:[%s1 + $0x1ab0] sm:$0xff]
    %v946 = vld [vmem:[%s1 + $0x1ab8] sm:$0xff]
    %v947 = vld [vmem:[%s1 + $0x1ac0] sm:$0xff]
    %v948 = vld [vmem:[%s1 + $0x1ac8] sm:$0xff]
    %v949 = vld [vmem:[%s1 + $0x1ad0] sm:$0xff]
    %v950 = vld [vmem:[%s1 + $0x1ad8] sm:$0xff]
    %v951 = vld [vmem:[%s1 + $0x1ae0] sm:$0xff]
    %v952 = vld [vmem:[%s1 + $0x1ae8] sm:$0xff]
    %v953 = vld [vmem:[%s1 + $0x1af0] sm:$0xff]
    %v954 = vld [vmem:[%s1 + $0x1af8] sm:$0xff]
    %v955 = vld [vmem:[%s1 + $0x1b00] sm:$0xff]
    %v956 = vld [vmem:[%s1 + $0x1b08] sm:$0xff]
    %v957 = vld [vmem:[%s1 + $0x1b10] sm:$0xff]
    %v958 = vld [vmem:[%s1 + $0x1b18] sm:$0xff]
    %v959 = vld [vmem:[%s1 + $0x1b20] sm:$0xff]
    %v960 = vld [vmem:[%s1 + $0x1b28] sm:$0xff]
    %v961 = vld [vmem:[%s1 + $0x1b30] sm:$0xff]
    %v962 = vld [vmem:[%s1 + $0x1b38] sm:$0xff]
    %v963 = vld [vmem:[%s1 + $0x1b40] sm:$0xff]
    %v964 = vld [vmem:[%s1 + $0x1b48] sm:$0xff]
    %v965 = vld [vmem:[%s1 + $0x1b50] sm:$0xff]
    %v966 = vld [vmem:[%s1 + $0x1b58] sm:$0xff]
    %v967 = vld [vmem:[%s1 + $0x1b60] sm:$0xff]
    %v968 = vld [vmem:[%s1 + $0x1b68] sm:$0xff]
    %v969 = vld [vmem:[%s1 + $0x1b70] sm:$0xff]
    %v970 = vld [vmem:[%s1 + $0x1b78] sm:$0xff]
    %v971 = vld [vmem:[%s1 + $0x1b80] sm:$0xff]
    %v972 = vld [vmem:[%s1 + $0x1b88] sm:$0xff]
    %v973 = vld [vmem:[%s1 + $0x1b90] sm:$0xff]
    %v974 = vld [vmem:[%s1 + $0x1b98] sm:$0xff]
    %v975 = vld [vmem:[%s1 + $0x1ba0] sm:$0xff]
    %v976 = vld [vmem:[%s1 + $0x1ba8] sm:$0xff]
    %v977 = vld [vmem:[%s1 + $0x1bb0] sm:$0xff]
    %v978 = vld [vmem:[%s1 + $0x1bb8] sm:$0xff]
    %v979 = vld [vmem:[%s1 + $0x1bc0] sm:$0xff]
    %v980 = vld [vmem:[%s1 + $0x1bc8] sm:$0xff]
    %v981 = vld [vmem:[%s1 + $0x1bd0] sm:$0xff]
    %v982 = vld [vmem:[%s1 + $0x1bd8] sm:$0xff]
    %v983 = vld [vmem:[%s1 + $0x1be0] sm:$0xff]
    %v984 = vld [vmem:[%s1 + $0x1be8] sm:$0xff]
    %v985 = vld [vmem:[%s1 + $0x1bf0] sm:$0xff]
    %v986 = vld [vmem:[%s1 + $0x1bf8] sm:$0xff]
    %v987 = vld [vmem:[%s1 + $0x1c00] sm:$0xff]
    %v988 = vld [vmem:[%s1 + $0x1c08] sm:$0xff]
    %v989 = vld [vmem:[%s1 + $0x1c10] sm:$0xff]
    %v990 = vld [vmem:[%s1 + $0x1c18] sm:$0xff]
    %v991 = vld [vmem:[%s1 + $0x1c20] sm:$0xff]
    %v992 = vld [vmem:[%s1 + $0x1c28] sm:$0xff]
    %v993 = vld [vmem:[%s1 + $0x1c30] sm:$0xff]
    %v994 = vld [vmem:[%s1 + $0x1c38] sm:$0xff]
    %v995 = vld [vmem:[%s1 + $0x1c40] sm:$0xff]
    %v996 = vld [vmem:[%s1 + $0x1c48] sm:$0xff]
    %v997 = vld [vmem:[%s1 + $0x1c50] sm:$0xff]
    %v998 = vld [vmem:[%s1 + $0x1c58] sm:$0xff]
    %v999 = vld [vmem:[%s1 + $0x1c60] sm:$0xff]
    %v1000 = vld [vmem:[%s1 + $0x1c68] sm:$0xff]
    %v1001 = vld [vmem:[%s1 + $0x1c70] sm:$0xff]
    %v1002 = vld [vmem:[%s1 + $0x1c78] sm:$0xff]
    %v1003 = vld [vmem:[%s1 + $0x1c80] sm:$0xff]
    %v1004 = vld [vmem:[%s1 + $0x1c88] sm:$0xff]
    %v1005 = vld [vmem:[%s1 + $0x1c90] sm:$0xff]
    %v1006 = vld [vmem:[%s1 + $0x1c98] sm:$0xff]
    %v1007 = vld [vmem:[%s1 + $0x1ca0] sm:$0xff]
    %v1008 = vld [vmem:[%s1 + $0x1ca8] sm:$0xff]
    %v1009 = vld [vmem:[%s1 + $0x1cb0] sm:$0xff]
    %v1010 = vld [vmem:[%s1 + $0x1cb8] sm:$0xff]
    %v1011 = vld [vmem:[%s1 + $0x1cc0] sm:$0xff]
    %v1012 = vld [vmem:[%s1 + $0x1cc8] sm:$0xff]
    %v1013 = vld [vmem:[%s1 + $0x1cd0] sm:$0xff]
    %v1014 = vld [vmem:[%s1 + $0x1cd8] sm:$0xff]
    %v1015 = vld [vmem:[%s1 + $0x1ce0] sm:$0xff]
    %v1016 = vld [vmem:[%s1 + $0x1ce8] sm:$0xff]
    %v1017 = vld [vmem:[%s1 + $0x1cf0] sm:$0xff]
    %v1018 = vld [vmem:[%s1 + $0x1cf8] sm:$0xff]
    %v1019 = vld [vmem:[%s1 + $0x1d00] sm:$0xff]
    %v1020 = vld [vmem:[%s1 + $0x1d08] sm:$0xff]
    %v1021 = vld [vmem:[%s1 + $0x1d10] sm:$0xff]
    %v1022 = vld [vmem:[%s1 + $0x1d18] sm:$0xff]
    %v1023 = vld [vmem:[%s1 + $0x1d20] sm:$0xff]
    %v1024 = vld [vmem:[%s1 + $0x1d28] sm:$0xff]
    %v1025 = vld [vmem:[%s1 + $0x1d30] sm:$0xff]
    %v1026 = vld [vmem:[%s1 + $0x1d38] sm:$0xff]
    %v1027 = vld [vmem:[%s1 + $0x1d40] sm:$0xff]
    %v1028 = vld [vmem:[%s1 + $0x1d48] sm:$0xff]
    %v1029 = vld [vmem:[%s1 + $0x1d50] sm:$0xff]
    %v1030 = vld [vmem:[%s1 + $0x1d58] sm:$0xff]
    %v1031 = vld [vmem:[%s1 + $0x1d60] sm:$0xff]
    %v1032 = vld [vmem:[%s1 + $0x1d68] sm:$0xff]
    %v1033 = vld [vmem:[%s1 + $0x1d70] sm:$0xff]
    %v1034 = vld [vmem:[%s1 + $0x1d78] sm:$0xff]
    %v1035 = vld [vmem:[%s1 + $0x1d80] sm:$0xff]
    %v1036 = vld [vmem:[%s1 + $0x1d88] sm:$0xff]
    %v1037 = vld [vmem:[%s1 + $0x1d90] sm:$0xff]
    %v1038 = vld [vmem:[%s1 + $0x1d98] sm:$0xff]
    %v1039 = vld [vmem:[%s1 + $0x1da0] sm:$0xff]
    %v1040 = vld [vmem:[%s1 + $0x1da8] sm:$0xff]
    %v1041 = vld [vmem:[%s1 + $0x1db0] sm:$0xff]
    %v1042 = vld [vmem:[%s1 + $0x1db8] sm:$0xff]
    %v1043 = vld [vmem:[%s1 + $0x1dc0] sm:$0xff]
    %v1044 = vld [vmem:[%s1 + $0x1dc8] sm:$0xff]
    %v1045 = vld [vmem:[%s1 + $0x1dd0] sm:$0xff]
    %v1046 = vld [vmem:[%s1 + $0x1dd8] sm:$0xff]
    %v1047 = vld [vmem:[%s1 + $0x1de0] sm:$0xff]
    %v1048 = vld [vmem:[%s1 + $0x1de8] sm:$0xff]
    %v1049 = vld [vmem:[%s1 + $0x1df0] sm:$0xff]
    %v1050 = vld [vmem:[%s1 + $0x1df8] sm:$0xff]
    %v1051 = vld [vmem:[%s1 + $0x1e00] sm:$0xff]
    %v1052 = vld [vmem:[%s1 + $0x1e08] sm:$0xff]
    %v1053 = vld [vmem:[%s1 + $0x1e10] sm:$0xff]
    %v1054 = vld [vmem:[%s1 + $0x1e18] sm:$0xff]
    %v1055 = vld [vmem:[%s1 + $0x1e20] sm:$0xff]
    %v1056 = vld [vmem:[%s1 + $0x1e28] sm:$0xff]
    %v1057 = vld [vmem:[%s1 + $0x1e30] sm:$0xff]
    %v1058 = vld [vmem:[%s1 + $0x1e38] sm:$0xff]
    %v1059 = vld [vmem:[%s1 + $0x1e40] sm:$0xff]
    %v1060 = vld [vmem:[%s1 + $0x1e48] sm:$0xff]
    %v1061 = vld [vmem:[%s1 + $0x1e50] sm:$0xff]
    %v1062 = vld [vmem:[%s1 + $0x1e58] sm:$0xff]
    %v1063 = vld [vmem:[%s1 + $0x1e60] sm:$0xff]
    %v1064 = vld [vmem:[%s1 + $0x1e68] sm:$0xff]
    %v1065 = vld [vmem:[%s1 + $0x1e70] sm:$0xff]
    %v1066 = vld [vmem:[%s1 + $0x1e78] sm:$0xff]
    %v1067 = vld [vmem:[%s1 + $0x1e80] sm:$0xff]
    %v1068 = vld [vmem:[%s1 + $0x1e88] sm:$0xff]
    %v1069 = vld [vmem:[%s1 + $0x1e90] sm:$0xff]
    %v1070 = vld [vmem:[%s1 + $0x1e98] sm:$0xff]
    %v1071 = vld [vmem:[%s1 + $0x1ea0] sm:$0xff]
    %v1072 = vld [vmem:[%s1 + $0x1ea8] sm:$0xff]
    %v1073 = vld [vmem:[%s1 + $0x1eb0] sm:$0xff]
    %v1074 = vld [vmem:[%s1 + $0x1eb8] sm:$0xff]
    %v1075 = vld [vmem:[%s1 + $0x1ec0] sm:$0xff]
    %v1076 = vld [vmem:[%s1 + $0x1ec8] sm:$0xff]
    %v1077 = vld [vmem:[%s1 + $0x1ed0] sm:$0xff]
    %v1078 = vld [vmem:[%s1 + $0x1ed8] sm:$0xff]
    %v1079 = vld [vmem:[%s1 + $0x1ee0] sm:$0xff]
    %v1080 = vld [vmem:[%s1 + $0x1ee8] sm:$0xff]
    %v1081 = vld [vmem:[%s1 + $0x1ef0] sm:$0xff]
    %v1082 = vld [vmem:[%s1 + $0x1ef8] sm:$0xff]
    %v1083 = vld [vmem:[%s1 + $0x1f00] sm:$0xff]
    %v1084 = vld [vmem:[%s1 + $0x1f08] sm:$0xff]
    %v1085 = vld [vmem:[%s1 + $0x1f10] sm:$0xff]
    %v1086 = vld [vmem:[%s1 + $0x1f18] sm:$0xff]
    %v1087 = vld [vmem:[%s1 + $0x1f20] sm:$0xff]
    %v1088 = vld [vmem:[%s1 + $0x1f28] sm:$0xff]
    %v1089 = vld [vmem:[%s1 + $0x1f30] sm:$0xff]
    %v1090 = vld [vmem:[%s1 + $0x1f38] sm:$0xff]
    %v1091 = vld [vmem:[%s1 + $0x1f40] sm:$0xff]
    %v1092 = vld [vmem:[%s1 + $0x1f48] sm:$0xff]
    %v1093 = vld [vmem:[%s1 + $0x1f50] sm:$0xff]
    %v1094 = vld [vmem:[%s1 + $0x1f58] sm:$0xff]
    %v1095 = vld [vmem:[%s1 + $0x1f60] sm:$0xff]
    %v1096 = vld [vmem:[%s1 + $0x1f68] sm:$0xff]
    %v1097 = vld [vmem:[%s1 + $0x1f70] sm:$0xff]
    %v1098 = vld [vmem:[%s1 + $0x1f78] sm:$0xff]
    %v1099 = vld [vmem:[%s1 + $0x1f80] sm:$0xff]
    %v1100 = vld [vmem:[%s1 + $0x1f88] sm:$0xff]
    %v1101 = vld [vmem:[%s1 + $0x1f90] sm:$0xff]
    %v1102 = vld [vmem:[%s1 + $0x1f98] sm:$0xff]
    %v1103 = vld [vmem:[%s1 + $0x1fa0] sm:$0xff]
    %v1104 = vld [vmem:[%s1 + $0x1fa8] sm:$0xff]
    %v1105 = vld [vmem:[%s1 + $0x1fb0] sm:$0xff]
    %v1106 = vld [vmem:[%s1 + $0x1fb8] sm:$0xff]
    %v1107 = vld [vmem:[%s1 + $0x1fc0] sm:$0xff]
    %v1108 = vld [vmem:[%s1 + $0x1fc8] sm:$0xff]
    %v1109 = vld [vmem:[%s1 + $0x1fd0] sm:$0xff]
    %v1110 = vld [vmem:[%s1 + $0x1fd8] sm:$0xff]
    %v1111 = vld [vmem:[%s1 + $0x1fe0] sm:$0xff]
    %v1112 = vld [vmem:[%s1 + $0x1fe8] sm:$0xff]
    %v1113 = vld [vmem:[%s1 + $0x1ff0] sm:$0xff]
    %v1114 = vld [vmem:[%s1 + $0x1ff8] sm:$0xff]
    %v1115 = vld [vmem:[%s1 + $0x2000] sm:$0xff]
    %v1116 = vld [vmem:[%s1 + $0x2008] sm:$0xff]
    %v1117 = vld [vmem:[%s1 + $0x2010] sm:$0xff]
    %v1118 = vld [vmem:[%s1 + $0x2018] sm:$0xff]
    %v1119 = vld [vmem:[%s1 + $0x2020] sm:$0xff]
    %v1120 = vld [vmem:[%s1 + $0x2028] sm:$0xff]
    %v1121 = vld [vmem:[%s1 + $0x2030] sm:$0xff]
    %v1122 = vld [vmem:[%s1 + $0x2038] sm:$0xff]
    %v1123 = vld [vmem:[%s1 + $0x2040] sm:$0xff]
    %v1124 = vld [vmem:[%s1 + $0x2048] sm:$0xff]
    %v1125 = vld [vmem:[%s1 + $0x2050] sm:$0xff]
    %v1126 = vld [vmem:[%s1 + $0x2058] sm:$0xff]
    %v1127 = vld [vmem:[%s1 + $0x2060] sm:$0xff]
    %v1128 = vld [vmem:[%s1 + $0x2068] sm:$0xff]
    %v1129 = vld [vmem:[%s1 + $0x2070] sm:$0xff]
    %v1130 = vld [vmem:[%s1 + $0x2078] sm:$0xff]
    %v1131 = vld [vmem:[%s1 + $0x2080] sm:$0xff]
    %v1132 = vld [vmem:[%s1 + $0x2088] sm:$0xff]
    %v1133 = vld [vmem:[%s1 + $0x2090] sm:$0xff]
    %v1134 = vld [vmem:[%s1 + $0x2098] sm:$0xff]
    %v1135 = vld [vmem:[%s1 + $0x20a0] sm:$0xff]
    %v1136 = vld [vmem:[%s1 + $0x20a8] sm:$0xff]
    %v1137 = vld [vmem:[%s1 + $0x20b0] sm:$0xff]
    %v1138 = vld [vmem:[%s1 + $0x20b8] sm:$0xff]
    %v1139 = vld [vmem:[%s1 + $0x20c0] sm:$0xff]
    %v1140 = vld [vmem:[%s1 + $0x20c8] sm:$0xff]
    %v1141 = vld [vmem:[%s1 + $0x20d0] sm:$0xff]
    %v1142 = vld [vmem:[%s1 + $0x20d8] sm:$0xff]
    %v1143 = vld [vmem:[%s1 + $0x20e0] sm:$0xff]
    %v1144 = vld [vmem:[%s1 + $0x20e8] sm:$0xff]
    %v1145 = vld [vmem:[%s1 + $0x20f0] sm:$0xff]
    %v1146 = vld [vmem:[%s1 + $0x20f8] sm:$0xff]
    %v1147 = vld [vmem:[%s1 + $0x2100] sm:$0xff]
    %v1148 = vld [vmem:[%s1 + $0x2108] sm:$0xff]
    %v1149 = vld [vmem:[%s1 + $0x2110] sm:$0xff]
    %v1150 = vld [vmem:[%s1 + $0x2118] sm:$0xff]
    %v1151 = vld [vmem:[%s1 + $0x2120] sm:$0xff]
    %v1152 = vld [vmem:[%s1 + $0x2128] sm:$0xff]
    %v1153 = vld [vmem:[%s1 + $0x2130] sm:$0xff]
    %v1154 = vld [vmem:[%s1 + $0x2138] sm:$0xff]
    %v1155 = vld [vmem:[%s1 + $0x2140] sm:$0xff]
    %v1156 = vld [vmem:[%s1 + $0x2148] sm:$0xff]
    %v1157 = vld [vmem:[%s1 + $0x2150] sm:$0xff]
    %v1158 = vld [vmem:[%s1 + $0x2158] sm:$0xff]
    %v1159 = vld [vmem:[%s1 + $0x2160] sm:$0xff]
    %v1160 = vld [vmem:[%s1 + $0x2168] sm:$0xff]
    %v1161 = vld [vmem:[%s1 + $0x2170] sm:$0xff]
    %v1162 = vld [vmem:[%s1 + $0x2178] sm:$0xff]
    %v1163 = vld [vmem:[%s1 + $0x2180] sm:$0xff]
    %v1164 = vld [vmem:[%s1 + $0x2188] sm:$0xff]
    %v1165 = vld [vmem:[%s1 + $0x2190] sm:$0xff]
    %v1166 = vld [vmem:[%s1 + $0x2198] sm:$0xff]
    %v1167 = vld [vmem:[%s1 + $0x21a0] sm:$0xff]
    %v1168 = vld [vmem:[%s1 + $0x21a8] sm:$0xff]
    %v1169 = vld [vmem:[%s1 + $0x21b0] sm:$0xff]
    %v1170 = vld [vmem:[%s1 + $0x21b8] sm:$0xff]
    %v1171 = vld [vmem:[%s1 + $0x21c0] sm:$0xff]
    %v1172 = vld [vmem:[%s1 + $0x21c8] sm:$0xff]
    %v1173 = vld [vmem:[%s1 + $0x21d0] sm:$0xff]
    %v1174 = vld [vmem:[%s1 + $0x21d8] sm:$0xff]
    %v1175 = vld [vmem:[%s1 + $0x21e0] sm:$0xff]
    %v1176 = vld [vmem:[%s1 + $0x21e8] sm:$0xff]
    %v1177 = vld [vmem:[%s1 + $0x21f0] sm:$0xff]
    %v1178 = vld [vmem:[%s1 + $0x21f8] sm:$0xff]
    %v1179 = vld [vmem:[%s1 + $0x2200] sm:$0xff]
    %v1180 = vld [vmem:[%s1 + $0x2208] sm:$0xff]
    %v1181 = vld [vmem:[%s1 + $0x2210] sm:$0xff]
    %v1182 = vld [vmem:[%s1 + $0x2218] sm:$0xff]
    %v1183 = vld [vmem:[%s1 + $0x2220] sm:$0xff]
    %v1184 = vld [vmem:[%s1 + $0x2228] sm:$0xff]
    %v1185 = vld [vmem:[%s1 + $0x2230] sm:$0xff]
    %v1186 = vld [vmem:[%s1 + $0x2238] sm:$0xff]
    %v1187 = vld [vmem:[%s1 + $0x2240] sm:$0xff]
    %v1188 = vld [vmem:[%s1 + $0x2248] sm:$0xff]
    %v1189 = vld [vmem:[%s1 + $0x2250] sm:$0xff]
    %v1190 = vld [vmem:[%s1 + $0x2258] sm:$0xff]
    %v1191 = vld [vmem:[%s1 + $0x2260] sm:$0xff]
    %v1192 = vld [vmem:[%s1 + $0x2268] sm:$0xff]
    %v1193 = vld [vmem:[%s1 + $0x2270] sm:$0xff]
    %v1194 = vld [vmem:[%s1 + $0x2278] sm:$0xff]
    %v1195 = vld [vmem:[%s1 + $0x2280] sm:$0xff]
    %v1196 = vld [vmem:[%s1 + $0x2288] sm:$0xff]
    %v1197 = vld [vmem:[%s1 + $0x2290] sm:$0xff]
    %v1198 = vld [vmem:[%s1 + $0x2298] sm:$0xff]
    %v1199 = vld [vmem:[%s1 + $0x22a0] sm:$0xff]
    %v1200 = vld [vmem:[%s1 + $0x22a8] sm:$0xff]
    %v1201 = vld [vmem:[%s1 + $0x22b0] sm:$0xff]
    %v1202 = vld [vmem:[%s1 + $0x22b8] sm:$0xff]
    %v1203 = vld [vmem:[%s1 + $0x22c0] sm:$0xff]
    %v1204 = vld [vmem:[%s1 + $0x22c8] sm:$0xff]
    %v1205 = vld [vmem:[%s1 + $0x22d0] sm:$0xff]
    %v1206 = vld [vmem:[%s1 + $0x22d8] sm:$0xff]
    %v1207 = vld [vmem:[%s1 + $0x22e0] sm:$0xff]
    %v1208 = vld [vmem:[%s1 + $0x22e8] sm:$0xff]
    %v1209 = vld [vmem:[%s1 + $0x22f0] sm:$0xff]
    %v1210 = vld [vmem:[%s1 + $0x22f8] sm:$0xff]
    %v1211 = vld [vmem:[%s1 + $0x2300] sm:$0xff]
    %v1212 = vld [vmem:[%s1 + $0x2308] sm:$0xff]
    %v1213 = vld [vmem:[%s1 + $0x2310] sm:$0xff]
    %v1214 = vld [vmem:[%s1 + $0x2318] sm:$0xff]
    %v1215 = vld [vmem:[%s1 + $0x2320] sm:$0xff]
    %v1216 = vld [vmem:[%s1 + $0x2328] sm:$0xff]
    %v1217 = vld [vmem:[%s1 + $0x2330] sm:$0xff]
    %v1218 = vld [vmem:[%s1 + $0x2338] sm:$0xff]
    %v1219 = vld [vmem:[%s1 + $0x2340] sm:$0xff]
    %v1220 = vld [vmem:[%s1 + $0x2348] sm:$0xff]
    %v1221 = vld [vmem:[%s1 + $0x2350] sm:$0xff]
    %v1222 = vld [vmem:[%s1 + $0x2358] sm:$0xff]
    %v1223 = vld [vmem:[%s1 + $0x2360] sm:$0xff]
    %v1224 = vld [vmem:[%s1 + $0x2368] sm:$0xff]
    %v1225 = vld [vmem:[%s1 + $0x2370] sm:$0xff]
    %v1226 = vld [vmem:[%s1 + $0x2378] sm:$0xff]
    %v1227 = vld [vmem:[%s1 + $0x2380] sm:$0xff]
    %v1228 = vld [vmem:[%s1 + $0x2388] sm:$0xff]
    %v1229 = vld [vmem:[%s1 + $0x2390] sm:$0xff]
    %v1230 = vld [vmem:[%s1 + $0x2398] sm:$0xff]
    %v1231 = vld [vmem:[%s1 + $0x23a0] sm:$0xff]
    %v1232 = vld [vmem:[%s1 + $0x23a8] sm:$0xff]
    %v1233 = vld [vmem:[%s1 + $0x23b0] sm:$0xff]
    %v1234 = vld [vmem:[%s1 + $0x23b8] sm:$0xff]
    %v1235 = vld [vmem:[%s1 + $0x23c0] sm:$0xff]
    %v1236 = vld [vmem:[%s1 + $0x23c8] sm:$0xff]
    %v1237 = vld [vmem:[%s1 + $0x23d0] sm:$0xff]
    %v1238 = vld [vmem:[%s1 + $0x23d8] sm:$0xff]
    %v1239 = vld [vmem:[%s1 + $0x23e0] sm:$0xff]
    %v1240 = vld [vmem:[%s1 + $0x23e8] sm:$0xff]
    %v1241 = vld [vmem:[%s1 + $0x23f0] sm:$0xff]
    %v1242 = vld [vmem:[%s1 + $0x23f8] sm:$0xff]
    %v1243 = vld [vmem:[%s2] sm:$0xff]
    %v1245 = vperm.slane %v1243, 0
    %v1246 = vperm.slane %v1243, 1
    %v1247 = vperm.slane %v1243, 2
    %v1248 = vperm.slane %v1243, 3
    %v1249 = vperm.slane %v1243, 4
    %v1250 = vperm.slane %v1243, 5
    %v1251 = vperm.slane %v1243, 6
    %v1252 = vperm.slane %v1243, 7
    %v2413 = vunpack.c.l.b16 %v91
    %v2414 = vunpack.c.h.b16 %v91
    %v2415 = vunpack.c.l.b16 %v92
    %v2416 = vunpack.c.h.b16 %v92
    %v2417 = vunpack.c.l.b16 %v93
    %v2418 = vunpack.c.h.b16 %v93
    %v2419 = vunpack.c.l.b16 %v94
    %v2420 = vunpack.c.h.b16 %v94
    %v2421 = vunpack.c.l.b16 %v95
    %v2422 = vunpack.c.h.b16 %v95
    %v2423 = vunpack.c.l.b16 %v96
    %v2424 = vunpack.c.h.b16 %v96
    %v2425 = vunpack.c.l.b16 %v97
    %v2426 = vunpack.c.h.b16 %v97
    %v2427 = vunpack.c.l.b16 %v98
    %v2428 = vunpack.c.h.b16 %v98
    %v2429 = vunpack.c.l.b16 %v99
    %v2430 = vunpack.c.h.b16 %v99
    %v2431 = vunpack.c.l.b16 %v100
    %v2432 = vunpack.c.h.b16 %v100
    %v2433 = vunpack.c.l.b16 %v101
    %v2434 = vunpack.c.h.b16 %v101
    %v2435 = vunpack.c.l.b16 %v102
    %v2436 = vunpack.c.h.b16 %v102
    %v2437 = vunpack.c.l.b16 %v103
    %v2438 = vunpack.c.h.b16 %v103
    %v2439 = vunpack.c.l.b16 %v104
    %v2440 = vunpack.c.h.b16 %v104
    %v2441 = vunpack.c.l.b16 %v105
    %v2442 = vunpack.c.h.b16 %v105
    %v2443 = vunpack.c.l.b16 %v106
    %v2444 = vunpack.c.h.b16 %v106
    %v2445 = vunpack.c.l.b16 %v107
    %v2446 = vunpack.c.h.b16 %v107
    %v2447 = vunpack.c.l.b16 %v108
    %v2448 = vunpack.c.h.b16 %v108
    %v2449 = vunpack.c.l.b16 %v109
    %v2450 = vunpack.c.h.b16 %v109
    %v2451 = vunpack.c.l.b16 %v110
    %v2452 = vunpack.c.h.b16 %v110
    %v2453 = vunpack.c.l.b16 %v111
    %v2454 = vunpack.c.h.b16 %v111
    %v2455 = vunpack.c.l.b16 %v112
    %v2456 = vunpack.c.h.b16 %v112
    %v2457 = vunpack.c.l.b16 %v113
    %v2458 = vunpack.c.h.b16 %v113
    %v2459 = vunpack.c.l.b16 %v114
    %v2460 = vunpack.c.h.b16 %v114
    %v2461 = vunpack.c.l.b16 %v115
    %v2462 = vunpack.c.h.b16 %v115
    %v2463 = vunpack.c.l.b16 %v116
    %v2464 = vunpack.c.h.b16 %v116
    %v2465 = vunpack.c.l.b16 %v117
    %v2466 = vunpack.c.h.b16 %v117
    %v2467 = vunpack.c.l.b16 %v118
    %v2468 = vunpack.c.h.b16 %v118
    %v2469 = vunpack.c.l.b16 %v119
    %v2470 = vunpack.c.h.b16 %v119
    %v2471 = vunpack.c.l.b16 %v120
    %v2472 = vunpack.c.h.b16 %v120
    %v2473 = vunpack.c.l.b16 %v121
    %v2474 = vunpack.c.h.b16 %v121
    %v2475 = vunpack.c.l.b16 %v122
    %v2476 = vunpack.c.h.b16 %v122
    %v2477 = vunpack.c.l.b16 %v123
    %v2478 = vunpack.c.h.b16 %v123
    %v2479 = vunpack.c.l.b16 %v124
    %v2480 = vunpack.c.h.b16 %v124
    %v2481 = vunpack.c.l.b16 %v125
    %v2482 = vunpack.c.h.b16 %v125
    %v2483 = vunpack.c.l.b16 %v126
    %v2484 = vunpack.c.h.b16 %v126
    %v2485 = vunpack.c.l.b16 %v127
    %v2486 = vunpack.c.h.b16 %v127
    %v2487 = vunpack.c.l.b16 %v128
    %v2488 = vunpack.c.h.b16 %v128
    %v2489 = vunpack.c.l.b16 %v129
    %v2490 = vunpack.c.h.b16 %v129
    %v2491 = vunpack.c.l.b16 %v130
    %v2492 = vunpack.c.h.b16 %v130
    %v2493 = vunpack.c.l.b16 %v131
    %v2494 = vunpack.c.h.b16 %v131
    %v2495 = vunpack.c.l.b16 %v132
    %v2496 = vunpack.c.h.b16 %v132
    %v2497 = vunpack.c.l.b16 %v133
    %v2498 = vunpack.c.h.b16 %v133
    %v2499 = vunpack.c.l.b16 %v134
    %v2500 = vunpack.c.h.b16 %v134
    %v2501 = vunpack.c.l.b16 %v135
    %v2502 = vunpack.c.h.b16 %v135
    %v2503 = vunpack.c.l.b16 %v136
    %v2504 = vunpack.c.h.b16 %v136
    %v2505 = vunpack.c.l.b16 %v137
    %v2506 = vunpack.c.h.b16 %v137
    %v2507 = vunpack.c.l.b16 %v138
    %v2508 = vunpack.c.h.b16 %v138
    %v2509 = vunpack.c.l.b16 %v139
    %v2510 = vunpack.c.h.b16 %v139
    %v2511 = vunpack.c.l.b16 %v140
    %v2512 = vunpack.c.h.b16 %v140
    %v2513 = vunpack.c.l.b16 %v141
    %v2514 = vunpack.c.h.b16 %v141
    %v2515 = vunpack.c.l.b16 %v142
    %v2516 = vunpack.c.h.b16 %v142
    %v2517 = vunpack.c.l.b16 %v143
    %v2518 = vunpack.c.h.b16 %v143
    %v2519 = vunpack.c.l.b16 %v144
    %v2520 = vunpack.c.h.b16 %v144
    %v2521 = vunpack.c.l.b16 %v145
    %v2522 = vunpack.c.h.b16 %v145
    %v2523 = vunpack.c.l.b16 %v146
    %v2524 = vunpack.c.h.b16 %v146
    %v2525 = vunpack.c.l.b16 %v147
    %v2526 = vunpack.c.h.b16 %v147
    %v2527 = vunpack.c.l.b16 %v148
    %v2528 = vunpack.c.h.b16 %v148
    %v2529 = vunpack.c.l.b16 %v149
    %v2530 = vunpack.c.h.b16 %v149
    %v2531 = vunpack.c.l.b16 %v150
    %v2532 = vunpack.c.h.b16 %v150
    %v2533 = vunpack.c.l.b16 %v151
    %v2534 = vunpack.c.h.b16 %v151
    %v2535 = vunpack.c.l.b16 %v152
    %v2536 = vunpack.c.h.b16 %v152
    %v2537 = vunpack.c.l.b16 %v153
    %v2538 = vunpack.c.h.b16 %v153
    %v2539 = vunpack.c.l.b16 %v154
    %v2540 = vunpack.c.h.b16 %v154
    %v2541 = vunpack.c.l.b16 %v155
    %v2542 = vunpack.c.h.b16 %v155
    %v2543 = vunpack.c.l.b16 %v156
    %v2544 = vunpack.c.h.b16 %v156
    %v2545 = vunpack.c.l.b16 %v157
    %v2546 = vunpack.c.h.b16 %v157
    %v2547 = vunpack.c.l.b16 %v158
    %v2548 = vunpack.c.h.b16 %v158
    %v2549 = vunpack.c.l.b16 %v159
    %v2550 = vunpack.c.h.b16 %v159
    %v2551 = vunpack.c.l.b16 %v160
    %v2552 = vunpack.c.h.b16 %v160
    %v2553 = vunpack.c.l.b16 %v161
    %v2554 = vunpack.c.h.b16 %v161
    %v2555 = vunpack.c.l.b16 %v162
    %v2556 = vunpack.c.h.b16 %v162
    %v2557 = vunpack.c.l.b16 %v163
    %v2558 = vunpack.c.h.b16 %v163
    %v2559 = vunpack.c.l.b16 %v164
    %v2560 = vunpack.c.h.b16 %v164
    %v2561 = vunpack.c.l.b16 %v165
    %v2562 = vunpack.c.h.b16 %v165
    %v2563 = vunpack.c.l.b16 %v166
    %v2564 = vunpack.c.h.b16 %v166
    %v2565 = vunpack.c.l.b16 %v167
    %v2566 = vunpack.c.h.b16 %v167
    %v2567 = vunpack.c.l.b16 %v168
    %v2568 = vunpack.c.h.b16 %v168
    %v2569 = vunpack.c.l.b16 %v169
    %v2570 = vunpack.c.h.b16 %v169
    %v2571 = vunpack.c.l.b16 %v170
    %v2572 = vunpack.c.h.b16 %v170
    %v2573 = vunpack.c.l.b16 %v171
    %v2574 = vunpack.c.h.b16 %v171
    %v2575 = vunpack.c.l.b16 %v172
    %v2576 = vunpack.c.h.b16 %v172
    %v2577 = vunpack.c.l.b16 %v173
    %v2578 = vunpack.c.h.b16 %v173
    %v2579 = vunpack.c.l.b16 %v174
    %v2580 = vunpack.c.h.b16 %v174
    %v2581 = vunpack.c.l.b16 %v175
    %v2582 = vunpack.c.h.b16 %v175
    %v2583 = vunpack.c.l.b16 %v176
    %v2584 = vunpack.c.h.b16 %v176
    %v2585 = vunpack.c.l.b16 %v177
    %v2586 = vunpack.c.h.b16 %v177
    %v2587 = vunpack.c.l.b16 %v178
    %v2588 = vunpack.c.h.b16 %v178
    %v2589 = vunpack.c.l.b16 %v179
    %v2590 = vunpack.c.h.b16 %v179
    %v2591 = vunpack.c.l.b16 %v180
    %v2592 = vunpack.c.h.b16 %v180
    %v2593 = vunpack.c.l.b16 %v181
    %v2594 = vunpack.c.h.b16 %v181
    %v2595 = vunpack.c.l.b16 %v182
    %v2596 = vunpack.c.h.b16 %v182
    %v2597 = vunpack.c.l.b16 %v183
    %v2598 = vunpack.c.h.b16 %v183
    %v2599 = vunpack.c.l.b16 %v184
    %v2600 = vunpack.c.h.b16 %v184
    %v2601 = vunpack.c.l.b16 %v185
    %v2602 = vunpack.c.h.b16 %v185
    %v2603 = vunpack.c.l.b16 %v186
    %v2604 = vunpack.c.h.b16 %v186
    %v2605 = vunpack.c.l.b16 %v187
    %v2606 = vunpack.c.h.b16 %v187
    %v2607 = vunpack.c.l.b16 %v188
    %v2608 = vunpack.c.h.b16 %v188
    %v2609 = vunpack.c.l.b16 %v189
    %v2610 = vunpack.c.h.b16 %v189
    %v2611 = vunpack.c.l.b16 %v190
    %v2612 = vunpack.c.h.b16 %v190
    %v2613 = vunpack.c.l.b16 %v191
    %v2614 = vunpack.c.h.b16 %v191
    %v2615 = vunpack.c.l.b16 %v192
    %v2616 = vunpack.c.h.b16 %v192
    %v2617 = vunpack.c.l.b16 %v193
    %v2618 = vunpack.c.h.b16 %v193
    %v2619 = vunpack.c.l.b16 %v194
    %v2620 = vunpack.c.h.b16 %v194
    %v2621 = vunpack.c.l.b16 %v195
    %v2622 = vunpack.c.h.b16 %v195
    %v2623 = vunpack.c.l.b16 %v196
    %v2624 = vunpack.c.h.b16 %v196
    %v2625 = vunpack.c.l.b16 %v197
    %v2626 = vunpack.c.h.b16 %v197
    %v2627 = vunpack.c.l.b16 %v198
    %v2628 = vunpack.c.h.b16 %v198
    %v2629 = vunpack.c.l.b16 %v199
    %v2630 = vunpack.c.h.b16 %v199
    %v2631 = vunpack.c.l.b16 %v200
    %v2632 = vunpack.c.h.b16 %v200
    %v2633 = vunpack.c.l.b16 %v201
    %v2634 = vunpack.c.h.b16 %v201
    %v2635 = vunpack.c.l.b16 %v202
    %v2636 = vunpack.c.h.b16 %v202
    %v2637 = vunpack.c.l.b16 %v203
    %v2638 = vunpack.c.h.b16 %v203
    %v2639 = vunpack.c.l.b16 %v204
    %v2640 = vunpack.c.h.b16 %v204
    %v2641 = vunpack.c.l.b16 %v205
    %v2642 = vunpack.c.h.b16 %v205
    %v2643 = vunpack.c.l.b16 %v206
    %v2644 = vunpack.c.h.b16 %v206
    %v2645 = vunpack.c.l.b16 %v207
    %v2646 = vunpack.c.h.b16 %v207
    %v2647 = vunpack.c.l.b16 %v208
    %v2648 = vunpack.c.h.b16 %v208
    %v2649 = vunpack.c.l.b16 %v209
    %v2650 = vunpack.c.h.b16 %v209
    %v2651 = vunpack.c.l.b16 %v210
    %v2652 = vunpack.c.h.b16 %v210
    %v2653 = vunpack.c.l.b16 %v211
    %v2654 = vunpack.c.h.b16 %v211
    %v2655 = vunpack.c.l.b16 %v212
    %v2656 = vunpack.c.h.b16 %v212
    %v2657 = vunpack.c.l.b16 %v213
    %v2658 = vunpack.c.h.b16 %v213
    %v2659 = vunpack.c.l.b16 %v214
    %v2660 = vunpack.c.h.b16 %v214
    %v2661 = vunpack.c.l.b16 %v215
    %v2662 = vunpack.c.h.b16 %v215
    %v2663 = vunpack.c.l.b16 %v216
    %v2664 = vunpack.c.h.b16 %v216
    %v2665 = vunpack.c.l.b16 %v217
    %v2666 = vunpack.c.h.b16 %v217
    %v2667 = vunpack.c.l.b16 %v218
    %v2668 = vunpack.c.h.b16 %v218
    %v2669 = vunpack.c.l.b16 %v219
    %v2670 = vunpack.c.h.b16 %v219
    %v2671 = vunpack.c.l.b16 %v220
    %v2672 = vunpack.c.h.b16 %v220
    %v2673 = vunpack.c.l.b16 %v221
    %v2674 = vunpack.c.h.b16 %v221
    %v2675 = vunpack.c.l.b16 %v222
    %v2676 = vunpack.c.h.b16 %v222
    %v2677 = vunpack.c.l.b16 %v223
    %v2678 = vunpack.c.h.b16 %v223
    %v2679 = vunpack.c.l.b16 %v224
    %v2680 = vunpack.c.h.b16 %v224
    %v2681 = vunpack.c.l.b16 %v225
    %v2682 = vunpack.c.h.b16 %v225
    %v2683 = vunpack.c.l.b16 %v226
    %v2684 = vunpack.c.h.b16 %v226
    %v2685 = vunpack.c.l.b16 %v227
    %v2686 = vunpack.c.h.b16 %v227
    %v2687 = vunpack.c.l.b16 %v228
    %v2688 = vunpack.c.h.b16 %v228
    %v2689 = vunpack.c.l.b16 %v229
    %v2690 = vunpack.c.h.b16 %v229
    %v2691 = vunpack.c.l.b16 %v230
    %v2692 = vunpack.c.h.b16 %v230
    %v2693 = vunpack.c.l.b16 %v231
    %v2694 = vunpack.c.h.b16 %v231
    %v2695 = vunpack.c.l.b16 %v232
    %v2696 = vunpack.c.h.b16 %v232
    %v2697 = vunpack.c.l.b16 %v233
    %v2698 = vunpack.c.h.b16 %v233
    %v2699 = vunpack.c.l.b16 %v234
    %v2700 = vunpack.c.h.b16 %v234
    %v2701 = vunpack.c.l.b16 %v235
    %v2702 = vunpack.c.h.b16 %v235
    %v2703 = vunpack.c.l.b16 %v236
    %v2704 = vunpack.c.h.b16 %v236
    %v2705 = vunpack.c.l.b16 %v237
    %v2706 = vunpack.c.h.b16 %v237
    %v2707 = vunpack.c.l.b16 %v238
    %v2708 = vunpack.c.h.b16 %v238
    %v2709 = vunpack.c.l.b16 %v239
    %v2710 = vunpack.c.h.b16 %v239
    %v2711 = vunpack.c.l.b16 %v240
    %v2712 = vunpack.c.h.b16 %v240
    %v2713 = vunpack.c.l.b16 %v241
    %v2714 = vunpack.c.h.b16 %v241
    %v2715 = vunpack.c.l.b16 %v242
    %v2716 = vunpack.c.h.b16 %v242
    %v2717 = vunpack.c.l.b16 %v243
    %v2718 = vunpack.c.h.b16 %v243
    %v2719 = vunpack.c.l.b16 %v244
    %v2720 = vunpack.c.h.b16 %v244
    %v2721 = vunpack.c.l.b16 %v245
    %v2722 = vunpack.c.h.b16 %v245
    %v2723 = vunpack.c.l.b16 %v246
    %v2724 = vunpack.c.h.b16 %v246
    %v2725 = vunpack.c.l.b16 %v247
    %v2726 = vunpack.c.h.b16 %v247
    %v2727 = vunpack.c.l.b16 %v248
    %v2728 = vunpack.c.h.b16 %v248
    %v2729 = vunpack.c.l.b16 %v249
    %v2730 = vunpack.c.h.b16 %v249
    %v2731 = vunpack.c.l.b16 %v250
    %v2732 = vunpack.c.h.b16 %v250
    %v2733 = vunpack.c.l.b16 %v251
    %v2734 = vunpack.c.h.b16 %v251
    %v2735 = vunpack.c.l.b16 %v252
    %v2736 = vunpack.c.h.b16 %v252
    %v2737 = vunpack.c.l.b16 %v253
    %v2738 = vunpack.c.h.b16 %v253
    %v2739 = vunpack.c.l.b16 %v254
    %v2740 = vunpack.c.h.b16 %v254
    %v2741 = vunpack.c.l.b16 %v255
    %v2742 = vunpack.c.h.b16 %v255
    %v2743 = vunpack.c.l.b16 %v256
    %v2744 = vunpack.c.h.b16 %v256
    %v2745 = vunpack.c.l.b16 %v257
    %v2746 = vunpack.c.h.b16 %v257
    %v2747 = vunpack.c.l.b16 %v258
    %v2748 = vunpack.c.h.b16 %v258
    %v2749 = vunpack.c.l.b16 %v259
    %v2750 = vunpack.c.h.b16 %v259
    %v2751 = vunpack.c.l.b16 %v260
    %v2752 = vunpack.c.h.b16 %v260
    %v2753 = vunpack.c.l.b16 %v261
    %v2754 = vunpack.c.h.b16 %v261
    %v2755 = vunpack.c.l.b16 %v262
    %v2756 = vunpack.c.h.b16 %v262
    %v2757 = vunpack.c.l.b16 %v263
    %v2758 = vunpack.c.h.b16 %v263
    %v2759 = vunpack.c.l.b16 %v264
    %v2760 = vunpack.c.h.b16 %v264
    %v2761 = vunpack.c.l.b16 %v265
    %v2762 = vunpack.c.h.b16 %v265
    %v2763 = vunpack.c.l.b16 %v266
    %v2764 = vunpack.c.h.b16 %v266
    %v2765 = vunpack.c.l.b16 %v267
    %v2766 = vunpack.c.h.b16 %v267
    %v2767 = vunpack.c.l.b16 %v268
    %v2768 = vunpack.c.h.b16 %v268
    %v2769 = vunpack.c.l.b16 %v269
    %v2770 = vunpack.c.h.b16 %v269
    %v2771 = vunpack.c.l.b16 %v270
    %v2772 = vunpack.c.h.b16 %v270
    %v2773 = vunpack.c.l.b16 %v271
    %v2774 = vunpack.c.h.b16 %v271
    %v2775 = vunpack.c.l.b16 %v272
    %v2776 = vunpack.c.h.b16 %v272
    %v2777 = vunpack.c.l.b16 %v273
    %v2778 = vunpack.c.h.b16 %v273
    %v2779 = vunpack.c.l.b16 %v274
    %v2780 = vunpack.c.h.b16 %v274
    %v2781 = vunpack.c.l.b16 %v275
    %v2782 = vunpack.c.h.b16 %v275
    %v2783 = vunpack.c.l.b16 %v276
    %v2784 = vunpack.c.h.b16 %v276
    %v2785 = vunpack.c.l.b16 %v277
    %v2786 = vunpack.c.h.b16 %v277
    %v2787 = vunpack.c.l.b16 %v278
    %v2788 = vunpack.c.h.b16 %v278
    %v2789 = vunpack.c.l.b16 %v279
    %v2790 = vunpack.c.h.b16 %v279
    %v2791 = vunpack.c.l.b16 %v280
    %v2792 = vunpack.c.h.b16 %v280
    %v2793 = vunpack.c.l.b16 %v281
    %v2794 = vunpack.c.h.b16 %v281
    %v2795 = vunpack.c.l.b16 %v282
    %v2796 = vunpack.c.h.b16 %v282
    %v2797 = vunpack.c.l.b16 %v283
    %v2798 = vunpack.c.h.b16 %v283
    %v2799 = vunpack.c.l.b16 %v284
    %v2800 = vunpack.c.h.b16 %v284
    %v2801 = vunpack.c.l.b16 %v285
    %v2802 = vunpack.c.h.b16 %v285
    %v2803 = vunpack.c.l.b16 %v286
    %v2804 = vunpack.c.h.b16 %v286
    %v2805 = vunpack.c.l.b16 %v287
    %v2806 = vunpack.c.h.b16 %v287
    %v2807 = vunpack.c.l.b16 %v288
    %v2808 = vunpack.c.h.b16 %v288
    %v2809 = vunpack.c.l.b16 %v289
    %v2810 = vunpack.c.h.b16 %v289
    %v2811 = vunpack.c.l.b16 %v290
    %v2812 = vunpack.c.h.b16 %v290
    %v2813 = vunpack.c.l.b16 %v291
    %v2814 = vunpack.c.h.b16 %v291
    %v2815 = vunpack.c.l.b16 %v292
    %v2816 = vunpack.c.h.b16 %v292
    %v2817 = vunpack.c.l.b16 %v293
    %v2818 = vunpack.c.h.b16 %v293
    %v2819 = vunpack.c.l.b16 %v294
    %v2820 = vunpack.c.h.b16 %v294
    %v2821 = vunpack.c.l.b16 %v295
    %v2822 = vunpack.c.h.b16 %v295
    %v2823 = vunpack.c.l.b16 %v296
    %v2824 = vunpack.c.h.b16 %v296
    %v2825 = vunpack.c.l.b16 %v297
    %v2826 = vunpack.c.h.b16 %v297
    %v2827 = vunpack.c.l.b16 %v298
    %v2828 = vunpack.c.h.b16 %v298
    %v2829 = vunpack.c.l.b16 %v299
    %v2830 = vunpack.c.h.b16 %v299
    %v2831 = vunpack.c.l.b16 %v300
    %v2832 = vunpack.c.h.b16 %v300
    %v2833 = vunpack.c.l.b16 %v301
    %v2834 = vunpack.c.h.b16 %v301
    %v2835 = vunpack.c.l.b16 %v302
    %v2836 = vunpack.c.h.b16 %v302
    %v2837 = vunpack.c.l.b16 %v303
    %v2838 = vunpack.c.h.b16 %v303
    %v2839 = vunpack.c.l.b16 %v304
    %v2840 = vunpack.c.h.b16 %v304
    %v2841 = vunpack.c.l.b16 %v305
    %v2842 = vunpack.c.h.b16 %v305
    %v2843 = vunpack.c.l.b16 %v306
    %v2844 = vunpack.c.h.b16 %v306
    %v2845 = vunpack.c.l.b16 %v307
    %v2846 = vunpack.c.h.b16 %v307
    %v2847 = vunpack.c.l.b16 %v308
    %v2848 = vunpack.c.h.b16 %v308
    %v2849 = vunpack.c.l.b16 %v309
    %v2850 = vunpack.c.h.b16 %v309
    %v2851 = vunpack.c.l.b16 %v310
    %v2852 = vunpack.c.h.b16 %v310
    %v2853 = vunpack.c.l.b16 %v311
    %v2854 = vunpack.c.h.b16 %v311
    %v2855 = vunpack.c.l.b16 %v312
    %v2856 = vunpack.c.h.b16 %v312
    %v2857 = vunpack.c.l.b16 %v313
    %v2858 = vunpack.c.h.b16 %v313
    %v2859 = vunpack.c.l.b16 %v314
    %v2860 = vunpack.c.h.b16 %v314
    %v2861 = vunpack.c.l.b16 %v315
    %v2862 = vunpack.c.h.b16 %v315
    %v2863 = vunpack.c.l.b16 %v316
    %v2864 = vunpack.c.h.b16 %v316
    %v2865 = vunpack.c.l.b16 %v317
    %v2866 = vunpack.c.h.b16 %v317
    %v2867 = vunpack.c.l.b16 %v318
    %v2868 = vunpack.c.h.b16 %v318
    %v2869 = vunpack.c.l.b16 %v319
    %v2870 = vunpack.c.h.b16 %v319
    %v2871 = vunpack.c.l.b16 %v320
    %v2872 = vunpack.c.h.b16 %v320
    %v2873 = vunpack.c.l.b16 %v321
    %v2874 = vunpack.c.h.b16 %v321
    %v2875 = vunpack.c.l.b16 %v322
    %v2876 = vunpack.c.h.b16 %v322
    %v2877 = vunpack.c.l.b16 %v323
    %v2878 = vunpack.c.h.b16 %v323
    %v2879 = vunpack.c.l.b16 %v324
    %v2880 = vunpack.c.h.b16 %v324
    %v2881 = vunpack.c.l.b16 %v325
    %v2882 = vunpack.c.h.b16 %v325
    %v2883 = vunpack.c.l.b16 %v326
    %v2884 = vunpack.c.h.b16 %v326
    %v2885 = vunpack.c.l.b16 %v327
    %v2886 = vunpack.c.h.b16 %v327
    %v2887 = vunpack.c.l.b16 %v328
    %v2888 = vunpack.c.h.b16 %v328
    %v2889 = vunpack.c.l.b16 %v329
    %v2890 = vunpack.c.h.b16 %v329
    %v2891 = vunpack.c.l.b16 %v330
    %v2892 = vunpack.c.h.b16 %v330
    %v2893 = vunpack.c.l.b16 %v331
    %v2894 = vunpack.c.h.b16 %v331
    %v2895 = vunpack.c.l.b16 %v332
    %v2896 = vunpack.c.h.b16 %v332
    %v2897 = vunpack.c.l.b16 %v333
    %v2898 = vunpack.c.h.b16 %v333
    %v2899 = vunpack.c.l.b16 %v334
    %v2900 = vunpack.c.h.b16 %v334
    %v2901 = vunpack.c.l.b16 %v335
    %v2902 = vunpack.c.h.b16 %v335
    %v2903 = vunpack.c.l.b16 %v336
    %v2904 = vunpack.c.h.b16 %v336
    %v2905 = vunpack.c.l.b16 %v337
    %v2906 = vunpack.c.h.b16 %v337
    %v2907 = vunpack.c.l.b16 %v338
    %v2908 = vunpack.c.h.b16 %v338
    %v2909 = vunpack.c.l.b16 %v339
    %v2910 = vunpack.c.h.b16 %v339
    %v2911 = vunpack.c.l.b16 %v340
    %v2912 = vunpack.c.h.b16 %v340
    %v2913 = vunpack.c.l.b16 %v341
    %v2914 = vunpack.c.h.b16 %v341
    %v2915 = vunpack.c.l.b16 %v342
    %v2916 = vunpack.c.h.b16 %v342
    %v2917 = vunpack.c.l.b16 %v343
    %v2918 = vunpack.c.h.b16 %v343
    %v2919 = vunpack.c.l.b16 %v344
    %v2920 = vunpack.c.h.b16 %v344
    %v2921 = vunpack.c.l.b16 %v345
    %v2922 = vunpack.c.h.b16 %v345
    %v2923 = vunpack.c.l.b16 %v346
    %v2924 = vunpack.c.h.b16 %v346
    %v2925 = vunpack.c.l.b16 %v347
    %v2926 = vunpack.c.h.b16 %v347
    %v2927 = vunpack.c.l.b16 %v348
    %v2928 = vunpack.c.h.b16 %v348
    %v2929 = vunpack.c.l.b16 %v349
    %v2930 = vunpack.c.h.b16 %v349
    %v2931 = vunpack.c.l.b16 %v350
    %v2932 = vunpack.c.h.b16 %v350
    %v2933 = vunpack.c.l.b16 %v351
    %v2934 = vunpack.c.h.b16 %v351
    %v2935 = vunpack.c.l.b16 %v352
    %v2936 = vunpack.c.h.b16 %v352
    %v2937 = vunpack.c.l.b16 %v353
    %v2938 = vunpack.c.h.b16 %v353
    %v2939 = vunpack.c.l.b16 %v354
    %v2940 = vunpack.c.h.b16 %v354
    %v2941 = vunpack.c.l.b16 %v355
    %v2942 = vunpack.c.h.b16 %v355
    %v2943 = vunpack.c.l.b16 %v356
    %v2944 = vunpack.c.h.b16 %v356
    %v2945 = vunpack.c.l.b16 %v357
    %v2946 = vunpack.c.h.b16 %v357
    %v2947 = vunpack.c.l.b16 %v358
    %v2948 = vunpack.c.h.b16 %v358
    %v2949 = vunpack.c.l.b16 %v359
    %v2950 = vunpack.c.h.b16 %v359
    %v2951 = vunpack.c.l.b16 %v360
    %v2952 = vunpack.c.h.b16 %v360
    %v2953 = vunpack.c.l.b16 %v361
    %v2954 = vunpack.c.h.b16 %v361
    %v2955 = vunpack.c.l.b16 %v362
    %v2956 = vunpack.c.h.b16 %v362
    %v2957 = vunpack.c.l.b16 %v363
    %v2958 = vunpack.c.h.b16 %v363
    %v2959 = vunpack.c.l.b16 %v364
    %v2960 = vunpack.c.h.b16 %v364
    %v2961 = vunpack.c.l.b16 %v365
    %v2962 = vunpack.c.h.b16 %v365
    %v2963 = vunpack.c.l.b16 %v366
    %v2964 = vunpack.c.h.b16 %v366
    %v2965 = vunpack.c.l.b16 %v367
    %v2966 = vunpack.c.h.b16 %v367
    %v2967 = vunpack.c.l.b16 %v368
    %v2968 = vunpack.c.h.b16 %v368
    %v2969 = vunpack.c.l.b16 %v369
    %v2970 = vunpack.c.h.b16 %v369
    %v2971 = vunpack.c.l.b16 %v370
    %v2972 = vunpack.c.h.b16 %v370
    %v2973 = vunpack.c.l.b16 %v371
    %v2974 = vunpack.c.h.b16 %v371
    %v2975 = vunpack.c.l.b16 %v372
    %v2976 = vunpack.c.h.b16 %v372
    %v2977 = vunpack.c.l.b16 %v373
    %v2978 = vunpack.c.h.b16 %v373
    %v2979 = vunpack.c.l.b16 %v374
    %v2980 = vunpack.c.h.b16 %v374
    %v2981 = vunpack.c.l.b16 %v375
    %v2982 = vunpack.c.h.b16 %v375
    %v2983 = vunpack.c.l.b16 %v376
    %v2984 = vunpack.c.h.b16 %v376
    %v2985 = vunpack.c.l.b16 %v377
    %v2986 = vunpack.c.h.b16 %v377
    %v2987 = vunpack.c.l.b16 %v378
    %v2988 = vunpack.c.h.b16 %v378
    %v2989 = vunpack.c.l.b16 %v379
    %v2990 = vunpack.c.h.b16 %v379
    %v2991 = vunpack.c.l.b16 %v380
    %v2992 = vunpack.c.h.b16 %v380
    %v2993 = vunpack.c.l.b16 %v381
    %v2994 = vunpack.c.h.b16 %v381
    %v2995 = vunpack.c.l.b16 %v382
    %v2996 = vunpack.c.h.b16 %v382
    %v2997 = vunpack.c.l.b16 %v383
    %v2998 = vunpack.c.h.b16 %v383
    %v2999 = vunpack.c.l.b16 %v384
    %v3000 = vunpack.c.h.b16 %v384
    %v3001 = vunpack.c.l.b16 %v385
    %v3002 = vunpack.c.h.b16 %v385
    %v3003 = vunpack.c.l.b16 %v386
    %v3004 = vunpack.c.h.b16 %v386
    %v3005 = vunpack.c.l.b16 %v387
    %v3006 = vunpack.c.h.b16 %v387
    %v3007 = vunpack.c.l.b16 %v388
    %v3008 = vunpack.c.h.b16 %v388
    %v3009 = vunpack.c.l.b16 %v389
    %v3010 = vunpack.c.h.b16 %v389
    %v3011 = vunpack.c.l.b16 %v390
    %v3012 = vunpack.c.h.b16 %v390
    %v3013 = vunpack.c.l.b16 %v391
    %v3014 = vunpack.c.h.b16 %v391
    %v3015 = vunpack.c.l.b16 %v392
    %v3016 = vunpack.c.h.b16 %v392
    %v3017 = vunpack.c.l.b16 %v393
    %v3018 = vunpack.c.h.b16 %v393
    %v3019 = vunpack.c.l.b16 %v394
    %v3020 = vunpack.c.h.b16 %v394
    %v3021 = vunpack.c.l.b16 %v395
    %v3022 = vunpack.c.h.b16 %v395
    %v3023 = vunpack.c.l.b16 %v396
    %v3024 = vunpack.c.h.b16 %v396
    %v3025 = vunpack.c.l.b16 %v397
    %v3026 = vunpack.c.h.b16 %v397
    %v3027 = vunpack.c.l.b16 %v398
    %v3028 = vunpack.c.h.b16 %v398
    %v3029 = vunpack.c.l.b16 %v399
    %v3030 = vunpack.c.h.b16 %v399
    %v3031 = vunpack.c.l.b16 %v400
    %v3032 = vunpack.c.h.b16 %v400
    %v3033 = vunpack.c.l.b16 %v401
    %v3034 = vunpack.c.h.b16 %v401
    %v3035 = vunpack.c.l.b16 %v402
    %v3036 = vunpack.c.h.b16 %v402
    %v3037 = vunpack.c.l.b16 %v403
    %v3038 = vunpack.c.h.b16 %v403
    %v3039 = vunpack.c.l.b16 %v404
    %v3040 = vunpack.c.h.b16 %v404
    %v3041 = vunpack.c.l.b16 %v405
    %v3042 = vunpack.c.h.b16 %v405
    %v3043 = vunpack.c.l.b16 %v406
    %v3044 = vunpack.c.h.b16 %v406
    %v3045 = vunpack.c.l.b16 %v407
    %v3046 = vunpack.c.h.b16 %v407
    %v3047 = vunpack.c.l.b16 %v408
    %v3048 = vunpack.c.h.b16 %v408
    %v3049 = vunpack.c.l.b16 %v409
    %v3050 = vunpack.c.h.b16 %v409
    %v3051 = vunpack.c.l.b16 %v410
    %v3052 = vunpack.c.h.b16 %v410
    %v3053 = vunpack.c.l.b16 %v411
    %v3054 = vunpack.c.h.b16 %v411
    %v3055 = vunpack.c.l.b16 %v412
    %v3056 = vunpack.c.h.b16 %v412
    %v3057 = vunpack.c.l.b16 %v413
    %v3058 = vunpack.c.h.b16 %v413
    %v3059 = vunpack.c.l.b16 %v414
    %v3060 = vunpack.c.h.b16 %v414
    %v3061 = vunpack.c.l.b16 %v415
    %v3062 = vunpack.c.h.b16 %v415
    %v3063 = vunpack.c.l.b16 %v416
    %v3064 = vunpack.c.h.b16 %v416
    %v3065 = vunpack.c.l.b16 %v417
    %v3066 = vunpack.c.h.b16 %v417
    %v3067 = vunpack.c.l.b16 %v418
    %v3068 = vunpack.c.h.b16 %v418
    %v3069 = vunpack.c.l.b16 %v419
    %v3070 = vunpack.c.h.b16 %v419
    %v3071 = vunpack.c.l.b16 %v420
    %v3072 = vunpack.c.h.b16 %v420
    %v3073 = vunpack.c.l.b16 %v421
    %v3074 = vunpack.c.h.b16 %v421
    %v3075 = vunpack.c.l.b16 %v422
    %v3076 = vunpack.c.h.b16 %v422
    %v3077 = vunpack.c.l.b16 %v423
    %v3078 = vunpack.c.h.b16 %v423
    %v3079 = vunpack.c.l.b16 %v424
    %v3080 = vunpack.c.h.b16 %v424
    %v3081 = vunpack.c.l.b16 %v425
    %v3082 = vunpack.c.h.b16 %v425
    %v3083 = vunpack.c.l.b16 %v426
    %v3084 = vunpack.c.h.b16 %v426
    %v3085 = vunpack.c.l.b16 %v427
    %v3086 = vunpack.c.h.b16 %v427
    %v3087 = vunpack.c.l.b16 %v428
    %v3088 = vunpack.c.h.b16 %v428
    %v3089 = vunpack.c.l.b16 %v429
    %v3090 = vunpack.c.h.b16 %v429
    %v3091 = vunpack.c.l.b16 %v430
    %v3092 = vunpack.c.h.b16 %v430
    %v3093 = vunpack.c.l.b16 %v431
    %v3094 = vunpack.c.h.b16 %v431
    %v3095 = vunpack.c.l.b16 %v432
    %v3096 = vunpack.c.h.b16 %v432
    %v3097 = vunpack.c.l.b16 %v433
    %v3098 = vunpack.c.h.b16 %v433
    %v3099 = vunpack.c.l.b16 %v434
    %v3100 = vunpack.c.h.b16 %v434
    %v3101 = vunpack.c.l.b16 %v435
    %v3102 = vunpack.c.h.b16 %v435
    %v3103 = vunpack.c.l.b16 %v436
    %v3104 = vunpack.c.h.b16 %v436
    %v3105 = vunpack.c.l.b16 %v437
    %v3106 = vunpack.c.h.b16 %v437
    %v3107 = vunpack.c.l.b16 %v438
    %v3108 = vunpack.c.h.b16 %v438
    %v3109 = vunpack.c.l.b16 %v439
    %v3110 = vunpack.c.h.b16 %v439
    %v3111 = vunpack.c.l.b16 %v440
    %v3112 = vunpack.c.h.b16 %v440
    %v3113 = vunpack.c.l.b16 %v441
    %v3114 = vunpack.c.h.b16 %v441
    %v3115 = vunpack.c.l.b16 %v442
    %v3116 = vunpack.c.h.b16 %v442
    %v3117 = vunpack.c.l.b16 %v443
    %v3118 = vunpack.c.h.b16 %v443
    %v3119 = vunpack.c.l.b16 %v444
    %v3120 = vunpack.c.h.b16 %v444
    %v3121 = vunpack.c.l.b16 %v445
    %v3122 = vunpack.c.h.b16 %v445
    %v3123 = vunpack.c.l.b16 %v446
    %v3124 = vunpack.c.h.b16 %v446
    %v3125 = vunpack.c.l.b16 %v447
    %v3126 = vunpack.c.h.b16 %v447
    %v3127 = vunpack.c.l.b16 %v448
    %v3128 = vunpack.c.h.b16 %v448
    %v3129 = vunpack.c.l.b16 %v449
    %v3130 = vunpack.c.h.b16 %v449
    %v3131 = vunpack.c.l.b16 %v450
    %v3132 = vunpack.c.h.b16 %v450
    %v3133 = vunpack.c.l.b16 %v451
    %v3134 = vunpack.c.h.b16 %v451
    %v3135 = vunpack.c.l.b16 %v452
    %v3136 = vunpack.c.h.b16 %v452
    %v3137 = vunpack.c.l.b16 %v453
    %v3138 = vunpack.c.h.b16 %v453
    %v3139 = vunpack.c.l.b16 %v454
    %v3140 = vunpack.c.h.b16 %v454
    %v3141 = vunpack.c.l.b16 %v455
    %v3142 = vunpack.c.h.b16 %v455
    %v3143 = vunpack.c.l.b16 %v456
    %v3144 = vunpack.c.h.b16 %v456
    %v3145 = vunpack.c.l.b16 %v457
    %v3146 = vunpack.c.h.b16 %v457
    %v3147 = vunpack.c.l.b16 %v458
    %v3148 = vunpack.c.h.b16 %v458
    %v3149 = vunpack.c.l.b16 %v459
    %v3150 = vunpack.c.h.b16 %v459
    %v3151 = vunpack.c.l.b16 %v460
    %v3152 = vunpack.c.h.b16 %v460
    %v3153 = vunpack.c.l.b16 %v461
    %v3154 = vunpack.c.h.b16 %v461
    %v3155 = vunpack.c.l.b16 %v462
    %v3156 = vunpack.c.h.b16 %v462
    %v3157 = vunpack.c.l.b16 %v463
    %v3158 = vunpack.c.h.b16 %v463
    %v3159 = vunpack.c.l.b16 %v464
    %v3160 = vunpack.c.h.b16 %v464
    %v3161 = vunpack.c.l.b16 %v465
    %v3162 = vunpack.c.h.b16 %v465
    %v3163 = vunpack.c.l.b16 %v466
    %v3164 = vunpack.c.h.b16 %v466
    %v3165 = vunpack.c.l.b16 %v467
    %v3166 = vunpack.c.h.b16 %v467
    %v3167 = vunpack.c.l.b16 %v468
    %v3168 = vunpack.c.h.b16 %v468
    %v3169 = vunpack.c.l.b16 %v469
    %v3170 = vunpack.c.h.b16 %v469
    %v3171 = vunpack.c.l.b16 %v470
    %v3172 = vunpack.c.h.b16 %v470
    %v3173 = vunpack.c.l.b16 %v471
    %v3174 = vunpack.c.h.b16 %v471
    %v3175 = vunpack.c.l.b16 %v472
    %v3176 = vunpack.c.h.b16 %v472
    %v3177 = vunpack.c.l.b16 %v473
    %v3178 = vunpack.c.h.b16 %v473
    %v3179 = vunpack.c.l.b16 %v474
    %v3180 = vunpack.c.h.b16 %v474
    %v3181 = vunpack.c.l.b16 %v475
    %v3182 = vunpack.c.h.b16 %v475
    %v3183 = vunpack.c.l.b16 %v476
    %v3184 = vunpack.c.h.b16 %v476
    %v3185 = vunpack.c.l.b16 %v477
    %v3186 = vunpack.c.h.b16 %v477
    %v3187 = vunpack.c.l.b16 %v478
    %v3188 = vunpack.c.h.b16 %v478
    %v3189 = vunpack.c.l.b16 %v479
    %v3190 = vunpack.c.h.b16 %v479
    %v3191 = vunpack.c.l.b16 %v480
    %v3192 = vunpack.c.h.b16 %v480
    %v3193 = vunpack.c.l.b16 %v481
    %v3194 = vunpack.c.h.b16 %v481
    %v3195 = vunpack.c.l.b16 %v482
    %v3196 = vunpack.c.h.b16 %v482
    %v3197 = vunpack.c.l.b16 %v483
    %v3198 = vunpack.c.h.b16 %v483
    %v3199 = vunpack.c.l.b16 %v484
    %v3200 = vunpack.c.h.b16 %v484
    %v3201 = vunpack.c.l.b16 %v485
    %v3202 = vunpack.c.h.b16 %v485
    %v3203 = vunpack.c.l.b16 %v486
    %v3204 = vunpack.c.h.b16 %v486
    %v3205 = vunpack.c.l.b16 %v487
    %v3206 = vunpack.c.h.b16 %v487
    %v3207 = vunpack.c.l.b16 %v488
    %v3208 = vunpack.c.h.b16 %v488
    %v3209 = vunpack.c.l.b16 %v489
    %v3210 = vunpack.c.h.b16 %v489
    %v3211 = vunpack.c.l.b16 %v490
    %v3212 = vunpack.c.h.b16 %v490
    %v3213 = vunpack.c.l.b16 %v491
    %v3214 = vunpack.c.h.b16 %v491
    %v3215 = vunpack.c.l.b16 %v492
    %v3216 = vunpack.c.h.b16 %v492
    %v3217 = vunpack.c.l.b16 %v493
    %v3218 = vunpack.c.h.b16 %v493
    %v3219 = vunpack.c.l.b16 %v494
    %v3220 = vunpack.c.h.b16 %v494
    %v3221 = vunpack.c.l.b16 %v495
    %v3222 = vunpack.c.h.b16 %v495
    %v3223 = vunpack.c.l.b16 %v496
    %v3224 = vunpack.c.h.b16 %v496
    %v3225 = vunpack.c.l.b16 %v497
    %v3226 = vunpack.c.h.b16 %v497
    %v3227 = vunpack.c.l.b16 %v498
    %v3228 = vunpack.c.h.b16 %v498
    %v3229 = vunpack.c.l.b16 %v499
    %v3230 = vunpack.c.h.b16 %v499
    %v3231 = vunpack.c.l.b16 %v500
    %v3232 = vunpack.c.h.b16 %v500
    %v3233 = vunpack.c.l.b16 %v501
    %v3234 = vunpack.c.h.b16 %v501
    %v3235 = vunpack.c.l.b16 %v502
    %v3236 = vunpack.c.h.b16 %v502
    %v3237 = vunpack.c.l.b16 %v503
    %v3238 = vunpack.c.h.b16 %v503
    %v3239 = vunpack.c.l.b16 %v504
    %v3240 = vunpack.c.h.b16 %v504
    %v3241 = vunpack.c.l.b16 %v505
    %v3242 = vunpack.c.h.b16 %v505
    %v3243 = vunpack.c.l.b16 %v506
    %v3244 = vunpack.c.h.b16 %v506
    %v3245 = vunpack.c.l.b16 %v507
    %v3246 = vunpack.c.h.b16 %v507
    %v3247 = vunpack.c.l.b16 %v508
    %v3248 = vunpack.c.h.b16 %v508
    %v3249 = vunpack.c.l.b16 %v509
    %v3250 = vunpack.c.h.b16 %v509
    %v3251 = vunpack.c.l.b16 %v510
    %v3252 = vunpack.c.h.b16 %v510
    %v3253 = vunpack.c.l.b16 %v511
    %v3254 = vunpack.c.h.b16 %v511
    %v3255 = vunpack.c.l.b16 %v512
    %v3256 = vunpack.c.h.b16 %v512
    %v3257 = vunpack.c.l.b16 %v513
    %v3258 = vunpack.c.h.b16 %v513
    %v3259 = vunpack.c.l.b16 %v514
    %v3260 = vunpack.c.h.b16 %v514
    %v3261 = vunpack.c.l.b16 %v515
    %v3262 = vunpack.c.h.b16 %v515
    %v3263 = vunpack.c.l.b16 %v516
    %v3264 = vunpack.c.h.b16 %v516
    %v3265 = vunpack.c.l.b16 %v517
    %v3266 = vunpack.c.h.b16 %v517
    %v3267 = vunpack.c.l.b16 %v518
    %v3268 = vunpack.c.h.b16 %v518
    %v3269 = vunpack.c.l.b16 %v519
    %v3270 = vunpack.c.h.b16 %v519
    %v3271 = vunpack.c.l.b16 %v520
    %v3272 = vunpack.c.h.b16 %v520
    %v3273 = vunpack.c.l.b16 %v521
    %v3274 = vunpack.c.h.b16 %v521
    %v3275 = vunpack.c.l.b16 %v522
    %v3276 = vunpack.c.h.b16 %v522
    %v3277 = vunpack.c.l.b16 %v523
    %v3278 = vunpack.c.h.b16 %v523
    %v3279 = vunpack.c.l.b16 %v524
    %v3280 = vunpack.c.h.b16 %v524
    %v3281 = vunpack.c.l.b16 %v525
    %v3282 = vunpack.c.h.b16 %v525
    %v3283 = vunpack.c.l.b16 %v526
    %v3284 = vunpack.c.h.b16 %v526
    %v3285 = vunpack.c.l.b16 %v527
    %v3286 = vunpack.c.h.b16 %v527
    %v3287 = vunpack.c.l.b16 %v528
    %v3288 = vunpack.c.h.b16 %v528
    %v3289 = vunpack.c.l.b16 %v529
    %v3290 = vunpack.c.h.b16 %v529
    %v3291 = vunpack.c.l.b16 %v530
    %v3292 = vunpack.c.h.b16 %v530
    %v3293 = vunpack.c.l.b16 %v531
    %v3294 = vunpack.c.h.b16 %v531
    %v3295 = vunpack.c.l.b16 %v532
    %v3296 = vunpack.c.h.b16 %v532
    %v3297 = vunpack.c.l.b16 %v533
    %v3298 = vunpack.c.h.b16 %v533
    %v3299 = vunpack.c.l.b16 %v534
    %v3300 = vunpack.c.h.b16 %v534
    %v3301 = vunpack.c.l.b16 %v535
    %v3302 = vunpack.c.h.b16 %v535
    %v3303 = vunpack.c.l.b16 %v536
    %v3304 = vunpack.c.h.b16 %v536
    %v3305 = vunpack.c.l.b16 %v537
    %v3306 = vunpack.c.h.b16 %v537
    %v3307 = vunpack.c.l.b16 %v538
    %v3308 = vunpack.c.h.b16 %v538
    %v3309 = vunpack.c.l.b16 %v539
    %v3310 = vunpack.c.h.b16 %v539
    %v3311 = vunpack.c.l.b16 %v540
    %v3312 = vunpack.c.h.b16 %v540
    %v3313 = vunpack.c.l.b16 %v541
    %v3314 = vunpack.c.h.b16 %v541
    %v3315 = vunpack.c.l.b16 %v542
    %v3316 = vunpack.c.h.b16 %v542
    %v3317 = vunpack.c.l.b16 %v543
    %v3318 = vunpack.c.h.b16 %v543
    %v3319 = vunpack.c.l.b16 %v544
    %v3320 = vunpack.c.h.b16 %v544
    %v3321 = vunpack.c.l.b16 %v545
    %v3322 = vunpack.c.h.b16 %v545
    %v3323 = vunpack.c.l.b16 %v546
    %v3324 = vunpack.c.h.b16 %v546
    %v3325 = vunpack.c.l.b16 %v547
    %v3326 = vunpack.c.h.b16 %v547
    %v3327 = vunpack.c.l.b16 %v548
    %v3328 = vunpack.c.h.b16 %v548
    %v3329 = vunpack.c.l.b16 %v549
    %v3330 = vunpack.c.h.b16 %v549
    %v3331 = vunpack.c.l.b16 %v550
    %v3332 = vunpack.c.h.b16 %v550
    %v3333 = vunpack.c.l.b16 %v551
    %v3334 = vunpack.c.h.b16 %v551
    %v3335 = vunpack.c.l.b16 %v552
    %v3336 = vunpack.c.h.b16 %v552
    %v3337 = vunpack.c.l.b16 %v553
    %v3338 = vunpack.c.h.b16 %v553
    %v3339 = vunpack.c.l.b16 %v554
    %v3340 = vunpack.c.h.b16 %v554
    %v3341 = vunpack.c.l.b16 %v555
    %v3342 = vunpack.c.h.b16 %v555
    %v3343 = vunpack.c.l.b16 %v556
    %v3344 = vunpack.c.h.b16 %v556
    %v3345 = vunpack.c.l.b16 %v557
    %v3346 = vunpack.c.h.b16 %v557
    %v3347 = vunpack.c.l.b16 %v558
    %v3348 = vunpack.c.h.b16 %v558
    %v3349 = vunpack.c.l.b16 %v559
    %v3350 = vunpack.c.h.b16 %v559
    %v3351 = vunpack.c.l.b16 %v560
    %v3352 = vunpack.c.h.b16 %v560
    %v3353 = vunpack.c.l.b16 %v561
    %v3354 = vunpack.c.h.b16 %v561
    %v3355 = vunpack.c.l.b16 %v562
    %v3356 = vunpack.c.h.b16 %v562
    %v3357 = vunpack.c.l.b16 %v563
    %v3358 = vunpack.c.h.b16 %v563
    %v3359 = vunpack.c.l.b16 %v564
    %v3360 = vunpack.c.h.b16 %v564
    %v3361 = vunpack.c.l.b16 %v565
    %v3362 = vunpack.c.h.b16 %v565
    %v3363 = vunpack.c.l.b16 %v566
    %v3364 = vunpack.c.h.b16 %v566
    %v3365 = vunpack.c.l.b16 %v567
    %v3366 = vunpack.c.h.b16 %v567
    %v3367 = vunpack.c.l.b16 %v568
    %v3368 = vunpack.c.h.b16 %v568
    %v3369 = vunpack.c.l.b16 %v569
    %v3370 = vunpack.c.h.b16 %v569
    %v3371 = vunpack.c.l.b16 %v570
    %v3372 = vunpack.c.h.b16 %v570
    %v3373 = vunpack.c.l.b16 %v571
    %v3374 = vunpack.c.h.b16 %v571
    %v3375 = vunpack.c.l.b16 %v572
    %v3376 = vunpack.c.h.b16 %v572
    %v3377 = vunpack.c.l.b16 %v573
    %v3378 = vunpack.c.h.b16 %v573
    %v3379 = vunpack.c.l.b16 %v574
    %v3380 = vunpack.c.h.b16 %v574
    %v3381 = vunpack.c.l.b16 %v575
    %v3382 = vunpack.c.h.b16 %v575
    %v3383 = vunpack.c.l.b16 %v576
    %v3384 = vunpack.c.h.b16 %v576
    %v3385 = vunpack.c.l.b16 %v577
    %v3386 = vunpack.c.h.b16 %v577
    %v3387 = vunpack.c.l.b16 %v578
    %v3388 = vunpack.c.h.b16 %v578
    %v3389 = vunpack.c.l.b16 %v579
    %v3390 = vunpack.c.h.b16 %v579
    %v3391 = vunpack.c.l.b16 %v580
    %v3392 = vunpack.c.h.b16 %v580
    %v3393 = vunpack.c.l.b16 %v581
    %v3394 = vunpack.c.h.b16 %v581
    %v3395 = vunpack.c.l.b16 %v582
    %v3396 = vunpack.c.h.b16 %v582
    %v3397 = vunpack.c.l.b16 %v583
    %v3398 = vunpack.c.h.b16 %v583
    %v3399 = vunpack.c.l.b16 %v584
    %v3400 = vunpack.c.h.b16 %v584
    %v3401 = vunpack.c.l.b16 %v585
    %v3402 = vunpack.c.h.b16 %v585
    %v3403 = vunpack.c.l.b16 %v586
    %v3404 = vunpack.c.h.b16 %v586
    %v3405 = vunpack.c.l.b16 %v587
    %v3406 = vunpack.c.h.b16 %v587
    %v3407 = vunpack.c.l.b16 %v588
    %v3408 = vunpack.c.h.b16 %v588
    %v3409 = vunpack.c.l.b16 %v589
    %v3410 = vunpack.c.h.b16 %v589
    %v3411 = vunpack.c.l.b16 %v590
    %v3412 = vunpack.c.h.b16 %v590
    %v3413 = vunpack.c.l.b16 %v591
    %v3414 = vunpack.c.h.b16 %v591
    %v3415 = vunpack.c.l.b16 %v592
    %v3416 = vunpack.c.h.b16 %v592
    %v3417 = vunpack.c.l.b16 %v593
    %v3418 = vunpack.c.h.b16 %v593
    %v3419 = vunpack.c.l.b16 %v594
    %v3420 = vunpack.c.h.b16 %v594
    %v3421 = vunpack.c.l.b16 %v595
    %v3422 = vunpack.c.h.b16 %v595
    %v3423 = vunpack.c.l.b16 %v596
    %v3424 = vunpack.c.h.b16 %v596
    %v3425 = vunpack.c.l.b16 %v597
    %v3426 = vunpack.c.h.b16 %v597
    %v3427 = vunpack.c.l.b16 %v598
    %v3428 = vunpack.c.h.b16 %v598
    %v3429 = vunpack.c.l.b16 %v599
    %v3430 = vunpack.c.h.b16 %v599
    %v3431 = vunpack.c.l.b16 %v600
    %v3432 = vunpack.c.h.b16 %v600
    %v3433 = vunpack.c.l.b16 %v601
    %v3434 = vunpack.c.h.b16 %v601
    %v3435 = vunpack.c.l.b16 %v602
    %v3436 = vunpack.c.h.b16 %v602
    %v3437 = vunpack.c.l.b16 %v603
    %v3438 = vunpack.c.h.b16 %v603
    %v3439 = vunpack.c.l.b16 %v604
    %v3440 = vunpack.c.h.b16 %v604
    %v3441 = vunpack.c.l.b16 %v605
    %v3442 = vunpack.c.h.b16 %v605
    %v3443 = vunpack.c.l.b16 %v606
    %v3444 = vunpack.c.h.b16 %v606
    %v3445 = vunpack.c.l.b16 %v607
    %v3446 = vunpack.c.h.b16 %v607
    %v3447 = vunpack.c.l.b16 %v608
    %v3448 = vunpack.c.h.b16 %v608
    %v3449 = vunpack.c.l.b16 %v609
    %v3450 = vunpack.c.h.b16 %v609
    %v3451 = vunpack.c.l.b16 %v610
    %v3452 = vunpack.c.h.b16 %v610
    %v3453 = vunpack.c.l.b16 %v611
    %v3454 = vunpack.c.h.b16 %v611
    %v3455 = vunpack.c.l.b16 %v612
    %v3456 = vunpack.c.h.b16 %v612
    %v3457 = vunpack.c.l.b16 %v613
    %v3458 = vunpack.c.h.b16 %v613
    %v3459 = vunpack.c.l.b16 %v614
    %v3460 = vunpack.c.h.b16 %v614
    %v3461 = vunpack.c.l.b16 %v615
    %v3462 = vunpack.c.h.b16 %v615
    %v3463 = vunpack.c.l.b16 %v616
    %v3464 = vunpack.c.h.b16 %v616
    %v3465 = vunpack.c.l.b16 %v617
    %v3466 = vunpack.c.h.b16 %v617
    %v3467 = vunpack.c.l.b16 %v618
    %v3468 = vunpack.c.h.b16 %v618
    %v3469 = vunpack.c.l.b16 %v619
    %v3470 = vunpack.c.h.b16 %v619
    %v3471 = vunpack.c.l.b16 %v620
    %v3472 = vunpack.c.h.b16 %v620
    %v3473 = vunpack.c.l.b16 %v621
    %v3474 = vunpack.c.h.b16 %v621
    %v3475 = vunpack.c.l.b16 %v622
    %v3476 = vunpack.c.h.b16 %v622
    %v3477 = vunpack.c.l.b16 %v623
    %v3478 = vunpack.c.h.b16 %v623
    %v3479 = vunpack.c.l.b16 %v624
    %v3480 = vunpack.c.h.b16 %v624
    %v3481 = vunpack.c.l.b16 %v625
    %v3482 = vunpack.c.h.b16 %v625
    %v3483 = vunpack.c.l.b16 %v626
    %v3484 = vunpack.c.h.b16 %v626
    %v3485 = vunpack.c.l.b16 %v627
    %v3486 = vunpack.c.h.b16 %v627
    %v3487 = vunpack.c.l.b16 %v628
    %v3488 = vunpack.c.h.b16 %v628
    %v3489 = vunpack.c.l.b16 %v629
    %v3490 = vunpack.c.h.b16 %v629
    %v3491 = vunpack.c.l.b16 %v630
    %v3492 = vunpack.c.h.b16 %v630
    %v3493 = vunpack.c.l.b16 %v631
    %v3494 = vunpack.c.h.b16 %v631
    %v3495 = vunpack.c.l.b16 %v632
    %v3496 = vunpack.c.h.b16 %v632
    %v3497 = vunpack.c.l.b16 %v633
    %v3498 = vunpack.c.h.b16 %v633
    %v3499 = vunpack.c.l.b16 %v634
    %v3500 = vunpack.c.h.b16 %v634
    %v3501 = vunpack.c.l.b16 %v635
    %v3502 = vunpack.c.h.b16 %v635
    %v3503 = vunpack.c.l.b16 %v636
    %v3504 = vunpack.c.h.b16 %v636
    %v3505 = vunpack.c.l.b16 %v637
    %v3506 = vunpack.c.h.b16 %v637
    %v3507 = vunpack.c.l.b16 %v638
    %v3508 = vunpack.c.h.b16 %v638
    %v3509 = vunpack.c.l.b16 %v639
    %v3510 = vunpack.c.h.b16 %v639
    %v3511 = vunpack.c.l.b16 %v640
    %v3512 = vunpack.c.h.b16 %v640
    %v3513 = vunpack.c.l.b16 %v641
    %v3514 = vunpack.c.h.b16 %v641
    %v3515 = vunpack.c.l.b16 %v642
    %v3516 = vunpack.c.h.b16 %v642
    %v3517 = vunpack.c.l.b16 %v643
    %v3518 = vunpack.c.h.b16 %v643
    %v3519 = vunpack.c.l.b16 %v644
    %v3520 = vunpack.c.h.b16 %v644
    %v3521 = vunpack.c.l.b16 %v645
    %v3522 = vunpack.c.h.b16 %v645
    %v3523 = vunpack.c.l.b16 %v646
    %v3524 = vunpack.c.h.b16 %v646
    %v3525 = vunpack.c.l.b16 %v647
    %v3526 = vunpack.c.h.b16 %v647
    %v3527 = vunpack.c.l.b16 %v648
    %v3528 = vunpack.c.h.b16 %v648
    %v3529 = vunpack.c.l.b16 %v649
    %v3530 = vunpack.c.h.b16 %v649
    %v3531 = vunpack.c.l.b16 %v650
    %v3532 = vunpack.c.h.b16 %v650
    %v3533 = vunpack.c.l.b16 %v651
    %v3534 = vunpack.c.h.b16 %v651
    %v3535 = vunpack.c.l.b16 %v652
    %v3536 = vunpack.c.h.b16 %v652
    %v3537 = vunpack.c.l.b16 %v653
    %v3538 = vunpack.c.h.b16 %v653
    %v3539 = vunpack.c.l.b16 %v654
    %v3540 = vunpack.c.h.b16 %v654
    %v3541 = vunpack.c.l.b16 %v655
    %v3542 = vunpack.c.h.b16 %v655
    %v3543 = vunpack.c.l.b16 %v656
    %v3544 = vunpack.c.h.b16 %v656
    %v3545 = vunpack.c.l.b16 %v657
    %v3546 = vunpack.c.h.b16 %v657
    %v3547 = vunpack.c.l.b16 %v658
    %v3548 = vunpack.c.h.b16 %v658
    %v3549 = vunpack.c.l.b16 %v659
    %v3550 = vunpack.c.h.b16 %v659
    %v3551 = vunpack.c.l.b16 %v660
    %v3552 = vunpack.c.h.b16 %v660
    %v3553 = vunpack.c.l.b16 %v661
    %v3554 = vunpack.c.h.b16 %v661
    %v3555 = vunpack.c.l.b16 %v662
    %v3556 = vunpack.c.h.b16 %v662
    %v3557 = vunpack.c.l.b16 %v663
    %v3558 = vunpack.c.h.b16 %v663
    %v3559 = vunpack.c.l.b16 %v664
    %v3560 = vunpack.c.h.b16 %v664
    %v3561 = vunpack.c.l.b16 %v665
    %v3562 = vunpack.c.h.b16 %v665
    %v3563 = vunpack.c.l.b16 %v666
    %v3564 = vunpack.c.h.b16 %v666
    %v3565 = vunpack.c.l.b16 %v667
    %v3566 = vunpack.c.h.b16 %v667
    %v3567 = vunpack.c.l.b16 %v668
    %v3568 = vunpack.c.h.b16 %v668
    %v3569 = vunpack.c.l.b16 %v669
    %v3570 = vunpack.c.h.b16 %v669
    %v3571 = vunpack.c.l.b16 %v670
    %v3572 = vunpack.c.h.b16 %v670
    %v3573 = vunpack.c.l.b16 %v671
    %v3574 = vunpack.c.h.b16 %v671
    %v3575 = vunpack.c.l.b16 %v672
    %v3576 = vunpack.c.h.b16 %v672
    %v3577 = vunpack.c.l.b16 %v673
    %v3578 = vunpack.c.h.b16 %v673
    %v3579 = vunpack.c.l.b16 %v674
    %v3580 = vunpack.c.h.b16 %v674
    %v3581 = vunpack.c.l.b16 %v675
    %v3582 = vunpack.c.h.b16 %v675
    %v3583 = vunpack.c.l.b16 %v676
    %v3584 = vunpack.c.h.b16 %v676
    %v3585 = vunpack.c.l.b16 %v677
    %v3586 = vunpack.c.h.b16 %v677
    %v3587 = vunpack.c.l.b16 %v678
    %v3588 = vunpack.c.h.b16 %v678
    %v3589 = vunpack.c.l.b16 %v679
    %v3590 = vunpack.c.h.b16 %v679
    %v3591 = vunpack.c.l.b16 %v680
    %v3592 = vunpack.c.h.b16 %v680
    %v3593 = vunpack.c.l.b16 %v681
    %v3594 = vunpack.c.h.b16 %v681
    %v3595 = vunpack.c.l.b16 %v682
    %v3596 = vunpack.c.h.b16 %v682
    %v3597 = vunpack.c.l.b16 %v683
    %v3598 = vunpack.c.h.b16 %v683
    %v3599 = vunpack.c.l.b16 %v684
    %v3600 = vunpack.c.h.b16 %v684
    %v3601 = vunpack.c.l.b16 %v685
    %v3602 = vunpack.c.h.b16 %v685
    %v3603 = vunpack.c.l.b16 %v686
    %v3604 = vunpack.c.h.b16 %v686
    %v3605 = vunpack.c.l.b16 %v687
    %v3606 = vunpack.c.h.b16 %v687
    %v3607 = vunpack.c.l.b16 %v688
    %v3608 = vunpack.c.h.b16 %v688
    %v3609 = vunpack.c.l.b16 %v689
    %v3610 = vunpack.c.h.b16 %v689
    %v3611 = vunpack.c.l.b16 %v690
    %v3612 = vunpack.c.h.b16 %v690
    %v3613 = vunpack.c.l.b16 %v691
    %v3614 = vunpack.c.h.b16 %v691
    %v3615 = vunpack.c.l.b16 %v692
    %v3616 = vunpack.c.h.b16 %v692
    %v3617 = vunpack.c.l.b16 %v693
    %v3618 = vunpack.c.h.b16 %v693
    %v3619 = vunpack.c.l.b16 %v694
    %v3620 = vunpack.c.h.b16 %v694
    %v3621 = vunpack.c.l.b16 %v695
    %v3622 = vunpack.c.h.b16 %v695
    %v3623 = vunpack.c.l.b16 %v696
    %v3624 = vunpack.c.h.b16 %v696
    %v3625 = vunpack.c.l.b16 %v697
    %v3626 = vunpack.c.h.b16 %v697
    %v3627 = vunpack.c.l.b16 %v698
    %v3628 = vunpack.c.h.b16 %v698
    %v3629 = vunpack.c.l.b16 %v699
    %v3630 = vunpack.c.h.b16 %v699
    %v3631 = vunpack.c.l.b16 %v700
    %v3632 = vunpack.c.h.b16 %v700
    %v3633 = vunpack.c.l.b16 %v701
    %v3634 = vunpack.c.h.b16 %v701
    %v3635 = vunpack.c.l.b16 %v702
    %v3636 = vunpack.c.h.b16 %v702
    %v3637 = vunpack.c.l.b16 %v703
    %v3638 = vunpack.c.h.b16 %v703
    %v3639 = vunpack.c.l.b16 %v704
    %v3640 = vunpack.c.h.b16 %v704
    %v3641 = vunpack.c.l.b16 %v705
    %v3642 = vunpack.c.h.b16 %v705
    %v3643 = vunpack.c.l.b16 %v706
    %v3644 = vunpack.c.h.b16 %v706
    %v3645 = vunpack.c.l.b16 %v707
    %v3646 = vunpack.c.h.b16 %v707
    %v3647 = vunpack.c.l.b16 %v708
    %v3648 = vunpack.c.h.b16 %v708
    %v3649 = vunpack.c.l.b16 %v709
    %v3650 = vunpack.c.h.b16 %v709
    %v3651 = vunpack.c.l.b16 %v710
    %v3652 = vunpack.c.h.b16 %v710
    %v3653 = vunpack.c.l.b16 %v711
    %v3654 = vunpack.c.h.b16 %v711
    %v3655 = vunpack.c.l.b16 %v712
    %v3656 = vunpack.c.h.b16 %v712
    %v3657 = vunpack.c.l.b16 %v713
    %v3658 = vunpack.c.h.b16 %v713
    %v3659 = vunpack.c.l.b16 %v714
    %v3660 = vunpack.c.h.b16 %v714
    %v3661 = vunpack.c.l.b16 %v715
    %v3662 = vunpack.c.h.b16 %v715
    %v3663 = vunpack.c.l.b16 %v716
    %v3664 = vunpack.c.h.b16 %v716
    %v3665 = vunpack.c.l.b16 %v717
    %v3666 = vunpack.c.h.b16 %v717
    %v3667 = vunpack.c.l.b16 %v718
    %v3668 = vunpack.c.h.b16 %v718
    %v3669 = vunpack.c.l.b16 %v719
    %v3670 = vunpack.c.h.b16 %v719
    %v3671 = vunpack.c.l.b16 %v720
    %v3672 = vunpack.c.h.b16 %v720
    %v3673 = vunpack.c.l.b16 %v721
    %v3674 = vunpack.c.h.b16 %v721
    %v3675 = vunpack.c.l.b16 %v722
    %v3676 = vunpack.c.h.b16 %v722
    %v3677 = vunpack.c.l.b16 %v723
    %v3678 = vunpack.c.h.b16 %v723
    %v3679 = vunpack.c.l.b16 %v724
    %v3680 = vunpack.c.h.b16 %v724
    %v3681 = vunpack.c.l.b16 %v725
    %v3682 = vunpack.c.h.b16 %v725
    %v3683 = vunpack.c.l.b16 %v726
    %v3684 = vunpack.c.h.b16 %v726
    %v3685 = vunpack.c.l.b16 %v727
    %v3686 = vunpack.c.h.b16 %v727
    %v3687 = vunpack.c.l.b16 %v728
    %v3688 = vunpack.c.h.b16 %v728
    %v3689 = vunpack.c.l.b16 %v729
    %v3690 = vunpack.c.h.b16 %v729
    %v3691 = vunpack.c.l.b16 %v730
    %v3692 = vunpack.c.h.b16 %v730
    %v3693 = vunpack.c.l.b16 %v731
    %v3694 = vunpack.c.h.b16 %v731
    %v3695 = vunpack.c.l.b16 %v732
    %v3696 = vunpack.c.h.b16 %v732
    %v3697 = vunpack.c.l.b16 %v733
    %v3698 = vunpack.c.h.b16 %v733
    %v3699 = vunpack.c.l.b16 %v734
    %v3700 = vunpack.c.h.b16 %v734
    %v3701 = vunpack.c.l.b16 %v735
    %v3702 = vunpack.c.h.b16 %v735
    %v3703 = vunpack.c.l.b16 %v736
    %v3704 = vunpack.c.h.b16 %v736
    %v3705 = vunpack.c.l.b16 %v737
    %v3706 = vunpack.c.h.b16 %v737
    %v3707 = vunpack.c.l.b16 %v738
    %v3708 = vunpack.c.h.b16 %v738
    %v3709 = vunpack.c.l.b16 %v739
    %v3710 = vunpack.c.h.b16 %v739
    %v3711 = vunpack.c.l.b16 %v740
    %v3712 = vunpack.c.h.b16 %v740
    %v3713 = vunpack.c.l.b16 %v741
    %v3714 = vunpack.c.h.b16 %v741
    %v3715 = vunpack.c.l.b16 %v742
    %v3716 = vunpack.c.h.b16 %v742
    %v3717 = vunpack.c.l.b16 %v743
    %v3718 = vunpack.c.h.b16 %v743
    %v3719 = vunpack.c.l.b16 %v744
    %v3720 = vunpack.c.h.b16 %v744
    %v3721 = vunpack.c.l.b16 %v745
    %v3722 = vunpack.c.h.b16 %v745
    %v3723 = vunpack.c.l.b16 %v746
    %v3724 = vunpack.c.h.b16 %v746
    %v3725 = vunpack.c.l.b16 %v747
    %v3726 = vunpack.c.h.b16 %v747
    %v3727 = vunpack.c.l.b16 %v748
    %v3728 = vunpack.c.h.b16 %v748
    %v3729 = vunpack.c.l.b16 %v749
    %v3730 = vunpack.c.h.b16 %v749
    %v3731 = vunpack.c.l.b16 %v750
    %v3732 = vunpack.c.h.b16 %v750
    %v3733 = vunpack.c.l.b16 %v751
    %v3734 = vunpack.c.h.b16 %v751
    %v3735 = vunpack.c.l.b16 %v752
    %v3736 = vunpack.c.h.b16 %v752
    %v3737 = vunpack.c.l.b16 %v753
    %v3738 = vunpack.c.h.b16 %v753
    %v3739 = vunpack.c.l.b16 %v754
    %v3740 = vunpack.c.h.b16 %v754
    %v3741 = vunpack.c.l.b16 %v755
    %v3742 = vunpack.c.h.b16 %v755
    %v3743 = vunpack.c.l.b16 %v756
    %v3744 = vunpack.c.h.b16 %v756
    %v3745 = vunpack.c.l.b16 %v757
    %v3746 = vunpack.c.h.b16 %v757
    %v3747 = vunpack.c.l.b16 %v758
    %v3748 = vunpack.c.h.b16 %v758
    %v3749 = vunpack.c.l.b16 %v759
    %v3750 = vunpack.c.h.b16 %v759
    %v3751 = vunpack.c.l.b16 %v760
    %v3752 = vunpack.c.h.b16 %v760
    %v3753 = vunpack.c.l.b16 %v761
    %v3754 = vunpack.c.h.b16 %v761
    %v3755 = vunpack.c.l.b16 %v762
    %v3756 = vunpack.c.h.b16 %v762
    %v3757 = vunpack.c.l.b16 %v763
    %v3758 = vunpack.c.h.b16 %v763
    %v3759 = vunpack.c.l.b16 %v764
    %v3760 = vunpack.c.h.b16 %v764
    %v3761 = vunpack.c.l.b16 %v765
    %v3762 = vunpack.c.h.b16 %v765
    %v3763 = vunpack.c.l.b16 %v766
    %v3764 = vunpack.c.h.b16 %v766
    %v3765 = vunpack.c.l.b16 %v767
    %v3766 = vunpack.c.h.b16 %v767
    %v3767 = vunpack.c.l.b16 %v768
    %v3768 = vunpack.c.h.b16 %v768
    %v3769 = vunpack.c.l.b16 %v769
    %v3770 = vunpack.c.h.b16 %v769
    %v3771 = vunpack.c.l.b16 %v770
    %v3772 = vunpack.c.h.b16 %v770
    %v3773 = vunpack.c.l.b16 %v771
    %v3774 = vunpack.c.h.b16 %v771
    %v3775 = vunpack.c.l.b16 %v772
    %v3776 = vunpack.c.h.b16 %v772
    %v3777 = vunpack.c.l.b16 %v773
    %v3778 = vunpack.c.h.b16 %v773
    %v3779 = vunpack.c.l.b16 %v774
    %v3780 = vunpack.c.h.b16 %v774
    %v3781 = vunpack.c.l.b16 %v775
    %v3782 = vunpack.c.h.b16 %v775
    %v3783 = vunpack.c.l.b16 %v776
    %v3784 = vunpack.c.h.b16 %v776
    %v3785 = vunpack.c.l.b16 %v777
    %v3786 = vunpack.c.h.b16 %v777
    %v3787 = vunpack.c.l.b16 %v778
    %v3788 = vunpack.c.h.b16 %v778
    %v3789 = vunpack.c.l.b16 %v779
    %v3790 = vunpack.c.h.b16 %v779
    %v3791 = vunpack.c.l.b16 %v780
    %v3792 = vunpack.c.h.b16 %v780
    %v3793 = vunpack.c.l.b16 %v781
    %v3794 = vunpack.c.h.b16 %v781
    %v3795 = vunpack.c.l.b16 %v782
    %v3796 = vunpack.c.h.b16 %v782
    %v3797 = vunpack.c.l.b16 %v783
    %v3798 = vunpack.c.h.b16 %v783
    %v3799 = vunpack.c.l.b16 %v784
    %v3800 = vunpack.c.h.b16 %v784
    %v3801 = vunpack.c.l.b16 %v785
    %v3802 = vunpack.c.h.b16 %v785
    %v3803 = vunpack.c.l.b16 %v786
    %v3804 = vunpack.c.h.b16 %v786
    %v3805 = vunpack.c.l.b16 %v787
    %v3806 = vunpack.c.h.b16 %v787
    %v3807 = vunpack.c.l.b16 %v788
    %v3808 = vunpack.c.h.b16 %v788
    %v3809 = vunpack.c.l.b16 %v789
    %v3810 = vunpack.c.h.b16 %v789
    %v3811 = vunpack.c.l.b16 %v790
    %v3812 = vunpack.c.h.b16 %v790
    %v3813 = vunpack.c.l.b16 %v791
    %v3814 = vunpack.c.h.b16 %v791
    %v3815 = vunpack.c.l.b16 %v792
    %v3816 = vunpack.c.h.b16 %v792
    %v3817 = vunpack.c.l.b16 %v793
    %v3818 = vunpack.c.h.b16 %v793
    %v3819 = vunpack.c.l.b16 %v794
    %v3820 = vunpack.c.h.b16 %v794
    %v3821 = vunpack.c.l.b16 %v795
    %v3822 = vunpack.c.h.b16 %v795
    %v3823 = vunpack.c.l.b16 %v796
    %v3824 = vunpack.c.h.b16 %v796
    %v3825 = vunpack.c.l.b16 %v797
    %v3826 = vunpack.c.h.b16 %v797
    %v3827 = vunpack.c.l.b16 %v798
    %v3828 = vunpack.c.h.b16 %v798
    %v3829 = vunpack.c.l.b16 %v799
    %v3830 = vunpack.c.h.b16 %v799
    %v3831 = vunpack.c.l.b16 %v800
    %v3832 = vunpack.c.h.b16 %v800
    %v3833 = vunpack.c.l.b16 %v801
    %v3834 = vunpack.c.h.b16 %v801
    %v3835 = vunpack.c.l.b16 %v802
    %v3836 = vunpack.c.h.b16 %v802
    %v3837 = vunpack.c.l.b16 %v803
    %v3838 = vunpack.c.h.b16 %v803
    %v3839 = vunpack.c.l.b16 %v804
    %v3840 = vunpack.c.h.b16 %v804
    %v3841 = vunpack.c.l.b16 %v805
    %v3842 = vunpack.c.h.b16 %v805
    %v3843 = vunpack.c.l.b16 %v806
    %v3844 = vunpack.c.h.b16 %v806
    %v3845 = vunpack.c.l.b16 %v807
    %v3846 = vunpack.c.h.b16 %v807
    %v3847 = vunpack.c.l.b16 %v808
    %v3848 = vunpack.c.h.b16 %v808
    %v3849 = vunpack.c.l.b16 %v809
    %v3850 = vunpack.c.h.b16 %v809
    %v3851 = vunpack.c.l.b16 %v810
    %v3852 = vunpack.c.h.b16 %v810
    %v3853 = vunpack.c.l.b16 %v811
    %v3854 = vunpack.c.h.b16 %v811
    %v3855 = vunpack.c.l.b16 %v812
    %v3856 = vunpack.c.h.b16 %v812
    %v3857 = vunpack.c.l.b16 %v813
    %v3858 = vunpack.c.h.b16 %v813
    %v3859 = vunpack.c.l.b16 %v814
    %v3860 = vunpack.c.h.b16 %v814
    %v3861 = vunpack.c.l.b16 %v815
    %v3862 = vunpack.c.h.b16 %v815
    %v3863 = vunpack.c.l.b16 %v816
    %v3864 = vunpack.c.h.b16 %v816
    %v3865 = vunpack.c.l.b16 %v817
    %v3866 = vunpack.c.h.b16 %v817
    %v3867 = vunpack.c.l.b16 %v818
    %v3868 = vunpack.c.h.b16 %v818
    %v3869 = vunpack.c.l.b16 %v819
    %v3870 = vunpack.c.h.b16 %v819
    %v3871 = vunpack.c.l.b16 %v820
    %v3872 = vunpack.c.h.b16 %v820
    %v3873 = vunpack.c.l.b16 %v821
    %v3874 = vunpack.c.h.b16 %v821
    %v3875 = vunpack.c.l.b16 %v822
    %v3876 = vunpack.c.h.b16 %v822
    %v3877 = vunpack.c.l.b16 %v823
    %v3878 = vunpack.c.h.b16 %v823
    %v3879 = vunpack.c.l.b16 %v824
    %v3880 = vunpack.c.h.b16 %v824
    %v3881 = vunpack.c.l.b16 %v825
    %v3882 = vunpack.c.h.b16 %v825
    %v3883 = vunpack.c.l.b16 %v826
    %v3884 = vunpack.c.h.b16 %v826
    %v3885 = vunpack.c.l.b16 %v827
    %v3886 = vunpack.c.h.b16 %v827
    %v3887 = vunpack.c.l.b16 %v828
    %v3888 = vunpack.c.h.b16 %v828
    %v3889 = vunpack.c.l.b16 %v829
    %v3890 = vunpack.c.h.b16 %v829
    %v3891 = vunpack.c.l.b16 %v830
    %v3892 = vunpack.c.h.b16 %v830
    %v3893 = vunpack.c.l.b16 %v831
    %v3894 = vunpack.c.h.b16 %v831
    %v3895 = vunpack.c.l.b16 %v832
    %v3896 = vunpack.c.h.b16 %v832
    %v3897 = vunpack.c.l.b16 %v833
    %v3898 = vunpack.c.h.b16 %v833
    %v3899 = vunpack.c.l.b16 %v834
    %v3900 = vunpack.c.h.b16 %v834
    %v3901 = vunpack.c.l.b16 %v835
    %v3902 = vunpack.c.h.b16 %v835
    %v3903 = vunpack.c.l.b16 %v836
    %v3904 = vunpack.c.h.b16 %v836
    %v3905 = vunpack.c.l.b16 %v837
    %v3906 = vunpack.c.h.b16 %v837
    %v3907 = vunpack.c.l.b16 %v838
    %v3908 = vunpack.c.h.b16 %v838
    %v3909 = vunpack.c.l.b16 %v839
    %v3910 = vunpack.c.h.b16 %v839
    %v3911 = vunpack.c.l.b16 %v840
    %v3912 = vunpack.c.h.b16 %v840
    %v3913 = vunpack.c.l.b16 %v841
    %v3914 = vunpack.c.h.b16 %v841
    %v3915 = vunpack.c.l.b16 %v842
    %v3916 = vunpack.c.h.b16 %v842
    %v3917 = vunpack.c.l.b16 %v843
    %v3918 = vunpack.c.h.b16 %v843
    %v3919 = vunpack.c.l.b16 %v844
    %v3920 = vunpack.c.h.b16 %v844
    %v3921 = vunpack.c.l.b16 %v845
    %v3922 = vunpack.c.h.b16 %v845
    %v3923 = vunpack.c.l.b16 %v846
    %v3924 = vunpack.c.h.b16 %v846
    %v3925 = vunpack.c.l.b16 %v847
    %v3926 = vunpack.c.h.b16 %v847
    %v3927 = vunpack.c.l.b16 %v848
    %v3928 = vunpack.c.h.b16 %v848
    %v3929 = vunpack.c.l.b16 %v849
    %v3930 = vunpack.c.h.b16 %v849
    %v3931 = vunpack.c.l.b16 %v850
    %v3932 = vunpack.c.h.b16 %v850
    %v3933 = vunpack.c.l.b16 %v851
    %v3934 = vunpack.c.h.b16 %v851
    %v3935 = vunpack.c.l.b16 %v852
    %v3936 = vunpack.c.h.b16 %v852
    %v3937 = vunpack.c.l.b16 %v853
    %v3938 = vunpack.c.h.b16 %v853
    %v3939 = vunpack.c.l.b16 %v854
    %v3940 = vunpack.c.h.b16 %v854
    %v3941 = vunpack.c.l.b16 %v855
    %v3942 = vunpack.c.h.b16 %v855
    %v3943 = vunpack.c.l.b16 %v856
    %v3944 = vunpack.c.h.b16 %v856
    %v3945 = vunpack.c.l.b16 %v857
    %v3946 = vunpack.c.h.b16 %v857
    %v3947 = vunpack.c.l.b16 %v858
    %v3948 = vunpack.c.h.b16 %v858
    %v3949 = vunpack.c.l.b16 %v859
    %v3950 = vunpack.c.h.b16 %v859
    %v3951 = vunpack.c.l.b16 %v860
    %v3952 = vunpack.c.h.b16 %v860
    %v3953 = vunpack.c.l.b16 %v861
    %v3954 = vunpack.c.h.b16 %v861
    %v3955 = vunpack.c.l.b16 %v862
    %v3956 = vunpack.c.h.b16 %v862
    %v3957 = vunpack.c.l.b16 %v863
    %v3958 = vunpack.c.h.b16 %v863
    %v3959 = vunpack.c.l.b16 %v864
    %v3960 = vunpack.c.h.b16 %v864
    %v3961 = vunpack.c.l.b16 %v865
    %v3962 = vunpack.c.h.b16 %v865
    %v3963 = vunpack.c.l.b16 %v866
    %v3964 = vunpack.c.h.b16 %v866
    %v3965 = vunpack.c.l.b16 %v867
    %v3966 = vunpack.c.h.b16 %v867
    %v3967 = vunpack.c.l.b16 %v868
    %v3968 = vunpack.c.h.b16 %v868
    %v3969 = vunpack.c.l.b16 %v869
    %v3970 = vunpack.c.h.b16 %v869
    %v3971 = vunpack.c.l.b16 %v870
    %v3972 = vunpack.c.h.b16 %v870
    %v3973 = vunpack.c.l.b16 %v871
    %v3974 = vunpack.c.h.b16 %v871
    %v3975 = vunpack.c.l.b16 %v872
    %v3976 = vunpack.c.h.b16 %v872
    %v3977 = vunpack.c.l.b16 %v873
    %v3978 = vunpack.c.h.b16 %v873
    %v3979 = vunpack.c.l.b16 %v874
    %v3980 = vunpack.c.h.b16 %v874
    %v3981 = vunpack.c.l.b16 %v875
    %v3982 = vunpack.c.h.b16 %v875
    %v3983 = vunpack.c.l.b16 %v876
    %v3984 = vunpack.c.h.b16 %v876
    %v3985 = vunpack.c.l.b16 %v877
    %v3986 = vunpack.c.h.b16 %v877
    %v3987 = vunpack.c.l.b16 %v878
    %v3988 = vunpack.c.h.b16 %v878
    %v3989 = vunpack.c.l.b16 %v879
    %v3990 = vunpack.c.h.b16 %v879
    %v3991 = vunpack.c.l.b16 %v880
    %v3992 = vunpack.c.h.b16 %v880
    %v3993 = vunpack.c.l.b16 %v881
    %v3994 = vunpack.c.h.b16 %v881
    %v3995 = vunpack.c.l.b16 %v882
    %v3996 = vunpack.c.h.b16 %v882
    %v3997 = vunpack.c.l.b16 %v883
    %v3998 = vunpack.c.h.b16 %v883
    %v3999 = vunpack.c.l.b16 %v884
    %v4000 = vunpack.c.h.b16 %v884
    %v4001 = vunpack.c.l.b16 %v885
    %v4002 = vunpack.c.h.b16 %v885
    %v4003 = vunpack.c.l.b16 %v886
    %v4004 = vunpack.c.h.b16 %v886
    %v4005 = vunpack.c.l.b16 %v887
    %v4006 = vunpack.c.h.b16 %v887
    %v4007 = vunpack.c.l.b16 %v888
    %v4008 = vunpack.c.h.b16 %v888
    %v4009 = vunpack.c.l.b16 %v889
    %v4010 = vunpack.c.h.b16 %v889
    %v4011 = vunpack.c.l.b16 %v890
    %v4012 = vunpack.c.h.b16 %v890
    %v4013 = vunpack.c.l.b16 %v891
    %v4014 = vunpack.c.h.b16 %v891
    %v4015 = vunpack.c.l.b16 %v892
    %v4016 = vunpack.c.h.b16 %v892
    %v4017 = vunpack.c.l.b16 %v893
    %v4018 = vunpack.c.h.b16 %v893
    %v4019 = vunpack.c.l.b16 %v894
    %v4020 = vunpack.c.h.b16 %v894
    %v4021 = vunpack.c.l.b16 %v895
    %v4022 = vunpack.c.h.b16 %v895
    %v4023 = vunpack.c.l.b16 %v896
    %v4024 = vunpack.c.h.b16 %v896
    %v4025 = vunpack.c.l.b16 %v897
    %v4026 = vunpack.c.h.b16 %v897
    %v4027 = vunpack.c.l.b16 %v898
    %v4028 = vunpack.c.h.b16 %v898
    %v4029 = vunpack.c.l.b16 %v899
    %v4030 = vunpack.c.h.b16 %v899
    %v4031 = vunpack.c.l.b16 %v900
    %v4032 = vunpack.c.h.b16 %v900
    %v4033 = vunpack.c.l.b16 %v901
    %v4034 = vunpack.c.h.b16 %v901
    %v4035 = vunpack.c.l.b16 %v902
    %v4036 = vunpack.c.h.b16 %v902
    %v4037 = vunpack.c.l.b16 %v903
    %v4038 = vunpack.c.h.b16 %v903
    %v4039 = vunpack.c.l.b16 %v904
    %v4040 = vunpack.c.h.b16 %v904
    %v4041 = vunpack.c.l.b16 %v905
    %v4042 = vunpack.c.h.b16 %v905
    %v4043 = vunpack.c.l.b16 %v906
    %v4044 = vunpack.c.h.b16 %v906
    %v4045 = vunpack.c.l.b16 %v907
    %v4046 = vunpack.c.h.b16 %v907
    %v4047 = vunpack.c.l.b16 %v908
    %v4048 = vunpack.c.h.b16 %v908
    %v4049 = vunpack.c.l.b16 %v909
    %v4050 = vunpack.c.h.b16 %v909
    %v4051 = vunpack.c.l.b16 %v910
    %v4052 = vunpack.c.h.b16 %v910
    %v4053 = vunpack.c.l.b16 %v911
    %v4054 = vunpack.c.h.b16 %v911
    %v4055 = vunpack.c.l.b16 %v912
    %v4056 = vunpack.c.h.b16 %v912
    %v4057 = vunpack.c.l.b16 %v913
    %v4058 = vunpack.c.h.b16 %v913
    %v4059 = vunpack.c.l.b16 %v914
    %v4060 = vunpack.c.h.b16 %v914
    %v4061 = vunpack.c.l.b16 %v915
    %v4062 = vunpack.c.h.b16 %v915
    %v4063 = vunpack.c.l.b16 %v916
    %v4064 = vunpack.c.h.b16 %v916
    %v4065 = vunpack.c.l.b16 %v917
    %v4066 = vunpack.c.h.b16 %v917
    %v4067 = vunpack.c.l.b16 %v918
    %v4068 = vunpack.c.h.b16 %v918
    %v4069 = vunpack.c.l.b16 %v919
    %v4070 = vunpack.c.h.b16 %v919
    %v4071 = vunpack.c.l.b16 %v920
    %v4072 = vunpack.c.h.b16 %v920
    %v4073 = vunpack.c.l.b16 %v921
    %v4074 = vunpack.c.h.b16 %v921
    %v4075 = vunpack.c.l.b16 %v922
    %v4076 = vunpack.c.h.b16 %v922
    %v4077 = vunpack.c.l.b16 %v923
    %v4078 = vunpack.c.h.b16 %v923
    %v4079 = vunpack.c.l.b16 %v924
    %v4080 = vunpack.c.h.b16 %v924
    %v4081 = vunpack.c.l.b16 %v925
    %v4082 = vunpack.c.h.b16 %v925
    %v4083 = vunpack.c.l.b16 %v926
    %v4084 = vunpack.c.h.b16 %v926
    %v4085 = vunpack.c.l.b16 %v927
    %v4086 = vunpack.c.h.b16 %v927
    %v4087 = vunpack.c.l.b16 %v928
    %v4088 = vunpack.c.h.b16 %v928
    %v4089 = vunpack.c.l.b16 %v929
    %v4090 = vunpack.c.h.b16 %v929
    %v4091 = vunpack.c.l.b16 %v930
    %v4092 = vunpack.c.h.b16 %v930
    %v4093 = vunpack.c.l.b16 %v931
    %v4094 = vunpack.c.h.b16 %v931
    %v4095 = vunpack.c.l.b16 %v932
    %v4096 = vunpack.c.h.b16 %v932
    %v4097 = vunpack.c.l.b16 %v933
    %v4098 = vunpack.c.h.b16 %v933
    %v4099 = vunpack.c.l.b16 %v934
    %v4100 = vunpack.c.h.b16 %v934
    %v4101 = vunpack.c.l.b16 %v935
    %v4102 = vunpack.c.h.b16 %v935
    %v4103 = vunpack.c.l.b16 %v936
    %v4104 = vunpack.c.h.b16 %v936
    %v4105 = vunpack.c.l.b16 %v937
    %v4106 = vunpack.c.h.b16 %v937
    %v4107 = vunpack.c.l.b16 %v938
    %v4108 = vunpack.c.h.b16 %v938
    %v4109 = vunpack.c.l.b16 %v939
    %v4110 = vunpack.c.h.b16 %v939
    %v4111 = vunpack.c.l.b16 %v940
    %v4112 = vunpack.c.h.b16 %v940
    %v4113 = vunpack.c.l.b16 %v941
    %v4114 = vunpack.c.h.b16 %v941
    %v4115 = vunpack.c.l.b16 %v942
    %v4116 = vunpack.c.h.b16 %v942
    %v4117 = vunpack.c.l.b16 %v943
    %v4118 = vunpack.c.h.b16 %v943
    %v4119 = vunpack.c.l.b16 %v944
    %v4120 = vunpack.c.h.b16 %v944
    %v4121 = vunpack.c.l.b16 %v945
    %v4122 = vunpack.c.h.b16 %v945
    %v4123 = vunpack.c.l.b16 %v946
    %v4124 = vunpack.c.h.b16 %v946
    %v4125 = vunpack.c.l.b16 %v947
    %v4126 = vunpack.c.h.b16 %v947
    %v4127 = vunpack.c.l.b16 %v948
    %v4128 = vunpack.c.h.b16 %v948
    %v4129 = vunpack.c.l.b16 %v949
    %v4130 = vunpack.c.h.b16 %v949
    %v4131 = vunpack.c.l.b16 %v950
    %v4132 = vunpack.c.h.b16 %v950
    %v4133 = vunpack.c.l.b16 %v951
    %v4134 = vunpack.c.h.b16 %v951
    %v4135 = vunpack.c.l.b16 %v952
    %v4136 = vunpack.c.h.b16 %v952
    %v4137 = vunpack.c.l.b16 %v953
    %v4138 = vunpack.c.h.b16 %v953
    %v4139 = vunpack.c.l.b16 %v954
    %v4140 = vunpack.c.h.b16 %v954
    %v4141 = vunpack.c.l.b16 %v955
    %v4142 = vunpack.c.h.b16 %v955
    %v4143 = vunpack.c.l.b16 %v956
    %v4144 = vunpack.c.h.b16 %v956
    %v4145 = vunpack.c.l.b16 %v957
    %v4146 = vunpack.c.h.b16 %v957
    %v4147 = vunpack.c.l.b16 %v958
    %v4148 = vunpack.c.h.b16 %v958
    %v4149 = vunpack.c.l.b16 %v959
    %v4150 = vunpack.c.h.b16 %v959
    %v4151 = vunpack.c.l.b16 %v960
    %v4152 = vunpack.c.h.b16 %v960
    %v4153 = vunpack.c.l.b16 %v961
    %v4154 = vunpack.c.h.b16 %v961
    %v4155 = vunpack.c.l.b16 %v962
    %v4156 = vunpack.c.h.b16 %v962
    %v4157 = vunpack.c.l.b16 %v963
    %v4158 = vunpack.c.h.b16 %v963
    %v4159 = vunpack.c.l.b16 %v964
    %v4160 = vunpack.c.h.b16 %v964
    %v4161 = vunpack.c.l.b16 %v965
    %v4162 = vunpack.c.h.b16 %v965
    %v4163 = vunpack.c.l.b16 %v966
    %v4164 = vunpack.c.h.b16 %v966
    %v4165 = vunpack.c.l.b16 %v967
    %v4166 = vunpack.c.h.b16 %v967
    %v4167 = vunpack.c.l.b16 %v968
    %v4168 = vunpack.c.h.b16 %v968
    %v4169 = vunpack.c.l.b16 %v969
    %v4170 = vunpack.c.h.b16 %v969
    %v4171 = vunpack.c.l.b16 %v970
    %v4172 = vunpack.c.h.b16 %v970
    %v4173 = vunpack.c.l.b16 %v971
    %v4174 = vunpack.c.h.b16 %v971
    %v4175 = vunpack.c.l.b16 %v972
    %v4176 = vunpack.c.h.b16 %v972
    %v4177 = vunpack.c.l.b16 %v973
    %v4178 = vunpack.c.h.b16 %v973
    %v4179 = vunpack.c.l.b16 %v974
    %v4180 = vunpack.c.h.b16 %v974
    %v4181 = vunpack.c.l.b16 %v975
    %v4182 = vunpack.c.h.b16 %v975
    %v4183 = vunpack.c.l.b16 %v976
    %v4184 = vunpack.c.h.b16 %v976
    %v4185 = vunpack.c.l.b16 %v977
    %v4186 = vunpack.c.h.b16 %v977
    %v4187 = vunpack.c.l.b16 %v978
    %v4188 = vunpack.c.h.b16 %v978
    %v4189 = vunpack.c.l.b16 %v979
    %v4190 = vunpack.c.h.b16 %v979
    %v4191 = vunpack.c.l.b16 %v980
    %v4192 = vunpack.c.h.b16 %v980
    %v4193 = vunpack.c.l.b16 %v981
    %v4194 = vunpack.c.h.b16 %v981
    %v4195 = vunpack.c.l.b16 %v982
    %v4196 = vunpack.c.h.b16 %v982
    %v4197 = vunpack.c.l.b16 %v983
    %v4198 = vunpack.c.h.b16 %v983
    %v4199 = vunpack.c.l.b16 %v984
    %v4200 = vunpack.c.h.b16 %v984
    %v4201 = vunpack.c.l.b16 %v985
    %v4202 = vunpack.c.h.b16 %v985
    %v4203 = vunpack.c.l.b16 %v986
    %v4204 = vunpack.c.h.b16 %v986
    %v4205 = vunpack.c.l.b16 %v987
    %v4206 = vunpack.c.h.b16 %v987
    %v4207 = vunpack.c.l.b16 %v988
    %v4208 = vunpack.c.h.b16 %v988
    %v4209 = vunpack.c.l.b16 %v989
    %v4210 = vunpack.c.h.b16 %v989
    %v4211 = vunpack.c.l.b16 %v990
    %v4212 = vunpack.c.h.b16 %v990
    %v4213 = vunpack.c.l.b16 %v991
    %v4214 = vunpack.c.h.b16 %v991
    %v4215 = vunpack.c.l.b16 %v992
    %v4216 = vunpack.c.h.b16 %v992
    %v4217 = vunpack.c.l.b16 %v993
    %v4218 = vunpack.c.h.b16 %v993
    %v4219 = vunpack.c.l.b16 %v994
    %v4220 = vunpack.c.h.b16 %v994
    %v4221 = vunpack.c.l.b16 %v995
    %v4222 = vunpack.c.h.b16 %v995
    %v4223 = vunpack.c.l.b16 %v996
    %v4224 = vunpack.c.h.b16 %v996
    %v4225 = vunpack.c.l.b16 %v997
    %v4226 = vunpack.c.h.b16 %v997
    %v4227 = vunpack.c.l.b16 %v998
    %v4228 = vunpack.c.h.b16 %v998
    %v4229 = vunpack.c.l.b16 %v999
    %v4230 = vunpack.c.h.b16 %v999
    %v4231 = vunpack.c.l.b16 %v1000
    %v4232 = vunpack.c.h.b16 %v1000
    %v4233 = vunpack.c.l.b16 %v1001
    %v4234 = vunpack.c.h.b16 %v1001
    %v4235 = vunpack.c.l.b16 %v1002
    %v4236 = vunpack.c.h.b16 %v1002
    %v4237 = vunpack.c.l.b16 %v1003
    %v4238 = vunpack.c.h.b16 %v1003
    %v4239 = vunpack.c.l.b16 %v1004
    %v4240 = vunpack.c.h.b16 %v1004
    %v4241 = vunpack.c.l.b16 %v1005
    %v4242 = vunpack.c.h.b16 %v1005
    %v4243 = vunpack.c.l.b16 %v1006
    %v4244 = vunpack.c.h.b16 %v1006
    %v4245 = vunpack.c.l.b16 %v1007
    %v4246 = vunpack.c.h.b16 %v1007
    %v4247 = vunpack.c.l.b16 %v1008
    %v4248 = vunpack.c.h.b16 %v1008
    %v4249 = vunpack.c.l.b16 %v1009
    %v4250 = vunpack.c.h.b16 %v1009
    %v4251 = vunpack.c.l.b16 %v1010
    %v4252 = vunpack.c.h.b16 %v1010
    %v4253 = vunpack.c.l.b16 %v1011
    %v4254 = vunpack.c.h.b16 %v1011
    %v4255 = vunpack.c.l.b16 %v1012
    %v4256 = vunpack.c.h.b16 %v1012
    %v4257 = vunpack.c.l.b16 %v1013
    %v4258 = vunpack.c.h.b16 %v1013
    %v4259 = vunpack.c.l.b16 %v1014
    %v4260 = vunpack.c.h.b16 %v1014
    %v4261 = vunpack.c.l.b16 %v1015
    %v4262 = vunpack.c.h.b16 %v1015
    %v4263 = vunpack.c.l.b16 %v1016
    %v4264 = vunpack.c.h.b16 %v1016
    %v4265 = vunpack.c.l.b16 %v1017
    %v4266 = vunpack.c.h.b16 %v1017
    %v4267 = vunpack.c.l.b16 %v1018
    %v4268 = vunpack.c.h.b16 %v1018
    %v4269 = vunpack.c.l.b16 %v1019
    %v4270 = vunpack.c.h.b16 %v1019
    %v4271 = vunpack.c.l.b16 %v1020
    %v4272 = vunpack.c.h.b16 %v1020
    %v4273 = vunpack.c.l.b16 %v1021
    %v4274 = vunpack.c.h.b16 %v1021
    %v4275 = vunpack.c.l.b16 %v1022
    %v4276 = vunpack.c.h.b16 %v1022
    %v4277 = vunpack.c.l.b16 %v1023
    %v4278 = vunpack.c.h.b16 %v1023
    %v4279 = vunpack.c.l.b16 %v1024
    %v4280 = vunpack.c.h.b16 %v1024
    %v4281 = vunpack.c.l.b16 %v1025
    %v4282 = vunpack.c.h.b16 %v1025
    %v4283 = vunpack.c.l.b16 %v1026
    %v4284 = vunpack.c.h.b16 %v1026
    %v4285 = vunpack.c.l.b16 %v1027
    %v4286 = vunpack.c.h.b16 %v1027
    %v4287 = vunpack.c.l.b16 %v1028
    %v4288 = vunpack.c.h.b16 %v1028
    %v4289 = vunpack.c.l.b16 %v1029
    %v4290 = vunpack.c.h.b16 %v1029
    %v4291 = vunpack.c.l.b16 %v1030
    %v4292 = vunpack.c.h.b16 %v1030
    %v4293 = vunpack.c.l.b16 %v1031
    %v4294 = vunpack.c.h.b16 %v1031
    %v4295 = vunpack.c.l.b16 %v1032
    %v4296 = vunpack.c.h.b16 %v1032
    %v4297 = vunpack.c.l.b16 %v1033
    %v4298 = vunpack.c.h.b16 %v1033
    %v4299 = vunpack.c.l.b16 %v1034
    %v4300 = vunpack.c.h.b16 %v1034
    %v4301 = vunpack.c.l.b16 %v1035
    %v4302 = vunpack.c.h.b16 %v1035
    %v4303 = vunpack.c.l.b16 %v1036
    %v4304 = vunpack.c.h.b16 %v1036
    %v4305 = vunpack.c.l.b16 %v1037
    %v4306 = vunpack.c.h.b16 %v1037
    %v4307 = vunpack.c.l.b16 %v1038
    %v4308 = vunpack.c.h.b16 %v1038
    %v4309 = vunpack.c.l.b16 %v1039
    %v4310 = vunpack.c.h.b16 %v1039
    %v4311 = vunpack.c.l.b16 %v1040
    %v4312 = vunpack.c.h.b16 %v1040
    %v4313 = vunpack.c.l.b16 %v1041
    %v4314 = vunpack.c.h.b16 %v1041
    %v4315 = vunpack.c.l.b16 %v1042
    %v4316 = vunpack.c.h.b16 %v1042
    %v4317 = vunpack.c.l.b16 %v1043
    %v4318 = vunpack.c.h.b16 %v1043
    %v4319 = vunpack.c.l.b16 %v1044
    %v4320 = vunpack.c.h.b16 %v1044
    %v4321 = vunpack.c.l.b16 %v1045
    %v4322 = vunpack.c.h.b16 %v1045
    %v4323 = vunpack.c.l.b16 %v1046
    %v4324 = vunpack.c.h.b16 %v1046
    %v4325 = vunpack.c.l.b16 %v1047
    %v4326 = vunpack.c.h.b16 %v1047
    %v4327 = vunpack.c.l.b16 %v1048
    %v4328 = vunpack.c.h.b16 %v1048
    %v4329 = vunpack.c.l.b16 %v1049
    %v4330 = vunpack.c.h.b16 %v1049
    %v4331 = vunpack.c.l.b16 %v1050
    %v4332 = vunpack.c.h.b16 %v1050
    %v4333 = vunpack.c.l.b16 %v1051
    %v4334 = vunpack.c.h.b16 %v1051
    %v4335 = vunpack.c.l.b16 %v1052
    %v4336 = vunpack.c.h.b16 %v1052
    %v4337 = vunpack.c.l.b16 %v1053
    %v4338 = vunpack.c.h.b16 %v1053
    %v4339 = vunpack.c.l.b16 %v1054
    %v4340 = vunpack.c.h.b16 %v1054
    %v4341 = vunpack.c.l.b16 %v1055
    %v4342 = vunpack.c.h.b16 %v1055
    %v4343 = vunpack.c.l.b16 %v1056
    %v4344 = vunpack.c.h.b16 %v1056
    %v4345 = vunpack.c.l.b16 %v1057
    %v4346 = vunpack.c.h.b16 %v1057
    %v4347 = vunpack.c.l.b16 %v1058
    %v4348 = vunpack.c.h.b16 %v1058
    %v4349 = vunpack.c.l.b16 %v1059
    %v4350 = vunpack.c.h.b16 %v1059
    %v4351 = vunpack.c.l.b16 %v1060
    %v4352 = vunpack.c.h.b16 %v1060
    %v4353 = vunpack.c.l.b16 %v1061
    %v4354 = vunpack.c.h.b16 %v1061
    %v4355 = vunpack.c.l.b16 %v1062
    %v4356 = vunpack.c.h.b16 %v1062
    %v4357 = vunpack.c.l.b16 %v1063
    %v4358 = vunpack.c.h.b16 %v1063
    %v4359 = vunpack.c.l.b16 %v1064
    %v4360 = vunpack.c.h.b16 %v1064
    %v4361 = vunpack.c.l.b16 %v1065
    %v4362 = vunpack.c.h.b16 %v1065
    %v4363 = vunpack.c.l.b16 %v1066
    %v4364 = vunpack.c.h.b16 %v1066
    %v4365 = vunpack.c.l.b16 %v1067
    %v4366 = vunpack.c.h.b16 %v1067
    %v4367 = vunpack.c.l.b16 %v1068
    %v4368 = vunpack.c.h.b16 %v1068
    %v4369 = vunpack.c.l.b16 %v1069
    %v4370 = vunpack.c.h.b16 %v1069
    %v4371 = vunpack.c.l.b16 %v1070
    %v4372 = vunpack.c.h.b16 %v1070
    %v4373 = vunpack.c.l.b16 %v1071
    %v4374 = vunpack.c.h.b16 %v1071
    %v4375 = vunpack.c.l.b16 %v1072
    %v4376 = vunpack.c.h.b16 %v1072
    %v4377 = vunpack.c.l.b16 %v1073
    %v4378 = vunpack.c.h.b16 %v1073
    %v4379 = vunpack.c.l.b16 %v1074
    %v4380 = vunpack.c.h.b16 %v1074
    %v4381 = vunpack.c.l.b16 %v1075
    %v4382 = vunpack.c.h.b16 %v1075
    %v4383 = vunpack.c.l.b16 %v1076
    %v4384 = vunpack.c.h.b16 %v1076
    %v4385 = vunpack.c.l.b16 %v1077
    %v4386 = vunpack.c.h.b16 %v1077
    %v4387 = vunpack.c.l.b16 %v1078
    %v4388 = vunpack.c.h.b16 %v1078
    %v4389 = vunpack.c.l.b16 %v1079
    %v4390 = vunpack.c.h.b16 %v1079
    %v4391 = vunpack.c.l.b16 %v1080
    %v4392 = vunpack.c.h.b16 %v1080
    %v4393 = vunpack.c.l.b16 %v1081
    %v4394 = vunpack.c.h.b16 %v1081
    %v4395 = vunpack.c.l.b16 %v1082
    %v4396 = vunpack.c.h.b16 %v1082
    %v4397 = vunpack.c.l.b16 %v1083
    %v4398 = vunpack.c.h.b16 %v1083
    %v4399 = vunpack.c.l.b16 %v1084
    %v4400 = vunpack.c.h.b16 %v1084
    %v4401 = vunpack.c.l.b16 %v1085
    %v4402 = vunpack.c.h.b16 %v1085
    %v4403 = vunpack.c.l.b16 %v1086
    %v4404 = vunpack.c.h.b16 %v1086
    %v4405 = vunpack.c.l.b16 %v1087
    %v4406 = vunpack.c.h.b16 %v1087
    %v4407 = vunpack.c.l.b16 %v1088
    %v4408 = vunpack.c.h.b16 %v1088
    %v4409 = vunpack.c.l.b16 %v1089
    %v4410 = vunpack.c.h.b16 %v1089
    %v4411 = vunpack.c.l.b16 %v1090
    %v4412 = vunpack.c.h.b16 %v1090
    %v4413 = vunpack.c.l.b16 %v1091
    %v4414 = vunpack.c.h.b16 %v1091
    %v4415 = vunpack.c.l.b16 %v1092
    %v4416 = vunpack.c.h.b16 %v1092
    %v4417 = vunpack.c.l.b16 %v1093
    %v4418 = vunpack.c.h.b16 %v1093
    %v4419 = vunpack.c.l.b16 %v1094
    %v4420 = vunpack.c.h.b16 %v1094
    %v4421 = vunpack.c.l.b16 %v1095
    %v4422 = vunpack.c.h.b16 %v1095
    %v4423 = vunpack.c.l.b16 %v1096
    %v4424 = vunpack.c.h.b16 %v1096
    %v4425 = vunpack.c.l.b16 %v1097
    %v4426 = vunpack.c.h.b16 %v1097
    %v4427 = vunpack.c.l.b16 %v1098
    %v4428 = vunpack.c.h.b16 %v1098
    %v4429 = vunpack.c.l.b16 %v1099
    %v4430 = vunpack.c.h.b16 %v1099
    %v4431 = vunpack.c.l.b16 %v1100
    %v4432 = vunpack.c.h.b16 %v1100
    %v4433 = vunpack.c.l.b16 %v1101
    %v4434 = vunpack.c.h.b16 %v1101
    %v4435 = vunpack.c.l.b16 %v1102
    %v4436 = vunpack.c.h.b16 %v1102
    %v4437 = vunpack.c.l.b16 %v1103
    %v4438 = vunpack.c.h.b16 %v1103
    %v4439 = vunpack.c.l.b16 %v1104
    %v4440 = vunpack.c.h.b16 %v1104
    %v4441 = vunpack.c.l.b16 %v1105
    %v4442 = vunpack.c.h.b16 %v1105
    %v4443 = vunpack.c.l.b16 %v1106
    %v4444 = vunpack.c.h.b16 %v1106
    %v4445 = vunpack.c.l.b16 %v1107
    %v4446 = vunpack.c.h.b16 %v1107
    %v4447 = vunpack.c.l.b16 %v1108
    %v4448 = vunpack.c.h.b16 %v1108
    %v4449 = vunpack.c.l.b16 %v1109
    %v4450 = vunpack.c.h.b16 %v1109
    %v4451 = vunpack.c.l.b16 %v1110
    %v4452 = vunpack.c.h.b16 %v1110
    %v4453 = vunpack.c.l.b16 %v1111
    %v4454 = vunpack.c.h.b16 %v1111
    %v4455 = vunpack.c.l.b16 %v1112
    %v4456 = vunpack.c.h.b16 %v1112
    %v4457 = vunpack.c.l.b16 %v1113
    %v4458 = vunpack.c.h.b16 %v1113
    %v4459 = vunpack.c.l.b16 %v1114
    %v4460 = vunpack.c.h.b16 %v1114
    %v4461 = vunpack.c.l.b16 %v1115
    %v4462 = vunpack.c.h.b16 %v1115
    %v4463 = vunpack.c.l.b16 %v1116
    %v4464 = vunpack.c.h.b16 %v1116
    %v4465 = vunpack.c.l.b16 %v1117
    %v4466 = vunpack.c.h.b16 %v1117
    %v4467 = vunpack.c.l.b16 %v1118
    %v4468 = vunpack.c.h.b16 %v1118
    %v4469 = vunpack.c.l.b16 %v1119
    %v4470 = vunpack.c.h.b16 %v1119
    %v4471 = vunpack.c.l.b16 %v1120
    %v4472 = vunpack.c.h.b16 %v1120
    %v4473 = vunpack.c.l.b16 %v1121
    %v4474 = vunpack.c.h.b16 %v1121
    %v4475 = vunpack.c.l.b16 %v1122
    %v4476 = vunpack.c.h.b16 %v1122
    %v4477 = vunpack.c.l.b16 %v1123
    %v4478 = vunpack.c.h.b16 %v1123
    %v4479 = vunpack.c.l.b16 %v1124
    %v4480 = vunpack.c.h.b16 %v1124
    %v4481 = vunpack.c.l.b16 %v1125
    %v4482 = vunpack.c.h.b16 %v1125
    %v4483 = vunpack.c.l.b16 %v1126
    %v4484 = vunpack.c.h.b16 %v1126
    %v4485 = vunpack.c.l.b16 %v1127
    %v4486 = vunpack.c.h.b16 %v1127
    %v4487 = vunpack.c.l.b16 %v1128
    %v4488 = vunpack.c.h.b16 %v1128
    %v4489 = vunpack.c.l.b16 %v1129
    %v4490 = vunpack.c.h.b16 %v1129
    %v4491 = vunpack.c.l.b16 %v1130
    %v4492 = vunpack.c.h.b16 %v1130
    %v4493 = vunpack.c.l.b16 %v1131
    %v4494 = vunpack.c.h.b16 %v1131
    %v4495 = vunpack.c.l.b16 %v1132
    %v4496 = vunpack.c.h.b16 %v1132
    %v4497 = vunpack.c.l.b16 %v1133
    %v4498 = vunpack.c.h.b16 %v1133
    %v4499 = vunpack.c.l.b16 %v1134
    %v4500 = vunpack.c.h.b16 %v1134
    %v4501 = vunpack.c.l.b16 %v1135
    %v4502 = vunpack.c.h.b16 %v1135
    %v4503 = vunpack.c.l.b16 %v1136
    %v4504 = vunpack.c.h.b16 %v1136
    %v4505 = vunpack.c.l.b16 %v1137
    %v4506 = vunpack.c.h.b16 %v1137
    %v4507 = vunpack.c.l.b16 %v1138
    %v4508 = vunpack.c.h.b16 %v1138
    %v4509 = vunpack.c.l.b16 %v1139
    %v4510 = vunpack.c.h.b16 %v1139
    %v4511 = vunpack.c.l.b16 %v1140
    %v4512 = vunpack.c.h.b16 %v1140
    %v4513 = vunpack.c.l.b16 %v1141
    %v4514 = vunpack.c.h.b16 %v1141
    %v4515 = vunpack.c.l.b16 %v1142
    %v4516 = vunpack.c.h.b16 %v1142
    %v4517 = vunpack.c.l.b16 %v1143
    %v4518 = vunpack.c.h.b16 %v1143
    %v4519 = vunpack.c.l.b16 %v1144
    %v4520 = vunpack.c.h.b16 %v1144
    %v4521 = vunpack.c.l.b16 %v1145
    %v4522 = vunpack.c.h.b16 %v1145
    %v4523 = vunpack.c.l.b16 %v1146
    %v4524 = vunpack.c.h.b16 %v1146
    %v4525 = vunpack.c.l.b16 %v1147
    %v4526 = vunpack.c.h.b16 %v1147
    %v4527 = vunpack.c.l.b16 %v1148
    %v4528 = vunpack.c.h.b16 %v1148
    %v4529 = vunpack.c.l.b16 %v1149
    %v4530 = vunpack.c.h.b16 %v1149
    %v4531 = vunpack.c.l.b16 %v1150
    %v4532 = vunpack.c.h.b16 %v1150
    %v4533 = vunpack.c.l.b16 %v1151
    %v4534 = vunpack.c.h.b16 %v1151
    %v4535 = vunpack.c.l.b16 %v1152
    %v4536 = vunpack.c.h.b16 %v1152
    %v4537 = vunpack.c.l.b16 %v1153
    %v4538 = vunpack.c.h.b16 %v1153
    %v4539 = vunpack.c.l.b16 %v1154
    %v4540 = vunpack.c.h.b16 %v1154
    %v4541 = vunpack.c.l.b16 %v1155
    %v4542 = vunpack.c.h.b16 %v1155
    %v4543 = vunpack.c.l.b16 %v1156
    %v4544 = vunpack.c.h.b16 %v1156
    %v4545 = vunpack.c.l.b16 %v1157
    %v4546 = vunpack.c.h.b16 %v1157
    %v4547 = vunpack.c.l.b16 %v1158
    %v4548 = vunpack.c.h.b16 %v1158
    %v4549 = vunpack.c.l.b16 %v1159
    %v4550 = vunpack.c.h.b16 %v1159
    %v4551 = vunpack.c.l.b16 %v1160
    %v4552 = vunpack.c.h.b16 %v1160
    %v4553 = vunpack.c.l.b16 %v1161
    %v4554 = vunpack.c.h.b16 %v1161
    %v4555 = vunpack.c.l.b16 %v1162
    %v4556 = vunpack.c.h.b16 %v1162
    %v4557 = vunpack.c.l.b16 %v1163
    %v4558 = vunpack.c.h.b16 %v1163
    %v4559 = vunpack.c.l.b16 %v1164
    %v4560 = vunpack.c.h.b16 %v1164
    %v4561 = vunpack.c.l.b16 %v1165
    %v4562 = vunpack.c.h.b16 %v1165
    %v4563 = vunpack.c.l.b16 %v1166
    %v4564 = vunpack.c.h.b16 %v1166
    %v4565 = vunpack.c.l.b16 %v1167
    %v4566 = vunpack.c.h.b16 %v1167
    %v4567 = vunpack.c.l.b16 %v1168
    %v4568 = vunpack.c.h.b16 %v1168
    %v4569 = vunpack.c.l.b16 %v1169
    %v4570 = vunpack.c.h.b16 %v1169
    %v4571 = vunpack.c.l.b16 %v1170
    %v4572 = vunpack.c.h.b16 %v1170
    %v4573 = vunpack.c.l.b16 %v1171
    %v4574 = vunpack.c.h.b16 %v1171
    %v4575 = vunpack.c.l.b16 %v1172
    %v4576 = vunpack.c.h.b16 %v1172
    %v4577 = vunpack.c.l.b16 %v1173
    %v4578 = vunpack.c.h.b16 %v1173
    %v4579 = vunpack.c.l.b16 %v1174
    %v4580 = vunpack.c.h.b16 %v1174
    %v4581 = vunpack.c.l.b16 %v1175
    %v4582 = vunpack.c.h.b16 %v1175
    %v4583 = vunpack.c.l.b16 %v1176
    %v4584 = vunpack.c.h.b16 %v1176
    %v4585 = vunpack.c.l.b16 %v1177
    %v4586 = vunpack.c.h.b16 %v1177
    %v4587 = vunpack.c.l.b16 %v1178
    %v4588 = vunpack.c.h.b16 %v1178
    %v4589 = vunpack.c.l.b16 %v1179
    %v4590 = vunpack.c.h.b16 %v1179
    %v4591 = vunpack.c.l.b16 %v1180
    %v4592 = vunpack.c.h.b16 %v1180
    %v4593 = vunpack.c.l.b16 %v1181
    %v4594 = vunpack.c.h.b16 %v1181
    %v4595 = vunpack.c.l.b16 %v1182
    %v4596 = vunpack.c.h.b16 %v1182
    %v4597 = vunpack.c.l.b16 %v1183
    %v4598 = vunpack.c.h.b16 %v1183
    %v4599 = vunpack.c.l.b16 %v1184
    %v4600 = vunpack.c.h.b16 %v1184
    %v4601 = vunpack.c.l.b16 %v1185
    %v4602 = vunpack.c.h.b16 %v1185
    %v4603 = vunpack.c.l.b16 %v1186
    %v4604 = vunpack.c.h.b16 %v1186
    %v4605 = vunpack.c.l.b16 %v1187
    %v4606 = vunpack.c.h.b16 %v1187
    %v4607 = vunpack.c.l.b16 %v1188
    %v4608 = vunpack.c.h.b16 %v1188
    %v4609 = vunpack.c.l.b16 %v1189
    %v4610 = vunpack.c.h.b16 %v1189
    %v4611 = vunpack.c.l.b16 %v1190
    %v4612 = vunpack.c.h.b16 %v1190
    %v4613 = vunpack.c.l.b16 %v1191
    %v4614 = vunpack.c.h.b16 %v1191
    %v4615 = vunpack.c.l.b16 %v1192
    %v4616 = vunpack.c.h.b16 %v1192
    %v4617 = vunpack.c.l.b16 %v1193
    %v4618 = vunpack.c.h.b16 %v1193
    %v4619 = vunpack.c.l.b16 %v1194
    %v4620 = vunpack.c.h.b16 %v1194
    %v4621 = vunpack.c.l.b16 %v1195
    %v4622 = vunpack.c.h.b16 %v1195
    %v4623 = vunpack.c.l.b16 %v1196
    %v4624 = vunpack.c.h.b16 %v1196
    %v4625 = vunpack.c.l.b16 %v1197
    %v4626 = vunpack.c.h.b16 %v1197
    %v4627 = vunpack.c.l.b16 %v1198
    %v4628 = vunpack.c.h.b16 %v1198
    %v4629 = vunpack.c.l.b16 %v1199
    %v4630 = vunpack.c.h.b16 %v1199
    %v4631 = vunpack.c.l.b16 %v1200
    %v4632 = vunpack.c.h.b16 %v1200
    %v4633 = vunpack.c.l.b16 %v1201
    %v4634 = vunpack.c.h.b16 %v1201
    %v4635 = vunpack.c.l.b16 %v1202
    %v4636 = vunpack.c.h.b16 %v1202
    %v4637 = vunpack.c.l.b16 %v1203
    %v4638 = vunpack.c.h.b16 %v1203
    %v4639 = vunpack.c.l.b16 %v1204
    %v4640 = vunpack.c.h.b16 %v1204
    %v4641 = vunpack.c.l.b16 %v1205
    %v4642 = vunpack.c.h.b16 %v1205
    %v4643 = vunpack.c.l.b16 %v1206
    %v4644 = vunpack.c.h.b16 %v1206
    %v4645 = vunpack.c.l.b16 %v1207
    %v4646 = vunpack.c.h.b16 %v1207
    %v4647 = vunpack.c.l.b16 %v1208
    %v4648 = vunpack.c.h.b16 %v1208
    %v4649 = vunpack.c.l.b16 %v1209
    %v4650 = vunpack.c.h.b16 %v1209
    %v4651 = vunpack.c.l.b16 %v1210
    %v4652 = vunpack.c.h.b16 %v1210
    %v4653 = vunpack.c.l.b16 %v1211
    %v4654 = vunpack.c.h.b16 %v1211
    %v4655 = vunpack.c.l.b16 %v1212
    %v4656 = vunpack.c.h.b16 %v1212
    %v4657 = vunpack.c.l.b16 %v1213
    %v4658 = vunpack.c.h.b16 %v1213
    %v4659 = vunpack.c.l.b16 %v1214
    %v4660 = vunpack.c.h.b16 %v1214
    %v4661 = vunpack.c.l.b16 %v1215
    %v4662 = vunpack.c.h.b16 %v1215
    %v4663 = vunpack.c.l.b16 %v1216
    %v4664 = vunpack.c.h.b16 %v1216
    %v4665 = vunpack.c.l.b16 %v1217
    %v4666 = vunpack.c.h.b16 %v1217
    %v4667 = vunpack.c.l.b16 %v1218
    %v4668 = vunpack.c.h.b16 %v1218
    %v4669 = vunpack.c.l.b16 %v1219
    %v4670 = vunpack.c.h.b16 %v1219
    %v4671 = vunpack.c.l.b16 %v1220
    %v4672 = vunpack.c.h.b16 %v1220
    %v4673 = vunpack.c.l.b16 %v1221
    %v4674 = vunpack.c.h.b16 %v1221
    %v4675 = vunpack.c.l.b16 %v1222
    %v4676 = vunpack.c.h.b16 %v1222
    %v4677 = vunpack.c.l.b16 %v1223
    %v4678 = vunpack.c.h.b16 %v1223
    %v4679 = vunpack.c.l.b16 %v1224
    %v4680 = vunpack.c.h.b16 %v1224
    %v4681 = vunpack.c.l.b16 %v1225
    %v4682 = vunpack.c.h.b16 %v1225
    %v4683 = vunpack.c.l.b16 %v1226
    %v4684 = vunpack.c.h.b16 %v1226
    %v4685 = vunpack.c.l.b16 %v1227
    %v4686 = vunpack.c.h.b16 %v1227
    %v4687 = vunpack.c.l.b16 %v1228
    %v4688 = vunpack.c.h.b16 %v1228
    %v4689 = vunpack.c.l.b16 %v1229
    %v4690 = vunpack.c.h.b16 %v1229
    %v4691 = vunpack.c.l.b16 %v1230
    %v4692 = vunpack.c.h.b16 %v1230
    %v4693 = vunpack.c.l.b16 %v1231
    %v4694 = vunpack.c.h.b16 %v1231
    %v4695 = vunpack.c.l.b16 %v1232
    %v4696 = vunpack.c.h.b16 %v1232
    %v4697 = vunpack.c.l.b16 %v1233
    %v4698 = vunpack.c.h.b16 %v1233
    %v4699 = vunpack.c.l.b16 %v1234
    %v4700 = vunpack.c.h.b16 %v1234
    %v4701 = vunpack.c.l.b16 %v1235
    %v4702 = vunpack.c.h.b16 %v1235
    %v4703 = vunpack.c.l.b16 %v1236
    %v4704 = vunpack.c.h.b16 %v1236
    %v4705 = vunpack.c.l.b16 %v1237
    %v4706 = vunpack.c.h.b16 %v1237
    %v4707 = vunpack.c.l.b16 %v1238
    %v4708 = vunpack.c.h.b16 %v1238
    %v4709 = vunpack.c.l.b16 %v1239
    %v4710 = vunpack.c.h.b16 %v1239
    %v4711 = vunpack.c.l.b16 %v1240
    %v4712 = vunpack.c.h.b16 %v1240
    %v4713 = vunpack.c.l.b16 %v1241
    %v4714 = vunpack.c.h.b16 %v1241
    %v4715 = vunpack.c.l.b16 %v1242
    %v4716 = vunpack.c.h.b16 %v1242
    %v4717 = vpack.c.b16 %v2421, %v2413
    %v4718 = vpack.c.b16 %v2422, %v2414
    %v4719 = vpack.c.b16 %v2423, %v2415
    %v4720 = vpack.c.b16 %v2424, %v2416
    %v4721 = vpack.c.b16 %v2425, %v2417
    %v4722 = vpack.c.b16 %v2426, %v2418
    %v4723 = vpack.c.b16 %v2427, %v2419
    %v4724 = vpack.c.b16 %v2428, %v2420
    %v4725 = vpack.c.b16 %v2437, %v2429
    %v4726 = vpack.c.b16 %v2438, %v2430
    %v4727 = vpack.c.b16 %v2439, %v2431
    %v4728 = vpack.c.b16 %v2440, %v2432
    %v4729 = vpack.c.b16 %v2441, %v2433
    %v4730 = vpack.c.b16 %v2442, %v2434
    %v4731 = vpack.c.b16 %v2443, %v2435
    %v4732 = vpack.c.b16 %v2444, %v2436
    %v4733 = vpack.c.b16 %v2453, %v2445
    %v4734 = vpack.c.b16 %v2454, %v2446
    %v4735 = vpack.c.b16 %v2455, %v2447
    %v4736 = vpack.c.b16 %v2456, %v2448
    %v4737 = vpack.c.b16 %v2457, %v2449
    %v4738 = vpack.c.b16 %v2458, %v2450
    %v4739 = vpack.c.b16 %v2459, %v2451
    %v4740 = vpack.c.b16 %v2460, %v2452
    %v4741 = vpack.c.b16 %v2469, %v2461
    %v4742 = vpack.c.b16 %v2470, %v2462
    %v4743 = vpack.c.b16 %v2471, %v2463
    %v4744 = vpack.c.b16 %v2472, %v2464
    %v4745 = vpack.c.b16 %v2473, %v2465
    %v4746 = vpack.c.b16 %v2474, %v2466
    %v4747 = vpack.c.b16 %v2475, %v2467
    %v4748 = vpack.c.b16 %v2476, %v2468
    %v4749 = vpack.c.b16 %v2485, %v2477
    %v4750 = vpack.c.b16 %v2486, %v2478
    %v4751 = vpack.c.b16 %v2487, %v2479
    %v4752 = vpack.c.b16 %v2488, %v2480
    %v4753 = vpack.c.b16 %v2489, %v2481
    %v4754 = vpack.c.b16 %v2490, %v2482
    %v4755 = vpack.c.b16 %v2491, %v2483
    %v4756 = vpack.c.b16 %v2492, %v2484
    %v4757 = vpack.c.b16 %v2501, %v2493
    %v4758 = vpack.c.b16 %v2502, %v2494
    %v4759 = vpack.c.b16 %v2503, %v2495
    %v4760 = vpack.c.b16 %v2504, %v2496
    %v4761 = vpack.c.b16 %v2505, %v2497
    %v4762 = vpack.c.b16 %v2506, %v2498
    %v4763 = vpack.c.b16 %v2507, %v2499
    %v4764 = vpack.c.b16 %v2508, %v2500
    %v4765 = vpack.c.b16 %v2517, %v2509
    %v4766 = vpack.c.b16 %v2518, %v2510
    %v4767 = vpack.c.b16 %v2519, %v2511
    %v4768 = vpack.c.b16 %v2520, %v2512
    %v4769 = vpack.c.b16 %v2521, %v2513
    %v4770 = vpack.c.b16 %v2522, %v2514
    %v4771 = vpack.c.b16 %v2523, %v2515
    %v4772 = vpack.c.b16 %v2524, %v2516
    %v4773 = vpack.c.b16 %v2533, %v2525
    %v4774 = vpack.c.b16 %v2534, %v2526
    %v4775 = vpack.c.b16 %v2535, %v2527
    %v4776 = vpack.c.b16 %v2536, %v2528
    %v4777 = vpack.c.b16 %v2537, %v2529
    %v4778 = vpack.c.b16 %v2538, %v2530
    %v4779 = vpack.c.b16 %v2539, %v2531
    %v4780 = vpack.c.b16 %v2540, %v2532
    %v4781 = vpack.c.b16 %v2549, %v2541
    %v4782 = vpack.c.b16 %v2550, %v2542
    %v4783 = vpack.c.b16 %v2551, %v2543
    %v4784 = vpack.c.b16 %v2552, %v2544
    %v4785 = vpack.c.b16 %v2553, %v2545
    %v4786 = vpack.c.b16 %v2554, %v2546
    %v4787 = vpack.c.b16 %v2555, %v2547
    %v4788 = vpack.c.b16 %v2556, %v2548
    %v4789 = vpack.c.b16 %v2565, %v2557
    %v4790 = vpack.c.b16 %v2566, %v2558
    %v4791 = vpack.c.b16 %v2567, %v2559
    %v4792 = vpack.c.b16 %v2568, %v2560
    %v4793 = vpack.c.b16 %v2569, %v2561
    %v4794 = vpack.c.b16 %v2570, %v2562
    %v4795 = vpack.c.b16 %v2571, %v2563
    %v4796 = vpack.c.b16 %v2572, %v2564
    %v4797 = vpack.c.b16 %v2581, %v2573
    %v4798 = vpack.c.b16 %v2582, %v2574
    %v4799 = vpack.c.b16 %v2583, %v2575
    %v4800 = vpack.c.b16 %v2584, %v2576
    %v4801 = vpack.c.b16 %v2585, %v2577
    %v4802 = vpack.c.b16 %v2586, %v2578
    %v4803 = vpack.c.b16 %v2587, %v2579
    %v4804 = vpack.c.b16 %v2588, %v2580
    %v4805 = vpack.c.b16 %v2597, %v2589
    %v4806 = vpack.c.b16 %v2598, %v2590
    %v4807 = vpack.c.b16 %v2599, %v2591
    %v4808 = vpack.c.b16 %v2600, %v2592
    %v4809 = vpack.c.b16 %v2601, %v2593
    %v4810 = vpack.c.b16 %v2602, %v2594
    %v4811 = vpack.c.b16 %v2603, %v2595
    %v4812 = vpack.c.b16 %v2604, %v2596
    %v4813 = vpack.c.b16 %v2613, %v2605
    %v4814 = vpack.c.b16 %v2614, %v2606
    %v4815 = vpack.c.b16 %v2615, %v2607
    %v4816 = vpack.c.b16 %v2616, %v2608
    %v4817 = vpack.c.b16 %v2617, %v2609
    %v4818 = vpack.c.b16 %v2618, %v2610
    %v4819 = vpack.c.b16 %v2619, %v2611
    %v4820 = vpack.c.b16 %v2620, %v2612
    %v4821 = vpack.c.b16 %v2629, %v2621
    %v4822 = vpack.c.b16 %v2630, %v2622
    %v4823 = vpack.c.b16 %v2631, %v2623
    %v4824 = vpack.c.b16 %v2632, %v2624
    %v4825 = vpack.c.b16 %v2633, %v2625
    %v4826 = vpack.c.b16 %v2634, %v2626
    %v4827 = vpack.c.b16 %v2635, %v2627
    %v4828 = vpack.c.b16 %v2636, %v2628
    %v4829 = vpack.c.b16 %v2645, %v2637
    %v4830 = vpack.c.b16 %v2646, %v2638
    %v4831 = vpack.c.b16 %v2647, %v2639
    %v4832 = vpack.c.b16 %v2648, %v2640
    %v4833 = vpack.c.b16 %v2649, %v2641
    %v4834 = vpack.c.b16 %v2650, %v2642
    %v4835 = vpack.c.b16 %v2651, %v2643
    %v4836 = vpack.c.b16 %v2652, %v2644
    %v4837 = vpack.c.b16 %v2661, %v2653
    %v4838 = vpack.c.b16 %v2662, %v2654
    %v4839 = vpack.c.b16 %v2663, %v2655
    %v4840 = vpack.c.b16 %v2664, %v2656
    %v4841 = vpack.c.b16 %v2665, %v2657
    %v4842 = vpack.c.b16 %v2666, %v2658
    %v4843 = vpack.c.b16 %v2667, %v2659
    %v4844 = vpack.c.b16 %v2668, %v2660
    %v4845 = vpack.c.b16 %v2677, %v2669
    %v4846 = vpack.c.b16 %v2678, %v2670
    %v4847 = vpack.c.b16 %v2679, %v2671
    %v4848 = vpack.c.b16 %v2680, %v2672
    %v4849 = vpack.c.b16 %v2681, %v2673
    %v4850 = vpack.c.b16 %v2682, %v2674
    %v4851 = vpack.c.b16 %v2683, %v2675
    %v4852 = vpack.c.b16 %v2684, %v2676
    %v4853 = vpack.c.b16 %v2693, %v2685
    %v4854 = vpack.c.b16 %v2694, %v2686
    %v4855 = vpack.c.b16 %v2695, %v2687
    %v4856 = vpack.c.b16 %v2696, %v2688
    %v4857 = vpack.c.b16 %v2697, %v2689
    %v4858 = vpack.c.b16 %v2698, %v2690
    %v4859 = vpack.c.b16 %v2699, %v2691
    %v4860 = vpack.c.b16 %v2700, %v2692
    %v4861 = vpack.c.b16 %v2709, %v2701
    %v4862 = vpack.c.b16 %v2710, %v2702
    %v4863 = vpack.c.b16 %v2711, %v2703
    %v4864 = vpack.c.b16 %v2712, %v2704
    %v4865 = vpack.c.b16 %v2713, %v2705
    %v4866 = vpack.c.b16 %v2714, %v2706
    %v4867 = vpack.c.b16 %v2715, %v2707
    %v4868 = vpack.c.b16 %v2716, %v2708
    %v4869 = vpack.c.b16 %v2725, %v2717
    %v4870 = vpack.c.b16 %v2726, %v2718
    %v4871 = vpack.c.b16 %v2727, %v2719
    %v4872 = vpack.c.b16 %v2728, %v2720
    %v4873 = vpack.c.b16 %v2729, %v2721
    %v4874 = vpack.c.b16 %v2730, %v2722
    %v4875 = vpack.c.b16 %v2731, %v2723
    %v4876 = vpack.c.b16 %v2732, %v2724
    %v4877 = vpack.c.b16 %v2741, %v2733
    %v4878 = vpack.c.b16 %v2742, %v2734
    %v4879 = vpack.c.b16 %v2743, %v2735
    %v4880 = vpack.c.b16 %v2744, %v2736
    %v4881 = vpack.c.b16 %v2745, %v2737
    %v4882 = vpack.c.b16 %v2746, %v2738
    %v4883 = vpack.c.b16 %v2747, %v2739
    %v4884 = vpack.c.b16 %v2748, %v2740
    %v4885 = vpack.c.b16 %v2757, %v2749
    %v4886 = vpack.c.b16 %v2758, %v2750
    %v4887 = vpack.c.b16 %v2759, %v2751
    %v4888 = vpack.c.b16 %v2760, %v2752
    %v4889 = vpack.c.b16 %v2761, %v2753
    %v4890 = vpack.c.b16 %v2762, %v2754
    %v4891 = vpack.c.b16 %v2763, %v2755
    %v4892 = vpack.c.b16 %v2764, %v2756
    %v4893 = vpack.c.b16 %v2773, %v2765
    %v4894 = vpack.c.b16 %v2774, %v2766
    %v4895 = vpack.c.b16 %v2775, %v2767
    %v4896 = vpack.c.b16 %v2776, %v2768
    %v4897 = vpack.c.b16 %v2777, %v2769
    %v4898 = vpack.c.b16 %v2778, %v2770
    %v4899 = vpack.c.b16 %v2779, %v2771
    %v4900 = vpack.c.b16 %v2780, %v2772
    %v4901 = vpack.c.b16 %v2789, %v2781
    %v4902 = vpack.c.b16 %v2790, %v2782
    %v4903 = vpack.c.b16 %v2791, %v2783
    %v4904 = vpack.c.b16 %v2792, %v2784
    %v4905 = vpack.c.b16 %v2793, %v2785
    %v4906 = vpack.c.b16 %v2794, %v2786
    %v4907 = vpack.c.b16 %v2795, %v2787
    %v4908 = vpack.c.b16 %v2796, %v2788
    %v4909 = vpack.c.b16 %v2805, %v2797
    %v4910 = vpack.c.b16 %v2806, %v2798
    %v4911 = vpack.c.b16 %v2807, %v2799
    %v4912 = vpack.c.b16 %v2808, %v2800
    %v4913 = vpack.c.b16 %v2809, %v2801
    %v4914 = vpack.c.b16 %v2810, %v2802
    %v4915 = vpack.c.b16 %v2811, %v2803
    %v4916 = vpack.c.b16 %v2812, %v2804
    %v4917 = vpack.c.b16 %v2821, %v2813
    %v4918 = vpack.c.b16 %v2822, %v2814
    %v4919 = vpack.c.b16 %v2823, %v2815
    %v4920 = vpack.c.b16 %v2824, %v2816
    %v4921 = vpack.c.b16 %v2825, %v2817
    %v4922 = vpack.c.b16 %v2826, %v2818
    %v4923 = vpack.c.b16 %v2827, %v2819
    %v4924 = vpack.c.b16 %v2828, %v2820
    %v4925 = vpack.c.b16 %v2837, %v2829
    %v4926 = vpack.c.b16 %v2838, %v2830
    %v4927 = vpack.c.b16 %v2839, %v2831
    %v4928 = vpack.c.b16 %v2840, %v2832
    %v4929 = vpack.c.b16 %v2841, %v2833
    %v4930 = vpack.c.b16 %v2842, %v2834
    %v4931 = vpack.c.b16 %v2843, %v2835
    %v4932 = vpack.c.b16 %v2844, %v2836
    %v4933 = vpack.c.b16 %v2853, %v2845
    %v4934 = vpack.c.b16 %v2854, %v2846
    %v4935 = vpack.c.b16 %v2855, %v2847
    %v4936 = vpack.c.b16 %v2856, %v2848
    %v4937 = vpack.c.b16 %v2857, %v2849
    %v4938 = vpack.c.b16 %v2858, %v2850
    %v4939 = vpack.c.b16 %v2859, %v2851
    %v4940 = vpack.c.b16 %v2860, %v2852
    %v4941 = vpack.c.b16 %v2869, %v2861
    %v4942 = vpack.c.b16 %v2870, %v2862
    %v4943 = vpack.c.b16 %v2871, %v2863
    %v4944 = vpack.c.b16 %v2872, %v2864
    %v4945 = vpack.c.b16 %v2873, %v2865
    %v4946 = vpack.c.b16 %v2874, %v2866
    %v4947 = vpack.c.b16 %v2875, %v2867
    %v4948 = vpack.c.b16 %v2876, %v2868
    %v4949 = vpack.c.b16 %v2885, %v2877
    %v4950 = vpack.c.b16 %v2886, %v2878
    %v4951 = vpack.c.b16 %v2887, %v2879
    %v4952 = vpack.c.b16 %v2888, %v2880
    %v4953 = vpack.c.b16 %v2889, %v2881
    %v4954 = vpack.c.b16 %v2890, %v2882
    %v4955 = vpack.c.b16 %v2891, %v2883
    %v4956 = vpack.c.b16 %v2892, %v2884
    %v4957 = vpack.c.b16 %v2901, %v2893
    %v4958 = vpack.c.b16 %v2902, %v2894
    %v4959 = vpack.c.b16 %v2903, %v2895
    %v4960 = vpack.c.b16 %v2904, %v2896
    %v4961 = vpack.c.b16 %v2905, %v2897
    %v4962 = vpack.c.b16 %v2906, %v2898
    %v4963 = vpack.c.b16 %v2907, %v2899
    %v4964 = vpack.c.b16 %v2908, %v2900
    %v4965 = vpack.c.b16 %v2917, %v2909
    %v4966 = vpack.c.b16 %v2918, %v2910
    %v4967 = vpack.c.b16 %v2919, %v2911
    %v4968 = vpack.c.b16 %v2920, %v2912
    %v4969 = vpack.c.b16 %v2921, %v2913
    %v4970 = vpack.c.b16 %v2922, %v2914
    %v4971 = vpack.c.b16 %v2923, %v2915
    %v4972 = vpack.c.b16 %v2924, %v2916
    %v4973 = vpack.c.b16 %v2933, %v2925
    %v4974 = vpack.c.b16 %v2934, %v2926
    %v4975 = vpack.c.b16 %v2935, %v2927
    %v4976 = vpack.c.b16 %v2936, %v2928
    %v4977 = vpack.c.b16 %v2937, %v2929
    %v4978 = vpack.c.b16 %v2938, %v2930
    %v4979 = vpack.c.b16 %v2939, %v2931
    %v4980 = vpack.c.b16 %v2940, %v2932
    %v4981 = vpack.c.b16 %v2949, %v2941
    %v4982 = vpack.c.b16 %v2950, %v2942
    %v4983 = vpack.c.b16 %v2951, %v2943
    %v4984 = vpack.c.b16 %v2952, %v2944
    %v4985 = vpack.c.b16 %v2953, %v2945
    %v4986 = vpack.c.b16 %v2954, %v2946
    %v4987 = vpack.c.b16 %v2955, %v2947
    %v4988 = vpack.c.b16 %v2956, %v2948
    %v4989 = vpack.c.b16 %v2965, %v2957
    %v4990 = vpack.c.b16 %v2966, %v2958
    %v4991 = vpack.c.b16 %v2967, %v2959
    %v4992 = vpack.c.b16 %v2968, %v2960
    %v4993 = vpack.c.b16 %v2969, %v2961
    %v4994 = vpack.c.b16 %v2970, %v2962
    %v4995 = vpack.c.b16 %v2971, %v2963
    %v4996 = vpack.c.b16 %v2972, %v2964
    %v4997 = vpack.c.b16 %v2981, %v2973
    %v4998 = vpack.c.b16 %v2982, %v2974
    %v4999 = vpack.c.b16 %v2983, %v2975
    %v5000 = vpack.c.b16 %v2984, %v2976
    %v5001 = vpack.c.b16 %v2985, %v2977
    %v5002 = vpack.c.b16 %v2986, %v2978
    %v5003 = vpack.c.b16 %v2987, %v2979
    %v5004 = vpack.c.b16 %v2988, %v2980
    %v5005 = vpack.c.b16 %v2997, %v2989
    %v5006 = vpack.c.b16 %v2998, %v2990
    %v5007 = vpack.c.b16 %v2999, %v2991
    %v5008 = vpack.c.b16 %v3000, %v2992
    %v5009 = vpack.c.b16 %v3001, %v2993
    %v5010 = vpack.c.b16 %v3002, %v2994
    %v5011 = vpack.c.b16 %v3003, %v2995
    %v5012 = vpack.c.b16 %v3004, %v2996
    %v5013 = vpack.c.b16 %v3013, %v3005
    %v5014 = vpack.c.b16 %v3014, %v3006
    %v5015 = vpack.c.b16 %v3015, %v3007
    %v5016 = vpack.c.b16 %v3016, %v3008
    %v5017 = vpack.c.b16 %v3017, %v3009
    %v5018 = vpack.c.b16 %v3018, %v3010
    %v5019 = vpack.c.b16 %v3019, %v3011
    %v5020 = vpack.c.b16 %v3020, %v3012
    %v5021 = vpack.c.b16 %v3029, %v3021
    %v5022 = vpack.c.b16 %v3030, %v3022
    %v5023 = vpack.c.b16 %v3031, %v3023
    %v5024 = vpack.c.b16 %v3032, %v3024
    %v5025 = vpack.c.b16 %v3033, %v3025
    %v5026 = vpack.c.b16 %v3034, %v3026
    %v5027 = vpack.c.b16 %v3035, %v3027
    %v5028 = vpack.c.b16 %v3036, %v3028
    %v5029 = vpack.c.b16 %v3045, %v3037
    %v5030 = vpack.c.b16 %v3046, %v3038
    %v5031 = vpack.c.b16 %v3047, %v3039
    %v5032 = vpack.c.b16 %v3048, %v3040
    %v5033 = vpack.c.b16 %v3049, %v3041
    %v5034 = vpack.c.b16 %v3050, %v3042
    %v5035 = vpack.c.b16 %v3051, %v3043
    %v5036 = vpack.c.b16 %v3052, %v3044
    %v5037 = vpack.c.b16 %v3061, %v3053
    %v5038 = vpack.c.b16 %v3062, %v3054
    %v5039 = vpack.c.b16 %v3063, %v3055
    %v5040 = vpack.c.b16 %v3064, %v3056
    %v5041 = vpack.c.b16 %v3065, %v3057
    %v5042 = vpack.c.b16 %v3066, %v3058
    %v5043 = vpack.c.b16 %v3067, %v3059
    %v5044 = vpack.c.b16 %v3068, %v3060
    %v5045 = vpack.c.b16 %v3077, %v3069
    %v5046 = vpack.c.b16 %v3078, %v3070
    %v5047 = vpack.c.b16 %v3079, %v3071
    %v5048 = vpack.c.b16 %v3080, %v3072
    %v5049 = vpack.c.b16 %v3081, %v3073
    %v5050 = vpack.c.b16 %v3082, %v3074
    %v5051 = vpack.c.b16 %v3083, %v3075
    %v5052 = vpack.c.b16 %v3084, %v3076
    %v5053 = vpack.c.b16 %v3093, %v3085
    %v5054 = vpack.c.b16 %v3094, %v3086
    %v5055 = vpack.c.b16 %v3095, %v3087
    %v5056 = vpack.c.b16 %v3096, %v3088
    %v5057 = vpack.c.b16 %v3097, %v3089
    %v5058 = vpack.c.b16 %v3098, %v3090
    %v5059 = vpack.c.b16 %v3099, %v3091
    %v5060 = vpack.c.b16 %v3100, %v3092
    %v5061 = vpack.c.b16 %v3109, %v3101
    %v5062 = vpack.c.b16 %v3110, %v3102
    %v5063 = vpack.c.b16 %v3111, %v3103
    %v5064 = vpack.c.b16 %v3112, %v3104
    %v5065 = vpack.c.b16 %v3113, %v3105
    %v5066 = vpack.c.b16 %v3114, %v3106
    %v5067 = vpack.c.b16 %v3115, %v3107
    %v5068 = vpack.c.b16 %v3116, %v3108
    %v5069 = vpack.c.b16 %v3125, %v3117
    %v5070 = vpack.c.b16 %v3126, %v3118
    %v5071 = vpack.c.b16 %v3127, %v3119
    %v5072 = vpack.c.b16 %v3128, %v3120
    %v5073 = vpack.c.b16 %v3129, %v3121
    %v5074 = vpack.c.b16 %v3130, %v3122
    %v5075 = vpack.c.b16 %v3131, %v3123
    %v5076 = vpack.c.b16 %v3132, %v3124
    %v5077 = vpack.c.b16 %v3141, %v3133
    %v5078 = vpack.c.b16 %v3142, %v3134
    %v5079 = vpack.c.b16 %v3143, %v3135
    %v5080 = vpack.c.b16 %v3144, %v3136
    %v5081 = vpack.c.b16 %v3145, %v3137
    %v5082 = vpack.c.b16 %v3146, %v3138
    %v5083 = vpack.c.b16 %v3147, %v3139
    %v5084 = vpack.c.b16 %v3148, %v3140
    %v5085 = vpack.c.b16 %v3157, %v3149
    %v5086 = vpack.c.b16 %v3158, %v3150
    %v5087 = vpack.c.b16 %v3159, %v3151
    %v5088 = vpack.c.b16 %v3160, %v3152
    %v5089 = vpack.c.b16 %v3161, %v3153
    %v5090 = vpack.c.b16 %v3162, %v3154
    %v5091 = vpack.c.b16 %v3163, %v3155
    %v5092 = vpack.c.b16 %v3164, %v3156
    %v5093 = vpack.c.b16 %v3173, %v3165
    %v5094 = vpack.c.b16 %v3174, %v3166
    %v5095 = vpack.c.b16 %v3175, %v3167
    %v5096 = vpack.c.b16 %v3176, %v3168
    %v5097 = vpack.c.b16 %v3177, %v3169
    %v5098 = vpack.c.b16 %v3178, %v3170
    %v5099 = vpack.c.b16 %v3179, %v3171
    %v5100 = vpack.c.b16 %v3180, %v3172
    %v5101 = vpack.c.b16 %v3189, %v3181
    %v5102 = vpack.c.b16 %v3190, %v3182
    %v5103 = vpack.c.b16 %v3191, %v3183
    %v5104 = vpack.c.b16 %v3192, %v3184
    %v5105 = vpack.c.b16 %v3193, %v3185
    %v5106 = vpack.c.b16 %v3194, %v3186
    %v5107 = vpack.c.b16 %v3195, %v3187
    %v5108 = vpack.c.b16 %v3196, %v3188
    %v5109 = vpack.c.b16 %v3205, %v3197
    %v5110 = vpack.c.b16 %v3206, %v3198
    %v5111 = vpack.c.b16 %v3207, %v3199
    %v5112 = vpack.c.b16 %v3208, %v3200
    %v5113 = vpack.c.b16 %v3209, %v3201
    %v5114 = vpack.c.b16 %v3210, %v3202
    %v5115 = vpack.c.b16 %v3211, %v3203
    %v5116 = vpack.c.b16 %v3212, %v3204
    %v5117 = vpack.c.b16 %v3221, %v3213
    %v5118 = vpack.c.b16 %v3222, %v3214
    %v5119 = vpack.c.b16 %v3223, %v3215
    %v5120 = vpack.c.b16 %v3224, %v3216
    %v5121 = vpack.c.b16 %v3225, %v3217
    %v5122 = vpack.c.b16 %v3226, %v3218
    %v5123 = vpack.c.b16 %v3227, %v3219
    %v5124 = vpack.c.b16 %v3228, %v3220
    %v5125 = vpack.c.b16 %v3237, %v3229
    %v5126 = vpack.c.b16 %v3238, %v3230
    %v5127 = vpack.c.b16 %v3239, %v3231
    %v5128 = vpack.c.b16 %v3240, %v3232
    %v5129 = vpack.c.b16 %v3241, %v3233
    %v5130 = vpack.c.b16 %v3242, %v3234
    %v5131 = vpack.c.b16 %v3243, %v3235
    %v5132 = vpack.c.b16 %v3244, %v3236
    %v5133 = vpack.c.b16 %v3253, %v3245
    %v5134 = vpack.c.b16 %v3254, %v3246
    %v5135 = vpack.c.b16 %v3255, %v3247
    %v5136 = vpack.c.b16 %v3256, %v3248
    %v5137 = vpack.c.b16 %v3257, %v3249
    %v5138 = vpack.c.b16 %v3258, %v3250
    %v5139 = vpack.c.b16 %v3259, %v3251
    %v5140 = vpack.c.b16 %v3260, %v3252
    %v5141 = vpack.c.b16 %v3269, %v3261
    %v5142 = vpack.c.b16 %v3270, %v3262
    %v5143 = vpack.c.b16 %v3271, %v3263
    %v5144 = vpack.c.b16 %v3272, %v3264
    %v5145 = vpack.c.b16 %v3273, %v3265
    %v5146 = vpack.c.b16 %v3274, %v3266
    %v5147 = vpack.c.b16 %v3275, %v3267
    %v5148 = vpack.c.b16 %v3276, %v3268
    %v5149 = vpack.c.b16 %v3285, %v3277
    %v5150 = vpack.c.b16 %v3286, %v3278
    %v5151 = vpack.c.b16 %v3287, %v3279
    %v5152 = vpack.c.b16 %v3288, %v3280
    %v5153 = vpack.c.b16 %v3289, %v3281
    %v5154 = vpack.c.b16 %v3290, %v3282
    %v5155 = vpack.c.b16 %v3291, %v3283
    %v5156 = vpack.c.b16 %v3292, %v3284
    %v5157 = vpack.c.b16 %v3301, %v3293
    %v5158 = vpack.c.b16 %v3302, %v3294
    %v5159 = vpack.c.b16 %v3303, %v3295
    %v5160 = vpack.c.b16 %v3304, %v3296
    %v5161 = vpack.c.b16 %v3305, %v3297
    %v5162 = vpack.c.b16 %v3306, %v3298
    %v5163 = vpack.c.b16 %v3307, %v3299
    %v5164 = vpack.c.b16 %v3308, %v3300
    %v5165 = vpack.c.b16 %v3317, %v3309
    %v5166 = vpack.c.b16 %v3318, %v3310
    %v5167 = vpack.c.b16 %v3319, %v3311
    %v5168 = vpack.c.b16 %v3320, %v3312
    %v5169 = vpack.c.b16 %v3321, %v3313
    %v5170 = vpack.c.b16 %v3322, %v3314
    %v5171 = vpack.c.b16 %v3323, %v3315
    %v5172 = vpack.c.b16 %v3324, %v3316
    %v5173 = vpack.c.b16 %v3333, %v3325
    %v5174 = vpack.c.b16 %v3334, %v3326
    %v5175 = vpack.c.b16 %v3335, %v3327
    %v5176 = vpack.c.b16 %v3336, %v3328
    %v5177 = vpack.c.b16 %v3337, %v3329
    %v5178 = vpack.c.b16 %v3338, %v3330
    %v5179 = vpack.c.b16 %v3339, %v3331
    %v5180 = vpack.c.b16 %v3340, %v3332
    %v5181 = vpack.c.b16 %v3349, %v3341
    %v5182 = vpack.c.b16 %v3350, %v3342
    %v5183 = vpack.c.b16 %v3351, %v3343
    %v5184 = vpack.c.b16 %v3352, %v3344
    %v5185 = vpack.c.b16 %v3353, %v3345
    %v5186 = vpack.c.b16 %v3354, %v3346
    %v5187 = vpack.c.b16 %v3355, %v3347
    %v5188 = vpack.c.b16 %v3356, %v3348
    %v5189 = vpack.c.b16 %v3365, %v3357
    %v5190 = vpack.c.b16 %v3366, %v3358
    %v5191 = vpack.c.b16 %v3367, %v3359
    %v5192 = vpack.c.b16 %v3368, %v3360
    %v5193 = vpack.c.b16 %v3369, %v3361
    %v5194 = vpack.c.b16 %v3370, %v3362
    %v5195 = vpack.c.b16 %v3371, %v3363
    %v5196 = vpack.c.b16 %v3372, %v3364
    %v5197 = vpack.c.b16 %v3381, %v3373
    %v5198 = vpack.c.b16 %v3382, %v3374
    %v5199 = vpack.c.b16 %v3383, %v3375
    %v5200 = vpack.c.b16 %v3384, %v3376
    %v5201 = vpack.c.b16 %v3385, %v3377
    %v5202 = vpack.c.b16 %v3386, %v3378
    %v5203 = vpack.c.b16 %v3387, %v3379
    %v5204 = vpack.c.b16 %v3388, %v3380
    %v5205 = vpack.c.b16 %v3397, %v3389
    %v5206 = vpack.c.b16 %v3398, %v3390
    %v5207 = vpack.c.b16 %v3399, %v3391
    %v5208 = vpack.c.b16 %v3400, %v3392
    %v5209 = vpack.c.b16 %v3401, %v3393
    %v5210 = vpack.c.b16 %v3402, %v3394
    %v5211 = vpack.c.b16 %v3403, %v3395
    %v5212 = vpack.c.b16 %v3404, %v3396
    %v5213 = vpack.c.b16 %v3413, %v3405
    %v5214 = vpack.c.b16 %v3414, %v3406
    %v5215 = vpack.c.b16 %v3415, %v3407
    %v5216 = vpack.c.b16 %v3416, %v3408
    %v5217 = vpack.c.b16 %v3417, %v3409
    %v5218 = vpack.c.b16 %v3418, %v3410
    %v5219 = vpack.c.b16 %v3419, %v3411
    %v5220 = vpack.c.b16 %v3420, %v3412
    %v5221 = vpack.c.b16 %v3429, %v3421
    %v5222 = vpack.c.b16 %v3430, %v3422
    %v5223 = vpack.c.b16 %v3431, %v3423
    %v5224 = vpack.c.b16 %v3432, %v3424
    %v5225 = vpack.c.b16 %v3433, %v3425
    %v5226 = vpack.c.b16 %v3434, %v3426
    %v5227 = vpack.c.b16 %v3435, %v3427
    %v5228 = vpack.c.b16 %v3436, %v3428
    %v5229 = vpack.c.b16 %v3445, %v3437
    %v5230 = vpack.c.b16 %v3446, %v3438
    %v5231 = vpack.c.b16 %v3447, %v3439
    %v5232 = vpack.c.b16 %v3448, %v3440
    %v5233 = vpack.c.b16 %v3449, %v3441
    %v5234 = vpack.c.b16 %v3450, %v3442
    %v5235 = vpack.c.b16 %v3451, %v3443
    %v5236 = vpack.c.b16 %v3452, %v3444
    %v5237 = vpack.c.b16 %v3461, %v3453
    %v5238 = vpack.c.b16 %v3462, %v3454
    %v5239 = vpack.c.b16 %v3463, %v3455
    %v5240 = vpack.c.b16 %v3464, %v3456
    %v5241 = vpack.c.b16 %v3465, %v3457
    %v5242 = vpack.c.b16 %v3466, %v3458
    %v5243 = vpack.c.b16 %v3467, %v3459
    %v5244 = vpack.c.b16 %v3468, %v3460
    %v5245 = vpack.c.b16 %v3477, %v3469
    %v5246 = vpack.c.b16 %v3478, %v3470
    %v5247 = vpack.c.b16 %v3479, %v3471
    %v5248 = vpack.c.b16 %v3480, %v3472
    %v5249 = vpack.c.b16 %v3481, %v3473
    %v5250 = vpack.c.b16 %v3482, %v3474
    %v5251 = vpack.c.b16 %v3483, %v3475
    %v5252 = vpack.c.b16 %v3484, %v3476
    %v5253 = vpack.c.b16 %v3493, %v3485
    %v5254 = vpack.c.b16 %v3494, %v3486
    %v5255 = vpack.c.b16 %v3495, %v3487
    %v5256 = vpack.c.b16 %v3496, %v3488
    %v5257 = vpack.c.b16 %v3497, %v3489
    %v5258 = vpack.c.b16 %v3498, %v3490
    %v5259 = vpack.c.b16 %v3499, %v3491
    %v5260 = vpack.c.b16 %v3500, %v3492
    %v5261 = vpack.c.b16 %v3509, %v3501
    %v5262 = vpack.c.b16 %v3510, %v3502
    %v5263 = vpack.c.b16 %v3511, %v3503
    %v5264 = vpack.c.b16 %v3512, %v3504
    %v5265 = vpack.c.b16 %v3513, %v3505
    %v5266 = vpack.c.b16 %v3514, %v3506
    %v5267 = vpack.c.b16 %v3515, %v3507
    %v5268 = vpack.c.b16 %v3516, %v3508
    %v5269 = vpack.c.b16 %v3525, %v3517
    %v5270 = vpack.c.b16 %v3526, %v3518
    %v5271 = vpack.c.b16 %v3527, %v3519
    %v5272 = vpack.c.b16 %v3528, %v3520
    %v5273 = vpack.c.b16 %v3529, %v3521
    %v5274 = vpack.c.b16 %v3530, %v3522
    %v5275 = vpack.c.b16 %v3531, %v3523
    %v5276 = vpack.c.b16 %v3532, %v3524
    %v5277 = vpack.c.b16 %v3541, %v3533
    %v5278 = vpack.c.b16 %v3542, %v3534
    %v5279 = vpack.c.b16 %v3543, %v3535
    %v5280 = vpack.c.b16 %v3544, %v3536
    %v5281 = vpack.c.b16 %v3545, %v3537
    %v5282 = vpack.c.b16 %v3546, %v3538
    %v5283 = vpack.c.b16 %v3547, %v3539
    %v5284 = vpack.c.b16 %v3548, %v3540
    %v5285 = vpack.c.b16 %v3557, %v3549
    %v5286 = vpack.c.b16 %v3558, %v3550
    %v5287 = vpack.c.b16 %v3559, %v3551
    %v5288 = vpack.c.b16 %v3560, %v3552
    %v5289 = vpack.c.b16 %v3561, %v3553
    %v5290 = vpack.c.b16 %v3562, %v3554
    %v5291 = vpack.c.b16 %v3563, %v3555
    %v5292 = vpack.c.b16 %v3564, %v3556
    %v5293 = vpack.c.b16 %v3573, %v3565
    %v5294 = vpack.c.b16 %v3574, %v3566
    %v5295 = vpack.c.b16 %v3575, %v3567
    %v5296 = vpack.c.b16 %v3576, %v3568
    %v5297 = vpack.c.b16 %v3577, %v3569
    %v5298 = vpack.c.b16 %v3578, %v3570
    %v5299 = vpack.c.b16 %v3579, %v3571
    %v5300 = vpack.c.b16 %v3580, %v3572
    %v5301 = vpack.c.b16 %v3589, %v3581
    %v5302 = vpack.c.b16 %v3590, %v3582
    %v5303 = vpack.c.b16 %v3591, %v3583
    %v5304 = vpack.c.b16 %v3592, %v3584
    %v5305 = vpack.c.b16 %v3593, %v3585
    %v5306 = vpack.c.b16 %v3594, %v3586
    %v5307 = vpack.c.b16 %v3595, %v3587
    %v5308 = vpack.c.b16 %v3596, %v3588
    %v5309 = vpack.c.b16 %v3605, %v3597
    %v5310 = vpack.c.b16 %v3606, %v3598
    %v5311 = vpack.c.b16 %v3607, %v3599
    %v5312 = vpack.c.b16 %v3608, %v3600
    %v5313 = vpack.c.b16 %v3609, %v3601
    %v5314 = vpack.c.b16 %v3610, %v3602
    %v5315 = vpack.c.b16 %v3611, %v3603
    %v5316 = vpack.c.b16 %v3612, %v3604
    %v5317 = vpack.c.b16 %v3621, %v3613
    %v5318 = vpack.c.b16 %v3622, %v3614
    %v5319 = vpack.c.b16 %v3623, %v3615
    %v5320 = vpack.c.b16 %v3624, %v3616
    %v5321 = vpack.c.b16 %v3625, %v3617
    %v5322 = vpack.c.b16 %v3626, %v3618
    %v5323 = vpack.c.b16 %v3627, %v3619
    %v5324 = vpack.c.b16 %v3628, %v3620
    %v5325 = vpack.c.b16 %v3637, %v3629
    %v5326 = vpack.c.b16 %v3638, %v3630
    %v5327 = vpack.c.b16 %v3639, %v3631
    %v5328 = vpack.c.b16 %v3640, %v3632
    %v5329 = vpack.c.b16 %v3641, %v3633
    %v5330 = vpack.c.b16 %v3642, %v3634
    %v5331 = vpack.c.b16 %v3643, %v3635
    %v5332 = vpack.c.b16 %v3644, %v3636
    %v5333 = vpack.c.b16 %v3653, %v3645
    %v5334 = vpack.c.b16 %v3654, %v3646
    %v5335 = vpack.c.b16 %v3655, %v3647
    %v5336 = vpack.c.b16 %v3656, %v3648
    %v5337 = vpack.c.b16 %v3657, %v3649
    %v5338 = vpack.c.b16 %v3658, %v3650
    %v5339 = vpack.c.b16 %v3659, %v3651
    %v5340 = vpack.c.b16 %v3660, %v3652
    %v5341 = vpack.c.b16 %v3669, %v3661
    %v5342 = vpack.c.b16 %v3670, %v3662
    %v5343 = vpack.c.b16 %v3671, %v3663
    %v5344 = vpack.c.b16 %v3672, %v3664
    %v5345 = vpack.c.b16 %v3673, %v3665
    %v5346 = vpack.c.b16 %v3674, %v3666
    %v5347 = vpack.c.b16 %v3675, %v3667
    %v5348 = vpack.c.b16 %v3676, %v3668
    %v5349 = vpack.c.b16 %v3685, %v3677
    %v5350 = vpack.c.b16 %v3686, %v3678
    %v5351 = vpack.c.b16 %v3687, %v3679
    %v5352 = vpack.c.b16 %v3688, %v3680
    %v5353 = vpack.c.b16 %v3689, %v3681
    %v5354 = vpack.c.b16 %v3690, %v3682
    %v5355 = vpack.c.b16 %v3691, %v3683
    %v5356 = vpack.c.b16 %v3692, %v3684
    %v5357 = vpack.c.b16 %v3701, %v3693
    %v5358 = vpack.c.b16 %v3702, %v3694
    %v5359 = vpack.c.b16 %v3703, %v3695
    %v5360 = vpack.c.b16 %v3704, %v3696
    %v5361 = vpack.c.b16 %v3705, %v3697
    %v5362 = vpack.c.b16 %v3706, %v3698
    %v5363 = vpack.c.b16 %v3707, %v3699
    %v5364 = vpack.c.b16 %v3708, %v3700
    %v5365 = vpack.c.b16 %v3717, %v3709
    %v5366 = vpack.c.b16 %v3718, %v3710
    %v5367 = vpack.c.b16 %v3719, %v3711
    %v5368 = vpack.c.b16 %v3720, %v3712
    %v5369 = vpack.c.b16 %v3721, %v3713
    %v5370 = vpack.c.b16 %v3722, %v3714
    %v5371 = vpack.c.b16 %v3723, %v3715
    %v5372 = vpack.c.b16 %v3724, %v3716
    %v5373 = vpack.c.b16 %v3733, %v3725
    %v5374 = vpack.c.b16 %v3734, %v3726
    %v5375 = vpack.c.b16 %v3735, %v3727
    %v5376 = vpack.c.b16 %v3736, %v3728
    %v5377 = vpack.c.b16 %v3737, %v3729
    %v5378 = vpack.c.b16 %v3738, %v3730
    %v5379 = vpack.c.b16 %v3739, %v3731
    %v5380 = vpack.c.b16 %v3740, %v3732
    %v5381 = vpack.c.b16 %v3749, %v3741
    %v5382 = vpack.c.b16 %v3750, %v3742
    %v5383 = vpack.c.b16 %v3751, %v3743
    %v5384 = vpack.c.b16 %v3752, %v3744
    %v5385 = vpack.c.b16 %v3753, %v3745
    %v5386 = vpack.c.b16 %v3754, %v3746
    %v5387 = vpack.c.b16 %v3755, %v3747
    %v5388 = vpack.c.b16 %v3756, %v3748
    %v5389 = vpack.c.b16 %v3765, %v3757
    %v5390 = vpack.c.b16 %v3766, %v3758
    %v5391 = vpack.c.b16 %v3767, %v3759
    %v5392 = vpack.c.b16 %v3768, %v3760
    %v5393 = vpack.c.b16 %v3769, %v3761
    %v5394 = vpack.c.b16 %v3770, %v3762
    %v5395 = vpack.c.b16 %v3771, %v3763
    %v5396 = vpack.c.b16 %v3772, %v3764
    %v5397 = vpack.c.b16 %v3781, %v3773
    %v5398 = vpack.c.b16 %v3782, %v3774
    %v5399 = vpack.c.b16 %v3783, %v3775
    %v5400 = vpack.c.b16 %v3784, %v3776
    %v5401 = vpack.c.b16 %v3785, %v3777
    %v5402 = vpack.c.b16 %v3786, %v3778
    %v5403 = vpack.c.b16 %v3787, %v3779
    %v5404 = vpack.c.b16 %v3788, %v3780
    %v5405 = vpack.c.b16 %v3797, %v3789
    %v5406 = vpack.c.b16 %v3798, %v3790
    %v5407 = vpack.c.b16 %v3799, %v3791
    %v5408 = vpack.c.b16 %v3800, %v3792
    %v5409 = vpack.c.b16 %v3801, %v3793
    %v5410 = vpack.c.b16 %v3802, %v3794
    %v5411 = vpack.c.b16 %v3803, %v3795
    %v5412 = vpack.c.b16 %v3804, %v3796
    %v5413 = vpack.c.b16 %v3813, %v3805
    %v5414 = vpack.c.b16 %v3814, %v3806
    %v5415 = vpack.c.b16 %v3815, %v3807
    %v5416 = vpack.c.b16 %v3816, %v3808
    %v5417 = vpack.c.b16 %v3817, %v3809
    %v5418 = vpack.c.b16 %v3818, %v3810
    %v5419 = vpack.c.b16 %v3819, %v3811
    %v5420 = vpack.c.b16 %v3820, %v3812
    %v5421 = vpack.c.b16 %v3829, %v3821
    %v5422 = vpack.c.b16 %v3830, %v3822
    %v5423 = vpack.c.b16 %v3831, %v3823
    %v5424 = vpack.c.b16 %v3832, %v3824
    %v5425 = vpack.c.b16 %v3833, %v3825
    %v5426 = vpack.c.b16 %v3834, %v3826
    %v5427 = vpack.c.b16 %v3835, %v3827
    %v5428 = vpack.c.b16 %v3836, %v3828
    %v5429 = vpack.c.b16 %v3845, %v3837
    %v5430 = vpack.c.b16 %v3846, %v3838
    %v5431 = vpack.c.b16 %v3847, %v3839
    %v5432 = vpack.c.b16 %v3848, %v3840
    %v5433 = vpack.c.b16 %v3849, %v3841
    %v5434 = vpack.c.b16 %v3850, %v3842
    %v5435 = vpack.c.b16 %v3851, %v3843
    %v5436 = vpack.c.b16 %v3852, %v3844
    %v5437 = vpack.c.b16 %v3861, %v3853
    %v5438 = vpack.c.b16 %v3862, %v3854
    %v5439 = vpack.c.b16 %v3863, %v3855
    %v5440 = vpack.c.b16 %v3864, %v3856
    %v5441 = vpack.c.b16 %v3865, %v3857
    %v5442 = vpack.c.b16 %v3866, %v3858
    %v5443 = vpack.c.b16 %v3867, %v3859
    %v5444 = vpack.c.b16 %v3868, %v3860
    %v5445 = vpack.c.b16 %v3877, %v3869
    %v5446 = vpack.c.b16 %v3878, %v3870
    %v5447 = vpack.c.b16 %v3879, %v3871
    %v5448 = vpack.c.b16 %v3880, %v3872
    %v5449 = vpack.c.b16 %v3881, %v3873
    %v5450 = vpack.c.b16 %v3882, %v3874
    %v5451 = vpack.c.b16 %v3883, %v3875
    %v5452 = vpack.c.b16 %v3884, %v3876
    %v5453 = vpack.c.b16 %v3893, %v3885
    %v5454 = vpack.c.b16 %v3894, %v3886
    %v5455 = vpack.c.b16 %v3895, %v3887
    %v5456 = vpack.c.b16 %v3896, %v3888
    %v5457 = vpack.c.b16 %v3897, %v3889
    %v5458 = vpack.c.b16 %v3898, %v3890
    %v5459 = vpack.c.b16 %v3899, %v3891
    %v5460 = vpack.c.b16 %v3900, %v3892
    %v5461 = vpack.c.b16 %v3909, %v3901
    %v5462 = vpack.c.b16 %v3910, %v3902
    %v5463 = vpack.c.b16 %v3911, %v3903
    %v5464 = vpack.c.b16 %v3912, %v3904
    %v5465 = vpack.c.b16 %v3913, %v3905
    %v5466 = vpack.c.b16 %v3914, %v3906
    %v5467 = vpack.c.b16 %v3915, %v3907
    %v5468 = vpack.c.b16 %v3916, %v3908
    %v5469 = vpack.c.b16 %v3925, %v3917
    %v5470 = vpack.c.b16 %v3926, %v3918
    %v5471 = vpack.c.b16 %v3927, %v3919
    %v5472 = vpack.c.b16 %v3928, %v3920
    %v5473 = vpack.c.b16 %v3929, %v3921
    %v5474 = vpack.c.b16 %v3930, %v3922
    %v5475 = vpack.c.b16 %v3931, %v3923
    %v5476 = vpack.c.b16 %v3932, %v3924
    %v5477 = vpack.c.b16 %v3941, %v3933
    %v5478 = vpack.c.b16 %v3942, %v3934
    %v5479 = vpack.c.b16 %v3943, %v3935
    %v5480 = vpack.c.b16 %v3944, %v3936
    %v5481 = vpack.c.b16 %v3945, %v3937
    %v5482 = vpack.c.b16 %v3946, %v3938
    %v5483 = vpack.c.b16 %v3947, %v3939
    %v5484 = vpack.c.b16 %v3948, %v3940
    %v5485 = vpack.c.b16 %v3957, %v3949
    %v5486 = vpack.c.b16 %v3958, %v3950
    %v5487 = vpack.c.b16 %v3959, %v3951
    %v5488 = vpack.c.b16 %v3960, %v3952
    %v5489 = vpack.c.b16 %v3961, %v3953
    %v5490 = vpack.c.b16 %v3962, %v3954
    %v5491 = vpack.c.b16 %v3963, %v3955
    %v5492 = vpack.c.b16 %v3964, %v3956
    %v5493 = vpack.c.b16 %v3973, %v3965
    %v5494 = vpack.c.b16 %v3974, %v3966
    %v5495 = vpack.c.b16 %v3975, %v3967
    %v5496 = vpack.c.b16 %v3976, %v3968
    %v5497 = vpack.c.b16 %v3977, %v3969
    %v5498 = vpack.c.b16 %v3978, %v3970
    %v5499 = vpack.c.b16 %v3979, %v3971
    %v5500 = vpack.c.b16 %v3980, %v3972
    %v5501 = vpack.c.b16 %v3989, %v3981
    %v5502 = vpack.c.b16 %v3990, %v3982
    %v5503 = vpack.c.b16 %v3991, %v3983
    %v5504 = vpack.c.b16 %v3992, %v3984
    %v5505 = vpack.c.b16 %v3993, %v3985
    %v5506 = vpack.c.b16 %v3994, %v3986
    %v5507 = vpack.c.b16 %v3995, %v3987
    %v5508 = vpack.c.b16 %v3996, %v3988
    %v5509 = vpack.c.b16 %v4005, %v3997
    %v5510 = vpack.c.b16 %v4006, %v3998
    %v5511 = vpack.c.b16 %v4007, %v3999
    %v5512 = vpack.c.b16 %v4008, %v4000
    %v5513 = vpack.c.b16 %v4009, %v4001
    %v5514 = vpack.c.b16 %v4010, %v4002
    %v5515 = vpack.c.b16 %v4011, %v4003
    %v5516 = vpack.c.b16 %v4012, %v4004
    %v5517 = vpack.c.b16 %v4021, %v4013
    %v5518 = vpack.c.b16 %v4022, %v4014
    %v5519 = vpack.c.b16 %v4023, %v4015
    %v5520 = vpack.c.b16 %v4024, %v4016
    %v5521 = vpack.c.b16 %v4025, %v4017
    %v5522 = vpack.c.b16 %v4026, %v4018
    %v5523 = vpack.c.b16 %v4027, %v4019
    %v5524 = vpack.c.b16 %v4028, %v4020
    %v5525 = vpack.c.b16 %v4037, %v4029
    %v5526 = vpack.c.b16 %v4038, %v4030
    %v5527 = vpack.c.b16 %v4039, %v4031
    %v5528 = vpack.c.b16 %v4040, %v4032
    %v5529 = vpack.c.b16 %v4041, %v4033
    %v5530 = vpack.c.b16 %v4042, %v4034
    %v5531 = vpack.c.b16 %v4043, %v4035
    %v5532 = vpack.c.b16 %v4044, %v4036
    %v5533 = vpack.c.b16 %v4053, %v4045
    %v5534 = vpack.c.b16 %v4054, %v4046
    %v5535 = vpack.c.b16 %v4055, %v4047
    %v5536 = vpack.c.b16 %v4056, %v4048
    %v5537 = vpack.c.b16 %v4057, %v4049
    %v5538 = vpack.c.b16 %v4058, %v4050
    %v5539 = vpack.c.b16 %v4059, %v4051
    %v5540 = vpack.c.b16 %v4060, %v4052
    %v5541 = vpack.c.b16 %v4069, %v4061
    %v5542 = vpack.c.b16 %v4070, %v4062
    %v5543 = vpack.c.b16 %v4071, %v4063
    %v5544 = vpack.c.b16 %v4072, %v4064
    %v5545 = vpack.c.b16 %v4073, %v4065
    %v5546 = vpack.c.b16 %v4074, %v4066
    %v5547 = vpack.c.b16 %v4075, %v4067
    %v5548 = vpack.c.b16 %v4076, %v4068
    %v5549 = vpack.c.b16 %v4085, %v4077
    %v5550 = vpack.c.b16 %v4086, %v4078
    %v5551 = vpack.c.b16 %v4087, %v4079
    %v5552 = vpack.c.b16 %v4088, %v4080
    %v5553 = vpack.c.b16 %v4089, %v4081
    %v5554 = vpack.c.b16 %v4090, %v4082
    %v5555 = vpack.c.b16 %v4091, %v4083
    %v5556 = vpack.c.b16 %v4092, %v4084
    %v5557 = vpack.c.b16 %v4101, %v4093
    %v5558 = vpack.c.b16 %v4102, %v4094
    %v5559 = vpack.c.b16 %v4103, %v4095
    %v5560 = vpack.c.b16 %v4104, %v4096
    %v5561 = vpack.c.b16 %v4105, %v4097
    %v5562 = vpack.c.b16 %v4106, %v4098
    %v5563 = vpack.c.b16 %v4107, %v4099
    %v5564 = vpack.c.b16 %v4108, %v4100
    %v5565 = vpack.c.b16 %v4117, %v4109
    %v5566 = vpack.c.b16 %v4118, %v4110
    %v5567 = vpack.c.b16 %v4119, %v4111
    %v5568 = vpack.c.b16 %v4120, %v4112
    %v5569 = vpack.c.b16 %v4121, %v4113
    %v5570 = vpack.c.b16 %v4122, %v4114
    %v5571 = vpack.c.b16 %v4123, %v4115
    %v5572 = vpack.c.b16 %v4124, %v4116
    %v5573 = vpack.c.b16 %v4133, %v4125
    %v5574 = vpack.c.b16 %v4134, %v4126
    %v5575 = vpack.c.b16 %v4135, %v4127
    %v5576 = vpack.c.b16 %v4136, %v4128
    %v5577 = vpack.c.b16 %v4137, %v4129
    %v5578 = vpack.c.b16 %v4138, %v4130
    %v5579 = vpack.c.b16 %v4139, %v4131
    %v5580 = vpack.c.b16 %v4140, %v4132
    %v5581 = vpack.c.b16 %v4149, %v4141
    %v5582 = vpack.c.b16 %v4150, %v4142
    %v5583 = vpack.c.b16 %v4151, %v4143
    %v5584 = vpack.c.b16 %v4152, %v4144
    %v5585 = vpack.c.b16 %v4153, %v4145
    %v5586 = vpack.c.b16 %v4154, %v4146
    %v5587 = vpack.c.b16 %v4155, %v4147
    %v5588 = vpack.c.b16 %v4156, %v4148
    %v5589 = vpack.c.b16 %v4165, %v4157
    %v5590 = vpack.c.b16 %v4166, %v4158
    %v5591 = vpack.c.b16 %v4167, %v4159
    %v5592 = vpack.c.b16 %v4168, %v4160
    %v5593 = vpack.c.b16 %v4169, %v4161
    %v5594 = vpack.c.b16 %v4170, %v4162
    %v5595 = vpack.c.b16 %v4171, %v4163
    %v5596 = vpack.c.b16 %v4172, %v4164
    %v5597 = vpack.c.b16 %v4181, %v4173
    %v5598 = vpack.c.b16 %v4182, %v4174
    %v5599 = vpack.c.b16 %v4183, %v4175
    %v5600 = vpack.c.b16 %v4184, %v4176
    %v5601 = vpack.c.b16 %v4185, %v4177
    %v5602 = vpack.c.b16 %v4186, %v4178
    %v5603 = vpack.c.b16 %v4187, %v4179
    %v5604 = vpack.c.b16 %v4188, %v4180
    %v5605 = vpack.c.b16 %v4197, %v4189
    %v5606 = vpack.c.b16 %v4198, %v4190
    %v5607 = vpack.c.b16 %v4199, %v4191
    %v5608 = vpack.c.b16 %v4200, %v4192
    %v5609 = vpack.c.b16 %v4201, %v4193
    %v5610 = vpack.c.b16 %v4202, %v4194
    %v5611 = vpack.c.b16 %v4203, %v4195
    %v5612 = vpack.c.b16 %v4204, %v4196
    %v5613 = vpack.c.b16 %v4213, %v4205
    %v5614 = vpack.c.b16 %v4214, %v4206
    %v5615 = vpack.c.b16 %v4215, %v4207
    %v5616 = vpack.c.b16 %v4216, %v4208
    %v5617 = vpack.c.b16 %v4217, %v4209
    %v5618 = vpack.c.b16 %v4218, %v4210
    %v5619 = vpack.c.b16 %v4219, %v4211
    %v5620 = vpack.c.b16 %v4220, %v4212
    %v5621 = vpack.c.b16 %v4229, %v4221
    %v5622 = vpack.c.b16 %v4230, %v4222
    %v5623 = vpack.c.b16 %v4231, %v4223
    %v5624 = vpack.c.b16 %v4232, %v4224
    %v5625 = vpack.c.b16 %v4233, %v4225
    %v5626 = vpack.c.b16 %v4234, %v4226
    %v5627 = vpack.c.b16 %v4235, %v4227
    %v5628 = vpack.c.b16 %v4236, %v4228
    %v5629 = vpack.c.b16 %v4245, %v4237
    %v5630 = vpack.c.b16 %v4246, %v4238
    %v5631 = vpack.c.b16 %v4247, %v4239
    %v5632 = vpack.c.b16 %v4248, %v4240
    %v5633 = vpack.c.b16 %v4249, %v4241
    %v5634 = vpack.c.b16 %v4250, %v4242
    %v5635 = vpack.c.b16 %v4251, %v4243
    %v5636 = vpack.c.b16 %v4252, %v4244
    %v5637 = vpack.c.b16 %v4261, %v4253
    %v5638 = vpack.c.b16 %v4262, %v4254
    %v5639 = vpack.c.b16 %v4263, %v4255
    %v5640 = vpack.c.b16 %v4264, %v4256
    %v5641 = vpack.c.b16 %v4265, %v4257
    %v5642 = vpack.c.b16 %v4266, %v4258
    %v5643 = vpack.c.b16 %v4267, %v4259
    %v5644 = vpack.c.b16 %v4268, %v4260
    %v5645 = vpack.c.b16 %v4277, %v4269
    %v5646 = vpack.c.b16 %v4278, %v4270
    %v5647 = vpack.c.b16 %v4279, %v4271
    %v5648 = vpack.c.b16 %v4280, %v4272
    %v5649 = vpack.c.b16 %v4281, %v4273
    %v5650 = vpack.c.b16 %v4282, %v4274
    %v5651 = vpack.c.b16 %v4283, %v4275
    %v5652 = vpack.c.b16 %v4284, %v4276
    %v5653 = vpack.c.b16 %v4293, %v4285
    %v5654 = vpack.c.b16 %v4294, %v4286
    %v5655 = vpack.c.b16 %v4295, %v4287
    %v5656 = vpack.c.b16 %v4296, %v4288
    %v5657 = vpack.c.b16 %v4297, %v4289
    %v5658 = vpack.c.b16 %v4298, %v4290
    %v5659 = vpack.c.b16 %v4299, %v4291
    %v5660 = vpack.c.b16 %v4300, %v4292
    %v5661 = vpack.c.b16 %v4309, %v4301
    %v5662 = vpack.c.b16 %v4310, %v4302
    %v5663 = vpack.c.b16 %v4311, %v4303
    %v5664 = vpack.c.b16 %v4312, %v4304
    %v5665 = vpack.c.b16 %v4313, %v4305
    %v5666 = vpack.c.b16 %v4314, %v4306
    %v5667 = vpack.c.b16 %v4315, %v4307
    %v5668 = vpack.c.b16 %v4316, %v4308
    %v5669 = vpack.c.b16 %v4325, %v4317
    %v5670 = vpack.c.b16 %v4326, %v4318
    %v5671 = vpack.c.b16 %v4327, %v4319
    %v5672 = vpack.c.b16 %v4328, %v4320
    %v5673 = vpack.c.b16 %v4329, %v4321
    %v5674 = vpack.c.b16 %v4330, %v4322
    %v5675 = vpack.c.b16 %v4331, %v4323
    %v5676 = vpack.c.b16 %v4332, %v4324
    %v5677 = vpack.c.b16 %v4341, %v4333
    %v5678 = vpack.c.b16 %v4342, %v4334
    %v5679 = vpack.c.b16 %v4343, %v4335
    %v5680 = vpack.c.b16 %v4344, %v4336
    %v5681 = vpack.c.b16 %v4345, %v4337
    %v5682 = vpack.c.b16 %v4346, %v4338
    %v5683 = vpack.c.b16 %v4347, %v4339
    %v5684 = vpack.c.b16 %v4348, %v4340
    %v5685 = vpack.c.b16 %v4357, %v4349
    %v5686 = vpack.c.b16 %v4358, %v4350
    %v5687 = vpack.c.b16 %v4359, %v4351
    %v5688 = vpack.c.b16 %v4360, %v4352
    %v5689 = vpack.c.b16 %v4361, %v4353
    %v5690 = vpack.c.b16 %v4362, %v4354
    %v5691 = vpack.c.b16 %v4363, %v4355
    %v5692 = vpack.c.b16 %v4364, %v4356
    %v5693 = vpack.c.b16 %v4373, %v4365
    %v5694 = vpack.c.b16 %v4374, %v4366
    %v5695 = vpack.c.b16 %v4375, %v4367
    %v5696 = vpack.c.b16 %v4376, %v4368
    %v5697 = vpack.c.b16 %v4377, %v4369
    %v5698 = vpack.c.b16 %v4378, %v4370
    %v5699 = vpack.c.b16 %v4379, %v4371
    %v5700 = vpack.c.b16 %v4380, %v4372
    %v5701 = vpack.c.b16 %v4389, %v4381
    %v5702 = vpack.c.b16 %v4390, %v4382
    %v5703 = vpack.c.b16 %v4391, %v4383
    %v5704 = vpack.c.b16 %v4392, %v4384
    %v5705 = vpack.c.b16 %v4393, %v4385
    %v5706 = vpack.c.b16 %v4394, %v4386
    %v5707 = vpack.c.b16 %v4395, %v4387
    %v5708 = vpack.c.b16 %v4396, %v4388
    %v5709 = vpack.c.b16 %v4405, %v4397
    %v5710 = vpack.c.b16 %v4406, %v4398
    %v5711 = vpack.c.b16 %v4407, %v4399
    %v5712 = vpack.c.b16 %v4408, %v4400
    %v5713 = vpack.c.b16 %v4409, %v4401
    %v5714 = vpack.c.b16 %v4410, %v4402
    %v5715 = vpack.c.b16 %v4411, %v4403
    %v5716 = vpack.c.b16 %v4412, %v4404
    %v5717 = vpack.c.b16 %v4421, %v4413
    %v5718 = vpack.c.b16 %v4422, %v4414
    %v5719 = vpack.c.b16 %v4423, %v4415
    %v5720 = vpack.c.b16 %v4424, %v4416
    %v5721 = vpack.c.b16 %v4425, %v4417
    %v5722 = vpack.c.b16 %v4426, %v4418
    %v5723 = vpack.c.b16 %v4427, %v4419
    %v5724 = vpack.c.b16 %v4428, %v4420
    %v5725 = vpack.c.b16 %v4437, %v4429
    %v5726 = vpack.c.b16 %v4438, %v4430
    %v5727 = vpack.c.b16 %v4439, %v4431
    %v5728 = vpack.c.b16 %v4440, %v4432
    %v5729 = vpack.c.b16 %v4441, %v4433
    %v5730 = vpack.c.b16 %v4442, %v4434
    %v5731 = vpack.c.b16 %v4443, %v4435
    %v5732 = vpack.c.b16 %v4444, %v4436
    %v5733 = vpack.c.b16 %v4453, %v4445
    %v5734 = vpack.c.b16 %v4454, %v4446
    %v5735 = vpack.c.b16 %v4455, %v4447
    %v5736 = vpack.c.b16 %v4456, %v4448
    %v5737 = vpack.c.b16 %v4457, %v4449
    %v5738 = vpack.c.b16 %v4458, %v4450
    %v5739 = vpack.c.b16 %v4459, %v4451
    %v5740 = vpack.c.b16 %v4460, %v4452
    %v5741 = vpack.c.b16 %v4469, %v4461
    %v5742 = vpack.c.b16 %v4470, %v4462
    %v5743 = vpack.c.b16 %v4471, %v4463
    %v5744 = vpack.c.b16 %v4472, %v4464
    %v5745 = vpack.c.b16 %v4473, %v4465
    %v5746 = vpack.c.b16 %v4474, %v4466
    %v5747 = vpack.c.b16 %v4475, %v4467
    %v5748 = vpack.c.b16 %v4476, %v4468
    %v5749 = vpack.c.b16 %v4485, %v4477
    %v5750 = vpack.c.b16 %v4486, %v4478
    %v5751 = vpack.c.b16 %v4487, %v4479
    %v5752 = vpack.c.b16 %v4488, %v4480
    %v5753 = vpack.c.b16 %v4489, %v4481
    %v5754 = vpack.c.b16 %v4490, %v4482
    %v5755 = vpack.c.b16 %v4491, %v4483
    %v5756 = vpack.c.b16 %v4492, %v4484
    %v5757 = vpack.c.b16 %v4501, %v4493
    %v5758 = vpack.c.b16 %v4502, %v4494
    %v5759 = vpack.c.b16 %v4503, %v4495
    %v5760 = vpack.c.b16 %v4504, %v4496
    %v5761 = vpack.c.b16 %v4505, %v4497
    %v5762 = vpack.c.b16 %v4506, %v4498
    %v5763 = vpack.c.b16 %v4507, %v4499
    %v5764 = vpack.c.b16 %v4508, %v4500
    %v5765 = vpack.c.b16 %v4517, %v4509
    %v5766 = vpack.c.b16 %v4518, %v4510
    %v5767 = vpack.c.b16 %v4519, %v4511
    %v5768 = vpack.c.b16 %v4520, %v4512
    %v5769 = vpack.c.b16 %v4521, %v4513
    %v5770 = vpack.c.b16 %v4522, %v4514
    %v5771 = vpack.c.b16 %v4523, %v4515
    %v5772 = vpack.c.b16 %v4524, %v4516
    %v5773 = vpack.c.b16 %v4533, %v4525
    %v5774 = vpack.c.b16 %v4534, %v4526
    %v5775 = vpack.c.b16 %v4535, %v4527
    %v5776 = vpack.c.b16 %v4536, %v4528
    %v5777 = vpack.c.b16 %v4537, %v4529
    %v5778 = vpack.c.b16 %v4538, %v4530
    %v5779 = vpack.c.b16 %v4539, %v4531
    %v5780 = vpack.c.b16 %v4540, %v4532
    %v5781 = vpack.c.b16 %v4549, %v4541
    %v5782 = vpack.c.b16 %v4550, %v4542
    %v5783 = vpack.c.b16 %v4551, %v4543
    %v5784 = vpack.c.b16 %v4552, %v4544
    %v5785 = vpack.c.b16 %v4553, %v4545
    %v5786 = vpack.c.b16 %v4554, %v4546
    %v5787 = vpack.c.b16 %v4555, %v4547
    %v5788 = vpack.c.b16 %v4556, %v4548
    %v5789 = vpack.c.b16 %v4565, %v4557
    %v5790 = vpack.c.b16 %v4566, %v4558
    %v5791 = vpack.c.b16 %v4567, %v4559
    %v5792 = vpack.c.b16 %v4568, %v4560
    %v5793 = vpack.c.b16 %v4569, %v4561
    %v5794 = vpack.c.b16 %v4570, %v4562
    %v5795 = vpack.c.b16 %v4571, %v4563
    %v5796 = vpack.c.b16 %v4572, %v4564
    %v5797 = vpack.c.b16 %v4581, %v4573
    %v5798 = vpack.c.b16 %v4582, %v4574
    %v5799 = vpack.c.b16 %v4583, %v4575
    %v5800 = vpack.c.b16 %v4584, %v4576
    %v5801 = vpack.c.b16 %v4585, %v4577
    %v5802 = vpack.c.b16 %v4586, %v4578
    %v5803 = vpack.c.b16 %v4587, %v4579
    %v5804 = vpack.c.b16 %v4588, %v4580
    %v5805 = vpack.c.b16 %v4597, %v4589
    %v5806 = vpack.c.b16 %v4598, %v4590
    %v5807 = vpack.c.b16 %v4599, %v4591
    %v5808 = vpack.c.b16 %v4600, %v4592
    %v5809 = vpack.c.b16 %v4601, %v4593
    %v5810 = vpack.c.b16 %v4602, %v4594
    %v5811 = vpack.c.b16 %v4603, %v4595
    %v5812 = vpack.c.b16 %v4604, %v4596
    %v5813 = vpack.c.b16 %v4613, %v4605
    %v5814 = vpack.c.b16 %v4614, %v4606
    %v5815 = vpack.c.b16 %v4615, %v4607
    %v5816 = vpack.c.b16 %v4616, %v4608
    %v5817 = vpack.c.b16 %v4617, %v4609
    %v5818 = vpack.c.b16 %v4618, %v4610
    %v5819 = vpack.c.b16 %v4619, %v4611
    %v5820 = vpack.c.b16 %v4620, %v4612
    %v5821 = vpack.c.b16 %v4629, %v4621
    %v5822 = vpack.c.b16 %v4630, %v4622
    %v5823 = vpack.c.b16 %v4631, %v4623
    %v5824 = vpack.c.b16 %v4632, %v4624
    %v5825 = vpack.c.b16 %v4633, %v4625
    %v5826 = vpack.c.b16 %v4634, %v4626
    %v5827 = vpack.c.b16 %v4635, %v4627
    %v5828 = vpack.c.b16 %v4636, %v4628
    %v5829 = vpack.c.b16 %v4645, %v4637
    %v5830 = vpack.c.b16 %v4646, %v4638
    %v5831 = vpack.c.b16 %v4647, %v4639
    %v5832 = vpack.c.b16 %v4648, %v4640
    %v5833 = vpack.c.b16 %v4649, %v4641
    %v5834 = vpack.c.b16 %v4650, %v4642
    %v5835 = vpack.c.b16 %v4651, %v4643
    %v5836 = vpack.c.b16 %v4652, %v4644
    %v5837 = vpack.c.b16 %v4661, %v4653
    %v5838 = vpack.c.b16 %v4662, %v4654
    %v5839 = vpack.c.b16 %v4663, %v4655
    %v5840 = vpack.c.b16 %v4664, %v4656
    %v5841 = vpack.c.b16 %v4665, %v4657
    %v5842 = vpack.c.b16 %v4666, %v4658
    %v5843 = vpack.c.b16 %v4667, %v4659
    %v5844 = vpack.c.b16 %v4668, %v4660
    %v5845 = vpack.c.b16 %v4677, %v4669
    %v5846 = vpack.c.b16 %v4678, %v4670
    %v5847 = vpack.c.b16 %v4679, %v4671
    %v5848 = vpack.c.b16 %v4680, %v4672
    %v5849 = vpack.c.b16 %v4681, %v4673
    %v5850 = vpack.c.b16 %v4682, %v4674
    %v5851 = vpack.c.b16 %v4683, %v4675
    %v5852 = vpack.c.b16 %v4684, %v4676
    %v5853 = vpack.c.b16 %v4693, %v4685
    %v5854 = vpack.c.b16 %v4694, %v4686
    %v5855 = vpack.c.b16 %v4695, %v4687
    %v5856 = vpack.c.b16 %v4696, %v4688
    %v5857 = vpack.c.b16 %v4697, %v4689
    %v5858 = vpack.c.b16 %v4698, %v4690
    %v5859 = vpack.c.b16 %v4699, %v4691
    %v5860 = vpack.c.b16 %v4700, %v4692
    %v5861 = vpack.c.b16 %v4709, %v4701
    %v5862 = vpack.c.b16 %v4710, %v4702
    %v5863 = vpack.c.b16 %v4711, %v4703
    %v5864 = vpack.c.b16 %v4712, %v4704
    %v5865 = vpack.c.b16 %v4713, %v4705
    %v5866 = vpack.c.b16 %v4714, %v4706
    %v5867 = vpack.c.b16 %v4715, %v4707
    %v5868 = vpack.c.b16 %v4716, %v4708
    %7021 = vmatpush.bf16.msra.mxu0 %v4773
    %7022 = vmatpush.bf16.msra.mxu0 %v4765
    %7023 = vmatpush.bf16.msra.mxu0 %v4757
    %7024 = vmatpush.bf16.msra.mxu0 %v4749
    %7025 = vmatpush.bf16.msra.mxu0 %v4741
    %7026 = vmatpush.bf16.msra.mxu0 %v4733
    %7027 = vmatpush.bf16.msra.mxu0 %v4725
    %7028 = vmatpush.bf16.msra.mxu0 %v4717
    %7029 = vmatmul.bf16.gmra.mxu0 %v73
    %v7030 = vpop.f32.mrf.mxu0
    %v7031 = vadd.f32 %v1245, %v7030
    %v7032 = vpop.f32.mrf.mxu0
    %7033 = vdwg.mxu0
    %7034 = vmatpush.bf16.msra.mxu0 %v4837
    %7035 = vmatpush.bf16.msra.mxu0 %v4829
    %7036 = vmatpush.bf16.msra.mxu0 %v4821
    %7037 = vmatpush.bf16.msra.mxu0 %v4813
    %7038 = vmatpush.bf16.msra.mxu0 %v4805
    %7039 = vmatpush.bf16.msra.mxu0 %v4797
    %7040 = vmatpush.bf16.msra.mxu0 %v4789
    %7041 = vmatpush.bf16.msra.mxu0 %v4781
    %7042 = vmatmul.bf16.gmra.mxu0 %v74
    %v7043 = vpop.f32.mrf.mxu0
    %v7044 = vadd.f32 %v7031, %v7043
    %v7045 = vpop.f32.mrf.mxu0
    %7046 = vdwg.mxu0
    %7047 = vmatpush.bf16.msra.mxu0 %v4901
    %7048 = vmatpush.bf16.msra.mxu0 %v4893
    %7049 = vmatpush.bf16.msra.mxu0 %v4885
    %7050 = vmatpush.bf16.msra.mxu0 %v4877
    %7051 = vmatpush.bf16.msra.mxu0 %v4869
    %7052 = vmatpush.bf16.msra.mxu0 %v4861
    %7053 = vmatpush.bf16.msra.mxu0 %v4853
    %7054 = vmatpush.bf16.msra.mxu0 %v4845
    %7055 = vmatmul.bf16.gmra.mxu0 %v75
    %v7056 = vpop.f32.mrf.mxu0
    %v7057 = vadd.f32 %v7044, %v7056
    %v7058 = vpop.f32.mrf.mxu0
    %7059 = vdwg.mxu0
    %7060 = vmatpush.bf16.msra.mxu0 %v4965
    %7061 = vmatpush.bf16.msra.mxu0 %v4957
    %7062 = vmatpush.bf16.msra.mxu0 %v4949
    %7063 = vmatpush.bf16.msra.mxu0 %v4941
    %7064 = vmatpush.bf16.msra.mxu0 %v4933
    %7065 = vmatpush.bf16.msra.mxu0 %v4925
    %7066 = vmatpush.bf16.msra.mxu0 %v4917
    %7067 = vmatpush.bf16.msra.mxu0 %v4909
    %7068 = vmatmul.bf16.gmra.mxu0 %v76
    %v7069 = vpop.f32.mrf.mxu0
    %v7070 = vadd.f32 %v7057, %v7069
    %v7071 = vpop.f32.mrf.mxu0
    %7072 = vdwg.mxu0
    %7073 = vmatpush.bf16.msra.mxu0 %v5029
    %7074 = vmatpush.bf16.msra.mxu0 %v5021
    %7075 = vmatpush.bf16.msra.mxu0 %v5013
    %7076 = vmatpush.bf16.msra.mxu0 %v5005
    %7077 = vmatpush.bf16.msra.mxu0 %v4997
    %7078 = vmatpush.bf16.msra.mxu0 %v4989
    %7079 = vmatpush.bf16.msra.mxu0 %v4981
    %7080 = vmatpush.bf16.msra.mxu0 %v4973
    %7081 = vmatmul.bf16.gmra.mxu0 %v77
    %v7082 = vpop.f32.mrf.mxu0
    %v7083 = vadd.f32 %v7070, %v7082
    %v7084 = vpop.f32.mrf.mxu0
    %7085 = vdwg.mxu0
    %7086 = vmatpush.bf16.msra.mxu0 %v5093
    %7087 = vmatpush.bf16.msra.mxu0 %v5085
    %7088 = vmatpush.bf16.msra.mxu0 %v5077
    %7089 = vmatpush.bf16.msra.mxu0 %v5069
    %7090 = vmatpush.bf16.msra.mxu0 %v5061
    %7091 = vmatpush.bf16.msra.mxu0 %v5053
    %7092 = vmatpush.bf16.msra.mxu0 %v5045
    %7093 = vmatpush.bf16.msra.mxu0 %v5037
    %7094 = vmatmul.bf16.gmra.mxu0 %v78
    %v7095 = vpop.f32.mrf.mxu0
    %v7096 = vadd.f32 %v7083, %v7095
    %v7097 = vpop.f32.mrf.mxu0
    %7098 = vdwg.mxu0
    %7099 = vmatpush.bf16.msra.mxu0 %v5157
    %7100 = vmatpush.bf16.msra.mxu0 %v5149
    %7101 = vmatpush.bf16.msra.mxu0 %v5141
    %7102 = vmatpush.bf16.msra.mxu0 %v5133
    %7103 = vmatpush.bf16.msra.mxu0 %v5125
    %7104 = vmatpush.bf16.msra.mxu0 %v5117
    %7105 = vmatpush.bf16.msra.mxu0 %v5109
    %7106 = vmatpush.bf16.msra.mxu0 %v5101
    %7107 = vmatmul.bf16.gmra.mxu0 %v79
    %v7108 = vpop.f32.mrf.mxu0
    %v7109 = vadd.f32 %v7096, %v7108
    %v7110 = vpop.f32.mrf.mxu0
    %7111 = vdwg.mxu0
    %7112 = vmatpush.bf16.msra.mxu0 %v5221
    %7113 = vmatpush.bf16.msra.mxu0 %v5213
    %7114 = vmatpush.bf16.msra.mxu0 %v5205
    %7115 = vmatpush.bf16.msra.mxu0 %v5197
    %7116 = vmatpush.bf16.msra.mxu0 %v5189
    %7117 = vmatpush.bf16.msra.mxu0 %v5181
    %7118 = vmatpush.bf16.msra.mxu0 %v5173
    %7119 = vmatpush.bf16.msra.mxu0 %v5165
    %7120 = vmatmul.bf16.gmra.mxu0 %v80
    %v7121 = vpop.f32.mrf.mxu0
    %v7122 = vadd.f32 %v7109, %v7121
    %v7123 = vpop.f32.mrf.mxu0
    %7124 = vdwg.mxu0
    %7125 = vmatpush.bf16.msra.mxu0 %v5285
    %7126 = vmatpush.bf16.msra.mxu0 %v5277
    %7127 = vmatpush.bf16.msra.mxu0 %v5269
    %7128 = vmatpush.bf16.msra.mxu0 %v5261
    %7129 = vmatpush.bf16.msra.mxu0 %v5253
    %7130 = vmatpush.bf16.msra.mxu0 %v5245
    %7131 = vmatpush.bf16.msra.mxu0 %v5237
    %7132 = vmatpush.bf16.msra.mxu0 %v5229
    %7133 = vmatmul.bf16.gmra.mxu0 %v81
    %v7134 = vpop.f32.mrf.mxu0
    %v7135 = vadd.f32 %v7122, %v7134
    %v7136 = vpop.f32.mrf.mxu0
    %7137 = vdwg.mxu0
    %7138 = vmatpush.bf16.msra.mxu0 %v5349
    %7139 = vmatpush.bf16.msra.mxu0 %v5341
    %7140 = vmatpush.bf16.msra.mxu0 %v5333
    %7141 = vmatpush.bf16.msra.mxu0 %v5325
    %7142 = vmatpush.bf16.msra.mxu0 %v5317
    %7143 = vmatpush.bf16.msra.mxu0 %v5309
    %7144 = vmatpush.bf16.msra.mxu0 %v5301
    %7145 = vmatpush.bf16.msra.mxu0 %v5293
    %7146 = vmatmul.bf16.gmra.mxu0 %v82
    %v7147 = vpop.f32.mrf.mxu0
    %v7148 = vadd.f32 %v7135, %v7147
    %v7149 = vpop.f32.mrf.mxu0
    %7150 = vdwg.mxu0
    %7151 = vmatpush.bf16.msra.mxu0 %v5413
    %7152 = vmatpush.bf16.msra.mxu0 %v5405
    %7153 = vmatpush.bf16.msra.mxu0 %v5397
    %7154 = vmatpush.bf16.msra.mxu0 %v5389
    %7155 = vmatpush.bf16.msra.mxu0 %v5381
    %7156 = vmatpush.bf16.msra.mxu0 %v5373
    %7157 = vmatpush.bf16.msra.mxu0 %v5365
    %7158 = vmatpush.bf16.msra.mxu0 %v5357
    %7159 = vmatmul.bf16.gmra.mxu0 %v83
    %v7160 = vpop.f32.mrf.mxu0
    %v7161 = vadd.f32 %v7148, %v7160
    %v7162 = vpop.f32.mrf.mxu0
    %7163 = vdwg.mxu0
    %7164 = vmatpush.bf16.msra.mxu0 %v5477
    %7165 = vmatpush.bf16.msra.mxu0 %v5469
    %7166 = vmatpush.bf16.msra.mxu0 %v5461
    %7167 = vmatpush.bf16.msra.mxu0 %v5453
    %7168 = vmatpush.bf16.msra.mxu0 %v5445
    %7169 = vmatpush.bf16.msra.mxu0 %v5437
    %7170 = vmatpush.bf16.msra.mxu0 %v5429
    %7171 = vmatpush.bf16.msra.mxu0 %v5421
    %7172 = vmatmul.bf16.gmra.mxu0 %v84
    %v7173 = vpop.f32.mrf.mxu0
    %v7174 = vadd.f32 %v7161, %v7173
    %v7175 = vpop.f32.mrf.mxu0
    %7176 = vdwg.mxu0
    %7177 = vmatpush.bf16.msra.mxu0 %v5541
    %7178 = vmatpush.bf16.msra.mxu0 %v5533
    %7179 = vmatpush.bf16.msra.mxu0 %v5525
    %7180 = vmatpush.bf16.msra.mxu0 %v5517
    %7181 = vmatpush.bf16.msra.mxu0 %v5509
    %7182 = vmatpush.bf16.msra.mxu0 %v5501
    %7183 = vmatpush.bf16.msra.mxu0 %v5493
    %7184 = vmatpush.bf16.msra.mxu0 %v5485
    %7185 = vmatmul.bf16.gmra.mxu0 %v85
    %v7186 = vpop.f32.mrf.mxu0
    %v7187 = vadd.f32 %v7174, %v7186
    %v7188 = vpop.f32.mrf.mxu0
    %7189 = vdwg.mxu0
    %7190 = vmatpush.bf16.msra.mxu0 %v5605
    %7191 = vmatpush.bf16.msra.mxu0 %v5597
    %7192 = vmatpush.bf16.msra.mxu0 %v5589
    %7193 = vmatpush.bf16.msra.mxu0 %v5581
    %7194 = vmatpush.bf16.msra.mxu0 %v5573
    %7195 = vmatpush.bf16.msra.mxu0 %v5565
    %7196 = vmatpush.bf16.msra.mxu0 %v5557
    %7197 = vmatpush.bf16.msra.mxu0 %v5549
    %7198 = vmatmul.bf16.gmra.mxu0 %v86
    %v7199 = vpop.f32.mrf.mxu0
    %v7200 = vadd.f32 %v7187, %v7199
    %v7201 = vpop.f32.mrf.mxu0
    %7202 = vdwg.mxu0
    %7203 = vmatpush.bf16.msra.mxu0 %v5669
    %7204 = vmatpush.bf16.msra.mxu0 %v5661
    %7205 = vmatpush.bf16.msra.mxu0 %v5653
    %7206 = vmatpush.bf16.msra.mxu0 %v5645
    %7207 = vmatpush.bf16.msra.mxu0 %v5637
    %7208 = vmatpush.bf16.msra.mxu0 %v5629
    %7209 = vmatpush.bf16.msra.mxu0 %v5621
    %7210 = vmatpush.bf16.msra.mxu0 %v5613
    %7211 = vmatmul.bf16.gmra.mxu0 %v87
    %v7212 = vpop.f32.mrf.mxu0
    %v7213 = vadd.f32 %v7200, %v7212
    %v7214 = vpop.f32.mrf.mxu0
    %7215 = vdwg.mxu0
    %7216 = vmatpush.bf16.msra.mxu0 %v5733
    %7217 = vmatpush.bf16.msra.mxu0 %v5725
    %7218 = vmatpush.bf16.msra.mxu0 %v5717
    %7219 = vmatpush.bf16.msra.mxu0 %v5709
    %7220 = vmatpush.bf16.msra.mxu0 %v5701
    %7221 = vmatpush.bf16.msra.mxu0 %v5693
    %7222 = vmatpush.bf16.msra.mxu0 %v5685
    %7223 = vmatpush.bf16.msra.mxu0 %v5677
    %7224 = vmatmul.bf16.gmra.mxu0 %v88
    %v7225 = vpop.f32.mrf.mxu0
    %v7226 = vadd.f32 %v7213, %v7225
    %v7227 = vpop.f32.mrf.mxu0
    %7228 = vdwg.mxu0
    %7229 = vmatpush.bf16.msra.mxu0 %v5797
    %7230 = vmatpush.bf16.msra.mxu0 %v5789
    %7231 = vmatpush.bf16.msra.mxu0 %v5781
    %7232 = vmatpush.bf16.msra.mxu0 %v5773
    %7233 = vmatpush.bf16.msra.mxu0 %v5765
    %7234 = vmatpush.bf16.msra.mxu0 %v5757
    %7235 = vmatpush.bf16.msra.mxu0 %v5749
    %7236 = vmatpush.bf16.msra.mxu0 %v5741
    %7237 = vmatmul.bf16.gmra.mxu0 %v89
    %v7238 = vpop.f32.mrf.mxu0
    %v7239 = vadd.f32 %v7226, %v7238
    %v7240 = vpop.f32.mrf.mxu0
    %7241 = vdwg.mxu0
    %7242 = vmatpush.bf16.msra.mxu0 %v5861
    %7243 = vmatpush.bf16.msra.mxu0 %v5853
    %7244 = vmatpush.bf16.msra.mxu0 %v5845
    %7245 = vmatpush.bf16.msra.mxu0 %v5837
    %7246 = vmatpush.bf16.msra.mxu0 %v5829
    %7247 = vmatpush.bf16.msra.mxu0 %v5821
    %7248 = vmatpush.bf16.msra.mxu0 %v5813
    %7249 = vmatpush.bf16.msra.mxu0 %v5805
    %7250 = vmatmul.bf16.gmra.mxu0 %v90
    %v7251 = vpop.f32.mrf.mxu0
    %v7252 = vadd.f32 %v7239, %v7251
    %v7253 = vpop.f32.mrf.mxu0
    %7254 = vdwg.mxu0
    %7255 = vmatpush.bf16.msra.mxu0 %v4774
    %7256 = vmatpush.bf16.msra.mxu0 %v4766
    %7257 = vmatpush.bf16.msra.mxu0 %v4758
    %7258 = vmatpush.bf16.msra.mxu0 %v4750
    %7259 = vmatpush.bf16.msra.mxu0 %v4742
    %7260 = vmatpush.bf16.msra.mxu0 %v4734
    %7261 = vmatpush.bf16.msra.mxu0 %v4726
    %7262 = vmatpush.bf16.msra.mxu0 %v4718
    %7263 = vmatmul.bf16.gmra.mxu0 %v73
    %v7264 = vpop.f32.mrf.mxu0
    %v7265 = vadd.f32 %v1246, %v7264
    %v7266 = vpop.f32.mrf.mxu0
    %7267 = vdwg.mxu0
    %7268 = vmatpush.bf16.msra.mxu0 %v4838
    %7269 = vmatpush.bf16.msra.mxu0 %v4830
    %7270 = vmatpush.bf16.msra.mxu0 %v4822
    %7271 = vmatpush.bf16.msra.mxu0 %v4814
    %7272 = vmatpush.bf16.msra.mxu0 %v4806
    %7273 = vmatpush.bf16.msra.mxu0 %v4798
    %7274 = vmatpush.bf16.msra.mxu0 %v4790
    %7275 = vmatpush.bf16.msra.mxu0 %v4782
    %7276 = vmatmul.bf16.gmra.mxu0 %v74
    %v7277 = vpop.f32.mrf.mxu0
    %v7278 = vadd.f32 %v7265, %v7277
    %v7279 = vpop.f32.mrf.mxu0
    %7280 = vdwg.mxu0
    %7281 = vmatpush.bf16.msra.mxu0 %v4902
    %7282 = vmatpush.bf16.msra.mxu0 %v4894
    %7283 = vmatpush.bf16.msra.mxu0 %v4886
    %7284 = vmatpush.bf16.msra.mxu0 %v4878
    %7285 = vmatpush.bf16.msra.mxu0 %v4870
    %7286 = vmatpush.bf16.msra.mxu0 %v4862
    %7287 = vmatpush.bf16.msra.mxu0 %v4854
    %7288 = vmatpush.bf16.msra.mxu0 %v4846
    %7289 = vmatmul.bf16.gmra.mxu0 %v75
    %v7290 = vpop.f32.mrf.mxu0
    %v7291 = vadd.f32 %v7278, %v7290
    %v7292 = vpop.f32.mrf.mxu0
    %7293 = vdwg.mxu0
    %7294 = vmatpush.bf16.msra.mxu0 %v4966
    %7295 = vmatpush.bf16.msra.mxu0 %v4958
    %7296 = vmatpush.bf16.msra.mxu0 %v4950
    %7297 = vmatpush.bf16.msra.mxu0 %v4942
    %7298 = vmatpush.bf16.msra.mxu0 %v4934
    %7299 = vmatpush.bf16.msra.mxu0 %v4926
    %7300 = vmatpush.bf16.msra.mxu0 %v4918
    %7301 = vmatpush.bf16.msra.mxu0 %v4910
    %7302 = vmatmul.bf16.gmra.mxu0 %v76
    %v7303 = vpop.f32.mrf.mxu0
    %v7304 = vadd.f32 %v7291, %v7303
    %v7305 = vpop.f32.mrf.mxu0
    %7306 = vdwg.mxu0
    %7307 = vmatpush.bf16.msra.mxu0 %v5030
    %7308 = vmatpush.bf16.msra.mxu0 %v5022
    %7309 = vmatpush.bf16.msra.mxu0 %v5014
    %7310 = vmatpush.bf16.msra.mxu0 %v5006
    %7311 = vmatpush.bf16.msra.mxu0 %v4998
    %7312 = vmatpush.bf16.msra.mxu0 %v4990
    %7313 = vmatpush.bf16.msra.mxu0 %v4982
    %7314 = vmatpush.bf16.msra.mxu0 %v4974
    %7315 = vmatmul.bf16.gmra.mxu0 %v77
    %v7316 = vpop.f32.mrf.mxu0
    %v7317 = vadd.f32 %v7304, %v7316
    %v7318 = vpop.f32.mrf.mxu0
    %7319 = vdwg.mxu0
    %7320 = vmatpush.bf16.msra.mxu0 %v5094
    %7321 = vmatpush.bf16.msra.mxu0 %v5086
    %7322 = vmatpush.bf16.msra.mxu0 %v5078
    %7323 = vmatpush.bf16.msra.mxu0 %v5070
    %7324 = vmatpush.bf16.msra.mxu0 %v5062
    %7325 = vmatpush.bf16.msra.mxu0 %v5054
    %7326 = vmatpush.bf16.msra.mxu0 %v5046
    %7327 = vmatpush.bf16.msra.mxu0 %v5038
    %7328 = vmatmul.bf16.gmra.mxu0 %v78
    %v7329 = vpop.f32.mrf.mxu0
    %v7330 = vadd.f32 %v7317, %v7329
    %v7331 = vpop.f32.mrf.mxu0
    %7332 = vdwg.mxu0
    %7333 = vmatpush.bf16.msra.mxu0 %v5158
    %7334 = vmatpush.bf16.msra.mxu0 %v5150
    %7335 = vmatpush.bf16.msra.mxu0 %v5142
    %7336 = vmatpush.bf16.msra.mxu0 %v5134
    %7337 = vmatpush.bf16.msra.mxu0 %v5126
    %7338 = vmatpush.bf16.msra.mxu0 %v5118
    %7339 = vmatpush.bf16.msra.mxu0 %v5110
    %7340 = vmatpush.bf16.msra.mxu0 %v5102
    %7341 = vmatmul.bf16.gmra.mxu0 %v79
    %v7342 = vpop.f32.mrf.mxu0
    %v7343 = vadd.f32 %v7330, %v7342
    %v7344 = vpop.f32.mrf.mxu0
    %7345 = vdwg.mxu0
    %7346 = vmatpush.bf16.msra.mxu0 %v5222
    %7347 = vmatpush.bf16.msra.mxu0 %v5214
    %7348 = vmatpush.bf16.msra.mxu0 %v5206
    %7349 = vmatpush.bf16.msra.mxu0 %v5198
    %7350 = vmatpush.bf16.msra.mxu0 %v5190
    %7351 = vmatpush.bf16.msra.mxu0 %v5182
    %7352 = vmatpush.bf16.msra.mxu0 %v5174
    %7353 = vmatpush.bf16.msra.mxu0 %v5166
    %7354 = vmatmul.bf16.gmra.mxu0 %v80
    %v7355 = vpop.f32.mrf.mxu0
    %v7356 = vadd.f32 %v7343, %v7355
    %v7357 = vpop.f32.mrf.mxu0
    %7358 = vdwg.mxu0
    %7359 = vmatpush.bf16.msra.mxu0 %v5286
    %7360 = vmatpush.bf16.msra.mxu0 %v5278
    %7361 = vmatpush.bf16.msra.mxu0 %v5270
    %7362 = vmatpush.bf16.msra.mxu0 %v5262
    %7363 = vmatpush.bf16.msra.mxu0 %v5254
    %7364 = vmatpush.bf16.msra.mxu0 %v5246
    %7365 = vmatpush.bf16.msra.mxu0 %v5238
    %7366 = vmatpush.bf16.msra.mxu0 %v5230
    %7367 = vmatmul.bf16.gmra.mxu0 %v81
    %v7368 = vpop.f32.mrf.mxu0
    %v7369 = vadd.f32 %v7356, %v7368
    %v7370 = vpop.f32.mrf.mxu0
    %7371 = vdwg.mxu0
    %7372 = vmatpush.bf16.msra.mxu0 %v5350
    %7373 = vmatpush.bf16.msra.mxu0 %v5342
    %7374 = vmatpush.bf16.msra.mxu0 %v5334
    %7375 = vmatpush.bf16.msra.mxu0 %v5326
    %7376 = vmatpush.bf16.msra.mxu0 %v5318
    %7377 = vmatpush.bf16.msra.mxu0 %v5310
    %7378 = vmatpush.bf16.msra.mxu0 %v5302
    %7379 = vmatpush.bf16.msra.mxu0 %v5294
    %7380 = vmatmul.bf16.gmra.mxu0 %v82
    %v7381 = vpop.f32.mrf.mxu0
    %v7382 = vadd.f32 %v7369, %v7381
    %v7383 = vpop.f32.mrf.mxu0
    %7384 = vdwg.mxu0
    %7385 = vmatpush.bf16.msra.mxu0 %v5414
    %7386 = vmatpush.bf16.msra.mxu0 %v5406
    %7387 = vmatpush.bf16.msra.mxu0 %v5398
    %7388 = vmatpush.bf16.msra.mxu0 %v5390
    %7389 = vmatpush.bf16.msra.mxu0 %v5382
    %7390 = vmatpush.bf16.msra.mxu0 %v5374
    %7391 = vmatpush.bf16.msra.mxu0 %v5366
    %7392 = vmatpush.bf16.msra.mxu0 %v5358
    %7393 = vmatmul.bf16.gmra.mxu0 %v83
    %v7394 = vpop.f32.mrf.mxu0
    %v7395 = vadd.f32 %v7382, %v7394
    %v7396 = vpop.f32.mrf.mxu0
    %7397 = vdwg.mxu0
    %7398 = vmatpush.bf16.msra.mxu0 %v5478
    %7399 = vmatpush.bf16.msra.mxu0 %v5470
    %7400 = vmatpush.bf16.msra.mxu0 %v5462
    %7401 = vmatpush.bf16.msra.mxu0 %v5454
    %7402 = vmatpush.bf16.msra.mxu0 %v5446
    %7403 = vmatpush.bf16.msra.mxu0 %v5438
    %7404 = vmatpush.bf16.msra.mxu0 %v5430
    %7405 = vmatpush.bf16.msra.mxu0 %v5422
    %7406 = vmatmul.bf16.gmra.mxu0 %v84
    %v7407 = vpop.f32.mrf.mxu0
    %v7408 = vadd.f32 %v7395, %v7407
    %v7409 = vpop.f32.mrf.mxu0
    %7410 = vdwg.mxu0
    %7411 = vmatpush.bf16.msra.mxu0 %v5542
    %7412 = vmatpush.bf16.msra.mxu0 %v5534
    %7413 = vmatpush.bf16.msra.mxu0 %v5526
    %7414 = vmatpush.bf16.msra.mxu0 %v5518
    %7415 = vmatpush.bf16.msra.mxu0 %v5510
    %7416 = vmatpush.bf16.msra.mxu0 %v5502
    %7417 = vmatpush.bf16.msra.mxu0 %v5494
    %7418 = vmatpush.bf16.msra.mxu0 %v5486
    %7419 = vmatmul.bf16.gmra.mxu0 %v85
    %v7420 = vpop.f32.mrf.mxu0
    %v7421 = vadd.f32 %v7408, %v7420
    %v7422 = vpop.f32.mrf.mxu0
    %7423 = vdwg.mxu0
    %7424 = vmatpush.bf16.msra.mxu0 %v5606
    %7425 = vmatpush.bf16.msra.mxu0 %v5598
    %7426 = vmatpush.bf16.msra.mxu0 %v5590
    %7427 = vmatpush.bf16.msra.mxu0 %v5582
    %7428 = vmatpush.bf16.msra.mxu0 %v5574
    %7429 = vmatpush.bf16.msra.mxu0 %v5566
    %7430 = vmatpush.bf16.msra.mxu0 %v5558
    %7431 = vmatpush.bf16.msra.mxu0 %v5550
    %7432 = vmatmul.bf16.gmra.mxu0 %v86
    %v7433 = vpop.f32.mrf.mxu0
    %v7434 = vadd.f32 %v7421, %v7433
    %v7435 = vpop.f32.mrf.mxu0
    %7436 = vdwg.mxu0
    %7437 = vmatpush.bf16.msra.mxu0 %v5670
    %7438 = vmatpush.bf16.msra.mxu0 %v5662
    %7439 = vmatpush.bf16.msra.mxu0 %v5654
    %7440 = vmatpush.bf16.msra.mxu0 %v5646
    %7441 = vmatpush.bf16.msra.mxu0 %v5638
    %7442 = vmatpush.bf16.msra.mxu0 %v5630
    %7443 = vmatpush.bf16.msra.mxu0 %v5622
    %7444 = vmatpush.bf16.msra.mxu0 %v5614
    %7445 = vmatmul.bf16.gmra.mxu0 %v87
    %v7446 = vpop.f32.mrf.mxu0
    %v7447 = vadd.f32 %v7434, %v7446
    %v7448 = vpop.f32.mrf.mxu0
    %7449 = vdwg.mxu0
    %7450 = vmatpush.bf16.msra.mxu0 %v5734
    %7451 = vmatpush.bf16.msra.mxu0 %v5726
    %7452 = vmatpush.bf16.msra.mxu0 %v5718
    %7453 = vmatpush.bf16.msra.mxu0 %v5710
    %7454 = vmatpush.bf16.msra.mxu0 %v5702
    %7455 = vmatpush.bf16.msra.mxu0 %v5694
    %7456 = vmatpush.bf16.msra.mxu0 %v5686
    %7457 = vmatpush.bf16.msra.mxu0 %v5678
    %7458 = vmatmul.bf16.gmra.mxu0 %v88
    %v7459 = vpop.f32.mrf.mxu0
    %v7460 = vadd.f32 %v7447, %v7459
    %v7461 = vpop.f32.mrf.mxu0
    %7462 = vdwg.mxu0
    %7463 = vmatpush.bf16.msra.mxu0 %v5798
    %7464 = vmatpush.bf16.msra.mxu0 %v5790
    %7465 = vmatpush.bf16.msra.mxu0 %v5782
    %7466 = vmatpush.bf16.msra.mxu0 %v5774
    %7467 = vmatpush.bf16.msra.mxu0 %v5766
    %7468 = vmatpush.bf16.msra.mxu0 %v5758
    %7469 = vmatpush.bf16.msra.mxu0 %v5750
    %7470 = vmatpush.bf16.msra.mxu0 %v5742
    %7471 = vmatmul.bf16.gmra.mxu0 %v89
    %v7472 = vpop.f32.mrf.mxu0
    %v7473 = vadd.f32 %v7460, %v7472
    %v7474 = vpop.f32.mrf.mxu0
    %7475 = vdwg.mxu0
    %7476 = vmatpush.bf16.msra.mxu0 %v5862
    %7477 = vmatpush.bf16.msra.mxu0 %v5854
    %7478 = vmatpush.bf16.msra.mxu0 %v5846
    %7479 = vmatpush.bf16.msra.mxu0 %v5838
    %7480 = vmatpush.bf16.msra.mxu0 %v5830
    %7481 = vmatpush.bf16.msra.mxu0 %v5822
    %7482 = vmatpush.bf16.msra.mxu0 %v5814
    %7483 = vmatpush.bf16.msra.mxu0 %v5806
    %7484 = vmatmul.bf16.gmra.mxu0 %v90
    %v7485 = vpop.f32.mrf.mxu0
    %v7486 = vadd.f32 %v7473, %v7485
    %v7487 = vpop.f32.mrf.mxu0
    %7488 = vdwg.mxu0
    %7489 = vmatpush.bf16.msra.mxu0 %v4775
    %7490 = vmatpush.bf16.msra.mxu0 %v4767
    %7491 = vmatpush.bf16.msra.mxu0 %v4759
    %7492 = vmatpush.bf16.msra.mxu0 %v4751
    %7493 = vmatpush.bf16.msra.mxu0 %v4743
    %7494 = vmatpush.bf16.msra.mxu0 %v4735
    %7495 = vmatpush.bf16.msra.mxu0 %v4727
    %7496 = vmatpush.bf16.msra.mxu0 %v4719
    %7497 = vmatmul.bf16.gmra.mxu0 %v73
    %v7498 = vpop.f32.mrf.mxu0
    %v7499 = vadd.f32 %v1247, %v7498
    %v7500 = vpop.f32.mrf.mxu0
    %7501 = vdwg.mxu0
    %7502 = vmatpush.bf16.msra.mxu0 %v4839
    %7503 = vmatpush.bf16.msra.mxu0 %v4831
    %7504 = vmatpush.bf16.msra.mxu0 %v4823
    %7505 = vmatpush.bf16.msra.mxu0 %v4815
    %7506 = vmatpush.bf16.msra.mxu0 %v4807
    %7507 = vmatpush.bf16.msra.mxu0 %v4799
    %7508 = vmatpush.bf16.msra.mxu0 %v4791
    %7509 = vmatpush.bf16.msra.mxu0 %v4783
    %7510 = vmatmul.bf16.gmra.mxu0 %v74
    %v7511 = vpop.f32.mrf.mxu0
    %v7512 = vadd.f32 %v7499, %v7511
    %v7513 = vpop.f32.mrf.mxu0
    %7514 = vdwg.mxu0
    %7515 = vmatpush.bf16.msra.mxu0 %v4903
    %7516 = vmatpush.bf16.msra.mxu0 %v4895
    %7517 = vmatpush.bf16.msra.mxu0 %v4887
    %7518 = vmatpush.bf16.msra.mxu0 %v4879
    %7519 = vmatpush.bf16.msra.mxu0 %v4871
    %7520 = vmatpush.bf16.msra.mxu0 %v4863
    %7521 = vmatpush.bf16.msra.mxu0 %v4855
    %7522 = vmatpush.bf16.msra.mxu0 %v4847
    %7523 = vmatmul.bf16.gmra.mxu0 %v75
    %v7524 = vpop.f32.mrf.mxu0
    %v7525 = vadd.f32 %v7512, %v7524
    %v7526 = vpop.f32.mrf.mxu0
    %7527 = vdwg.mxu0
    %7528 = vmatpush.bf16.msra.mxu0 %v4967
    %7529 = vmatpush.bf16.msra.mxu0 %v4959
    %7530 = vmatpush.bf16.msra.mxu0 %v4951
    %7531 = vmatpush.bf16.msra.mxu0 %v4943
    %7532 = vmatpush.bf16.msra.mxu0 %v4935
    %7533 = vmatpush.bf16.msra.mxu0 %v4927
    %7534 = vmatpush.bf16.msra.mxu0 %v4919
    %7535 = vmatpush.bf16.msra.mxu0 %v4911
    %7536 = vmatmul.bf16.gmra.mxu0 %v76
    %v7537 = vpop.f32.mrf.mxu0
    %v7538 = vadd.f32 %v7525, %v7537
    %v7539 = vpop.f32.mrf.mxu0
    %7540 = vdwg.mxu0
    %7541 = vmatpush.bf16.msra.mxu0 %v5031
    %7542 = vmatpush.bf16.msra.mxu0 %v5023
    %7543 = vmatpush.bf16.msra.mxu0 %v5015
    %7544 = vmatpush.bf16.msra.mxu0 %v5007
    %7545 = vmatpush.bf16.msra.mxu0 %v4999
    %7546 = vmatpush.bf16.msra.mxu0 %v4991
    %7547 = vmatpush.bf16.msra.mxu0 %v4983
    %7548 = vmatpush.bf16.msra.mxu0 %v4975
    %7549 = vmatmul.bf16.gmra.mxu0 %v77
    %v7550 = vpop.f32.mrf.mxu0
    %v7551 = vadd.f32 %v7538, %v7550
    %v7552 = vpop.f32.mrf.mxu0
    %7553 = vdwg.mxu0
    %7554 = vmatpush.bf16.msra.mxu0 %v5095
    %7555 = vmatpush.bf16.msra.mxu0 %v5087
    %7556 = vmatpush.bf16.msra.mxu0 %v5079
    %7557 = vmatpush.bf16.msra.mxu0 %v5071
    %7558 = vmatpush.bf16.msra.mxu0 %v5063
    %7559 = vmatpush.bf16.msra.mxu0 %v5055
    %7560 = vmatpush.bf16.msra.mxu0 %v5047
    %7561 = vmatpush.bf16.msra.mxu0 %v5039
    %7562 = vmatmul.bf16.gmra.mxu0 %v78
    %v7563 = vpop.f32.mrf.mxu0
    %v7564 = vadd.f32 %v7551, %v7563
    %v7565 = vpop.f32.mrf.mxu0
    %7566 = vdwg.mxu0
    %7567 = vmatpush.bf16.msra.mxu0 %v5159
    %7568 = vmatpush.bf16.msra.mxu0 %v5151
    %7569 = vmatpush.bf16.msra.mxu0 %v5143
    %7570 = vmatpush.bf16.msra.mxu0 %v5135
    %7571 = vmatpush.bf16.msra.mxu0 %v5127
    %7572 = vmatpush.bf16.msra.mxu0 %v5119
    %7573 = vmatpush.bf16.msra.mxu0 %v5111
    %7574 = vmatpush.bf16.msra.mxu0 %v5103
    %7575 = vmatmul.bf16.gmra.mxu0 %v79
    %v7576 = vpop.f32.mrf.mxu0
    %v7577 = vadd.f32 %v7564, %v7576
    %v7578 = vpop.f32.mrf.mxu0
    %7579 = vdwg.mxu0
    %7580 = vmatpush.bf16.msra.mxu0 %v5223
    %7581 = vmatpush.bf16.msra.mxu0 %v5215
    %7582 = vmatpush.bf16.msra.mxu0 %v5207
    %7583 = vmatpush.bf16.msra.mxu0 %v5199
    %7584 = vmatpush.bf16.msra.mxu0 %v5191
    %7585 = vmatpush.bf16.msra.mxu0 %v5183
    %7586 = vmatpush.bf16.msra.mxu0 %v5175
    %7587 = vmatpush.bf16.msra.mxu0 %v5167
    %7588 = vmatmul.bf16.gmra.mxu0 %v80
    %v7589 = vpop.f32.mrf.mxu0
    %v7590 = vadd.f32 %v7577, %v7589
    %v7591 = vpop.f32.mrf.mxu0
    %7592 = vdwg.mxu0
    %7593 = vmatpush.bf16.msra.mxu0 %v5287
    %7594 = vmatpush.bf16.msra.mxu0 %v5279
    %7595 = vmatpush.bf16.msra.mxu0 %v5271
    %7596 = vmatpush.bf16.msra.mxu0 %v5263
    %7597 = vmatpush.bf16.msra.mxu0 %v5255
    %7598 = vmatpush.bf16.msra.mxu0 %v5247
    %7599 = vmatpush.bf16.msra.mxu0 %v5239
    %7600 = vmatpush.bf16.msra.mxu0 %v5231
    %7601 = vmatmul.bf16.gmra.mxu0 %v81
    %v7602 = vpop.f32.mrf.mxu0
    %v7603 = vadd.f32 %v7590, %v7602
    %v7604 = vpop.f32.mrf.mxu0
    %7605 = vdwg.mxu0
    %7606 = vmatpush.bf16.msra.mxu0 %v5351
    %7607 = vmatpush.bf16.msra.mxu0 %v5343
    %7608 = vmatpush.bf16.msra.mxu0 %v5335
    %7609 = vmatpush.bf16.msra.mxu0 %v5327
    %7610 = vmatpush.bf16.msra.mxu0 %v5319
    %7611 = vmatpush.bf16.msra.mxu0 %v5311
    %7612 = vmatpush.bf16.msra.mxu0 %v5303
    %7613 = vmatpush.bf16.msra.mxu0 %v5295
    %7614 = vmatmul.bf16.gmra.mxu0 %v82
    %v7615 = vpop.f32.mrf.mxu0
    %v7616 = vadd.f32 %v7603, %v7615
    %v7617 = vpop.f32.mrf.mxu0
    %7618 = vdwg.mxu0
    %7619 = vmatpush.bf16.msra.mxu0 %v5415
    %7620 = vmatpush.bf16.msra.mxu0 %v5407
    %7621 = vmatpush.bf16.msra.mxu0 %v5399
    %7622 = vmatpush.bf16.msra.mxu0 %v5391
    %7623 = vmatpush.bf16.msra.mxu0 %v5383
    %7624 = vmatpush.bf16.msra.mxu0 %v5375
    %7625 = vmatpush.bf16.msra.mxu0 %v5367
    %7626 = vmatpush.bf16.msra.mxu0 %v5359
    %7627 = vmatmul.bf16.gmra.mxu0 %v83
    %v7628 = vpop.f32.mrf.mxu0
    %v7629 = vadd.f32 %v7616, %v7628
    %v7630 = vpop.f32.mrf.mxu0
    %7631 = vdwg.mxu0
    %7632 = vmatpush.bf16.msra.mxu0 %v5479
    %7633 = vmatpush.bf16.msra.mxu0 %v5471
    %7634 = vmatpush.bf16.msra.mxu0 %v5463
    %7635 = vmatpush.bf16.msra.mxu0 %v5455
    %7636 = vmatpush.bf16.msra.mxu0 %v5447
    %7637 = vmatpush.bf16.msra.mxu0 %v5439
    %7638 = vmatpush.bf16.msra.mxu0 %v5431
    %7639 = vmatpush.bf16.msra.mxu0 %v5423
    %7640 = vmatmul.bf16.gmra.mxu0 %v84
    %v7641 = vpop.f32.mrf.mxu0
    %v7642 = vadd.f32 %v7629, %v7641
    %v7643 = vpop.f32.mrf.mxu0
    %7644 = vdwg.mxu0
    %7645 = vmatpush.bf16.msra.mxu0 %v5543
    %7646 = vmatpush.bf16.msra.mxu0 %v5535
    %7647 = vmatpush.bf16.msra.mxu0 %v5527
    %7648 = vmatpush.bf16.msra.mxu0 %v5519
    %7649 = vmatpush.bf16.msra.mxu0 %v5511
    %7650 = vmatpush.bf16.msra.mxu0 %v5503
    %7651 = vmatpush.bf16.msra.mxu0 %v5495
    %7652 = vmatpush.bf16.msra.mxu0 %v5487
    %7653 = vmatmul.bf16.gmra.mxu0 %v85
    %v7654 = vpop.f32.mrf.mxu0
    %v7655 = vadd.f32 %v7642, %v7654
    %v7656 = vpop.f32.mrf.mxu0
    %7657 = vdwg.mxu0
    %7658 = vmatpush.bf16.msra.mxu0 %v5607
    %7659 = vmatpush.bf16.msra.mxu0 %v5599
    %7660 = vmatpush.bf16.msra.mxu0 %v5591
    %7661 = vmatpush.bf16.msra.mxu0 %v5583
    %7662 = vmatpush.bf16.msra.mxu0 %v5575
    %7663 = vmatpush.bf16.msra.mxu0 %v5567
    %7664 = vmatpush.bf16.msra.mxu0 %v5559
    %7665 = vmatpush.bf16.msra.mxu0 %v5551
    %7666 = vmatmul.bf16.gmra.mxu0 %v86
    %v7667 = vpop.f32.mrf.mxu0
    %v7668 = vadd.f32 %v7655, %v7667
    %v7669 = vpop.f32.mrf.mxu0
    %7670 = vdwg.mxu0
    %7671 = vmatpush.bf16.msra.mxu0 %v5671
    %7672 = vmatpush.bf16.msra.mxu0 %v5663
    %7673 = vmatpush.bf16.msra.mxu0 %v5655
    %7674 = vmatpush.bf16.msra.mxu0 %v5647
    %7675 = vmatpush.bf16.msra.mxu0 %v5639
    %7676 = vmatpush.bf16.msra.mxu0 %v5631
    %7677 = vmatpush.bf16.msra.mxu0 %v5623
    %7678 = vmatpush.bf16.msra.mxu0 %v5615
    %7679 = vmatmul.bf16.gmra.mxu0 %v87
    %v7680 = vpop.f32.mrf.mxu0
    %v7681 = vadd.f32 %v7668, %v7680
    %v7682 = vpop.f32.mrf.mxu0
    %7683 = vdwg.mxu0
    %7684 = vmatpush.bf16.msra.mxu0 %v5735
    %7685 = vmatpush.bf16.msra.mxu0 %v5727
    %7686 = vmatpush.bf16.msra.mxu0 %v5719
    %7687 = vmatpush.bf16.msra.mxu0 %v5711
    %7688 = vmatpush.bf16.msra.mxu0 %v5703
    %7689 = vmatpush.bf16.msra.mxu0 %v5695
    %7690 = vmatpush.bf16.msra.mxu0 %v5687
    %7691 = vmatpush.bf16.msra.mxu0 %v5679
    %7692 = vmatmul.bf16.gmra.mxu0 %v88
    %v7693 = vpop.f32.mrf.mxu0
    %v7694 = vadd.f32 %v7681, %v7693
    %v7695 = vpop.f32.mrf.mxu0
    %7696 = vdwg.mxu0
    %7697 = vmatpush.bf16.msra.mxu0 %v5799
    %7698 = vmatpush.bf16.msra.mxu0 %v5791
    %7699 = vmatpush.bf16.msra.mxu0 %v5783
    %7700 = vmatpush.bf16.msra.mxu0 %v5775
    %7701 = vmatpush.bf16.msra.mxu0 %v5767
    %7702 = vmatpush.bf16.msra.mxu0 %v5759
    %7703 = vmatpush.bf16.msra.mxu0 %v5751
    %7704 = vmatpush.bf16.msra.mxu0 %v5743
    %7705 = vmatmul.bf16.gmra.mxu0 %v89
    %v7706 = vpop.f32.mrf.mxu0
    %v7707 = vadd.f32 %v7694, %v7706
    %v7708 = vpop.f32.mrf.mxu0
    %7709 = vdwg.mxu0
    %7710 = vmatpush.bf16.msra.mxu0 %v5863
    %7711 = vmatpush.bf16.msra.mxu0 %v5855
    %7712 = vmatpush.bf16.msra.mxu0 %v5847
    %7713 = vmatpush.bf16.msra.mxu0 %v5839
    %7714 = vmatpush.bf16.msra.mxu0 %v5831
    %7715 = vmatpush.bf16.msra.mxu0 %v5823
    %7716 = vmatpush.bf16.msra.mxu0 %v5815
    %7717 = vmatpush.bf16.msra.mxu0 %v5807
    %7718 = vmatmul.bf16.gmra.mxu0 %v90
    %v7719 = vpop.f32.mrf.mxu0
    %v7720 = vadd.f32 %v7707, %v7719
    %v7721 = vpop.f32.mrf.mxu0
    %7722 = vdwg.mxu0
    %7723 = vmatpush.bf16.msra.mxu0 %v4776
    %7724 = vmatpush.bf16.msra.mxu0 %v4768
    %7725 = vmatpush.bf16.msra.mxu0 %v4760
    %7726 = vmatpush.bf16.msra.mxu0 %v4752
    %7727 = vmatpush.bf16.msra.mxu0 %v4744
    %7728 = vmatpush.bf16.msra.mxu0 %v4736
    %7729 = vmatpush.bf16.msra.mxu0 %v4728
    %7730 = vmatpush.bf16.msra.mxu0 %v4720
    %7731 = vmatmul.bf16.gmra.mxu0 %v73
    %v7732 = vpop.f32.mrf.mxu0
    %v7733 = vadd.f32 %v1248, %v7732
    %v7734 = vpop.f32.mrf.mxu0
    %7735 = vdwg.mxu0
    %7736 = vmatpush.bf16.msra.mxu0 %v4840
    %7737 = vmatpush.bf16.msra.mxu0 %v4832
    %7738 = vmatpush.bf16.msra.mxu0 %v4824
    %7739 = vmatpush.bf16.msra.mxu0 %v4816
    %7740 = vmatpush.bf16.msra.mxu0 %v4808
    %7741 = vmatpush.bf16.msra.mxu0 %v4800
    %7742 = vmatpush.bf16.msra.mxu0 %v4792
    %7743 = vmatpush.bf16.msra.mxu0 %v4784
    %7744 = vmatmul.bf16.gmra.mxu0 %v74
    %v7745 = vpop.f32.mrf.mxu0
    %v7746 = vadd.f32 %v7733, %v7745
    %v7747 = vpop.f32.mrf.mxu0
    %7748 = vdwg.mxu0
    %7749 = vmatpush.bf16.msra.mxu0 %v4904
    %7750 = vmatpush.bf16.msra.mxu0 %v4896
    %7751 = vmatpush.bf16.msra.mxu0 %v4888
    %7752 = vmatpush.bf16.msra.mxu0 %v4880
    %7753 = vmatpush.bf16.msra.mxu0 %v4872
    %7754 = vmatpush.bf16.msra.mxu0 %v4864
    %7755 = vmatpush.bf16.msra.mxu0 %v4856
    %7756 = vmatpush.bf16.msra.mxu0 %v4848
    %7757 = vmatmul.bf16.gmra.mxu0 %v75
    %v7758 = vpop.f32.mrf.mxu0
    %v7759 = vadd.f32 %v7746, %v7758
    %v7760 = vpop.f32.mrf.mxu0
    %7761 = vdwg.mxu0
    %7762 = vmatpush.bf16.msra.mxu0 %v4968
    %7763 = vmatpush.bf16.msra.mxu0 %v4960
    %7764 = vmatpush.bf16.msra.mxu0 %v4952
    %7765 = vmatpush.bf16.msra.mxu0 %v4944
    %7766 = vmatpush.bf16.msra.mxu0 %v4936
    %7767 = vmatpush.bf16.msra.mxu0 %v4928
    %7768 = vmatpush.bf16.msra.mxu0 %v4920
    %7769 = vmatpush.bf16.msra.mxu0 %v4912
    %7770 = vmatmul.bf16.gmra.mxu0 %v76
    %v7771 = vpop.f32.mrf.mxu0
    %v7772 = vadd.f32 %v7759, %v7771
    %v7773 = vpop.f32.mrf.mxu0
    %7774 = vdwg.mxu0
    %7775 = vmatpush.bf16.msra.mxu0 %v5032
    %7776 = vmatpush.bf16.msra.mxu0 %v5024
    %7777 = vmatpush.bf16.msra.mxu0 %v5016
    %7778 = vmatpush.bf16.msra.mxu0 %v5008
    %7779 = vmatpush.bf16.msra.mxu0 %v5000
    %7780 = vmatpush.bf16.msra.mxu0 %v4992
    %7781 = vmatpush.bf16.msra.mxu0 %v4984
    %7782 = vmatpush.bf16.msra.mxu0 %v4976
    %7783 = vmatmul.bf16.gmra.mxu0 %v77
    %v7784 = vpop.f32.mrf.mxu0
    %v7785 = vadd.f32 %v7772, %v7784
    %v7786 = vpop.f32.mrf.mxu0
    %7787 = vdwg.mxu0
    %7788 = vmatpush.bf16.msra.mxu0 %v5096
    %7789 = vmatpush.bf16.msra.mxu0 %v5088
    %7790 = vmatpush.bf16.msra.mxu0 %v5080
    %7791 = vmatpush.bf16.msra.mxu0 %v5072
    %7792 = vmatpush.bf16.msra.mxu0 %v5064
    %7793 = vmatpush.bf16.msra.mxu0 %v5056
    %7794 = vmatpush.bf16.msra.mxu0 %v5048
    %7795 = vmatpush.bf16.msra.mxu0 %v5040
    %7796 = vmatmul.bf16.gmra.mxu0 %v78
    %v7797 = vpop.f32.mrf.mxu0
    %v7798 = vadd.f32 %v7785, %v7797
    %v7799 = vpop.f32.mrf.mxu0
    %7800 = vdwg.mxu0
    %7801 = vmatpush.bf16.msra.mxu0 %v5160
    %7802 = vmatpush.bf16.msra.mxu0 %v5152
    %7803 = vmatpush.bf16.msra.mxu0 %v5144
    %7804 = vmatpush.bf16.msra.mxu0 %v5136
    %7805 = vmatpush.bf16.msra.mxu0 %v5128
    %7806 = vmatpush.bf16.msra.mxu0 %v5120
    %7807 = vmatpush.bf16.msra.mxu0 %v5112
    %7808 = vmatpush.bf16.msra.mxu0 %v5104
    %7809 = vmatmul.bf16.gmra.mxu0 %v79
    %v7810 = vpop.f32.mrf.mxu0
    %v7811 = vadd.f32 %v7798, %v7810
    %v7812 = vpop.f32.mrf.mxu0
    %7813 = vdwg.mxu0
    %7814 = vmatpush.bf16.msra.mxu0 %v5224
    %7815 = vmatpush.bf16.msra.mxu0 %v5216
    %7816 = vmatpush.bf16.msra.mxu0 %v5208
    %7817 = vmatpush.bf16.msra.mxu0 %v5200
    %7818 = vmatpush.bf16.msra.mxu0 %v5192
    %7819 = vmatpush.bf16.msra.mxu0 %v5184
    %7820 = vmatpush.bf16.msra.mxu0 %v5176
    %7821 = vmatpush.bf16.msra.mxu0 %v5168
    %7822 = vmatmul.bf16.gmra.mxu0 %v80
    %v7823 = vpop.f32.mrf.mxu0
    %v7824 = vadd.f32 %v7811, %v7823
    %v7825 = vpop.f32.mrf.mxu0
    %7826 = vdwg.mxu0
    %7827 = vmatpush.bf16.msra.mxu0 %v5288
    %7828 = vmatpush.bf16.msra.mxu0 %v5280
    %7829 = vmatpush.bf16.msra.mxu0 %v5272
    %7830 = vmatpush.bf16.msra.mxu0 %v5264
    %7831 = vmatpush.bf16.msra.mxu0 %v5256
    %7832 = vmatpush.bf16.msra.mxu0 %v5248
    %7833 = vmatpush.bf16.msra.mxu0 %v5240
    %7834 = vmatpush.bf16.msra.mxu0 %v5232
    %7835 = vmatmul.bf16.gmra.mxu0 %v81
    %v7836 = vpop.f32.mrf.mxu0
    %v7837 = vadd.f32 %v7824, %v7836
    %v7838 = vpop.f32.mrf.mxu0
    %7839 = vdwg.mxu0
    %7840 = vmatpush.bf16.msra.mxu0 %v5352
    %7841 = vmatpush.bf16.msra.mxu0 %v5344
    %7842 = vmatpush.bf16.msra.mxu0 %v5336
    %7843 = vmatpush.bf16.msra.mxu0 %v5328
    %7844 = vmatpush.bf16.msra.mxu0 %v5320
    %7845 = vmatpush.bf16.msra.mxu0 %v5312
    %7846 = vmatpush.bf16.msra.mxu0 %v5304
    %7847 = vmatpush.bf16.msra.mxu0 %v5296
    %7848 = vmatmul.bf16.gmra.mxu0 %v82
    %v7849 = vpop.f32.mrf.mxu0
    %v7850 = vadd.f32 %v7837, %v7849
    %v7851 = vpop.f32.mrf.mxu0
    %7852 = vdwg.mxu0
    %7853 = vmatpush.bf16.msra.mxu0 %v5416
    %7854 = vmatpush.bf16.msra.mxu0 %v5408
    %7855 = vmatpush.bf16.msra.mxu0 %v5400
    %7856 = vmatpush.bf16.msra.mxu0 %v5392
    %7857 = vmatpush.bf16.msra.mxu0 %v5384
    %7858 = vmatpush.bf16.msra.mxu0 %v5376
    %7859 = vmatpush.bf16.msra.mxu0 %v5368
    %7860 = vmatpush.bf16.msra.mxu0 %v5360
    %7861 = vmatmul.bf16.gmra.mxu0 %v83
    %v7862 = vpop.f32.mrf.mxu0
    %v7863 = vadd.f32 %v7850, %v7862
    %v7864 = vpop.f32.mrf.mxu0
    %7865 = vdwg.mxu0
    %7866 = vmatpush.bf16.msra.mxu0 %v5480
    %7867 = vmatpush.bf16.msra.mxu0 %v5472
    %7868 = vmatpush.bf16.msra.mxu0 %v5464
    %7869 = vmatpush.bf16.msra.mxu0 %v5456
    %7870 = vmatpush.bf16.msra.mxu0 %v5448
    %7871 = vmatpush.bf16.msra.mxu0 %v5440
    %7872 = vmatpush.bf16.msra.mxu0 %v5432
    %7873 = vmatpush.bf16.msra.mxu0 %v5424
    %7874 = vmatmul.bf16.gmra.mxu0 %v84
    %v7875 = vpop.f32.mrf.mxu0
    %v7876 = vadd.f32 %v7863, %v7875
    %v7877 = vpop.f32.mrf.mxu0
    %7878 = vdwg.mxu0
    %7879 = vmatpush.bf16.msra.mxu0 %v5544
    %7880 = vmatpush.bf16.msra.mxu0 %v5536
    %7881 = vmatpush.bf16.msra.mxu0 %v5528
    %7882 = vmatpush.bf16.msra.mxu0 %v5520
    %7883 = vmatpush.bf16.msra.mxu0 %v5512
    %7884 = vmatpush.bf16.msra.mxu0 %v5504
    %7885 = vmatpush.bf16.msra.mxu0 %v5496
    %7886 = vmatpush.bf16.msra.mxu0 %v5488
    %7887 = vmatmul.bf16.gmra.mxu0 %v85
    %v7888 = vpop.f32.mrf.mxu0
    %v7889 = vadd.f32 %v7876, %v7888
    %v7890 = vpop.f32.mrf.mxu0
    %7891 = vdwg.mxu0
    %7892 = vmatpush.bf16.msra.mxu0 %v5608
    %7893 = vmatpush.bf16.msra.mxu0 %v5600
    %7894 = vmatpush.bf16.msra.mxu0 %v5592
    %7895 = vmatpush.bf16.msra.mxu0 %v5584
    %7896 = vmatpush.bf16.msra.mxu0 %v5576
    %7897 = vmatpush.bf16.msra.mxu0 %v5568
    %7898 = vmatpush.bf16.msra.mxu0 %v5560
    %7899 = vmatpush.bf16.msra.mxu0 %v5552
    %7900 = vmatmul.bf16.gmra.mxu0 %v86
    %v7901 = vpop.f32.mrf.mxu0
    %v7902 = vadd.f32 %v7889, %v7901
    %v7903 = vpop.f32.mrf.mxu0
    %7904 = vdwg.mxu0
    %7905 = vmatpush.bf16.msra.mxu0 %v5672
    %7906 = vmatpush.bf16.msra.mxu0 %v5664
    %7907 = vmatpush.bf16.msra.mxu0 %v5656
    %7908 = vmatpush.bf16.msra.mxu0 %v5648
    %7909 = vmatpush.bf16.msra.mxu0 %v5640
    %7910 = vmatpush.bf16.msra.mxu0 %v5632
    %7911 = vmatpush.bf16.msra.mxu0 %v5624
    %7912 = vmatpush.bf16.msra.mxu0 %v5616
    %7913 = vmatmul.bf16.gmra.mxu0 %v87
    %v7914 = vpop.f32.mrf.mxu0
    %v7915 = vadd.f32 %v7902, %v7914
    %v7916 = vpop.f32.mrf.mxu0
    %7917 = vdwg.mxu0
    %7918 = vmatpush.bf16.msra.mxu0 %v5736
    %7919 = vmatpush.bf16.msra.mxu0 %v5728
    %7920 = vmatpush.bf16.msra.mxu0 %v5720
    %7921 = vmatpush.bf16.msra.mxu0 %v5712
    %7922 = vmatpush.bf16.msra.mxu0 %v5704
    %7923 = vmatpush.bf16.msra.mxu0 %v5696
    %7924 = vmatpush.bf16.msra.mxu0 %v5688
    %7925 = vmatpush.bf16.msra.mxu0 %v5680
    %7926 = vmatmul.bf16.gmra.mxu0 %v88
    %v7927 = vpop.f32.mrf.mxu0
    %v7928 = vadd.f32 %v7915, %v7927
    %v7929 = vpop.f32.mrf.mxu0
    %7930 = vdwg.mxu0
    %7931 = vmatpush.bf16.msra.mxu0 %v5800
    %7932 = vmatpush.bf16.msra.mxu0 %v5792
    %7933 = vmatpush.bf16.msra.mxu0 %v5784
    %7934 = vmatpush.bf16.msra.mxu0 %v5776
    %7935 = vmatpush.bf16.msra.mxu0 %v5768
    %7936 = vmatpush.bf16.msra.mxu0 %v5760
    %7937 = vmatpush.bf16.msra.mxu0 %v5752
    %7938 = vmatpush.bf16.msra.mxu0 %v5744
    %7939 = vmatmul.bf16.gmra.mxu0 %v89
    %v7940 = vpop.f32.mrf.mxu0
    %v7941 = vadd.f32 %v7928, %v7940
    %v7942 = vpop.f32.mrf.mxu0
    %7943 = vdwg.mxu0
    %7944 = vmatpush.bf16.msra.mxu0 %v5864
    %7945 = vmatpush.bf16.msra.mxu0 %v5856
    %7946 = vmatpush.bf16.msra.mxu0 %v5848
    %7947 = vmatpush.bf16.msra.mxu0 %v5840
    %7948 = vmatpush.bf16.msra.mxu0 %v5832
    %7949 = vmatpush.bf16.msra.mxu0 %v5824
    %7950 = vmatpush.bf16.msra.mxu0 %v5816
    %7951 = vmatpush.bf16.msra.mxu0 %v5808
    %7952 = vmatmul.bf16.gmra.mxu0 %v90
    %v7953 = vpop.f32.mrf.mxu0
    %v7954 = vadd.f32 %v7941, %v7953
    %v7955 = vpop.f32.mrf.mxu0
    %7956 = vdwg.mxu0
    %7957 = vmatpush.bf16.msra.mxu0 %v4777
    %7958 = vmatpush.bf16.msra.mxu0 %v4769
    %7959 = vmatpush.bf16.msra.mxu0 %v4761
    %7960 = vmatpush.bf16.msra.mxu0 %v4753
    %7961 = vmatpush.bf16.msra.mxu0 %v4745
    %7962 = vmatpush.bf16.msra.mxu0 %v4737
    %7963 = vmatpush.bf16.msra.mxu0 %v4729
    %7964 = vmatpush.bf16.msra.mxu0 %v4721
    %7965 = vmatmul.bf16.gmra.mxu0 %v73
    %v7966 = vpop.f32.mrf.mxu0
    %v7967 = vadd.f32 %v1249, %v7966
    %v7968 = vpop.f32.mrf.mxu0
    %7969 = vdwg.mxu0
    %7970 = vmatpush.bf16.msra.mxu0 %v4841
    %7971 = vmatpush.bf16.msra.mxu0 %v4833
    %7972 = vmatpush.bf16.msra.mxu0 %v4825
    %7973 = vmatpush.bf16.msra.mxu0 %v4817
    %7974 = vmatpush.bf16.msra.mxu0 %v4809
    %7975 = vmatpush.bf16.msra.mxu0 %v4801
    %7976 = vmatpush.bf16.msra.mxu0 %v4793
    %7977 = vmatpush.bf16.msra.mxu0 %v4785
    %7978 = vmatmul.bf16.gmra.mxu0 %v74
    %v7979 = vpop.f32.mrf.mxu0
    %v7980 = vadd.f32 %v7967, %v7979
    %v7981 = vpop.f32.mrf.mxu0
    %7982 = vdwg.mxu0
    %7983 = vmatpush.bf16.msra.mxu0 %v4905
    %7984 = vmatpush.bf16.msra.mxu0 %v4897
    %7985 = vmatpush.bf16.msra.mxu0 %v4889
    %7986 = vmatpush.bf16.msra.mxu0 %v4881
    %7987 = vmatpush.bf16.msra.mxu0 %v4873
    %7988 = vmatpush.bf16.msra.mxu0 %v4865
    %7989 = vmatpush.bf16.msra.mxu0 %v4857
    %7990 = vmatpush.bf16.msra.mxu0 %v4849
    %7991 = vmatmul.bf16.gmra.mxu0 %v75
    %v7992 = vpop.f32.mrf.mxu0
    %v7993 = vadd.f32 %v7980, %v7992
    %v7994 = vpop.f32.mrf.mxu0
    %7995 = vdwg.mxu0
    %7996 = vmatpush.bf16.msra.mxu0 %v4969
    %7997 = vmatpush.bf16.msra.mxu0 %v4961
    %7998 = vmatpush.bf16.msra.mxu0 %v4953
    %7999 = vmatpush.bf16.msra.mxu0 %v4945
    %8000 = vmatpush.bf16.msra.mxu0 %v4937
    %8001 = vmatpush.bf16.msra.mxu0 %v4929
    %8002 = vmatpush.bf16.msra.mxu0 %v4921
    %8003 = vmatpush.bf16.msra.mxu0 %v4913
    %8004 = vmatmul.bf16.gmra.mxu0 %v76
    %v8005 = vpop.f32.mrf.mxu0
    %v8006 = vadd.f32 %v7993, %v8005
    %v8007 = vpop.f32.mrf.mxu0
    %8008 = vdwg.mxu0
    %8009 = vmatpush.bf16.msra.mxu0 %v5033
    %8010 = vmatpush.bf16.msra.mxu0 %v5025
    %8011 = vmatpush.bf16.msra.mxu0 %v5017
    %8012 = vmatpush.bf16.msra.mxu0 %v5009
    %8013 = vmatpush.bf16.msra.mxu0 %v5001
    %8014 = vmatpush.bf16.msra.mxu0 %v4993
    %8015 = vmatpush.bf16.msra.mxu0 %v4985
    %8016 = vmatpush.bf16.msra.mxu0 %v4977
    %8017 = vmatmul.bf16.gmra.mxu0 %v77
    %v8018 = vpop.f32.mrf.mxu0
    %v8019 = vadd.f32 %v8006, %v8018
    %v8020 = vpop.f32.mrf.mxu0
    %8021 = vdwg.mxu0
    %8022 = vmatpush.bf16.msra.mxu0 %v5097
    %8023 = vmatpush.bf16.msra.mxu0 %v5089
    %8024 = vmatpush.bf16.msra.mxu0 %v5081
    %8025 = vmatpush.bf16.msra.mxu0 %v5073
    %8026 = vmatpush.bf16.msra.mxu0 %v5065
    %8027 = vmatpush.bf16.msra.mxu0 %v5057
    %8028 = vmatpush.bf16.msra.mxu0 %v5049
    %8029 = vmatpush.bf16.msra.mxu0 %v5041
    %8030 = vmatmul.bf16.gmra.mxu0 %v78
    %v8031 = vpop.f32.mrf.mxu0
    %v8032 = vadd.f32 %v8019, %v8031
    %v8033 = vpop.f32.mrf.mxu0
    %8034 = vdwg.mxu0
    %8035 = vmatpush.bf16.msra.mxu0 %v5161
    %8036 = vmatpush.bf16.msra.mxu0 %v5153
    %8037 = vmatpush.bf16.msra.mxu0 %v5145
    %8038 = vmatpush.bf16.msra.mxu0 %v5137
    %8039 = vmatpush.bf16.msra.mxu0 %v5129
    %8040 = vmatpush.bf16.msra.mxu0 %v5121
    %8041 = vmatpush.bf16.msra.mxu0 %v5113
    %8042 = vmatpush.bf16.msra.mxu0 %v5105
    %8043 = vmatmul.bf16.gmra.mxu0 %v79
    %v8044 = vpop.f32.mrf.mxu0
    %v8045 = vadd.f32 %v8032, %v8044
    %v8046 = vpop.f32.mrf.mxu0
    %8047 = vdwg.mxu0
    %8048 = vmatpush.bf16.msra.mxu0 %v5225
    %8049 = vmatpush.bf16.msra.mxu0 %v5217
    %8050 = vmatpush.bf16.msra.mxu0 %v5209
    %8051 = vmatpush.bf16.msra.mxu0 %v5201
    %8052 = vmatpush.bf16.msra.mxu0 %v5193
    %8053 = vmatpush.bf16.msra.mxu0 %v5185
    %8054 = vmatpush.bf16.msra.mxu0 %v5177
    %8055 = vmatpush.bf16.msra.mxu0 %v5169
    %8056 = vmatmul.bf16.gmra.mxu0 %v80
    %v8057 = vpop.f32.mrf.mxu0
    %v8058 = vadd.f32 %v8045, %v8057
    %v8059 = vpop.f32.mrf.mxu0
    %8060 = vdwg.mxu0
    %8061 = vmatpush.bf16.msra.mxu0 %v5289
    %8062 = vmatpush.bf16.msra.mxu0 %v5281
    %8063 = vmatpush.bf16.msra.mxu0 %v5273
    %8064 = vmatpush.bf16.msra.mxu0 %v5265
    %8065 = vmatpush.bf16.msra.mxu0 %v5257
    %8066 = vmatpush.bf16.msra.mxu0 %v5249
    %8067 = vmatpush.bf16.msra.mxu0 %v5241
    %8068 = vmatpush.bf16.msra.mxu0 %v5233
    %8069 = vmatmul.bf16.gmra.mxu0 %v81
    %v8070 = vpop.f32.mrf.mxu0
    %v8071 = vadd.f32 %v8058, %v8070
    %v8072 = vpop.f32.mrf.mxu0
    %8073 = vdwg.mxu0
    %8074 = vmatpush.bf16.msra.mxu0 %v5353
    %8075 = vmatpush.bf16.msra.mxu0 %v5345
    %8076 = vmatpush.bf16.msra.mxu0 %v5337
    %8077 = vmatpush.bf16.msra.mxu0 %v5329
    %8078 = vmatpush.bf16.msra.mxu0 %v5321
    %8079 = vmatpush.bf16.msra.mxu0 %v5313
    %8080 = vmatpush.bf16.msra.mxu0 %v5305
    %8081 = vmatpush.bf16.msra.mxu0 %v5297
    %8082 = vmatmul.bf16.gmra.mxu0 %v82
    %v8083 = vpop.f32.mrf.mxu0
    %v8084 = vadd.f32 %v8071, %v8083
    %v8085 = vpop.f32.mrf.mxu0
    %8086 = vdwg.mxu0
    %8087 = vmatpush.bf16.msra.mxu0 %v5417
    %8088 = vmatpush.bf16.msra.mxu0 %v5409
    %8089 = vmatpush.bf16.msra.mxu0 %v5401
    %8090 = vmatpush.bf16.msra.mxu0 %v5393
    %8091 = vmatpush.bf16.msra.mxu0 %v5385
    %8092 = vmatpush.bf16.msra.mxu0 %v5377
    %8093 = vmatpush.bf16.msra.mxu0 %v5369
    %8094 = vmatpush.bf16.msra.mxu0 %v5361
    %8095 = vmatmul.bf16.gmra.mxu0 %v83
    %v8096 = vpop.f32.mrf.mxu0
    %v8097 = vadd.f32 %v8084, %v8096
    %v8098 = vpop.f32.mrf.mxu0
    %8099 = vdwg.mxu0
    %8100 = vmatpush.bf16.msra.mxu0 %v5481
    %8101 = vmatpush.bf16.msra.mxu0 %v5473
    %8102 = vmatpush.bf16.msra.mxu0 %v5465
    %8103 = vmatpush.bf16.msra.mxu0 %v5457
    %8104 = vmatpush.bf16.msra.mxu0 %v5449
    %8105 = vmatpush.bf16.msra.mxu0 %v5441
    %8106 = vmatpush.bf16.msra.mxu0 %v5433
    %8107 = vmatpush.bf16.msra.mxu0 %v5425
    %8108 = vmatmul.bf16.gmra.mxu0 %v84
    %v8109 = vpop.f32.mrf.mxu0
    %v8110 = vadd.f32 %v8097, %v8109
    %v8111 = vpop.f32.mrf.mxu0
    %8112 = vdwg.mxu0
    %8113 = vmatpush.bf16.msra.mxu0 %v5545
    %8114 = vmatpush.bf16.msra.mxu0 %v5537
    %8115 = vmatpush.bf16.msra.mxu0 %v5529
    %8116 = vmatpush.bf16.msra.mxu0 %v5521
    %8117 = vmatpush.bf16.msra.mxu0 %v5513
    %8118 = vmatpush.bf16.msra.mxu0 %v5505
    %8119 = vmatpush.bf16.msra.mxu0 %v5497
    %8120 = vmatpush.bf16.msra.mxu0 %v5489
    %8121 = vmatmul.bf16.gmra.mxu0 %v85
    %v8122 = vpop.f32.mrf.mxu0
    %v8123 = vadd.f32 %v8110, %v8122
    %v8124 = vpop.f32.mrf.mxu0
    %8125 = vdwg.mxu0
    %8126 = vmatpush.bf16.msra.mxu0 %v5609
    %8127 = vmatpush.bf16.msra.mxu0 %v5601
    %8128 = vmatpush.bf16.msra.mxu0 %v5593
    %8129 = vmatpush.bf16.msra.mxu0 %v5585
    %8130 = vmatpush.bf16.msra.mxu0 %v5577
    %8131 = vmatpush.bf16.msra.mxu0 %v5569
    %8132 = vmatpush.bf16.msra.mxu0 %v5561
    %8133 = vmatpush.bf16.msra.mxu0 %v5553
    %8134 = vmatmul.bf16.gmra.mxu0 %v86
    %v8135 = vpop.f32.mrf.mxu0
    %v8136 = vadd.f32 %v8123, %v8135
    %v8137 = vpop.f32.mrf.mxu0
    %8138 = vdwg.mxu0
    %8139 = vmatpush.bf16.msra.mxu0 %v5673
    %8140 = vmatpush.bf16.msra.mxu0 %v5665
    %8141 = vmatpush.bf16.msra.mxu0 %v5657
    %8142 = vmatpush.bf16.msra.mxu0 %v5649
    %8143 = vmatpush.bf16.msra.mxu0 %v5641
    %8144 = vmatpush.bf16.msra.mxu0 %v5633
    %8145 = vmatpush.bf16.msra.mxu0 %v5625
    %8146 = vmatpush.bf16.msra.mxu0 %v5617
    %8147 = vmatmul.bf16.gmra.mxu0 %v87
    %v8148 = vpop.f32.mrf.mxu0
    %v8149 = vadd.f32 %v8136, %v8148
    %v8150 = vpop.f32.mrf.mxu0
    %8151 = vdwg.mxu0
    %8152 = vmatpush.bf16.msra.mxu0 %v5737
    %8153 = vmatpush.bf16.msra.mxu0 %v5729
    %8154 = vmatpush.bf16.msra.mxu0 %v5721
    %8155 = vmatpush.bf16.msra.mxu0 %v5713
    %8156 = vmatpush.bf16.msra.mxu0 %v5705
    %8157 = vmatpush.bf16.msra.mxu0 %v5697
    %8158 = vmatpush.bf16.msra.mxu0 %v5689
    %8159 = vmatpush.bf16.msra.mxu0 %v5681
    %8160 = vmatmul.bf16.gmra.mxu0 %v88
    %v8161 = vpop.f32.mrf.mxu0
    %v8162 = vadd.f32 %v8149, %v8161
    %v8163 = vpop.f32.mrf.mxu0
    %8164 = vdwg.mxu0
    %8165 = vmatpush.bf16.msra.mxu0 %v5801
    %8166 = vmatpush.bf16.msra.mxu0 %v5793
    %8167 = vmatpush.bf16.msra.mxu0 %v5785
    %8168 = vmatpush.bf16.msra.mxu0 %v5777
    %8169 = vmatpush.bf16.msra.mxu0 %v5769
    %8170 = vmatpush.bf16.msra.mxu0 %v5761
    %8171 = vmatpush.bf16.msra.mxu0 %v5753
    %8172 = vmatpush.bf16.msra.mxu0 %v5745
    %8173 = vmatmul.bf16.gmra.mxu0 %v89
    %v8174 = vpop.f32.mrf.mxu0
    %v8175 = vadd.f32 %v8162, %v8174
    %v8176 = vpop.f32.mrf.mxu0
    %8177 = vdwg.mxu0
    %8178 = vmatpush.bf16.msra.mxu0 %v5865
    %8179 = vmatpush.bf16.msra.mxu0 %v5857
    %8180 = vmatpush.bf16.msra.mxu0 %v5849
    %8181 = vmatpush.bf16.msra.mxu0 %v5841
    %8182 = vmatpush.bf16.msra.mxu0 %v5833
    %8183 = vmatpush.bf16.msra.mxu0 %v5825
    %8184 = vmatpush.bf16.msra.mxu0 %v5817
    %8185 = vmatpush.bf16.msra.mxu0 %v5809
    %8186 = vmatmul.bf16.gmra.mxu0 %v90
    %v8187 = vpop.f32.mrf.mxu0
    %v8188 = vadd.f32 %v8175, %v8187
    %v8189 = vpop.f32.mrf.mxu0
    %8190 = vdwg.mxu0
    %8191 = vmatpush.bf16.msra.mxu0 %v4778
    %8192 = vmatpush.bf16.msra.mxu0 %v4770
    %8193 = vmatpush.bf16.msra.mxu0 %v4762
    %8194 = vmatpush.bf16.msra.mxu0 %v4754
    %8195 = vmatpush.bf16.msra.mxu0 %v4746
    %8196 = vmatpush.bf16.msra.mxu0 %v4738
    %8197 = vmatpush.bf16.msra.mxu0 %v4730
    %8198 = vmatpush.bf16.msra.mxu0 %v4722
    %8199 = vmatmul.bf16.gmra.mxu0 %v73
    %v8200 = vpop.f32.mrf.mxu0
    %v8201 = vadd.f32 %v1250, %v8200
    %v8202 = vpop.f32.mrf.mxu0
    %8203 = vdwg.mxu0
    %8204 = vmatpush.bf16.msra.mxu0 %v4842
    %8205 = vmatpush.bf16.msra.mxu0 %v4834
    %8206 = vmatpush.bf16.msra.mxu0 %v4826
    %8207 = vmatpush.bf16.msra.mxu0 %v4818
    %8208 = vmatpush.bf16.msra.mxu0 %v4810
    %8209 = vmatpush.bf16.msra.mxu0 %v4802
    %8210 = vmatpush.bf16.msra.mxu0 %v4794
    %8211 = vmatpush.bf16.msra.mxu0 %v4786
    %8212 = vmatmul.bf16.gmra.mxu0 %v74
    %v8213 = vpop.f32.mrf.mxu0
    %v8214 = vadd.f32 %v8201, %v8213
    %v8215 = vpop.f32.mrf.mxu0
    %8216 = vdwg.mxu0
    %8217 = vmatpush.bf16.msra.mxu0 %v4906
    %8218 = vmatpush.bf16.msra.mxu0 %v4898
    %8219 = vmatpush.bf16.msra.mxu0 %v4890
    %8220 = vmatpush.bf16.msra.mxu0 %v4882
    %8221 = vmatpush.bf16.msra.mxu0 %v4874
    %8222 = vmatpush.bf16.msra.mxu0 %v4866
    %8223 = vmatpush.bf16.msra.mxu0 %v4858
    %8224 = vmatpush.bf16.msra.mxu0 %v4850
    %8225 = vmatmul.bf16.gmra.mxu0 %v75
    %v8226 = vpop.f32.mrf.mxu0
    %v8227 = vadd.f32 %v8214, %v8226
    %v8228 = vpop.f32.mrf.mxu0
    %8229 = vdwg.mxu0
    %8230 = vmatpush.bf16.msra.mxu0 %v4970
    %8231 = vmatpush.bf16.msra.mxu0 %v4962
    %8232 = vmatpush.bf16.msra.mxu0 %v4954
    %8233 = vmatpush.bf16.msra.mxu0 %v4946
    %8234 = vmatpush.bf16.msra.mxu0 %v4938
    %8235 = vmatpush.bf16.msra.mxu0 %v4930
    %8236 = vmatpush.bf16.msra.mxu0 %v4922
    %8237 = vmatpush.bf16.msra.mxu0 %v4914
    %8238 = vmatmul.bf16.gmra.mxu0 %v76
    %v8239 = vpop.f32.mrf.mxu0
    %v8240 = vadd.f32 %v8227, %v8239
    %v8241 = vpop.f32.mrf.mxu0
    %8242 = vdwg.mxu0
    %8243 = vmatpush.bf16.msra.mxu0 %v5034
    %8244 = vmatpush.bf16.msra.mxu0 %v5026
    %8245 = vmatpush.bf16.msra.mxu0 %v5018
    %8246 = vmatpush.bf16.msra.mxu0 %v5010
    %8247 = vmatpush.bf16.msra.mxu0 %v5002
    %8248 = vmatpush.bf16.msra.mxu0 %v4994
    %8249 = vmatpush.bf16.msra.mxu0 %v4986
    %8250 = vmatpush.bf16.msra.mxu0 %v4978
    %8251 = vmatmul.bf16.gmra.mxu0 %v77
    %v8252 = vpop.f32.mrf.mxu0
    %v8253 = vadd.f32 %v8240, %v8252
    %v8254 = vpop.f32.mrf.mxu0
    %8255 = vdwg.mxu0
    %8256 = vmatpush.bf16.msra.mxu0 %v5098
    %8257 = vmatpush.bf16.msra.mxu0 %v5090
    %8258 = vmatpush.bf16.msra.mxu0 %v5082
    %8259 = vmatpush.bf16.msra.mxu0 %v5074
    %8260 = vmatpush.bf16.msra.mxu0 %v5066
    %8261 = vmatpush.bf16.msra.mxu0 %v5058
    %8262 = vmatpush.bf16.msra.mxu0 %v5050
    %8263 = vmatpush.bf16.msra.mxu0 %v5042
    %8264 = vmatmul.bf16.gmra.mxu0 %v78
    %v8265 = vpop.f32.mrf.mxu0
    %v8266 = vadd.f32 %v8253, %v8265
    %v8267 = vpop.f32.mrf.mxu0
    %8268 = vdwg.mxu0
    %8269 = vmatpush.bf16.msra.mxu0 %v5162
    %8270 = vmatpush.bf16.msra.mxu0 %v5154
    %8271 = vmatpush.bf16.msra.mxu0 %v5146
    %8272 = vmatpush.bf16.msra.mxu0 %v5138
    %8273 = vmatpush.bf16.msra.mxu0 %v5130
    %8274 = vmatpush.bf16.msra.mxu0 %v5122
    %8275 = vmatpush.bf16.msra.mxu0 %v5114
    %8276 = vmatpush.bf16.msra.mxu0 %v5106
    %8277 = vmatmul.bf16.gmra.mxu0 %v79
    %v8278 = vpop.f32.mrf.mxu0
    %v8279 = vadd.f32 %v8266, %v8278
    %v8280 = vpop.f32.mrf.mxu0
    %8281 = vdwg.mxu0
    %8282 = vmatpush.bf16.msra.mxu0 %v5226
    %8283 = vmatpush.bf16.msra.mxu0 %v5218
    %8284 = vmatpush.bf16.msra.mxu0 %v5210
    %8285 = vmatpush.bf16.msra.mxu0 %v5202
    %8286 = vmatpush.bf16.msra.mxu0 %v5194
    %8287 = vmatpush.bf16.msra.mxu0 %v5186
    %8288 = vmatpush.bf16.msra.mxu0 %v5178
    %8289 = vmatpush.bf16.msra.mxu0 %v5170
    %8290 = vmatmul.bf16.gmra.mxu0 %v80
    %v8291 = vpop.f32.mrf.mxu0
    %v8292 = vadd.f32 %v8279, %v8291
    %v8293 = vpop.f32.mrf.mxu0
    %8294 = vdwg.mxu0
    %8295 = vmatpush.bf16.msra.mxu0 %v5290
    %8296 = vmatpush.bf16.msra.mxu0 %v5282
    %8297 = vmatpush.bf16.msra.mxu0 %v5274
    %8298 = vmatpush.bf16.msra.mxu0 %v5266
    %8299 = vmatpush.bf16.msra.mxu0 %v5258
    %8300 = vmatpush.bf16.msra.mxu0 %v5250
    %8301 = vmatpush.bf16.msra.mxu0 %v5242
    %8302 = vmatpush.bf16.msra.mxu0 %v5234
    %8303 = vmatmul.bf16.gmra.mxu0 %v81
    %v8304 = vpop.f32.mrf.mxu0
    %v8305 = vadd.f32 %v8292, %v8304
    %v8306 = vpop.f32.mrf.mxu0
    %8307 = vdwg.mxu0
    %8308 = vmatpush.bf16.msra.mxu0 %v5354
    %8309 = vmatpush.bf16.msra.mxu0 %v5346
    %8310 = vmatpush.bf16.msra.mxu0 %v5338
    %8311 = vmatpush.bf16.msra.mxu0 %v5330
    %8312 = vmatpush.bf16.msra.mxu0 %v5322
    %8313 = vmatpush.bf16.msra.mxu0 %v5314
    %8314 = vmatpush.bf16.msra.mxu0 %v5306
    %8315 = vmatpush.bf16.msra.mxu0 %v5298
    %8316 = vmatmul.bf16.gmra.mxu0 %v82
    %v8317 = vpop.f32.mrf.mxu0
    %v8318 = vadd.f32 %v8305, %v8317
    %v8319 = vpop.f32.mrf.mxu0
    %8320 = vdwg.mxu0
    %8321 = vmatpush.bf16.msra.mxu0 %v5418
    %8322 = vmatpush.bf16.msra.mxu0 %v5410
    %8323 = vmatpush.bf16.msra.mxu0 %v5402
    %8324 = vmatpush.bf16.msra.mxu0 %v5394
    %8325 = vmatpush.bf16.msra.mxu0 %v5386
    %8326 = vmatpush.bf16.msra.mxu0 %v5378
    %8327 = vmatpush.bf16.msra.mxu0 %v5370
    %8328 = vmatpush.bf16.msra.mxu0 %v5362
    %8329 = vmatmul.bf16.gmra.mxu0 %v83
    %v8330 = vpop.f32.mrf.mxu0
    %v8331 = vadd.f32 %v8318, %v8330
    %v8332 = vpop.f32.mrf.mxu0
    %8333 = vdwg.mxu0
    %8334 = vmatpush.bf16.msra.mxu0 %v5482
    %8335 = vmatpush.bf16.msra.mxu0 %v5474
    %8336 = vmatpush.bf16.msra.mxu0 %v5466
    %8337 = vmatpush.bf16.msra.mxu0 %v5458
    %8338 = vmatpush.bf16.msra.mxu0 %v5450
    %8339 = vmatpush.bf16.msra.mxu0 %v5442
    %8340 = vmatpush.bf16.msra.mxu0 %v5434
    %8341 = vmatpush.bf16.msra.mxu0 %v5426
    %8342 = vmatmul.bf16.gmra.mxu0 %v84
    %v8343 = vpop.f32.mrf.mxu0
    %v8344 = vadd.f32 %v8331, %v8343
    %v8345 = vpop.f32.mrf.mxu0
    %8346 = vdwg.mxu0
    %8347 = vmatpush.bf16.msra.mxu0 %v5546
    %8348 = vmatpush.bf16.msra.mxu0 %v5538
    %8349 = vmatpush.bf16.msra.mxu0 %v5530
    %8350 = vmatpush.bf16.msra.mxu0 %v5522
    %8351 = vmatpush.bf16.msra.mxu0 %v5514
    %8352 = vmatpush.bf16.msra.mxu0 %v5506
    %8353 = vmatpush.bf16.msra.mxu0 %v5498
    %8354 = vmatpush.bf16.msra.mxu0 %v5490
    %8355 = vmatmul.bf16.gmra.mxu0 %v85
    %v8356 = vpop.f32.mrf.mxu0
    %v8357 = vadd.f32 %v8344, %v8356
    %v8358 = vpop.f32.mrf.mxu0
    %8359 = vdwg.mxu0
    %8360 = vmatpush.bf16.msra.mxu0 %v5610
    %8361 = vmatpush.bf16.msra.mxu0 %v5602
    %8362 = vmatpush.bf16.msra.mxu0 %v5594
    %8363 = vmatpush.bf16.msra.mxu0 %v5586
    %8364 = vmatpush.bf16.msra.mxu0 %v5578
    %8365 = vmatpush.bf16.msra.mxu0 %v5570
    %8366 = vmatpush.bf16.msra.mxu0 %v5562
    %8367 = vmatpush.bf16.msra.mxu0 %v5554
    %8368 = vmatmul.bf16.gmra.mxu0 %v86
    %v8369 = vpop.f32.mrf.mxu0
    %v8370 = vadd.f32 %v8357, %v8369
    %v8371 = vpop.f32.mrf.mxu0
    %8372 = vdwg.mxu0
    %8373 = vmatpush.bf16.msra.mxu0 %v5674
    %8374 = vmatpush.bf16.msra.mxu0 %v5666
    %8375 = vmatpush.bf16.msra.mxu0 %v5658
    %8376 = vmatpush.bf16.msra.mxu0 %v5650
    %8377 = vmatpush.bf16.msra.mxu0 %v5642
    %8378 = vmatpush.bf16.msra.mxu0 %v5634
    %8379 = vmatpush.bf16.msra.mxu0 %v5626
    %8380 = vmatpush.bf16.msra.mxu0 %v5618
    %8381 = vmatmul.bf16.gmra.mxu0 %v87
    %v8382 = vpop.f32.mrf.mxu0
    %v8383 = vadd.f32 %v8370, %v8382
    %v8384 = vpop.f32.mrf.mxu0
    %8385 = vdwg.mxu0
    %8386 = vmatpush.bf16.msra.mxu0 %v5738
    %8387 = vmatpush.bf16.msra.mxu0 %v5730
    %8388 = vmatpush.bf16.msra.mxu0 %v5722
    %8389 = vmatpush.bf16.msra.mxu0 %v5714
    %8390 = vmatpush.bf16.msra.mxu0 %v5706
    %8391 = vmatpush.bf16.msra.mxu0 %v5698
    %8392 = vmatpush.bf16.msra.mxu0 %v5690
    %8393 = vmatpush.bf16.msra.mxu0 %v5682
    %8394 = vmatmul.bf16.gmra.mxu0 %v88
    %v8395 = vpop.f32.mrf.mxu0
    %v8396 = vadd.f32 %v8383, %v8395
    %v8397 = vpop.f32.mrf.mxu0
    %8398 = vdwg.mxu0
    %8399 = vmatpush.bf16.msra.mxu0 %v5802
    %8400 = vmatpush.bf16.msra.mxu0 %v5794
    %8401 = vmatpush.bf16.msra.mxu0 %v5786
    %8402 = vmatpush.bf16.msra.mxu0 %v5778
    %8403 = vmatpush.bf16.msra.mxu0 %v5770
    %8404 = vmatpush.bf16.msra.mxu0 %v5762
    %8405 = vmatpush.bf16.msra.mxu0 %v5754
    %8406 = vmatpush.bf16.msra.mxu0 %v5746
    %8407 = vmatmul.bf16.gmra.mxu0 %v89
    %v8408 = vpop.f32.mrf.mxu0
    %v8409 = vadd.f32 %v8396, %v8408
    %v8410 = vpop.f32.mrf.mxu0
    %8411 = vdwg.mxu0
    %8412 = vmatpush.bf16.msra.mxu0 %v5866
    %8413 = vmatpush.bf16.msra.mxu0 %v5858
    %8414 = vmatpush.bf16.msra.mxu0 %v5850
    %8415 = vmatpush.bf16.msra.mxu0 %v5842
    %8416 = vmatpush.bf16.msra.mxu0 %v5834
    %8417 = vmatpush.bf16.msra.mxu0 %v5826
    %8418 = vmatpush.bf16.msra.mxu0 %v5818
    %8419 = vmatpush.bf16.msra.mxu0 %v5810
    %8420 = vmatmul.bf16.gmra.mxu0 %v90
    %v8421 = vpop.f32.mrf.mxu0
    %v8422 = vadd.f32 %v8409, %v8421
    %v8423 = vpop.f32.mrf.mxu0
    %8424 = vdwg.mxu0
    %8425 = vmatpush.bf16.msra.mxu0 %v4779
    %8426 = vmatpush.bf16.msra.mxu0 %v4771
    %8427 = vmatpush.bf16.msra.mxu0 %v4763
    %8428 = vmatpush.bf16.msra.mxu0 %v4755
    %8429 = vmatpush.bf16.msra.mxu0 %v4747
    %8430 = vmatpush.bf16.msra.mxu0 %v4739
    %8431 = vmatpush.bf16.msra.mxu0 %v4731
    %8432 = vmatpush.bf16.msra.mxu0 %v4723
    %8433 = vmatmul.bf16.gmra.mxu0 %v73
    %v8434 = vpop.f32.mrf.mxu0
    %v8435 = vadd.f32 %v1251, %v8434
    %v8436 = vpop.f32.mrf.mxu0
    %8437 = vdwg.mxu0
    %8438 = vmatpush.bf16.msra.mxu0 %v4843
    %8439 = vmatpush.bf16.msra.mxu0 %v4835
    %8440 = vmatpush.bf16.msra.mxu0 %v4827
    %8441 = vmatpush.bf16.msra.mxu0 %v4819
    %8442 = vmatpush.bf16.msra.mxu0 %v4811
    %8443 = vmatpush.bf16.msra.mxu0 %v4803
    %8444 = vmatpush.bf16.msra.mxu0 %v4795
    %8445 = vmatpush.bf16.msra.mxu0 %v4787
    %8446 = vmatmul.bf16.gmra.mxu0 %v74
    %v8447 = vpop.f32.mrf.mxu0
    %v8448 = vadd.f32 %v8435, %v8447
    %v8449 = vpop.f32.mrf.mxu0
    %8450 = vdwg.mxu0
    %8451 = vmatpush.bf16.msra.mxu0 %v4907
    %8452 = vmatpush.bf16.msra.mxu0 %v4899
    %8453 = vmatpush.bf16.msra.mxu0 %v4891
    %8454 = vmatpush.bf16.msra.mxu0 %v4883
    %8455 = vmatpush.bf16.msra.mxu0 %v4875
    %8456 = vmatpush.bf16.msra.mxu0 %v4867
    %8457 = vmatpush.bf16.msra.mxu0 %v4859
    %8458 = vmatpush.bf16.msra.mxu0 %v4851
    %8459 = vmatmul.bf16.gmra.mxu0 %v75
    %v8460 = vpop.f32.mrf.mxu0
    %v8461 = vadd.f32 %v8448, %v8460
    %v8462 = vpop.f32.mrf.mxu0
    %8463 = vdwg.mxu0
    %8464 = vmatpush.bf16.msra.mxu0 %v4971
    %8465 = vmatpush.bf16.msra.mxu0 %v4963
    %8466 = vmatpush.bf16.msra.mxu0 %v4955
    %8467 = vmatpush.bf16.msra.mxu0 %v4947
    %8468 = vmatpush.bf16.msra.mxu0 %v4939
    %8469 = vmatpush.bf16.msra.mxu0 %v4931
    %8470 = vmatpush.bf16.msra.mxu0 %v4923
    %8471 = vmatpush.bf16.msra.mxu0 %v4915
    %8472 = vmatmul.bf16.gmra.mxu0 %v76
    %v8473 = vpop.f32.mrf.mxu0
    %v8474 = vadd.f32 %v8461, %v8473
    %v8475 = vpop.f32.mrf.mxu0
    %8476 = vdwg.mxu0
    %8477 = vmatpush.bf16.msra.mxu0 %v5035
    %8478 = vmatpush.bf16.msra.mxu0 %v5027
    %8479 = vmatpush.bf16.msra.mxu0 %v5019
    %8480 = vmatpush.bf16.msra.mxu0 %v5011
    %8481 = vmatpush.bf16.msra.mxu0 %v5003
    %8482 = vmatpush.bf16.msra.mxu0 %v4995
    %8483 = vmatpush.bf16.msra.mxu0 %v4987
    %8484 = vmatpush.bf16.msra.mxu0 %v4979
    %8485 = vmatmul.bf16.gmra.mxu0 %v77
    %v8486 = vpop.f32.mrf.mxu0
    %v8487 = vadd.f32 %v8474, %v8486
    %v8488 = vpop.f32.mrf.mxu0
    %8489 = vdwg.mxu0
    %8490 = vmatpush.bf16.msra.mxu0 %v5099
    %8491 = vmatpush.bf16.msra.mxu0 %v5091
    %8492 = vmatpush.bf16.msra.mxu0 %v5083
    %8493 = vmatpush.bf16.msra.mxu0 %v5075
    %8494 = vmatpush.bf16.msra.mxu0 %v5067
    %8495 = vmatpush.bf16.msra.mxu0 %v5059
    %8496 = vmatpush.bf16.msra.mxu0 %v5051
    %8497 = vmatpush.bf16.msra.mxu0 %v5043
    %8498 = vmatmul.bf16.gmra.mxu0 %v78
    %v8499 = vpop.f32.mrf.mxu0
    %v8500 = vadd.f32 %v8487, %v8499
    %v8501 = vpop.f32.mrf.mxu0
    %8502 = vdwg.mxu0
    %8503 = vmatpush.bf16.msra.mxu0 %v5163
    %8504 = vmatpush.bf16.msra.mxu0 %v5155
    %8505 = vmatpush.bf16.msra.mxu0 %v5147
    %8506 = vmatpush.bf16.msra.mxu0 %v5139
    %8507 = vmatpush.bf16.msra.mxu0 %v5131
    %8508 = vmatpush.bf16.msra.mxu0 %v5123
    %8509 = vmatpush.bf16.msra.mxu0 %v5115
    %8510 = vmatpush.bf16.msra.mxu0 %v5107
    %8511 = vmatmul.bf16.gmra.mxu0 %v79
    %v8512 = vpop.f32.mrf.mxu0
    %v8513 = vadd.f32 %v8500, %v8512
    %v8514 = vpop.f32.mrf.mxu0
    %8515 = vdwg.mxu0
    %8516 = vmatpush.bf16.msra.mxu0 %v5227
    %8517 = vmatpush.bf16.msra.mxu0 %v5219
    %8518 = vmatpush.bf16.msra.mxu0 %v5211
    %8519 = vmatpush.bf16.msra.mxu0 %v5203
    %8520 = vmatpush.bf16.msra.mxu0 %v5195
    %8521 = vmatpush.bf16.msra.mxu0 %v5187
    %8522 = vmatpush.bf16.msra.mxu0 %v5179
    %8523 = vmatpush.bf16.msra.mxu0 %v5171
    %8524 = vmatmul.bf16.gmra.mxu0 %v80
    %v8525 = vpop.f32.mrf.mxu0
    %v8526 = vadd.f32 %v8513, %v8525
    %v8527 = vpop.f32.mrf.mxu0
    %8528 = vdwg.mxu0
    %8529 = vmatpush.bf16.msra.mxu0 %v5291
    %8530 = vmatpush.bf16.msra.mxu0 %v5283
    %8531 = vmatpush.bf16.msra.mxu0 %v5275
    %8532 = vmatpush.bf16.msra.mxu0 %v5267
    %8533 = vmatpush.bf16.msra.mxu0 %v5259
    %8534 = vmatpush.bf16.msra.mxu0 %v5251
    %8535 = vmatpush.bf16.msra.mxu0 %v5243
    %8536 = vmatpush.bf16.msra.mxu0 %v5235
    %8537 = vmatmul.bf16.gmra.mxu0 %v81
    %v8538 = vpop.f32.mrf.mxu0
    %v8539 = vadd.f32 %v8526, %v8538
    %v8540 = vpop.f32.mrf.mxu0
    %8541 = vdwg.mxu0
    %8542 = vmatpush.bf16.msra.mxu0 %v5355
    %8543 = vmatpush.bf16.msra.mxu0 %v5347
    %8544 = vmatpush.bf16.msra.mxu0 %v5339
    %8545 = vmatpush.bf16.msra.mxu0 %v5331
    %8546 = vmatpush.bf16.msra.mxu0 %v5323
    %8547 = vmatpush.bf16.msra.mxu0 %v5315
    %8548 = vmatpush.bf16.msra.mxu0 %v5307
    %8549 = vmatpush.bf16.msra.mxu0 %v5299
    %8550 = vmatmul.bf16.gmra.mxu0 %v82
    %v8551 = vpop.f32.mrf.mxu0
    %v8552 = vadd.f32 %v8539, %v8551
    %v8553 = vpop.f32.mrf.mxu0
    %8554 = vdwg.mxu0
    %8555 = vmatpush.bf16.msra.mxu0 %v5419
    %8556 = vmatpush.bf16.msra.mxu0 %v5411
    %8557 = vmatpush.bf16.msra.mxu0 %v5403
    %8558 = vmatpush.bf16.msra.mxu0 %v5395
    %8559 = vmatpush.bf16.msra.mxu0 %v5387
    %8560 = vmatpush.bf16.msra.mxu0 %v5379
    %8561 = vmatpush.bf16.msra.mxu0 %v5371
    %8562 = vmatpush.bf16.msra.mxu0 %v5363
    %8563 = vmatmul.bf16.gmra.mxu0 %v83
    %v8564 = vpop.f32.mrf.mxu0
    %v8565 = vadd.f32 %v8552, %v8564
    %v8566 = vpop.f32.mrf.mxu0
    %8567 = vdwg.mxu0
    %8568 = vmatpush.bf16.msra.mxu0 %v5483
    %8569 = vmatpush.bf16.msra.mxu0 %v5475
    %8570 = vmatpush.bf16.msra.mxu0 %v5467
    %8571 = vmatpush.bf16.msra.mxu0 %v5459
    %8572 = vmatpush.bf16.msra.mxu0 %v5451
    %8573 = vmatpush.bf16.msra.mxu0 %v5443
    %8574 = vmatpush.bf16.msra.mxu0 %v5435
    %8575 = vmatpush.bf16.msra.mxu0 %v5427
    %8576 = vmatmul.bf16.gmra.mxu0 %v84
    %v8577 = vpop.f32.mrf.mxu0
    %v8578 = vadd.f32 %v8565, %v8577
    %v8579 = vpop.f32.mrf.mxu0
    %8580 = vdwg.mxu0
    %8581 = vmatpush.bf16.msra.mxu0 %v5547
    %8582 = vmatpush.bf16.msra.mxu0 %v5539
    %8583 = vmatpush.bf16.msra.mxu0 %v5531
    %8584 = vmatpush.bf16.msra.mxu0 %v5523
    %8585 = vmatpush.bf16.msra.mxu0 %v5515
    %8586 = vmatpush.bf16.msra.mxu0 %v5507
    %8587 = vmatpush.bf16.msra.mxu0 %v5499
    %8588 = vmatpush.bf16.msra.mxu0 %v5491
    %8589 = vmatmul.bf16.gmra.mxu0 %v85
    %v8590 = vpop.f32.mrf.mxu0
    %v8591 = vadd.f32 %v8578, %v8590
    %v8592 = vpop.f32.mrf.mxu0
    %8593 = vdwg.mxu0
    %8594 = vmatpush.bf16.msra.mxu0 %v5611
    %8595 = vmatpush.bf16.msra.mxu0 %v5603
    %8596 = vmatpush.bf16.msra.mxu0 %v5595
    %8597 = vmatpush.bf16.msra.mxu0 %v5587
    %8598 = vmatpush.bf16.msra.mxu0 %v5579
    %8599 = vmatpush.bf16.msra.mxu0 %v5571
    %8600 = vmatpush.bf16.msra.mxu0 %v5563
    %8601 = vmatpush.bf16.msra.mxu0 %v5555
    %8602 = vmatmul.bf16.gmra.mxu0 %v86
    %v8603 = vpop.f32.mrf.mxu0
    %v8604 = vadd.f32 %v8591, %v8603
    %v8605 = vpop.f32.mrf.mxu0
    %8606 = vdwg.mxu0
    %8607 = vmatpush.bf16.msra.mxu0 %v5675
    %8608 = vmatpush.bf16.msra.mxu0 %v5667
    %8609 = vmatpush.bf16.msra.mxu0 %v5659
    %8610 = vmatpush.bf16.msra.mxu0 %v5651
    %8611 = vmatpush.bf16.msra.mxu0 %v5643
    %8612 = vmatpush.bf16.msra.mxu0 %v5635
    %8613 = vmatpush.bf16.msra.mxu0 %v5627
    %8614 = vmatpush.bf16.msra.mxu0 %v5619
    %8615 = vmatmul.bf16.gmra.mxu0 %v87
    %v8616 = vpop.f32.mrf.mxu0
    %v8617 = vadd.f32 %v8604, %v8616
    %v8618 = vpop.f32.mrf.mxu0
    %8619 = vdwg.mxu0
    %8620 = vmatpush.bf16.msra.mxu0 %v5739
    %8621 = vmatpush.bf16.msra.mxu0 %v5731
    %8622 = vmatpush.bf16.msra.mxu0 %v5723
    %8623 = vmatpush.bf16.msra.mxu0 %v5715
    %8624 = vmatpush.bf16.msra.mxu0 %v5707
    %8625 = vmatpush.bf16.msra.mxu0 %v5699
    %8626 = vmatpush.bf16.msra.mxu0 %v5691
    %8627 = vmatpush.bf16.msra.mxu0 %v5683
    %8628 = vmatmul.bf16.gmra.mxu0 %v88
    %v8629 = vpop.f32.mrf.mxu0
    %v8630 = vadd.f32 %v8617, %v8629
    %v8631 = vpop.f32.mrf.mxu0
    %8632 = vdwg.mxu0
    %8633 = vmatpush.bf16.msra.mxu0 %v5803
    %8634 = vmatpush.bf16.msra.mxu0 %v5795
    %8635 = vmatpush.bf16.msra.mxu0 %v5787
    %8636 = vmatpush.bf16.msra.mxu0 %v5779
    %8637 = vmatpush.bf16.msra.mxu0 %v5771
    %8638 = vmatpush.bf16.msra.mxu0 %v5763
    %8639 = vmatpush.bf16.msra.mxu0 %v5755
    %8640 = vmatpush.bf16.msra.mxu0 %v5747
    %8641 = vmatmul.bf16.gmra.mxu0 %v89
    %v8642 = vpop.f32.mrf.mxu0
    %v8643 = vadd.f32 %v8630, %v8642
    %v8644 = vpop.f32.mrf.mxu0
    %8645 = vdwg.mxu0
    %8646 = vmatpush.bf16.msra.mxu0 %v5867
    %8647 = vmatpush.bf16.msra.mxu0 %v5859
    %8648 = vmatpush.bf16.msra.mxu0 %v5851
    %8649 = vmatpush.bf16.msra.mxu0 %v5843
    %8650 = vmatpush.bf16.msra.mxu0 %v5835
    %8651 = vmatpush.bf16.msra.mxu0 %v5827
    %8652 = vmatpush.bf16.msra.mxu0 %v5819
    %8653 = vmatpush.bf16.msra.mxu0 %v5811
    %8654 = vmatmul.bf16.gmra.mxu0 %v90
    %v8655 = vpop.f32.mrf.mxu0
    %v8656 = vadd.f32 %v8643, %v8655
    %v8657 = vpop.f32.mrf.mxu0
    %8658 = vdwg.mxu0
    %8659 = vmatpush.bf16.msra.mxu0 %v4780
    %8660 = vmatpush.bf16.msra.mxu0 %v4772
    %8661 = vmatpush.bf16.msra.mxu0 %v4764
    %8662 = vmatpush.bf16.msra.mxu0 %v4756
    %8663 = vmatpush.bf16.msra.mxu0 %v4748
    %8664 = vmatpush.bf16.msra.mxu0 %v4740
    %8665 = vmatpush.bf16.msra.mxu0 %v4732
    %8666 = vmatpush.bf16.msra.mxu0 %v4724
    %8667 = vmatmul.bf16.gmra.mxu0 %v73
    %v8668 = vpop.f32.mrf.mxu0
    %v8669 = vadd.f32 %v1252, %v8668
    %v8670 = vpop.f32.mrf.mxu0
    %8671 = vdwg.mxu0
    %8672 = vmatpush.bf16.msra.mxu0 %v4844
    %8673 = vmatpush.bf16.msra.mxu0 %v4836
    %8674 = vmatpush.bf16.msra.mxu0 %v4828
    %8675 = vmatpush.bf16.msra.mxu0 %v4820
    %8676 = vmatpush.bf16.msra.mxu0 %v4812
    %8677 = vmatpush.bf16.msra.mxu0 %v4804
    %8678 = vmatpush.bf16.msra.mxu0 %v4796
    %8679 = vmatpush.bf16.msra.mxu0 %v4788
    %8680 = vmatmul.bf16.gmra.mxu0 %v74
    %v8681 = vpop.f32.mrf.mxu0
    %v8682 = vadd.f32 %v8669, %v8681
    %v8683 = vpop.f32.mrf.mxu0
    %8684 = vdwg.mxu0
    %8685 = vmatpush.bf16.msra.mxu0 %v4908
    %8686 = vmatpush.bf16.msra.mxu0 %v4900
    %8687 = vmatpush.bf16.msra.mxu0 %v4892
    %8688 = vmatpush.bf16.msra.mxu0 %v4884
    %8689 = vmatpush.bf16.msra.mxu0 %v4876
    %8690 = vmatpush.bf16.msra.mxu0 %v4868
    %8691 = vmatpush.bf16.msra.mxu0 %v4860
    %8692 = vmatpush.bf16.msra.mxu0 %v4852
    %8693 = vmatmul.bf16.gmra.mxu0 %v75
    %v8694 = vpop.f32.mrf.mxu0
    %v8695 = vadd.f32 %v8682, %v8694
    %v8696 = vpop.f32.mrf.mxu0
    %8697 = vdwg.mxu0
    %8698 = vmatpush.bf16.msra.mxu0 %v4972
    %8699 = vmatpush.bf16.msra.mxu0 %v4964
    %8700 = vmatpush.bf16.msra.mxu0 %v4956
    %8701 = vmatpush.bf16.msra.mxu0 %v4948
    %8702 = vmatpush.bf16.msra.mxu0 %v4940
    %8703 = vmatpush.bf16.msra.mxu0 %v4932
    %8704 = vmatpush.bf16.msra.mxu0 %v4924
    %8705 = vmatpush.bf16.msra.mxu0 %v4916
    %8706 = vmatmul.bf16.gmra.mxu0 %v76
    %v8707 = vpop.f32.mrf.mxu0
    %v8708 = vadd.f32 %v8695, %v8707
    %v8709 = vpop.f32.mrf.mxu0
    %8710 = vdwg.mxu0
    %8711 = vmatpush.bf16.msra.mxu0 %v5036
    %8712 = vmatpush.bf16.msra.mxu0 %v5028
    %8713 = vmatpush.bf16.msra.mxu0 %v5020
    %8714 = vmatpush.bf16.msra.mxu0 %v5012
    %8715 = vmatpush.bf16.msra.mxu0 %v5004
    %8716 = vmatpush.bf16.msra.mxu0 %v4996
    %8717 = vmatpush.bf16.msra.mxu0 %v4988
    %8718 = vmatpush.bf16.msra.mxu0 %v4980
    %8719 = vmatmul.bf16.gmra.mxu0 %v77
    %v8720 = vpop.f32.mrf.mxu0
    %v8721 = vadd.f32 %v8708, %v8720
    %v8722 = vpop.f32.mrf.mxu0
    %8723 = vdwg.mxu0
    %8724 = vmatpush.bf16.msra.mxu0 %v5100
    %8725 = vmatpush.bf16.msra.mxu0 %v5092
    %8726 = vmatpush.bf16.msra.mxu0 %v5084
    %8727 = vmatpush.bf16.msra.mxu0 %v5076
    %8728 = vmatpush.bf16.msra.mxu0 %v5068
    %8729 = vmatpush.bf16.msra.mxu0 %v5060
    %8730 = vmatpush.bf16.msra.mxu0 %v5052
    %8731 = vmatpush.bf16.msra.mxu0 %v5044
    %8732 = vmatmul.bf16.gmra.mxu0 %v78
    %v8733 = vpop.f32.mrf.mxu0
    %v8734 = vadd.f32 %v8721, %v8733
    %v8735 = vpop.f32.mrf.mxu0
    %8736 = vdwg.mxu0
    %8737 = vmatpush.bf16.msra.mxu0 %v5164
    %8738 = vmatpush.bf16.msra.mxu0 %v5156
    %8739 = vmatpush.bf16.msra.mxu0 %v5148
    %8740 = vmatpush.bf16.msra.mxu0 %v5140
    %8741 = vmatpush.bf16.msra.mxu0 %v5132
    %8742 = vmatpush.bf16.msra.mxu0 %v5124
    %8743 = vmatpush.bf16.msra.mxu0 %v5116
    %8744 = vmatpush.bf16.msra.mxu0 %v5108
    %8745 = vmatmul.bf16.gmra.mxu0 %v79
    %v8746 = vpop.f32.mrf.mxu0
    %v8747 = vadd.f32 %v8734, %v8746
    %v8748 = vpop.f32.mrf.mxu0
    %8749 = vdwg.mxu0
    %8750 = vmatpush.bf16.msra.mxu0 %v5228
    %8751 = vmatpush.bf16.msra.mxu0 %v5220
    %8752 = vmatpush.bf16.msra.mxu0 %v5212
    %8753 = vmatpush.bf16.msra.mxu0 %v5204
    %8754 = vmatpush.bf16.msra.mxu0 %v5196
    %8755 = vmatpush.bf16.msra.mxu0 %v5188
    %8756 = vmatpush.bf16.msra.mxu0 %v5180
    %8757 = vmatpush.bf16.msra.mxu0 %v5172
    %8758 = vmatmul.bf16.gmra.mxu0 %v80
    %v8759 = vpop.f32.mrf.mxu0
    %v8760 = vadd.f32 %v8747, %v8759
    %v8761 = vpop.f32.mrf.mxu0
    %8762 = vdwg.mxu0
    %8763 = vmatpush.bf16.msra.mxu0 %v5292
    %8764 = vmatpush.bf16.msra.mxu0 %v5284
    %8765 = vmatpush.bf16.msra.mxu0 %v5276
    %8766 = vmatpush.bf16.msra.mxu0 %v5268
    %8767 = vmatpush.bf16.msra.mxu0 %v5260
    %8768 = vmatpush.bf16.msra.mxu0 %v5252
    %8769 = vmatpush.bf16.msra.mxu0 %v5244
    %8770 = vmatpush.bf16.msra.mxu0 %v5236
    %8771 = vmatmul.bf16.gmra.mxu0 %v81
    %v8772 = vpop.f32.mrf.mxu0
    %v8773 = vadd.f32 %v8760, %v8772
    %v8774 = vpop.f32.mrf.mxu0
    %8775 = vdwg.mxu0
    %8776 = vmatpush.bf16.msra.mxu0 %v5356
    %8777 = vmatpush.bf16.msra.mxu0 %v5348
    %8778 = vmatpush.bf16.msra.mxu0 %v5340
    %8779 = vmatpush.bf16.msra.mxu0 %v5332
    %8780 = vmatpush.bf16.msra.mxu0 %v5324
    %8781 = vmatpush.bf16.msra.mxu0 %v5316
    %8782 = vmatpush.bf16.msra.mxu0 %v5308
    %8783 = vmatpush.bf16.msra.mxu0 %v5300
    %8784 = vmatmul.bf16.gmra.mxu0 %v82
    %v8785 = vpop.f32.mrf.mxu0
    %v8786 = vadd.f32 %v8773, %v8785
    %v8787 = vpop.f32.mrf.mxu0
    %8788 = vdwg.mxu0
    %8789 = vmatpush.bf16.msra.mxu0 %v5420
    %8790 = vmatpush.bf16.msra.mxu0 %v5412
    %8791 = vmatpush.bf16.msra.mxu0 %v5404
    %8792 = vmatpush.bf16.msra.mxu0 %v5396
    %8793 = vmatpush.bf16.msra.mxu0 %v5388
    %8794 = vmatpush.bf16.msra.mxu0 %v5380
    %8795 = vmatpush.bf16.msra.mxu0 %v5372
    %8796 = vmatpush.bf16.msra.mxu0 %v5364
    %8797 = vmatmul.bf16.gmra.mxu0 %v83
    %v8798 = vpop.f32.mrf.mxu0
    %v8799 = vadd.f32 %v8786, %v8798
    %v8800 = vpop.f32.mrf.mxu0
    %8801 = vdwg.mxu0
    %8802 = vmatpush.bf16.msra.mxu0 %v5484
    %8803 = vmatpush.bf16.msra.mxu0 %v5476
    %8804 = vmatpush.bf16.msra.mxu0 %v5468
    %8805 = vmatpush.bf16.msra.mxu0 %v5460
    %8806 = vmatpush.bf16.msra.mxu0 %v5452
    %8807 = vmatpush.bf16.msra.mxu0 %v5444
    %8808 = vmatpush.bf16.msra.mxu0 %v5436
    %8809 = vmatpush.bf16.msra.mxu0 %v5428
    %8810 = vmatmul.bf16.gmra.mxu0 %v84
    %v8811 = vpop.f32.mrf.mxu0
    %v8812 = vadd.f32 %v8799, %v8811
    %v8813 = vpop.f32.mrf.mxu0
    %8814 = vdwg.mxu0
    %8815 = vmatpush.bf16.msra.mxu0 %v5548
    %8816 = vmatpush.bf16.msra.mxu0 %v5540
    %8817 = vmatpush.bf16.msra.mxu0 %v5532
    %8818 = vmatpush.bf16.msra.mxu0 %v5524
    %8819 = vmatpush.bf16.msra.mxu0 %v5516
    %8820 = vmatpush.bf16.msra.mxu0 %v5508
    %8821 = vmatpush.bf16.msra.mxu0 %v5500
    %8822 = vmatpush.bf16.msra.mxu0 %v5492
    %8823 = vmatmul.bf16.gmra.mxu0 %v85
    %v8824 = vpop.f32.mrf.mxu0
    %v8825 = vadd.f32 %v8812, %v8824
    %v8826 = vpop.f32.mrf.mxu0
    %8827 = vdwg.mxu0
    %8828 = vmatpush.bf16.msra.mxu0 %v5612
    %8829 = vmatpush.bf16.msra.mxu0 %v5604
    %8830 = vmatpush.bf16.msra.mxu0 %v5596
    %8831 = vmatpush.bf16.msra.mxu0 %v5588
    %8832 = vmatpush.bf16.msra.mxu0 %v5580
    %8833 = vmatpush.bf16.msra.mxu0 %v5572
    %8834 = vmatpush.bf16.msra.mxu0 %v5564
    %8835 = vmatpush.bf16.msra.mxu0 %v5556
    %8836 = vmatmul.bf16.gmra.mxu0 %v86
    %v8837 = vpop.f32.mrf.mxu0
    %v8838 = vadd.f32 %v8825, %v8837
    %v8839 = vpop.f32.mrf.mxu0
    %8840 = vdwg.mxu0
    %8841 = vmatpush.bf16.msra.mxu0 %v5676
    %8842 = vmatpush.bf16.msra.mxu0 %v5668
    %8843 = vmatpush.bf16.msra.mxu0 %v5660
    %8844 = vmatpush.bf16.msra.mxu0 %v5652
    %8845 = vmatpush.bf16.msra.mxu0 %v5644
    %8846 = vmatpush.bf16.msra.mxu0 %v5636
    %8847 = vmatpush.bf16.msra.mxu0 %v5628
    %8848 = vmatpush.bf16.msra.mxu0 %v5620
    %8849 = vmatmul.bf16.gmra.mxu0 %v87
    %v8850 = vpop.f32.mrf.mxu0
    %v8851 = vadd.f32 %v8838, %v8850
    %v8852 = vpop.f32.mrf.mxu0
    %8853 = vdwg.mxu0
    %8854 = vmatpush.bf16.msra.mxu0 %v5740
    %8855 = vmatpush.bf16.msra.mxu0 %v5732
    %8856 = vmatpush.bf16.msra.mxu0 %v5724
    %8857 = vmatpush.bf16.msra.mxu0 %v5716
    %8858 = vmatpush.bf16.msra.mxu0 %v5708
    %8859 = vmatpush.bf16.msra.mxu0 %v5700
    %8860 = vmatpush.bf16.msra.mxu0 %v5692
    %8861 = vmatpush.bf16.msra.mxu0 %v5684
    %8862 = vmatmul.bf16.gmra.mxu0 %v88
    %v8863 = vpop.f32.mrf.mxu0
    %v8864 = vadd.f32 %v8851, %v8863
    %v8865 = vpop.f32.mrf.mxu0
    %8866 = vdwg.mxu0
    %8867 = vmatpush.bf16.msra.mxu0 %v5804
    %8868 = vmatpush.bf16.msra.mxu0 %v5796
    %8869 = vmatpush.bf16.msra.mxu0 %v5788
    %8870 = vmatpush.bf16.msra.mxu0 %v5780
    %8871 = vmatpush.bf16.msra.mxu0 %v5772
    %8872 = vmatpush.bf16.msra.mxu0 %v5764
    %8873 = vmatpush.bf16.msra.mxu0 %v5756
    %8874 = vmatpush.bf16.msra.mxu0 %v5748
    %8875 = vmatmul.bf16.gmra.mxu0 %v89
    %v8876 = vpop.f32.mrf.mxu0
    %v8877 = vadd.f32 %v8864, %v8876
    %v8878 = vpop.f32.mrf.mxu0
    %8879 = vdwg.mxu0
    %8880 = vmatpush.bf16.msra.mxu0 %v5868
    %8881 = vmatpush.bf16.msra.mxu0 %v5860
    %8882 = vmatpush.bf16.msra.mxu0 %v5852
    %8883 = vmatpush.bf16.msra.mxu0 %v5844
    %8884 = vmatpush.bf16.msra.mxu0 %v5836
    %8885 = vmatpush.bf16.msra.mxu0 %v5828
    %8886 = vmatpush.bf16.msra.mxu0 %v5820
    %8887 = vmatpush.bf16.msra.mxu0 %v5812
    %8888 = vmatmul.bf16.gmra.mxu0 %v90
    %v8889 = vpop.f32.mrf.mxu0
    %v8890 = vadd.f32 %v8877, %v8889
    %v8891 = vpop.f32.mrf.mxu0
    %8892 = vdwg.mxu0
    %v8893 = vmax.f32 %v7252, 0.0
    %v8894 = vmax.f32 %v7486, 0.0
    %v8895 = vmax.f32 %v7720, 0.0
    %v8896 = vmax.f32 %v7954, 0.0
    %v8897 = vmax.f32 %v8188, 0.0
    %v8898 = vmax.f32 %v8422, 0.0
    %v8899 = vmax.f32 %v8656, 0.0
    %v8900 = vmax.f32 %v8890, 0.0
    %v8901 = vpack.c.bf16 %v8893, %v8893
    %v8902 = vpack.c.bf16 %v8894, %v8894
    %v8903 = vpack.c.bf16 %v8895, %v8895
    %v8904 = vpack.c.bf16 %v8896, %v8896
    %v8905 = vpack.c.bf16 %v8897, %v8897
    %v8906 = vpack.c.bf16 %v8898, %v8898
    %v8907 = vpack.c.bf16 %v8899, %v8899
    %v8908 = vpack.c.bf16 %v8900, %v8900
    %v8909 = vld [vmem:[%s3] sm:$0xf]
    %v8910 = vld [vmem:[%s3 + $0x4] sm:$0xf]
    %v8911 = vld [vmem:[%s3 + $0x8] sm:$0xf]
    %v8912 = vld [vmem:[%s3 + $0xc] sm:$0xf]
    %v8913 = vld [vmem:[%s3 + $0x10] sm:$0xf]
    %v8914 = vld [vmem:[%s3 + $0x14] sm:$0xf]
    %v8915 = vld [vmem:[%s3 + $0x18] sm:$0xf]
    %v8916 = vld [vmem:[%s3 + $0x1c] sm:$0xf]
    %v8917 = vld [vmem:[%s3 + $0x20] sm:$0xf]
    %v8918 = vld [vmem:[%s3 + $0x24] sm:$0xf]
    %v8919 = vld [vmem:[%s3 + $0x28] sm:$0xf]
    %v8920 = vld [vmem:[%s3 + $0x2c] sm:$0xf]
    %v8921 = vld [vmem:[%s3 + $0x30] sm:$0xf]
    %v8922 = vld [vmem:[%s3 + $0x34] sm:$0xf]
    %v8923 = vld [vmem:[%s3 + $0x38] sm:$0xf]
    %v8924 = vld [vmem:[%s3 + $0x3c] sm:$0xf]
    %v8925 = vld [vmem:[%s3 + $0x40] sm:$0xf]
    %v8926 = vld [vmem:[%s3 + $0x44] sm:$0xf]
    %v8927 = vld [vmem:[%s3 + $0x48] sm:$0xf]
    %v8928 = vld [vmem:[%s3 + $0x4c] sm:$0xf]
    %v8929 = vld [vmem:[%s3 + $0x50] sm:$0xf]
    %v8930 = vld [vmem:[%s3 + $0x54] sm:$0xf]
    %v8931 = vld [vmem:[%s3 + $0x58] sm:$0xf]
    %v8932 = vld [vmem:[%s3 + $0x5c] sm:$0xf]
    %v8933 = vld [vmem:[%s3 + $0x60] sm:$0xf]
    %v8934 = vld [vmem:[%s3 + $0x64] sm:$0xf]
    %v8935 = vld [vmem:[%s3 + $0x68] sm:$0xf]
    %v8936 = vld [vmem:[%s3 + $0x6c] sm:$0xf]
    %v8937 = vld [vmem:[%s3 + $0x70] sm:$0xf]
    %v8938 = vld [vmem:[%s3 + $0x74] sm:$0xf]
    %v8939 = vld [vmem:[%s3 + $0x78] sm:$0xf]
    %v8940 = vld [vmem:[%s3 + $0x7c] sm:$0xf]
    %v8941 = vld [vmem:[%s3 + $0x80] sm:$0xf]
    %v8942 = vld [vmem:[%s3 + $0x84] sm:$0xf]
    %v8943 = vld [vmem:[%s3 + $0x88] sm:$0xf]
    %v8944 = vld [vmem:[%s3 + $0x8c] sm:$0xf]
    %v8945 = vld [vmem:[%s3 + $0x90] sm:$0xf]
    %v8946 = vld [vmem:[%s3 + $0x94] sm:$0xf]
    %v8947 = vld [vmem:[%s3 + $0x98] sm:$0xf]
    %v8948 = vld [vmem:[%s3 + $0x9c] sm:$0xf]
    %v8949 = vld [vmem:[%s3 + $0xa0] sm:$0xf]
    %v8950 = vld [vmem:[%s3 + $0xa4] sm:$0xf]
    %v8951 = vld [vmem:[%s3 + $0xa8] sm:$0xf]
    %v8952 = vld [vmem:[%s3 + $0xac] sm:$0xf]
    %v8953 = vld [vmem:[%s3 + $0xb0] sm:$0xf]
    %v8954 = vld [vmem:[%s3 + $0xb4] sm:$0xf]
    %v8955 = vld [vmem:[%s3 + $0xb8] sm:$0xf]
    %v8956 = vld [vmem:[%s3 + $0xbc] sm:$0xf]
    %v8957 = vld [vmem:[%s3 + $0xc0] sm:$0xf]
    %v8958 = vld [vmem:[%s3 + $0xc4] sm:$0xf]
    %v8959 = vld [vmem:[%s3 + $0xc8] sm:$0xf]
    %v8960 = vld [vmem:[%s3 + $0xcc] sm:$0xf]
    %v8961 = vld [vmem:[%s3 + $0xd0] sm:$0xf]
    %v8962 = vld [vmem:[%s3 + $0xd4] sm:$0xf]
    %v8963 = vld [vmem:[%s3 + $0xd8] sm:$0xf]
    %v8964 = vld [vmem:[%s3 + $0xdc] sm:$0xf]
    %v8965 = vld [vmem:[%s3 + $0xe0] sm:$0xf]
    %v8966 = vld [vmem:[%s3 + $0xe4] sm:$0xf]
    %v8967 = vld [vmem:[%s3 + $0xe8] sm:$0xf]
    %v8968 = vld [vmem:[%s3 + $0xec] sm:$0xf]
    %v8969 = vld [vmem:[%s3 + $0xf0] sm:$0xf]
    %v8970 = vld [vmem:[%s3 + $0xf4] sm:$0xf]
    %v8971 = vld [vmem:[%s3 + $0xf8] sm:$0xf]
    %v8972 = vld [vmem:[%s3 + $0xfc] sm:$0xf]
    %v8973 = vld [vmem:[%s3 + $0x100] sm:$0xf]
    %v8974 = vld [vmem:[%s3 + $0x104] sm:$0xf]
    %v8975 = vld [vmem:[%s3 + $0x108] sm:$0xf]
    %v8976 = vld [vmem:[%s3 + $0x10c] sm:$0xf]
    %v8977 = vld [vmem:[%s3 + $0x110] sm:$0xf]
    %v8978 = vld [vmem:[%s3 + $0x114] sm:$0xf]
    %v8979 = vld [vmem:[%s3 + $0x118] sm:$0xf]
    %v8980 = vld [vmem:[%s3 + $0x11c] sm:$0xf]
    %v8981 = vld [vmem:[%s3 + $0x120] sm:$0xf]
    %v8982 = vld [vmem:[%s3 + $0x124] sm:$0xf]
    %v8983 = vld [vmem:[%s3 + $0x128] sm:$0xf]
    %v8984 = vld [vmem:[%s3 + $0x12c] sm:$0xf]
    %v8985 = vld [vmem:[%s3 + $0x130] sm:$0xf]
    %v8986 = vld [vmem:[%s3 + $0x134] sm:$0xf]
    %v8987 = vld [vmem:[%s3 + $0x138] sm:$0xf]
    %v8988 = vld [vmem:[%s3 + $0x13c] sm:$0xf]
    %v8989 = vld [vmem:[%s3 + $0x140] sm:$0xf]
    %v8990 = vld [vmem:[%s3 + $0x144] sm:$0xf]
    %v8991 = vld [vmem:[%s3 + $0x148] sm:$0xf]
    %v8992 = vld [vmem:[%s3 + $0x14c] sm:$0xf]
    %v8993 = vld [vmem:[%s3 + $0x150] sm:$0xf]
    %v8994 = vld [vmem:[%s3 + $0x154] sm:$0xf]
    %v8995 = vld [vmem:[%s3 + $0x158] sm:$0xf]
    %v8996 = vld [vmem:[%s3 + $0x15c] sm:$0xf]
    %v8997 = vld [vmem:[%s3 + $0x160] sm:$0xf]
    %v8998 = vld [vmem:[%s3 + $0x164] sm:$0xf]
    %v8999 = vld [vmem:[%s3 + $0x168] sm:$0xf]
    %v9000 = vld [vmem:[%s3 + $0x16c] sm:$0xf]
    %v9001 = vld [vmem:[%s3 + $0x170] sm:$0xf]
    %v9002 = vld [vmem:[%s3 + $0x174] sm:$0xf]
    %v9003 = vld [vmem:[%s3 + $0x178] sm:$0xf]
    %v9004 = vld [vmem:[%s3 + $0x17c] sm:$0xf]
    %v9005 = vld [vmem:[%s3 + $0x180] sm:$0xf]
    %v9006 = vld [vmem:[%s3 + $0x184] sm:$0xf]
    %v9007 = vld [vmem:[%s3 + $0x188] sm:$0xf]
    %v9008 = vld [vmem:[%s3 + $0x18c] sm:$0xf]
    %v9009 = vld [vmem:[%s3 + $0x190] sm:$0xf]
    %v9010 = vld [vmem:[%s3 + $0x194] sm:$0xf]
    %v9011 = vld [vmem:[%s3 + $0x198] sm:$0xf]
    %v9012 = vld [vmem:[%s3 + $0x19c] sm:$0xf]
    %v9013 = vld [vmem:[%s3 + $0x1a0] sm:$0xf]
    %v9014 = vld [vmem:[%s3 + $0x1a4] sm:$0xf]
    %v9015 = vld [vmem:[%s3 + $0x1a8] sm:$0xf]
    %v9016 = vld [vmem:[%s3 + $0x1ac] sm:$0xf]
    %v9017 = vld [vmem:[%s3 + $0x1b0] sm:$0xf]
    %v9018 = vld [vmem:[%s3 + $0x1b4] sm:$0xf]
    %v9019 = vld [vmem:[%s3 + $0x1b8] sm:$0xf]
    %v9020 = vld [vmem:[%s3 + $0x1bc] sm:$0xf]
    %v9021 = vld [vmem:[%s3 + $0x1c0] sm:$0xf]
    %v9022 = vld [vmem:[%s3 + $0x1c4] sm:$0xf]
    %v9023 = vld [vmem:[%s3 + $0x1c8] sm:$0xf]
    %v9024 = vld [vmem:[%s3 + $0x1cc] sm:$0xf]
    %v9025 = vld [vmem:[%s3 + $0x1d0] sm:$0xf]
    %v9026 = vld [vmem:[%s3 + $0x1d4] sm:$0xf]
    %v9027 = vld [vmem:[%s3 + $0x1d8] sm:$0xf]
    %v9028 = vld [vmem:[%s3 + $0x1dc] sm:$0xf]
    %v9029 = vld [vmem:[%s3 + $0x1e0] sm:$0xf]
    %v9030 = vld [vmem:[%s3 + $0x1e4] sm:$0xf]
    %v9031 = vld [vmem:[%s3 + $0x1e8] sm:$0xf]
    %v9032 = vld [vmem:[%s3 + $0x1ec] sm:$0xf]
    %v9033 = vld [vmem:[%s3 + $0x1f0] sm:$0xf]
    %v9034 = vld [vmem:[%s3 + $0x1f4] sm:$0xf]
    %v9035 = vld [vmem:[%s3 + $0x1f8] sm:$0xf]
    %v9036 = vld [vmem:[%s3 + $0x1fc] sm:$0xf]
    %v9037 = vld [vmem:[%s4] sm:$0x1]
    %v9039 = vperm.slane %v9037, 0
    %v9169 = vunpack.c.l.b16 %v8909
    %v9170 = vunpack.c.l.b16 %v8910
    %v9171 = vunpack.c.l.b16 %v8911
    %v9172 = vunpack.c.l.b16 %v8912
    %v9173 = vunpack.c.l.b16 %v8913
    %v9174 = vunpack.c.l.b16 %v8914
    %v9175 = vunpack.c.l.b16 %v8915
    %v9176 = vunpack.c.l.b16 %v8916
    %v9177 = vunpack.c.l.b16 %v8917
    %v9178 = vunpack.c.l.b16 %v8918
    %v9179 = vunpack.c.l.b16 %v8919
    %v9180 = vunpack.c.l.b16 %v8920
    %v9181 = vunpack.c.l.b16 %v8921
    %v9182 = vunpack.c.l.b16 %v8922
    %v9183 = vunpack.c.l.b16 %v8923
    %v9184 = vunpack.c.l.b16 %v8924
    %v9185 = vunpack.c.l.b16 %v8925
    %v9186 = vunpack.c.l.b16 %v8926
    %v9187 = vunpack.c.l.b16 %v8927
    %v9188 = vunpack.c.l.b16 %v8928
    %v9189 = vunpack.c.l.b16 %v8929
    %v9190 = vunpack.c.l.b16 %v8930
    %v9191 = vunpack.c.l.b16 %v8931
    %v9192 = vunpack.c.l.b16 %v8932
    %v9193 = vunpack.c.l.b16 %v8933
    %v9194 = vunpack.c.l.b16 %v8934
    %v9195 = vunpack.c.l.b16 %v8935
    %v9196 = vunpack.c.l.b16 %v8936
    %v9197 = vunpack.c.l.b16 %v8937
    %v9198 = vunpack.c.l.b16 %v8938
    %v9199 = vunpack.c.l.b16 %v8939
    %v9200 = vunpack.c.l.b16 %v8940
    %v9201 = vunpack.c.l.b16 %v8941
    %v9202 = vunpack.c.l.b16 %v8942
    %v9203 = vunpack.c.l.b16 %v8943
    %v9204 = vunpack.c.l.b16 %v8944
    %v9205 = vunpack.c.l.b16 %v8945
    %v9206 = vunpack.c.l.b16 %v8946
    %v9207 = vunpack.c.l.b16 %v8947
    %v9208 = vunpack.c.l.b16 %v8948
    %v9209 = vunpack.c.l.b16 %v8949
    %v9210 = vunpack.c.l.b16 %v8950
    %v9211 = vunpack.c.l.b16 %v8951
    %v9212 = vunpack.c.l.b16 %v8952
    %v9213 = vunpack.c.l.b16 %v8953
    %v9214 = vunpack.c.l.b16 %v8954
    %v9215 = vunpack.c.l.b16 %v8955
    %v9216 = vunpack.c.l.b16 %v8956
    %v9217 = vunpack.c.l.b16 %v8957
    %v9218 = vunpack.c.l.b16 %v8958
    %v9219 = vunpack.c.l.b16 %v8959
    %v9220 = vunpack.c.l.b16 %v8960
    %v9221 = vunpack.c.l.b16 %v8961
    %v9222 = vunpack.c.l.b16 %v8962
    %v9223 = vunpack.c.l.b16 %v8963
    %v9224 = vunpack.c.l.b16 %v8964
    %v9225 = vunpack.c.l.b16 %v8965
    %v9226 = vunpack.c.l.b16 %v8966
    %v9227 = vunpack.c.l.b16 %v8967
    %v9228 = vunpack.c.l.b16 %v8968
    %v9229 = vunpack.c.l.b16 %v8969
    %v9230 = vunpack.c.l.b16 %v8970
    %v9231 = vunpack.c.l.b16 %v8971
    %v9232 = vunpack.c.l.b16 %v8972
    %v9233 = vunpack.c.l.b16 %v8973
    %v9234 = vunpack.c.l.b16 %v8974
    %v9235 = vunpack.c.l.b16 %v8975
    %v9236 = vunpack.c.l.b16 %v8976
    %v9237 = vunpack.c.l.b16 %v8977
    %v9238 = vunpack.c.l.b16 %v8978
    %v9239 = vunpack.c.l.b16 %v8979
    %v9240 = vunpack.c.l.b16 %v8980
    %v9241 = vunpack.c.l.b16 %v8981
    %v9242 = vunpack.c.l.b16 %v8982
    %v9243 = vunpack.c.l.b16 %v8983
    %v9244 = vunpack.c.l.b16 %v8984
    %v9245 = vunpack.c.l.b16 %v8985
    %v9246 = vunpack.c.l.b16 %v8986
    %v9247 = vunpack.c.l.b16 %v8987
    %v9248 = vunpack.c.l.b16 %v8988
    %v9249 = vunpack.c.l.b16 %v8989
    %v9250 = vunpack.c.l.b16 %v8990
    %v9251 = vunpack.c.l.b16 %v8991
    %v9252 = vunpack.c.l.b16 %v8992
    %v9253 = vunpack.c.l.b16 %v8993
    %v9254 = vunpack.c.l.b16 %v8994
    %v9255 = vunpack.c.l.b16 %v8995
    %v9256 = vunpack.c.l.b16 %v8996
    %v9257 = vunpack.c.l.b16 %v8997
    %v9258 = vunpack.c.l.b16 %v8998
    %v9259 = vunpack.c.l.b16 %v8999
    %v9260 = vunpack.c.l.b16 %v9000
    %v9261 = vunpack.c.l.b16 %v9001
    %v9262 = vunpack.c.l.b16 %v9002
    %v9263 = vunpack.c.l.b16 %v9003
    %v9264 = vunpack.c.l.b16 %v9004
    %v9265 = vunpack.c.l.b16 %v9005
    %v9266 = vunpack.c.l.b16 %v9006
    %v9267 = vunpack.c.l.b16 %v9007
    %v9268 = vunpack.c.l.b16 %v9008
    %v9269 = vunpack.c.l.b16 %v9009
    %v9270 = vunpack.c.l.b16 %v9010
    %v9271 = vunpack.c.l.b16 %v9011
    %v9272 = vunpack.c.l.b16 %v9012
    %v9273 = vunpack.c.l.b16 %v9013
    %v9274 = vunpack.c.l.b16 %v9014
    %v9275 = vunpack.c.l.b16 %v9015
    %v9276 = vunpack.c.l.b16 %v9016
    %v9277 = vunpack.c.l.b16 %v9017
    %v9278 = vunpack.c.l.b16 %v9018
    %v9279 = vunpack.c.l.b16 %v9019
    %v9280 = vunpack.c.l.b16 %v9020
    %v9281 = vunpack.c.l.b16 %v9021
    %v9282 = vunpack.c.l.b16 %v9022
    %v9283 = vunpack.c.l.b16 %v9023
    %v9284 = vunpack.c.l.b16 %v9024
    %v9285 = vunpack.c.l.b16 %v9025
    %v9286 = vunpack.c.l.b16 %v9026
    %v9287 = vunpack.c.l.b16 %v9027
    %v9288 = vunpack.c.l.b16 %v9028
    %v9289 = vunpack.c.l.b16 %v9029
    %v9290 = vunpack.c.l.b16 %v9030
    %v9291 = vunpack.c.l.b16 %v9031
    %v9292 = vunpack.c.l.b16 %v9032
    %v9293 = vunpack.c.l.b16 %v9033
    %v9294 = vunpack.c.l.b16 %v9034
    %v9295 = vunpack.c.l.b16 %v9035
    %v9296 = vunpack.c.l.b16 %v9036
    %v9297 = vpack.c.b16 %v9170, %v9169
    %v9298 = vpack.c.b16 %v9172, %v9171
    %v9299 = vpack.c.b16 %v9174, %v9173
    %v9300 = vpack.c.b16 %v9176, %v9175
    %v9301 = vpack.c.b16 %v9178, %v9177
    %v9302 = vpack.c.b16 %v9180, %v9179
    %v9303 = vpack.c.b16 %v9182, %v9181
    %v9304 = vpack.c.b16 %v9184, %v9183
    %v9305 = vpack.c.b16 %v9186, %v9185
    %v9306 = vpack.c.b16 %v9188, %v9187
    %v9307 = vpack.c.b16 %v9190, %v9189
    %v9308 = vpack.c.b16 %v9192, %v9191
    %v9309 = vpack.c.b16 %v9194, %v9193
    %v9310 = vpack.c.b16 %v9196, %v9195
    %v9311 = vpack.c.b16 %v9198, %v9197
    %v9312 = vpack.c.b16 %v9200, %v9199
    %v9313 = vpack.c.b16 %v9202, %v9201
    %v9314 = vpack.c.b16 %v9204, %v9203
    %v9315 = vpack.c.b16 %v9206, %v9205
    %v9316 = vpack.c.b16 %v9208, %v9207
    %v9317 = vpack.c.b16 %v9210, %v9209
    %v9318 = vpack.c.b16 %v9212, %v9211
    %v9319 = vpack.c.b16 %v9214, %v9213
    %v9320 = vpack.c.b16 %v9216, %v9215
    %v9321 = vpack.c.b16 %v9218, %v9217
    %v9322 = vpack.c.b16 %v9220, %v9219
    %v9323 = vpack.c.b16 %v9222, %v9221
    %v9324 = vpack.c.b16 %v9224, %v9223
    %v9325 = vpack.c.b16 %v9226, %v9225
    %v9326 = vpack.c.b16 %v9228, %v9227
    %v9327 = vpack.c.b16 %v9230, %v9229
    %v9328 = vpack.c.b16 %v9232, %v9231
    %v9329 = vpack.c.b16 %v9234, %v9233
    %v9330 = vpack.c.b16 %v9236, %v9235
    %v9331 = vpack.c.b16 %v9238, %v9237
    %v9332 = vpack.c.b16 %v9240, %v9239
    %v9333 = vpack.c.b16 %v9242, %v9241
    %v9334 = vpack.c.b16 %v9244, %v9243
    %v9335 = vpack.c.b16 %v9246, %v9245
    %v9336 = vpack.c.b16 %v9248, %v9247
    %v9337 = vpack.c.b16 %v9250, %v9249
    %v9338 = vpack.c.b16 %v9252, %v9251
    %v9339 = vpack.c.b16 %v9254, %v9253
    %v9340 = vpack.c.b16 %v9256, %v9255
    %v9341 = vpack.c.b16 %v9258, %v9257
    %v9342 = vpack.c.b16 %v9260, %v9259
    %v9343 = vpack.c.b16 %v9262, %v9261
    %v9344 = vpack.c.b16 %v9264, %v9263
    %v9345 = vpack.c.b16 %v9266, %v9265
    %v9346 = vpack.c.b16 %v9268, %v9267
    %v9347 = vpack.c.b16 %v9270, %v9269
    %v9348 = vpack.c.b16 %v9272, %v9271
    %v9349 = vpack.c.b16 %v9274, %v9273
    %v9350 = vpack.c.b16 %v9276, %v9275
    %v9351 = vpack.c.b16 %v9278, %v9277
    %v9352 = vpack.c.b16 %v9280, %v9279
    %v9353 = vpack.c.b16 %v9282, %v9281
    %v9354 = vpack.c.b16 %v9284, %v9283
    %v9355 = vpack.c.b16 %v9286, %v9285
    %v9356 = vpack.c.b16 %v9288, %v9287
    %v9357 = vpack.c.b16 %v9290, %v9289
    %v9358 = vpack.c.b16 %v9292, %v9291
    %v9359 = vpack.c.b16 %v9294, %v9293
    %v9360 = vpack.c.b16 %v9296, %v9295
    %9425 = vmatpush.bf16.msra.mxu0 %v9304
    %9426 = vmatpush.bf16.msra.mxu0 %v9303
    %9427 = vmatpush.bf16.msra.mxu0 %v9302
    %9428 = vmatpush.bf16.msra.mxu0 %v9301
    %9429 = vmatpush.bf16.msra.mxu0 %v9300
    %9430 = vmatpush.bf16.msra.mxu0 %v9299
    %9431 = vmatpush.bf16.msra.mxu0 %v9298
    %9432 = vmatpush.bf16.msra.mxu0 %v9297
    %9433 = vmatmul.bf16.gmra.mxu0 %v8901
    %v9434 = vpop.f32.mrf.mxu0
    %v9435 = vadd.f32 %v9039, %v9434
    %v9436 = vpop.f32.mrf.mxu0
    %9437 = vdwg.mxu0
    %9438 = vmatpush.bf16.msra.mxu0 %v9312
    %9439 = vmatpush.bf16.msra.mxu0 %v9311
    %9440 = vmatpush.bf16.msra.mxu0 %v9310
    %9441 = vmatpush.bf16.msra.mxu0 %v9309
    %9442 = vmatpush.bf16.msra.mxu0 %v9308
    %9443 = vmatpush.bf16.msra.mxu0 %v9307
    %9444 = vmatpush.bf16.msra.mxu0 %v9306
    %9445 = vmatpush.bf16.msra.mxu0 %v9305
    %9446 = vmatmul.bf16.gmra.mxu0 %v8902
    %v9447 = vpop.f32.mrf.mxu0
    %v9448 = vadd.f32 %v9435, %v9447
    %v9449 = vpop.f32.mrf.mxu0
    %9450 = vdwg.mxu0
    %9451 = vmatpush.bf16.msra.mxu0 %v9320
    %9452 = vmatpush.bf16.msra.mxu0 %v9319
    %9453 = vmatpush.bf16.msra.mxu0 %v9318
    %9454 = vmatpush.bf16.msra.mxu0 %v9317
    %9455 = vmatpush.bf16.msra.mxu0 %v9316
    %9456 = vmatpush.bf16.msra.mxu0 %v9315
    %9457 = vmatpush.bf16.msra.mxu0 %v9314
    %9458 = vmatpush.bf16.msra.mxu0 %v9313
    %9459 = vmatmul.bf16.gmra.mxu0 %v8903
    %v9460 = vpop.f32.mrf.mxu0
    %v9461 = vadd.f32 %v9448, %v9460
    %v9462 = vpop.f32.mrf.mxu0
    %9463 = vdwg.mxu0
    %9464 = vmatpush.bf16.msra.mxu0 %v9328
    %9465 = vmatpush.bf16.msra.mxu0 %v9327
    %9466 = vmatpush.bf16.msra.mxu0 %v9326
    %9467 = vmatpush.bf16.msra.mxu0 %v9325
    %9468 = vmatpush.bf16.msra.mxu0 %v9324
    %9469 = vmatpush.bf16.msra.mxu0 %v9323
    %9470 = vmatpush.bf16.msra.mxu0 %v9322
    %9471 = vmatpush.bf16.msra.mxu0 %v9321
    %9472 = vmatmul.bf16.gmra.mxu0 %v8904
    %v9473 = vpop.f32.mrf.mxu0
    %v9474 = vadd.f32 %v9461, %v9473
    %v9475 = vpop.f32.mrf.mxu0
    %9476 = vdwg.mxu0
    %9477 = vmatpush.bf16.msra.mxu0 %v9336
    %9478 = vmatpush.bf16.msra.mxu0 %v9335
    %9479 = vmatpush.bf16.msra.mxu0 %v9334
    %9480 = vmatpush.bf16.msra.mxu0 %v9333
    %9481 = vmatpush.bf16.msra.mxu0 %v9332
    %9482 = vmatpush.bf16.msra.mxu0 %v9331
    %9483 = vmatpush.bf16.msra.mxu0 %v9330
    %9484 = vmatpush.bf16.msra.mxu0 %v9329
    %9485 = vmatmul.bf16.gmra.mxu0 %v8905
    %v9486 = vpop.f32.mrf.mxu0
    %v9487 = vadd.f32 %v9474, %v9486
    %v9488 = vpop.f32.mrf.mxu0
    %9489 = vdwg.mxu0
    %9490 = vmatpush.bf16.msra.mxu0 %v9344
    %9491 = vmatpush.bf16.msra.mxu0 %v9343
    %9492 = vmatpush.bf16.msra.mxu0 %v9342
    %9493 = vmatpush.bf16.msra.mxu0 %v9341
    %9494 = vmatpush.bf16.msra.mxu0 %v9340
    %9495 = vmatpush.bf16.msra.mxu0 %v9339
    %9496 = vmatpush.bf16.msra.mxu0 %v9338
    %9497 = vmatpush.bf16.msra.mxu0 %v9337
    %9498 = vmatmul.bf16.gmra.mxu0 %v8906
    %v9499 = vpop.f32.mrf.mxu0
    %v9500 = vadd.f32 %v9487, %v9499
    %v9501 = vpop.f32.mrf.mxu0
    %9502 = vdwg.mxu0
    %9503 = vmatpush.bf16.msra.mxu0 %v9352
    %9504 = vmatpush.bf16.msra.mxu0 %v9351
    %9505 = vmatpush.bf16.msra.mxu0 %v9350
    %9506 = vmatpush.bf16.msra.mxu0 %v9349
    %9507 = vmatpush.bf16.msra.mxu0 %v9348
    %9508 = vmatpush.bf16.msra.mxu0 %v9347
    %9509 = vmatpush.bf16.msra.mxu0 %v9346
    %9510 = vmatpush.bf16.msra.mxu0 %v9345
    %9511 = vmatmul.bf16.gmra.mxu0 %v8907
    %v9512 = vpop.f32.mrf.mxu0
    %v9513 = vadd.f32 %v9500, %v9512
    %v9514 = vpop.f32.mrf.mxu0
    %9515 = vdwg.mxu0
    %9516 = vmatpush.bf16.msra.mxu0 %v9360
    %9517 = vmatpush.bf16.msra.mxu0 %v9359
    %9518 = vmatpush.bf16.msra.mxu0 %v9358
    %9519 = vmatpush.bf16.msra.mxu0 %v9357
    %9520 = vmatpush.bf16.msra.mxu0 %v9356
    %9521 = vmatpush.bf16.msra.mxu0 %v9355
    %9522 = vmatpush.bf16.msra.mxu0 %v9354
    %9523 = vmatpush.bf16.msra.mxu0 %v9353
    %9524 = vmatmul.bf16.gmra.mxu0 %v8908
    %v9525 = vpop.f32.mrf.mxu0
    %v9526 = vadd.f32 %v9513, %v9525
    %v9527 = vpop.f32.mrf.mxu0
    %9528 = vdwg.mxu0
    %9530 = vset.pattern.permute.xlu0 6
    %9531 = vperm.xlu0 %9530, %v9526
    %v9532 = vpop.permute.xlu0 %9531
    %v9534 = vadd.f32 %v9532, %v9526
    %vm9535 = vcmask 41984
    %v9536 = vsel %vm9535, %v9526, 0.0
    %9537 = vadd.xlane.f32.xlu0 %v9536
    %v9538 = vpop.xlane.xlu0 %9537
    %v9539 = vrcp.pop 6.0
    %v9540 = vmul.f32 6.0, %v9539
    %v9541 = vsub.f32 1.0, %v9540
    %v9542 = vmul.f32 %v9539, %v9541
    %v9543 = vadd.f32 %v9539, %v9542
    %vm9544 = vweird.f32 %v9539
    %v9545 = vsel %vm9544, %v9539, %v9543
    %v9546 = vmul.f32 %v9538, %v9545
    %v9547 = vsub.f32 %v9534, %v9546
    %9548 = vst.msk [vmem:[#allocation2] sm:$0x3] %vm9535, %v9547
    // Predicated region
    $region22: #{dueling_dqn_forward.7} parent=1 // pred_check
      _
    $region23: #{dueling_dqn_forward.7} parent=1 // pred_check_branch
      %9550 = sbr.rel (0) target = $region25
    $region24: #{dueling_dqn_forward.7} parent=1 // pred_region
      %9552 = vsyncadd [#allocation3], 0
      %s9554 = sshll.u32 [#allocation2], 4
      %s9555 = int_to_ptr.vmem [resolvable:$true] %s9554
      %s9556 = sshll.u32 %s5, 4
      %s9557 = int_to_ptr.hbm [resolvable:$true] %s9556
      %9559 = dma.vmem_to_hbm [thread:$0]  %s9555, 32, %s9557, [#allocation3]
    $region25: #{dueling_dqn_forward.7} parent=1 // pred_fallthru
      _
    // Predicated region
    $region26: #{dueling_dqn_forward.7} parent=1 // pred_check
      _
    $region27: #{dueling_dqn_forward.7} parent=1 // pred_check_branch
      %9561 = sbr.rel (0) target = $region29
    $region28: #{dueling_dqn_forward.7} parent=1 // pred_region
      %9563 = dma.done [#allocation3], 32
    $region29: #{dueling_dqn_forward.7} parent=1 // pred_fallthru
      _
    %9564 = vsyncpa [#allocation3], 1

</llo_original>
